<compile_context>
chip_gen: v6e
topology: v6e:2x2x1
jax: 0.10.0
libtpu: 0.0.40
codegen_flags: <defaults>
</compile_context>

<pallas_src>
import functools

import jax
import jax.numpy as jnp
import numpy as np
from jax.experimental import pallas as pl
from jax.experimental.pallas import tpu as pltpu

BN_EPS = 1e-5


# ---------------------------------------------------------------------------
# Fused kernel: conv3x3 -> bn1 -> relu -> bn2 -> (+identity) -> bn2 -> relu
# ---------------------------------------------------------------------------
def _resnet_block_kernel(xpad_ref, xid_ref, w_ref, bnp_ref, o_ref, *,
                         n, h, w, eps):
    c_in = xpad_ref.shape[-1]
    rows = n * h * w

    # ---- 3x3 conv (padding=1, stride=1, no bias) as 9 shifted MXU matmuls ----
    # bf16 operands, fp32 accumulation directly into the resident output block.
    first = True
    for dh in range(3):
        for dw in range(3):
            xs = xpad_ref[:, dh:dh + h, dw:dw + w, :]        # (n, h, w, c_in) bf16
            xs2 = xs.reshape(rows, c_in)                     # lane dim unchanged
            wk = w_ref[dh, dw]                               # (c_in, tc) bf16
            part = jnp.dot(xs2, wk, preferred_element_type=jnp.float32)
            if first:
                o_ref[...] = part
                first = False
            else:
                o_ref[...] += part

    # ---- epilogue (fp32) ----
    g1 = bnp_ref[0:1, :]
    b1 = bnp_ref[1:2, :]
    g2 = bnp_ref[2:3, :]
    b2 = bnp_ref[3:4, :]

    def bn(z, g, b):
        # BatchNorm2d training-mode: per-channel stats over N*H*W, biased variance.
        mean = jnp.mean(z, axis=0, keepdims=True)
        var = jnp.mean(jnp.square(z - mean), axis=0, keepdims=True)
        return (z - mean) * jax.lax.rsqrt(var + eps) * g + b

    z = o_ref[...]                                           # conv result, fp32
    z = jnp.maximum(bn(z, g1, b1), 0.0)                      # bn1 -> relu
    z = bn(z, g2, b2)                                        # bn2
    z = z + xid_ref[...].astype(jnp.float32)                 # + identity
    z = bn(z, g2, b2)                                        # bn2 again (fresh stats)
    o_ref[...] = jnp.maximum(z, 0.0)                         # final relu


# ---------------------------------------------------------------------------
# Wrapper: layout plumbing + pallas_call
# ---------------------------------------------------------------------------
def resnet_block_forward(params, x_nchw, *, stride=1, eps=BN_EPS):
    n, c_in, h, w = x_nchw.shape
    c_out = params['conv1_w'].shape[-1]
    if stride != 1 or c_in != c_out:
        # TODO(synk): projection shortcut (original uses a fresh random 1x1 conv per call).
        raise NotImplementedError("only stride=1, inC==outC identity shortcut")

    rows = n * h * w
    # Output-channel block size; full batch/spatial stays in-block for exact BN stats.
    tc = c_out if c_out <= 256 else 256
    assert c_out % tc == 0 and (tc == c_out or tc % 128 == 0)

    # bf16 activation streams (weights already bf16 from init).
    x_nhwc = jnp.transpose(x_nchw, (0, 2, 3, 1)).astype(jnp.bfloat16)
    x_pad = jnp.pad(x_nhwc, ((0, 0), (1, 1), (1, 1), (0, 0)))       # (n, h+2, w+2, c)
    x_id = x_nhwc.reshape(rows, c_in)                               # identity slab

    kernel = functools.partial(_resnet_block_kernel, n=n, h=h, w=w, eps=eps)

    out2d = pl.pallas_call(
        kernel,
        out_shape=jax.ShapeDtypeStruct((rows, c_out), jnp.float32),
        grid_spec=pltpu.PrefetchScalarGridSpec(
            num_scalar_prefetch=0,
            grid=(c_out // tc,),
            in_specs=[
                # zero-padded input, all channels (needed by every output block)
                pl.BlockSpec((n, h + 2, w + 2, c_in), lambda j: (0, 0, 0, 0)),
                # identity (flattened), channel-blocked
                pl.BlockSpec((rows, tc), lambda j: (0, j)),
                # conv1 weight (kh, kw, c_in, c_out), channel-blocked on c_out
                pl.BlockSpec((3, 3, c_in, tc), lambda j: (0, 0, 0, j)),
                # packed BN params [gamma1; beta1; gamma2; beta2]
                pl.BlockSpec((4, tc), lambda j: (0, j)),
            ],
            out_specs=pl.BlockSpec((rows, tc), lambda j: (0, j)),
        ),
        compiler_params=pltpu.CompilerParams(
            dimension_semantics=("parallel",)),
    )(x_pad, x_id, params['conv1_w'], params['bn_packed'])

    return jnp.transpose(out2d.reshape(n, h, w, c_out), (0, 3, 1, 2))


# ---------------------------------------------------------------------------
# Parameter construction (PyTorch-style init; weights cast to bf16 once, here)
# ---------------------------------------------------------------------------
def init_params(key, c_in, c_out):
    k_w, k_g1, k_b1, k_g2, k_b2 = jax.random.split(key, 5)
    fan_in = c_in * 9
    bound = 1.0 / np.sqrt(fan_in)
    # Stored as (kh, kw, c_in, c_out); PyTorch's (c_out, c_in, kh, kw) would need
    # a transpose when importing real weights.
    w = jax.random.uniform(k_w, (3, 3, c_in, c_out), jnp.float32, -bound, bound)
    # PyTorch BatchNorm default is gamma=1, beta=0; perturb slightly so the
    # affine path is actually exercised by the correctness check.
    g1 = 1.0 + 0.1 * jax.random.normal(k_g1, (c_out,), jnp.float32)
    b1 = 0.1 * jax.random.normal(k_b1, (c_out,), jnp.float32)
    g2 = 1.0 + 0.1 * jax.random.normal(k_g2, (c_out,), jnp.float32)
    b2 = 0.1 * jax.random.normal(k_b2, (c_out,), jnp.float32)
    return {
        'conv1_w': w.astype(jnp.bfloat16),                     # bf16 weight stream
        'bn_packed': jnp.stack([g1, b1, g2, b2], axis=0),      # (4, c_out) fp32
        'bn1_g': g1, 'bn1_b': b1, 'bn2_g': g2, 'bn2_b': b2,
    }


# ---------------------------------------------------------------------------
# Pure-JAX reference (fp32 math on the same bf16-rounded conv inputs/identity,
# so the only kernel-vs-reference difference is accumulation order)
# ---------------------------------------------------------------------------
def reference_forward(params, x_nchw, *, eps=BN_EPS):
    x = jnp.transpose(x_nchw, (0, 2, 3, 1)).astype(jnp.bfloat16).astype(jnp.float32)
    w = params['conv1_w'].astype(jnp.float32)                  # (3, 3, c_in, c_out)
    conv = jax.lax.conv_general_dilated(
        x, w, window_strides=(1, 1), padding=((1, 1), (1, 1)),
        dimension_numbers=('NHWC', 'HWIO', 'NHWC'),
        precision=jax.lax.Precision.HIGHEST)

    def bn(z, g, b):
        mean = jnp.mean(z, axis=(0, 1, 2), keepdims=True)
        var = jnp.mean(jnp.square(z - mean), axis=(0, 1, 2), keepdims=True)
        return (z - mean) * jax.lax.rsqrt(var + eps) * g + b

    g1, b1 = params['bn1_g'], params['bn1_b']
    g2, b2 = params['bn2_g'], params['bn2_b']
    h = jnp.maximum(bn(conv, g1, b1), 0.0)
    h = bn(h, g2, b2)
    h = h + x
    h = bn(h, g2, b2)
    h = jnp.maximum(h, 0.0)
    return jnp.transpose(h, (0, 3, 1, 2))


if __name__ == "__main__":
    # Small, ResNet-like shapes: batch=2, channels=128 (lane-dense), spatial 16x16.
    N, C, H, W = 2, 128, 16, 16

    key = jax.random.PRNGKey(0)
    k_params, k_x = jax.random.split(key)
    params = init_params(k_params, C, C)
    x = jax.random.normal(k_x, (N, C, H, W), jnp.float32)

    fwd = jax.jit(resnet_block_forward)
    out = jax.block_until_ready(fwd(params, x))
    ref = jax.block_until_ready(reference_forward(params, x))

    assert out.shape == (N, C, H, W)
    assert bool(jnp.all(jnp.isfinite(out)))
    np.testing.assert_allclose(np.asarray(out), np.asarray(ref),
                               rtol=2e-3, atol=2e-3)
    print("KERNEL_OK")
</pallas_src>

<mosaic_0001>
module attributes {stable_mosaic.version = 11 : i64} {
  func.func @_resnet_block_kernel(%arg0: i32, %arg1: memref<2x18x18x128xbf16, #tpu.memory_space<vmem>>, %arg2: memref<512x128xbf16, #tpu.memory_space<vmem>>, %arg3: memref<3x3x128x128xbf16, #tpu.memory_space<vmem>>, %arg4: memref<4x128xf32, #tpu.memory_space<vmem>>, %arg5: memref<512x128xf32, #tpu.memory_space<vmem>>) attributes {dimension_semantics = [#tpu.dimension_semantics<parallel>], iteration_bounds = array<i64: 1>, scalar_prefetch = 0 : i64, scratch_operands = 0 : i64, tpu.core_type = #tpu.core_type<tc>, window_params = [{pipeline_mode = #tpu.pipeline_mode<synchronous>, transform_indices = @transform_0, window_bounds = array<i64: 2, 18, 18, 128>}, {transform_indices = @transform_1, window_bounds = array<i64: 512, 128>}, {transform_indices = @transform_2, window_bounds = array<i64: 3, 3, 128, 128>}, {transform_indices = @transform_3, window_bounds = array<i64: 4, 128>}, {transform_indices = @transform_4, window_bounds = array<i64: 512, 128>}]} {
    %c0 = arith.constant 0 : index
    %c0_0 = arith.constant 0 : index
    %c0_1 = arith.constant 0 : index
    %c0_2 = arith.constant 0 : index
    %0 = vector.load %arg1[%c0, %c0_0, %c0_1, %c0_2] : memref<2x18x18x128xbf16, #tpu.memory_space<vmem>>, vector<2x16x16x128xbf16>
    %1 = vector.shape_cast %0 : vector<2x16x16x128xbf16> to vector<512x128xbf16>
    %c0_3 = arith.constant 0 : index
    %c0_4 = arith.constant 0 : index
    %c0_5 = arith.constant 0 : index
    %c0_6 = arith.constant 0 : index
    %2 = vector.load %arg3[%c0_3, %c0_4, %c0_5, %c0_6] : memref<3x3x128x128xbf16, #tpu.memory_space<vmem>>, vector<1x1x128x128xbf16>
    %3 = vector.shape_cast %2 : vector<1x1x128x128xbf16> to vector<128x128xbf16>
    %cst = arith.constant dense<0.000000e+00> : vector<512x128xf32>
    %4 = tpu.matmul %1, %3, %cst {dimension_numbers = #tpu.dot_dimension_numbers<[1], [0], [0], [1], [0, 0, 1, 1], [], []>} : vector<512x128xbf16>, vector<128x128xbf16>, vector<512x128xf32> -> vector<512x128xf32>
    %c0_7 = arith.constant 0 : index
    %c0_8 = arith.constant 0 : index
    %5 = vector.load %arg5[%c0_7, %c0_8] : memref<512x128xf32, #tpu.memory_space<vmem>>, vector<512x128xf32>
    tpu.vector_store %arg5[%c0_7, %c0_8], %4 {strides = array<i32>} : memref<512x128xf32, #tpu.memory_space<vmem>>, vector<512x128xf32>,
    %c0_9 = arith.constant 0 : index
    %c0_10 = arith.constant 0 : index
    %c1 = arith.constant 1 : index
    %c0_11 = arith.constant 0 : index
    %6 = vector.load %arg1[%c0_9, %c0_10, %c1, %c0_11] : memref<2x18x18x128xbf16, #tpu.memory_space<vmem>>, vector<2x16x16x128xbf16>
    %7 = vector.shape_cast %6 : vector<2x16x16x128xbf16> to vector<512x128xbf16>
    %c0_12 = arith.constant 0 : index
    %c1_13 = arith.constant 1 : index
    %c0_14 = arith.constant 0 : index
    %c0_15 = arith.constant 0 : index
    %8 = vector.load %arg3[%c0_12, %c1_13, %c0_14, %c0_15] : memref<3x3x128x128xbf16, #tpu.memory_space<vmem>>, vector<1x1x128x128xbf16>
    %9 = vector.shape_cast %8 : vector<1x1x128x128xbf16> to vector<128x128xbf16>
    %cst_16 = arith.constant dense<0.000000e+00> : vector<512x128xf32>
    %10 = tpu.matmul %7, %9, %cst_16 {dimension_numbers = #tpu.dot_dimension_numbers<[1], [0], [0], [1], [0, 0, 1, 1], [], []>} : vector<512x128xbf16>, vector<128x128xbf16>, vector<512x128xf32> -> vector<512x128xf32>
    %c0_17 = arith.constant 0 : index
    %c0_18 = arith.constant 0 : index
    %11 = vector.load %arg5[%c0_17, %c0_18] : memref<512x128xf32, #tpu.memory_space<vmem>>, vector<512x128xf32>
    %12 = arith.addf %11, %10 : vector<512x128xf32>
    %c0_19 = arith.constant 0 : index
    %c0_20 = arith.constant 0 : index
    %13 = vector.load %arg5[%c0_19, %c0_20] : memref<512x128xf32, #tpu.memory_space<vmem>>, vector<512x128xf32>
    tpu.vector_store %arg5[%c0_19, %c0_20], %12 {strides = array<i32>} : memref<512x128xf32, #tpu.memory_space<vmem>>, vector<512x128xf32>,
    %c0_21 = arith.constant 0 : index
    %c0_22 = arith.constant 0 : index
    %c2 = arith.constant 2 : index
    %c0_23 = arith.constant 0 : index
    %14 = vector.load %arg1[%c0_21, %c0_22, %c2, %c0_23] : memref<2x18x18x128xbf16, #tpu.memory_space<vmem>>, vector<2x16x16x128xbf16>
    %15 = vector.shape_cast %14 : vector<2x16x16x128xbf16> to vector<512x128xbf16>
    %c0_24 = arith.constant 0 : index
    %c2_25 = arith.constant 2 : index
    %c0_26 = arith.constant 0 : index
    %c0_27 = arith.constant 0 : index
    %16 = vector.load %arg3[%c0_24, %c2_25, %c0_26, %c0_27] : memref<3x3x128x128xbf16, #tpu.memory_space<vmem>>, vector<1x1x128x128xbf16>
    %17 = vector.shape_cast %16 : vector<1x1x128x128xbf16> to vector<128x128xbf16>
    %cst_28 = arith.constant dense<0.000000e+00> : vector<512x128xf32>
    %18 = tpu.matmul %15, %17, %cst_28 {dimension_numbers = #tpu.dot_dimension_numbers<[1], [0], [0], [1], [0, 0, 1, 1], [], []>} : vector<512x128xbf16>, vector<128x128xbf16>, vector<512x128xf32> -> vector<512x128xf32>
    %c0_29 = arith.constant 0 : index
    %c0_30 = arith.constant 0 : index
    %19 = vector.load %arg5[%c0_29, %c0_30] : memref<512x128xf32, #tpu.memory_space<vmem>>, vector<512x128xf32>
    %20 = arith.addf %19, %18 : vector<512x128xf32>
    %c0_31 = arith.constant 0 : index
    %c0_32 = arith.constant 0 : index
    %21 = vector.load %arg5[%c0_31, %c0_32] : memref<512x128xf32, #tpu.memory_space<vmem>>, vector<512x128xf32>
    tpu.vector_store %arg5[%c0_31, %c0_32], %20 {strides = array<i32>} : memref<512x128xf32, #tpu.memory_space<vmem>>, vector<512x128xf32>,
    %c0_33 = arith.constant 0 : index
    %c1_34 = arith.constant 1 : index
    %c0_35 = arith.constant 0 : index
    %c0_36 = arith.constant 0 : index
    %22 = vector.load %arg1[%c0_33, %c1_34, %c0_35, %c0_36] : memref<2x18x18x128xbf16, #tpu.memory_space<vmem>>, vector<2x16x16x128xbf16>
    %23 = vector.shape_cast %22 : vector<2x16x16x128xbf16> to vector<512x128xbf16>
    %c1_37 = arith.constant 1 : index
    %c0_38 = arith.constant 0 : index
    %c0_39 = arith.constant 0 : index
    %c0_40 = arith.constant 0 : index
    %24 = vector.load %arg3[%c1_37, %c0_38, %c0_39, %c0_40] : memref<3x3x128x128xbf16, #tpu.memory_space<vmem>>, vector<1x1x128x128xbf16>
    %25 = vector.shape_cast %24 : vector<1x1x128x128xbf16> to vector<128x128xbf16>
    %cst_41 = arith.constant dense<0.000000e+00> : vector<512x128xf32>
    %26 = tpu.matmul %23, %25, %cst_41 {dimension_numbers = #tpu.dot_dimension_numbers<[1], [0], [0], [1], [0, 0, 1, 1], [], []>} : vector<512x128xbf16>, vector<128x128xbf16>, vector<512x128xf32> -> vector<512x128xf32>
    %c0_42 = arith.constant 0 : index
    %c0_43 = arith.constant 0 : index
    %27 = vector.load %arg5[%c0_42, %c0_43] : memref<512x128xf32, #tpu.memory_space<vmem>>, vector<512x128xf32>
    %28 = arith.addf %27, %26 : vector<512x128xf32>
    %c0_44 = arith.constant 0 : index
    %c0_45 = arith.constant 0 : index
    %29 = vector.load %arg5[%c0_44, %c0_45] : memref<512x128xf32, #tpu.memory_space<vmem>>, vector<512x128xf32>
    tpu.vector_store %arg5[%c0_44, %c0_45], %28 {strides = array<i32>} : memref<512x128xf32, #tpu.memory_space<vmem>>, vector<512x128xf32>,
    %c0_46 = arith.constant 0 : index
    %c1_47 = arith.constant 1 : index
    %c1_48 = arith.constant 1 : index
    %c0_49 = arith.constant 0 : index
    %30 = vector.load %arg1[%c0_46, %c1_47, %c1_48, %c0_49] : memref<2x18x18x128xbf16, #tpu.memory_space<vmem>>, vector<2x16x16x128xbf16>
    %31 = vector.shape_cast %30 : vector<2x16x16x128xbf16> to vector<512x128xbf16>
    %c1_50 = arith.constant 1 : index
    %c1_51 = arith.constant 1 : index
    %c0_52 = arith.constant 0 : index
    %c0_53 = arith.constant 0 : index
    %32 = vector.load %arg3[%c1_50, %c1_51, %c0_52, %c0_53] : memref<3x3x128x128xbf16, #tpu.memory_space<vmem>>, vector<1x1x128x128xbf16>
    %33 = vector.shape_cast %32 : vector<1x1x128x128xbf16> to vector<128x128xbf16>
    %cst_54 = arith.constant dense<0.000000e+00> : vector<512x128xf32>
    %34 = tpu.matmul %31, %33, %cst_54 {dimension_numbers = #tpu.dot_dimension_numbers<[1], [0], [0], [1], [0, 0, 1, 1], [], []>} : vector<512x128xbf16>, vector<128x128xbf16>, vector<512x128xf32> -> vector<512x128xf32>
    %c0_55 = arith.constant 0 : index
    %c0_56 = arith.constant 0 : index
    %35 = vector.load %arg5[%c0_55, %c0_56] : memref<512x128xf32, #tpu.memory_space<vmem>>, vector<512x128xf32>
    %36 = arith.addf %35, %34 : vector<512x128xf32>
    %c0_57 = arith.constant 0 : index
    %c0_58 = arith.constant 0 : index
    %37 = vector.load %arg5[%c0_57, %c0_58] : memref<512x128xf32, #tpu.memory_space<vmem>>, vector<512x128xf32>
    tpu.vector_store %arg5[%c0_57, %c0_58], %36 {strides = array<i32>} : memref<512x128xf32, #tpu.memory_space<vmem>>, vector<512x128xf32>,
    %c0_59 = arith.constant 0 : index
    %c1_60 = arith.constant 1 : index
    %c2_61 = arith.constant 2 : index
    %c0_62 = arith.constant 0 : index
    %38 = vector.load %arg1[%c0_59, %c1_60, %c2_61, %c0_62] : memref<2x18x18x128xbf16, #tpu.memory_space<vmem>>, vector<2x16x16x128xbf16>
    %39 = vector.shape_cast %38 : vector<2x16x16x128xbf16> to vector<512x128xbf16>
    %c1_63 = arith.constant 1 : index
    %c2_64 = arith.constant 2 : index
    %c0_65 = arith.constant 0 : index
    %c0_66 = arith.constant 0 : index
    %40 = vector.load %arg3[%c1_63, %c2_64, %c0_65, %c0_66] : memref<3x3x128x128xbf16, #tpu.memory_space<vmem>>, vector<1x1x128x128xbf16>
    %41 = vector.shape_cast %40 : vector<1x1x128x128xbf16> to vector<128x128xbf16>
    %cst_67 = arith.constant dense<0.000000e+00> : vector<512x128xf32>
    %42 = tpu.matmul %39, %41, %cst_67 {dimension_numbers = #tpu.dot_dimension_numbers<[1], [0], [0], [1], [0, 0, 1, 1], [], []>} : vector<512x128xbf16>, vector<128x128xbf16>, vector<512x128xf32> -> vector<512x128xf32>
    %c0_68 = arith.constant 0 : index
    %c0_69 = arith.constant 0 : index
    %43 = vector.load %arg5[%c0_68, %c0_69] : memref<512x128xf32, #tpu.memory_space<vmem>>, vector<512x128xf32>
    %44 = arith.addf %43, %42 : vector<512x128xf32>
    %c0_70 = arith.constant 0 : index
    %c0_71 = arith.constant 0 : index
    %45 = vector.load %arg5[%c0_70, %c0_71] : memref<512x128xf32, #tpu.memory_space<vmem>>, vector<512x128xf32>
    tpu.vector_store %arg5[%c0_70, %c0_71], %44 {strides = array<i32>} : memref<512x128xf32, #tpu.memory_space<vmem>>, vector<512x128xf32>,
    %c0_72 = arith.constant 0 : index
    %c2_73 = arith.constant 2 : index
    %c0_74 = arith.constant 0 : index
    %c0_75 = arith.constant 0 : index
    %46 = vector.load %arg1[%c0_72, %c2_73, %c0_74, %c0_75] : memref<2x18x18x128xbf16, #tpu.memory_space<vmem>>, vector<2x16x16x128xbf16>
    %47 = vector.shape_cast %46 : vector<2x16x16x128xbf16> to vector<512x128xbf16>
    %c2_76 = arith.constant 2 : index
    %c0_77 = arith.constant 0 : index
    %c0_78 = arith.constant 0 : index
    %c0_79 = arith.constant 0 : index
    %48 = vector.load %arg3[%c2_76, %c0_77, %c0_78, %c0_79] : memref<3x3x128x128xbf16, #tpu.memory_space<vmem>>, vector<1x1x128x128xbf16>
    %49 = vector.shape_cast %48 : vector<1x1x128x128xbf16> to vector<128x128xbf16>
    %cst_80 = arith.constant dense<0.000000e+00> : vector<512x128xf32>
    %50 = tpu.matmul %47, %49, %cst_80 {dimension_numbers = #tpu.dot_dimension_numbers<[1], [0], [0], [1], [0, 0, 1, 1], [], []>} : vector<512x128xbf16>, vector<128x128xbf16>, vector<512x128xf32> -> vector<512x128xf32>
    %c0_81 = arith.constant 0 : index
    %c0_82 = arith.constant 0 : index
    %51 = vector.load %arg5[%c0_81, %c0_82] : memref<512x128xf32, #tpu.memory_space<vmem>>, vector<512x128xf32>
    %52 = arith.addf %51, %50 : vector<512x128xf32>
    %c0_83 = arith.constant 0 : index
    %c0_84 = arith.constant 0 : index
    %53 = vector.load %arg5[%c0_83, %c0_84] : memref<512x128xf32, #tpu.memory_space<vmem>>, vector<512x128xf32>
    tpu.vector_store %arg5[%c0_83, %c0_84], %52 {strides = array<i32>} : memref<512x128xf32, #tpu.memory_space<vmem>>, vector<512x128xf32>,
    %c0_85 = arith.constant 0 : index
    %c2_86 = arith.constant 2 : index
    %c1_87 = arith.constant 1 : index
    %c0_88 = arith.constant 0 : index
    %54 = vector.load %arg1[%c0_85, %c2_86, %c1_87, %c0_88] : memref<2x18x18x128xbf16, #tpu.memory_space<vmem>>, vector<2x16x16x128xbf16>
    %55 = vector.shape_cast %54 : vector<2x16x16x128xbf16> to vector<512x128xbf16>
    %c2_89 = arith.constant 2 : index
    %c1_90 = arith.constant 1 : index
    %c0_91 = arith.constant 0 : index
    %c0_92 = arith.constant 0 : index
    %56 = vector.load %arg3[%c2_89, %c1_90, %c0_91, %c0_92] : memref<3x3x128x128xbf16, #tpu.memory_space<vmem>>, vector<1x1x128x128xbf16>
    %57 = vector.shape_cast %56 : vector<1x1x128x128xbf16> to vector<128x128xbf16>
    %cst_93 = arith.constant dense<0.000000e+00> : vector<512x128xf32>
    %58 = tpu.matmul %55, %57, %cst_93 {dimension_numbers = #tpu.dot_dimension_numbers<[1], [0], [0], [1], [0, 0, 1, 1], [], []>} : vector<512x128xbf16>, vector<128x128xbf16>, vector<512x128xf32> -> vector<512x128xf32>
    %c0_94 = arith.constant 0 : index
    %c0_95 = arith.constant 0 : index
    %59 = vector.load %arg5[%c0_94, %c0_95] : memref<512x128xf32, #tpu.memory_space<vmem>>, vector<512x128xf32>
    %60 = arith.addf %59, %58 : vector<512x128xf32>
    %c0_96 = arith.constant 0 : index
    %c0_97 = arith.constant 0 : index
    %61 = vector.load %arg5[%c0_96, %c0_97] : memref<512x128xf32, #tpu.memory_space<vmem>>, vector<512x128xf32>
    tpu.vector_store %arg5[%c0_96, %c0_97], %60 {strides = array<i32>} : memref<512x128xf32, #tpu.memory_space<vmem>>, vector<512x128xf32>,
    %c0_98 = arith.constant 0 : index
    %c2_99 = arith.constant 2 : index
    %c2_100 = arith.constant 2 : index
    %c0_101 = arith.constant 0 : index
    %62 = vector.load %arg1[%c0_98, %c2_99, %c2_100, %c0_101] : memref<2x18x18x128xbf16, #tpu.memory_space<vmem>>, vector<2x16x16x128xbf16>
    %63 = vector.shape_cast %62 : vector<2x16x16x128xbf16> to vector<512x128xbf16>
    %c2_102 = arith.constant 2 : index
    %c2_103 = arith.constant 2 : index
    %c0_104 = arith.constant 0 : index
    %c0_105 = arith.constant 0 : index
    %64 = vector.load %arg3[%c2_102, %c2_103, %c0_104, %c0_105] : memref<3x3x128x128xbf16, #tpu.memory_space<vmem>>, vector<1x1x128x128xbf16>
    %65 = vector.shape_cast %64 : vector<1x1x128x128xbf16> to vector<128x128xbf16>
    %cst_106 = arith.constant dense<0.000000e+00> : vector<512x128xf32>
    %66 = tpu.matmul %63, %65, %cst_106 {dimension_numbers = #tpu.dot_dimension_numbers<[1], [0], [0], [1], [0, 0, 1, 1], [], []>} : vector<512x128xbf16>, vector<128x128xbf16>, vector<512x128xf32> -> vector<512x128xf32>
    %c0_107 = arith.constant 0 : index
    %c0_108 = arith.constant 0 : index
    %67 = vector.load %arg5[%c0_107, %c0_108] : memref<512x128xf32, #tpu.memory_space<vmem>>, vector<512x128xf32>
    %68 = arith.addf %67, %66 : vector<512x128xf32>
    %c0_109 = arith.constant 0 : index
    %c0_110 = arith.constant 0 : index
    %69 = vector.load %arg5[%c0_109, %c0_110] : memref<512x128xf32, #tpu.memory_space<vmem>>, vector<512x128xf32>
    tpu.vector_store %arg5[%c0_109, %c0_110], %68 {strides = array<i32>} : memref<512x128xf32, #tpu.memory_space<vmem>>, vector<512x128xf32>,
    %c0_111 = arith.constant 0 : index
    %c0_112 = arith.constant 0 : index
    %70 = vector.load %arg4[%c0_111, %c0_112] : memref<4x128xf32, #tpu.memory_space<vmem>>, vector<1x128xf32>
    %c1_113 = arith.constant 1 : index
    %c0_114 = arith.constant 0 : index
    %71 = vector.load %arg4[%c1_113, %c0_114] : memref<4x128xf32, #tpu.memory_space<vmem>>, vector<1x128xf32>
    %c2_115 = arith.constant 2 : index
    %c0_116 = arith.constant 0 : index
    %72 = vector.load %arg4[%c2_115, %c0_116] : memref<4x128xf32, #tpu.memory_space<vmem>>, vector<1x128xf32>
    %c3 = arith.constant 3 : index
    %c0_117 = arith.constant 0 : index
    %73 = vector.load %arg4[%c3, %c0_117] : memref<4x128xf32, #tpu.memory_space<vmem>>, vector<1x128xf32>
    %c0_118 = arith.constant 0 : index
    %c0_119 = arith.constant 0 : index
    %74 = vector.load %arg5[%c0_118, %c0_119] : memref<512x128xf32, #tpu.memory_space<vmem>>, vector<512x128xf32>
    %cst_120 = arith.constant dense<0.000000e+00> : vector<128xf32>
    %75 = vector.multi_reduction <add>, %74, %cst_120 [0] : vector<512x128xf32> to vector<128xf32>
    %76 = vector.shape_cast %75 : vector<128xf32> to vector<1x128xf32>
    %cst_121 = arith.constant 5.120000e+02 : f32
    %77 = vector.broadcast %cst_121 : f32 to vector<1x128xf32>
    %78 = arith.divf %76, %77 : vector<1x128xf32>
    %79 = vector.broadcast %78 : vector<1x128xf32> to vector<512x128xf32>
    %80 = arith.subf %74, %79 : vector<512x128xf32>
    %81 = arith.mulf %80, %80 : vector<512x128xf32>
    %cst_122 = arith.constant dense<0.000000e+00> : vector<128xf32>
    %82 = vector.multi_reduction <add>, %81, %cst_122 [0] : vector<512x128xf32> to vector<128xf32>
    %83 = vector.shape_cast %82 : vector<128xf32> to vector<1x128xf32>
    %cst_123 = arith.constant 5.120000e+02 : f32
    %84 = vector.broadcast %cst_123 : f32 to vector<1x128xf32>
    %85 = arith.divf %83, %84 : vector<1x128xf32>
    %86 = vector.broadcast %78 : vector<1x128xf32> to vector<512x128xf32>
    %87 = arith.subf %74, %86 : vector<512x128xf32>
    %cst_124 = arith.constant 9.99999974E-6 : f32
    %88 = vector.broadcast %cst_124 : f32 to vector<1x128xf32>
    %89 = arith.addf %85, %88 : vector<1x128xf32>
    %90 = math.rsqrt %89 : vector<1x128xf32>
    %91 = vector.broadcast %90 : vector<1x128xf32> to vector<512x128xf32>
    %92 = arith.mulf %87, %91 : vector<512x128xf32>
    %93 = vector.broadcast %70 : vector<1x128xf32> to vector<512x128xf32>
    %94 = arith.mulf %92, %93 : vector<512x128xf32>
    %95 = vector.broadcast %71 : vector<1x128xf32> to vector<512x128xf32>
    %96 = arith.addf %94, %95 : vector<512x128xf32>
    %cst_125 = arith.constant 0.000000e+00 : f32
    %97 = vector.broadcast %cst_125 : f32 to vector<512x128xf32>
    %98 = arith.maximumf %96, %97 : vector<512x128xf32>
    %cst_126 = arith.constant dense<0.000000e+00> : vector<128xf32>
    %99 = vector.multi_reduction <add>, %98, %cst_126 [0] : vector<512x128xf32> to vector<128xf32>
    %100 = vector.shape_cast %99 : vector<128xf32> to vector<1x128xf32>
    %cst_127 = arith.constant 5.120000e+02 : f32
    %101 = vector.broadcast %cst_127 : f32 to vector<1x128xf32>
    %102 = arith.divf %100, %101 : vector<1x128xf32>
    %103 = vector.broadcast %102 : vector<1x128xf32> to vector<512x128xf32>
    %104 = arith.subf %98, %103 : vector<512x128xf32>
    %105 = arith.mulf %104, %104 : vector<512x128xf32>
    %cst_128 = arith.constant dense<0.000000e+00> : vector<128xf32>
    %106 = vector.multi_reduction <add>, %105, %cst_128 [0] : vector<512x128xf32> to vector<128xf32>
    %107 = vector.shape_cast %106 : vector<128xf32> to vector<1x128xf32>
    %cst_129 = arith.constant 5.120000e+02 : f32
    %108 = vector.broadcast %cst_129 : f32 to vector<1x128xf32>
    %109 = arith.divf %107, %108 : vector<1x128xf32>
    %110 = vector.broadcast %102 : vector<1x128xf32> to vector<512x128xf32>
    %111 = arith.subf %98, %110 : vector<512x128xf32>
    %cst_130 = arith.constant 9.99999974E-6 : f32
    %112 = vector.broadcast %cst_130 : f32 to vector<1x128xf32>
    %113 = arith.addf %109, %112 : vector<1x128xf32>
    %114 = math.rsqrt %113 : vector<1x128xf32>
    %115 = vector.broadcast %114 : vector<1x128xf32> to vector<512x128xf32>
    %116 = arith.mulf %111, %115 : vector<512x128xf32>
    %117 = vector.broadcast %72 : vector<1x128xf32> to vector<512x128xf32>
    %118 = arith.mulf %116, %117 : vector<512x128xf32>
    %119 = vector.broadcast %73 : vector<1x128xf32> to vector<512x128xf32>
    %120 = arith.addf %118, %119 : vector<512x128xf32>
    %c0_131 = arith.constant 0 : index
    %c0_132 = arith.constant 0 : index
    %121 = vector.load %arg2[%c0_131, %c0_132] : memref<512x128xbf16, #tpu.memory_space<vmem>>, vector<512x128xbf16>
    %122 = arith.extf %121 : vector<512x128xbf16> to vector<512x128xf32>
    %123 = arith.addf %120, %122 : vector<512x128xf32>
    %cst_133 = arith.constant dense<0.000000e+00> : vector<128xf32>
    %124 = vector.multi_reduction <add>, %123, %cst_133 [0] : vector<512x128xf32> to vector<128xf32>
    %125 = vector.shape_cast %124 : vector<128xf32> to vector<1x128xf32>
    %cst_134 = arith.constant 5.120000e+02 : f32
    %126 = vector.broadcast %cst_134 : f32 to vector<1x128xf32>
    %127 = arith.divf %125, %126 : vector<1x128xf32>
    %128 = vector.broadcast %127 : vector<1x128xf32> to vector<512x128xf32>
    %129 = arith.subf %123, %128 : vector<512x128xf32>
    %130 = arith.mulf %129, %129 : vector<512x128xf32>
    %cst_135 = arith.constant dense<0.000000e+00> : vector<128xf32>
    %131 = vector.multi_reduction <add>, %130, %cst_135 [0] : vector<512x128xf32> to vector<128xf32>
    %132 = vector.shape_cast %131 : vector<128xf32> to vector<1x128xf32>
    %cst_136 = arith.constant 5.120000e+02 : f32
    %133 = vector.broadcast %cst_136 : f32 to vector<1x128xf32>
    %134 = arith.divf %132, %133 : vector<1x128xf32>
    %135 = vector.broadcast %127 : vector<1x128xf32> to vector<512x128xf32>
    %136 = arith.subf %123, %135 : vector<512x128xf32>
    %cst_137 = arith.constant 9.99999974E-6 : f32
    %137 = vector.broadcast %cst_137 : f32 to vector<1x128xf32>
    %138 = arith.addf %134, %137 : vector<1x128xf32>
    %139 = math.rsqrt %138 : vector<1x128xf32>
    %140 = vector.broadcast %139 : vector<1x128xf32> to vector<512x128xf32>
    %141 = arith.mulf %136, %140 : vector<512x128xf32>
    %142 = vector.broadcast %72 : vector<1x128xf32> to vector<512x128xf32>
    %143 = arith.mulf %141, %142 : vector<512x128xf32>
    %144 = vector.broadcast %73 : vector<1x128xf32> to vector<512x128xf32>
    %145 = arith.addf %143, %144 : vector<512x128xf32>
    %cst_138 = arith.constant 0.000000e+00 : f32
    %146 = vector.broadcast %cst_138 : f32 to vector<512x128xf32>
    %147 = arith.maximumf %145, %146 : vector<512x128xf32>
    %c0_139 = arith.constant 0 : index
    %c0_140 = arith.constant 0 : index
    %148 = vector.load %arg5[%c0_139, %c0_140] : memref<512x128xf32, #tpu.memory_space<vmem>>, vector<512x128xf32>
    tpu.vector_store %arg5[%c0_139, %c0_140], %147 {strides = array<i32>} : memref<512x128xf32, #tpu.memory_space<vmem>>, vector<512x128xf32>,
    return
  }
  func.func @transform_0(%arg0: i32) -> (i32, i32, i32, i32) {
    %c0_i32 = arith.constant 0 : i32
    %c0_i32_0 = arith.constant 0 : i32
    %c0_i32_1 = arith.constant 0 : i32
    %c0_i32_2 = arith.constant 0 : i32
    %c0_i32_3 = arith.constant 0 : i32
    return %c0_i32, %c0_i32_0, %c0_i32_1, %c0_i32_2 : i32, i32, i32, i32
  }
  func.func @transform_1(%arg0: i32) -> (i32, i32) {
    %c0_i32 = arith.constant 0 : i32
    %c0_i32_0 = arith.constant 0 : i32
    return %c0_i32, %arg0 : i32, i32
  }
  func.func @transform_2(%arg0: i32) -> (i32, i32, i32, i32) {
    %c0_i32 = arith.constant 0 : i32
    %c0_i32_0 = arith.constant 0 : i32
    %c0_i32_1 = arith.constant 0 : i32
    %c0_i32_2 = arith.constant 0 : i32
    return %c0_i32, %c0_i32_0, %c0_i32_1, %arg0 : i32, i32, i32, i32
  }
  func.func @transform_3(%arg0: i32) -> (i32, i32) {
    %c0_i32 = arith.constant 0 : i32
    %c0_i32_0 = arith.constant 0 : i32
    return %c0_i32, %arg0 : i32, i32
  }
  func.func @transform_4(%arg0: i32) -> (i32, i32) {
    %c0_i32 = arith.constant 0 : i32
    %c0_i32_0 = arith.constant 0 : i32
    return %c0_i32, %arg0 : i32, i32
  }
}

</mosaic_0001>

<llo_original>
// kernel: resnet_block_forward.1
$region0: #{resnet_block_forward.1}
  #allocation0 [shape = 'u32[]', space=smem, size = 0x4, offset = 0x4, fixed_abs, tag = 'smem constant byte address 0x4 - core index']
  #allocation1 [shape = 'u32[144,128]{1,0:T(1,128)}', space=vmem, size = 0x12000, scoped, tag = 'internal scratch']
  %s0 = inlined_call_operand.vmem [shape: bf16[2,18,18,128], index: 0, kind: input, shape index: {}]
  %s1 = inlined_call_operand.vmem [shape: bf16[512,128], index: 1, kind: input, shape index: {}]
  %s2 = inlined_call_operand.vmem [shape: bf16[3,3,128,128], index: 2, kind: input, shape index: {}]
  %s3 = inlined_call_operand.vmem [shape: f32[4,128], index: 3, kind: input, shape index: {}]
  %s4 = inlined_call_operand.hbm [shape: f32[512,128], index: 4, kind: output, shape index: {}]
  %s5 = sld [smem:[#allocation0]]
  $region26: #{resnet_block_forward.1} parent=0
    _
  %s7 = ssub.s32 1, %s5
  %s8 = scalar_select 0, %s7, %s5
  $region1: #{resnet_block_forward.1} parent=0
    #allocation2 [shape = 'u8[262144]{0}', space=vmem, size = 0x40000, scoped, tag = 'output window, operand 0, single buffered']
    #allocation3 [shape = 's32[1]{0}', space=sflag, size = 0x4, scoped, tag = 'scoped memory for resnet_block_forward.1']
    %9 = vsyncpa [#allocation3], 0
    // Predicated region
    $region2: #{resnet_block_forward.1} parent=1 // pred_check
      _
    $region3: #{resnet_block_forward.1} parent=1 // pred_check_branch
      %11 = sbr.rel (0) target = $region5
    $region4: #{resnet_block_forward.1} parent=1 // pred_region
      _
    $region5: #{resnet_block_forward.1} parent=1 // pred_fallthru
      _
    // Predicated region
    $region6: #{resnet_block_forward.1} parent=1 // pred_check
      _
    $region7: #{resnet_block_forward.1} parent=1 // pred_check_branch
      %13 = sbr.rel (0) target = $region9
    $region8: #{resnet_block_forward.1} parent=1 // pred_region
      _
    $region9: #{resnet_block_forward.1} parent=1 // pred_fallthru
      _
    // Predicated region
    $region10: #{resnet_block_forward.1} parent=1 // pred_check
      _
    $region11: #{resnet_block_forward.1} parent=1 // pred_check_branch
      %15 = sbr.rel (0) target = $region13
    $region12: #{resnet_block_forward.1} parent=1 // pred_region
      _
    $region13: #{resnet_block_forward.1} parent=1 // pred_fallthru
      _
    // Predicated region
    $region14: #{resnet_block_forward.1} parent=1 // pred_check
      _
    $region15: #{resnet_block_forward.1} parent=1 // pred_check_branch
      %17 = sbr.rel (0) target = $region17
    $region16: #{resnet_block_forward.1} parent=1 // pred_region
      _
    $region17: #{resnet_block_forward.1} parent=1 // pred_fallthru
      _
    %v19 = vld [vmem:[%s0] sm:$0xf]
    %v20 = vld [vmem:[%s0 + $0x4] sm:$0xf]
    %v21 = vld [vmem:[%s0 + $0xc] sm:$0xf]
    %v22 = vld [vmem:[%s0 + $0x10] sm:$0xf]
    %v23 = vld [vmem:[%s0 + $0x18] sm:$0xf]
    %v24 = vld [vmem:[%s0 + $0x1c] sm:$0xf]
    %v25 = vld [vmem:[%s0 + $0x24] sm:$0xf]
    %v26 = vld [vmem:[%s0 + $0x28] sm:$0xf]
    %v27 = vld [vmem:[%s0 + $0x30] sm:$0xf]
    %v28 = vld [vmem:[%s0 + $0x34] sm:$0xf]
    %v29 = vld [vmem:[%s0 + $0x3c] sm:$0xf]
    %v30 = vld [vmem:[%s0 + $0x40] sm:$0xf]
    %v31 = vld [vmem:[%s0 + $0x48] sm:$0xf]
    %v32 = vld [vmem:[%s0 + $0x4c] sm:$0xf]
    %v33 = vld [vmem:[%s0 + $0x54] sm:$0xf]
    %v34 = vld [vmem:[%s0 + $0x58] sm:$0xf]
    %v35 = vld [vmem:[%s0 + $0x60] sm:$0xf]
    %v36 = vld [vmem:[%s0 + $0x64] sm:$0xf]
    %v37 = vld [vmem:[%s0 + $0x6c] sm:$0xf]
    %v38 = vld [vmem:[%s0 + $0x70] sm:$0xf]
    %v39 = vld [vmem:[%s0 + $0x78] sm:$0xf]
    %v40 = vld [vmem:[%s0 + $0x7c] sm:$0xf]
    %v41 = vld [vmem:[%s0 + $0x84] sm:$0xf]
    %v42 = vld [vmem:[%s0 + $0x88] sm:$0xf]
    %v43 = vld [vmem:[%s0 + $0x90] sm:$0xf]
    %v44 = vld [vmem:[%s0 + $0x94] sm:$0xf]
    %v45 = vld [vmem:[%s0 + $0x9c] sm:$0xf]
    %v46 = vld [vmem:[%s0 + $0xa0] sm:$0xf]
    %v47 = vld [vmem:[%s0 + $0xa8] sm:$0xf]
    %v48 = vld [vmem:[%s0 + $0xac] sm:$0xf]
    %v49 = vld [vmem:[%s0 + $0xb4] sm:$0xf]
    %v50 = vld [vmem:[%s0 + $0xb8] sm:$0xf]
    %v51 = vld [vmem:[%s0 + $0xd8] sm:$0xf]
    %v52 = vld [vmem:[%s0 + $0xdc] sm:$0xf]
    %v53 = vld [vmem:[%s0 + $0xe4] sm:$0xf]
    %v54 = vld [vmem:[%s0 + $0xe8] sm:$0xf]
    %v55 = vld [vmem:[%s0 + $0xf0] sm:$0xf]
    %v56 = vld [vmem:[%s0 + $0xf4] sm:$0xf]
    %v57 = vld [vmem:[%s0 + $0xfc] sm:$0xf]
    %v58 = vld [vmem:[%s0 + $0x100] sm:$0xf]
    %v59 = vld [vmem:[%s0 + $0x108] sm:$0xf]
    %v60 = vld [vmem:[%s0 + $0x10c] sm:$0xf]
    %v61 = vld [vmem:[%s0 + $0x114] sm:$0xf]
    %v62 = vld [vmem:[%s0 + $0x118] sm:$0xf]
    %v63 = vld [vmem:[%s0 + $0x120] sm:$0xf]
    %v64 = vld [vmem:[%s0 + $0x124] sm:$0xf]
    %v65 = vld [vmem:[%s0 + $0x12c] sm:$0xf]
    %v66 = vld [vmem:[%s0 + $0x130] sm:$0xf]
    %v67 = vld [vmem:[%s0 + $0x138] sm:$0xf]
    %v68 = vld [vmem:[%s0 + $0x13c] sm:$0xf]
    %v69 = vld [vmem:[%s0 + $0x144] sm:$0xf]
    %v70 = vld [vmem:[%s0 + $0x148] sm:$0xf]
    %v71 = vld [vmem:[%s0 + $0x150] sm:$0xf]
    %v72 = vld [vmem:[%s0 + $0x154] sm:$0xf]
    %v73 = vld [vmem:[%s0 + $0x15c] sm:$0xf]
    %v74 = vld [vmem:[%s0 + $0x160] sm:$0xf]
    %v75 = vld [vmem:[%s0 + $0x168] sm:$0xf]
    %v76 = vld [vmem:[%s0 + $0x16c] sm:$0xf]
    %v77 = vld [vmem:[%s0 + $0x174] sm:$0xf]
    %v78 = vld [vmem:[%s0 + $0x178] sm:$0xf]
    %v79 = vld [vmem:[%s0 + $0x180] sm:$0xf]
    %v80 = vld [vmem:[%s0 + $0x184] sm:$0xf]
    %v81 = vld [vmem:[%s0 + $0x18c] sm:$0xf]
    %v82 = vld [vmem:[%s0 + $0x190] sm:$0xf]
    %v83 = vld [vmem:[%s2] sm:$0xf]
    %v84 = vld [vmem:[%s2 + $0x4] sm:$0xf]
    %v85 = vld [vmem:[%s2 + $0x8] sm:$0xf]
    %v86 = vld [vmem:[%s2 + $0xc] sm:$0xf]
    %v87 = vld [vmem:[%s2 + $0x10] sm:$0xf]
    %v88 = vld [vmem:[%s2 + $0x14] sm:$0xf]
    %v89 = vld [vmem:[%s2 + $0x18] sm:$0xf]
    %v90 = vld [vmem:[%s2 + $0x1c] sm:$0xf]
    %v91 = vld [vmem:[%s2 + $0x20] sm:$0xf]
    %v92 = vld [vmem:[%s2 + $0x24] sm:$0xf]
    %v93 = vld [vmem:[%s2 + $0x28] sm:$0xf]
    %v94 = vld [vmem:[%s2 + $0x2c] sm:$0xf]
    %v95 = vld [vmem:[%s2 + $0x30] sm:$0xf]
    %v96 = vld [vmem:[%s2 + $0x34] sm:$0xf]
    %v97 = vld [vmem:[%s2 + $0x38] sm:$0xf]
    %v98 = vld [vmem:[%s2 + $0x3c] sm:$0xf]
    %v163 = vunpack.c.l.b16 %v19
    %v164 = vunpack.c.l.b16 %v20
    %v165 = vunpack.c.l.b16 %v21
    %v166 = vunpack.c.l.b16 %v22
    %v167 = vunpack.c.l.b16 %v23
    %v168 = vunpack.c.l.b16 %v24
    %v169 = vunpack.c.l.b16 %v25
    %v170 = vunpack.c.l.b16 %v26
    %v171 = vunpack.c.l.b16 %v27
    %v172 = vunpack.c.l.b16 %v28
    %v173 = vunpack.c.l.b16 %v29
    %v174 = vunpack.c.l.b16 %v30
    %v175 = vunpack.c.l.b16 %v31
    %v176 = vunpack.c.l.b16 %v32
    %v177 = vunpack.c.l.b16 %v33
    %v178 = vunpack.c.l.b16 %v34
    %v179 = vunpack.c.l.b16 %v35
    %v180 = vunpack.c.l.b16 %v36
    %v181 = vunpack.c.l.b16 %v37
    %v182 = vunpack.c.l.b16 %v38
    %v183 = vunpack.c.l.b16 %v39
    %v184 = vunpack.c.l.b16 %v40
    %v185 = vunpack.c.l.b16 %v41
    %v186 = vunpack.c.l.b16 %v42
    %v187 = vunpack.c.l.b16 %v43
    %v188 = vunpack.c.l.b16 %v44
    %v189 = vunpack.c.l.b16 %v45
    %v190 = vunpack.c.l.b16 %v46
    %v191 = vunpack.c.l.b16 %v47
    %v192 = vunpack.c.l.b16 %v48
    %v193 = vunpack.c.l.b16 %v49
    %v194 = vunpack.c.l.b16 %v50
    %v195 = vunpack.c.l.b16 %v51
    %v196 = vunpack.c.l.b16 %v52
    %v197 = vunpack.c.l.b16 %v53
    %v198 = vunpack.c.l.b16 %v54
    %v199 = vunpack.c.l.b16 %v55
    %v200 = vunpack.c.l.b16 %v56
    %v201 = vunpack.c.l.b16 %v57
    %v202 = vunpack.c.l.b16 %v58
    %v203 = vunpack.c.l.b16 %v59
    %v204 = vunpack.c.l.b16 %v60
    %v205 = vunpack.c.l.b16 %v61
    %v206 = vunpack.c.l.b16 %v62
    %v207 = vunpack.c.l.b16 %v63
    %v208 = vunpack.c.l.b16 %v64
    %v209 = vunpack.c.l.b16 %v65
    %v210 = vunpack.c.l.b16 %v66
    %v211 = vunpack.c.l.b16 %v67
    %v212 = vunpack.c.l.b16 %v68
    %v213 = vunpack.c.l.b16 %v69
    %v214 = vunpack.c.l.b16 %v70
    %v215 = vunpack.c.l.b16 %v71
    %v216 = vunpack.c.l.b16 %v72
    %v217 = vunpack.c.l.b16 %v73
    %v218 = vunpack.c.l.b16 %v74
    %v219 = vunpack.c.l.b16 %v75
    %v220 = vunpack.c.l.b16 %v76
    %v221 = vunpack.c.l.b16 %v77
    %v222 = vunpack.c.l.b16 %v78
    %v223 = vunpack.c.l.b16 %v79
    %v224 = vunpack.c.l.b16 %v80
    %v225 = vunpack.c.l.b16 %v81
    %v226 = vunpack.c.l.b16 %v82
    %v227 = vpack.c.b16 %v164, %v163
    %v228 = vpack.c.b16 %v166, %v165
    %v229 = vpack.c.b16 %v168, %v167
    %v230 = vpack.c.b16 %v170, %v169
    %v231 = vpack.c.b16 %v172, %v171
    %v232 = vpack.c.b16 %v174, %v173
    %v233 = vpack.c.b16 %v176, %v175
    %v234 = vpack.c.b16 %v178, %v177
    %v235 = vpack.c.b16 %v180, %v179
    %v236 = vpack.c.b16 %v182, %v181
    %v237 = vpack.c.b16 %v184, %v183
    %v238 = vpack.c.b16 %v186, %v185
    %v239 = vpack.c.b16 %v188, %v187
    %v240 = vpack.c.b16 %v190, %v189
    %v241 = vpack.c.b16 %v192, %v191
    %v242 = vpack.c.b16 %v194, %v193
    %v243 = vpack.c.b16 %v196, %v195
    %v244 = vpack.c.b16 %v198, %v197
    %v245 = vpack.c.b16 %v200, %v199
    %v246 = vpack.c.b16 %v202, %v201
    %v247 = vpack.c.b16 %v204, %v203
    %v248 = vpack.c.b16 %v206, %v205
    %v249 = vpack.c.b16 %v208, %v207
    %v250 = vpack.c.b16 %v210, %v209
    %v251 = vpack.c.b16 %v212, %v211
    %v252 = vpack.c.b16 %v214, %v213
    %v253 = vpack.c.b16 %v216, %v215
    %v254 = vpack.c.b16 %v218, %v217
    %v255 = vpack.c.b16 %v220, %v219
    %v256 = vpack.c.b16 %v222, %v221
    %v257 = vpack.c.b16 %v224, %v223
    %v258 = vpack.c.b16 %v226, %v225
    %v307 = vunpack.c.l.b16 %v83
    %v308 = vunpack.c.l.b16 %v84
    %v309 = vunpack.c.l.b16 %v85
    %v310 = vunpack.c.l.b16 %v86
    %v311 = vunpack.c.l.b16 %v87
    %v312 = vunpack.c.l.b16 %v88
    %v313 = vunpack.c.l.b16 %v89
    %v314 = vunpack.c.l.b16 %v90
    %v315 = vunpack.c.l.b16 %v91
    %v316 = vunpack.c.l.b16 %v92
    %v317 = vunpack.c.l.b16 %v93
    %v318 = vunpack.c.l.b16 %v94
    %v319 = vunpack.c.l.b16 %v95
    %v320 = vunpack.c.l.b16 %v96
    %v321 = vunpack.c.l.b16 %v97
    %v322 = vunpack.c.l.b16 %v98
    %v323 = vpack.c.b16 %v308, %v307
    %v324 = vpack.c.b16 %v310, %v309
    %v325 = vpack.c.b16 %v312, %v311
    %v326 = vpack.c.b16 %v314, %v313
    %v327 = vpack.c.b16 %v316, %v315
    %v328 = vpack.c.b16 %v318, %v317
    %v329 = vpack.c.b16 %v320, %v319
    %v330 = vpack.c.b16 %v322, %v321
    %339 = vmatprep.subr.bf16.mxu0 0
    %340 = vmatpush1.bf16.msra.mxu0 %v330
    %341 = vmatprep.subr.bf16.mxu0 0
    %342 = vmatpush1.bf16.msra.mxu0 %v329
    %343 = vmatprep.subr.bf16.mxu0 0
    %344 = vmatpush1.bf16.msra.mxu0 %v328
    %345 = vmatprep.subr.bf16.mxu0 0
    %346 = vmatpush1.bf16.msra.mxu0 %v327
    %347 = vmatprep.subr.bf16.mxu0 0
    %348 = vmatpush1.bf16.msra.mxu0 %v326
    %349 = vmatprep.subr.bf16.mxu0 0
    %350 = vmatpush1.bf16.msra.mxu0 %v325
    %351 = vmatprep.subr.bf16.mxu0 0
    %352 = vmatpush1.bf16.msra.mxu0 %v324
    %353 = vmatprep.subr.bf16.mxu0 0
    %354 = vmatpush1.bf16.msra.mxu0 %v323
    %355 = vmatprep.subr.bf16.mxu0 0
    %356 = vmatpush2.bf16.msra.mxu0 0
    %357 = vmatprep.subr.bf16.mxu0 0
    %358 = vmatpush2.bf16.msra.mxu0 0
    %359 = vmatprep.subr.bf16.mxu0 0
    %360 = vmatpush2.bf16.msra.mxu0 0
    %361 = vmatprep.subr.bf16.mxu0 0
    %362 = vmatpush2.bf16.msra.mxu0 0
    %363 = vmatprep.subr.bf16.mxu0 0
    %364 = vmatpush2.bf16.msra.mxu0 0
    %365 = vmatprep.subr.bf16.mxu0 0
    %366 = vmatpush2.bf16.msra.mxu0 0
    %367 = vmatprep.subr.bf16.mxu0 0
    %368 = vmatpush2.bf16.msra.mxu0 0
    %369 = vmatprep.subr.bf16.mxu0 0
    %370 = vmatpush2.bf16.msra.mxu0 0
    %371 = vmatprep.mubr.bf16.mxu0 0
    %372 = vmatmul.mubr.bf16.gmra.mxu0 %v227
    %v373 = vpop.f32.mrf.mxu0
    %v374 = vadd.f32 0.0, %v373
    %v375 = vpop.f32.mrf.mxu0
    %v376 = vpop.f32.mrf.mxu0
    %v377 = vadd.f32 0.0, %v376
    %v378 = vpop.f32.mrf.mxu0
    %379 = vmatprep.mubr.bf16.mxu0 0
    %380 = vmatmul.mubr.bf16.gmra.mxu0 %v228
    %v381 = vpop.f32.mrf.mxu0
    %v382 = vadd.f32 0.0, %v381
    %v383 = vpop.f32.mrf.mxu0
    %v384 = vpop.f32.mrf.mxu0
    %v385 = vadd.f32 0.0, %v384
    %v386 = vpop.f32.mrf.mxu0
    %387 = vmatprep.mubr.bf16.mxu0 0
    %388 = vmatmul.mubr.bf16.gmra.mxu0 %v229
    %v389 = vpop.f32.mrf.mxu0
    %v390 = vadd.f32 0.0, %v389
    %v391 = vpop.f32.mrf.mxu0
    %v392 = vpop.f32.mrf.mxu0
    %v393 = vadd.f32 0.0, %v392
    %v394 = vpop.f32.mrf.mxu0
    %395 = vmatprep.mubr.bf16.mxu0 0
    %396 = vmatmul.mubr.bf16.gmra.mxu0 %v230
    %v397 = vpop.f32.mrf.mxu0
    %v398 = vadd.f32 0.0, %v397
    %v399 = vpop.f32.mrf.mxu0
    %v400 = vpop.f32.mrf.mxu0
    %v401 = vadd.f32 0.0, %v400
    %v402 = vpop.f32.mrf.mxu0
    %403 = vmatprep.mubr.bf16.mxu0 0
    %404 = vmatmul.mubr.bf16.gmra.mxu0 %v231
    %v405 = vpop.f32.mrf.mxu0
    %v406 = vadd.f32 0.0, %v405
    %v407 = vpop.f32.mrf.mxu0
    %v408 = vpop.f32.mrf.mxu0
    %v409 = vadd.f32 0.0, %v408
    %v410 = vpop.f32.mrf.mxu0
    %411 = vmatprep.mubr.bf16.mxu0 0
    %412 = vmatmul.mubr.bf16.gmra.mxu0 %v232
    %v413 = vpop.f32.mrf.mxu0
    %v414 = vadd.f32 0.0, %v413
    %v415 = vpop.f32.mrf.mxu0
    %v416 = vpop.f32.mrf.mxu0
    %v417 = vadd.f32 0.0, %v416
    %v418 = vpop.f32.mrf.mxu0
    %419 = vmatprep.mubr.bf16.mxu0 0
    %420 = vmatmul.mubr.bf16.gmra.mxu0 %v233
    %v421 = vpop.f32.mrf.mxu0
    %v422 = vadd.f32 0.0, %v421
    %v423 = vpop.f32.mrf.mxu0
    %v424 = vpop.f32.mrf.mxu0
    %v425 = vadd.f32 0.0, %v424
    %v426 = vpop.f32.mrf.mxu0
    %427 = vmatprep.mubr.bf16.mxu0 0
    %428 = vmatmul.mubr.bf16.gmra.mxu0 %v234
    %v429 = vpop.f32.mrf.mxu0
    %v430 = vadd.f32 0.0, %v429
    %v431 = vpop.f32.mrf.mxu0
    %v432 = vpop.f32.mrf.mxu0
    %v433 = vadd.f32 0.0, %v432
    %v434 = vpop.f32.mrf.mxu0
    %435 = vmatprep.mubr.bf16.mxu0 0
    %436 = vmatmul.mubr.bf16.gmra.mxu0 %v235
    %v437 = vpop.f32.mrf.mxu0
    %v438 = vadd.f32 0.0, %v437
    %v439 = vpop.f32.mrf.mxu0
    %v440 = vpop.f32.mrf.mxu0
    %v441 = vadd.f32 0.0, %v440
    %v442 = vpop.f32.mrf.mxu0
    %443 = vmatprep.mubr.bf16.mxu0 0
    %444 = vmatmul.mubr.bf16.gmra.mxu0 %v236
    %v445 = vpop.f32.mrf.mxu0
    %v446 = vadd.f32 0.0, %v445
    %v447 = vpop.f32.mrf.mxu0
    %v448 = vpop.f32.mrf.mxu0
    %v449 = vadd.f32 0.0, %v448
    %v450 = vpop.f32.mrf.mxu0
    %451 = vmatprep.mubr.bf16.mxu0 0
    %452 = vmatmul.mubr.bf16.gmra.mxu0 %v237
    %v453 = vpop.f32.mrf.mxu0
    %v454 = vadd.f32 0.0, %v453
    %v455 = vpop.f32.mrf.mxu0
    %v456 = vpop.f32.mrf.mxu0
    %v457 = vadd.f32 0.0, %v456
    %v458 = vpop.f32.mrf.mxu0
    %459 = vmatprep.mubr.bf16.mxu0 0
    %460 = vmatmul.mubr.bf16.gmra.mxu0 %v238
    %v461 = vpop.f32.mrf.mxu0
    %v462 = vadd.f32 0.0, %v461
    %v463 = vpop.f32.mrf.mxu0
    %v464 = vpop.f32.mrf.mxu0
    %v465 = vadd.f32 0.0, %v464
    %v466 = vpop.f32.mrf.mxu0
    %467 = vmatprep.mubr.bf16.mxu0 0
    %468 = vmatmul.mubr.bf16.gmra.mxu0 %v239
    %v469 = vpop.f32.mrf.mxu0
    %v470 = vadd.f32 0.0, %v469
    %v471 = vpop.f32.mrf.mxu0
    %v472 = vpop.f32.mrf.mxu0
    %v473 = vadd.f32 0.0, %v472
    %v474 = vpop.f32.mrf.mxu0
    %475 = vmatprep.mubr.bf16.mxu0 0
    %476 = vmatmul.mubr.bf16.gmra.mxu0 %v240
    %v477 = vpop.f32.mrf.mxu0
    %v478 = vadd.f32 0.0, %v477
    %v479 = vpop.f32.mrf.mxu0
    %v480 = vpop.f32.mrf.mxu0
    %v481 = vadd.f32 0.0, %v480
    %v482 = vpop.f32.mrf.mxu0
    %483 = vmatprep.mubr.bf16.mxu0 0
    %484 = vmatmul.mubr.bf16.gmra.mxu0 %v241
    %v485 = vpop.f32.mrf.mxu0
    %v486 = vadd.f32 0.0, %v485
    %v487 = vpop.f32.mrf.mxu0
    %v488 = vpop.f32.mrf.mxu0
    %v489 = vadd.f32 0.0, %v488
    %v490 = vpop.f32.mrf.mxu0
    %491 = vmatprep.mubr.bf16.mxu0 0
    %492 = vmatmul.mubr.bf16.gmra.mxu0 %v242
    %v493 = vpop.f32.mrf.mxu0
    %v494 = vadd.f32 0.0, %v493
    %v495 = vpop.f32.mrf.mxu0
    %v496 = vpop.f32.mrf.mxu0
    %v497 = vadd.f32 0.0, %v496
    %v498 = vpop.f32.mrf.mxu0
    %499 = vmatprep.mubr.bf16.mxu0 0
    %500 = vmatmul.mubr.bf16.gmra.mxu0 %v243
    %v501 = vpop.f32.mrf.mxu0
    %v502 = vadd.f32 0.0, %v501
    %v503 = vpop.f32.mrf.mxu0
    %v504 = vpop.f32.mrf.mxu0
    %v505 = vadd.f32 0.0, %v504
    %v506 = vpop.f32.mrf.mxu0
    %507 = vmatprep.mubr.bf16.mxu0 0
    %508 = vmatmul.mubr.bf16.gmra.mxu0 %v244
    %v509 = vpop.f32.mrf.mxu0
    %v510 = vadd.f32 0.0, %v509
    %v511 = vpop.f32.mrf.mxu0
    %v512 = vpop.f32.mrf.mxu0
    %v513 = vadd.f32 0.0, %v512
    %v514 = vpop.f32.mrf.mxu0
    %515 = vmatprep.mubr.bf16.mxu0 0
    %516 = vmatmul.mubr.bf16.gmra.mxu0 %v245
    %v517 = vpop.f32.mrf.mxu0
    %v518 = vadd.f32 0.0, %v517
    %v519 = vpop.f32.mrf.mxu0
    %v520 = vpop.f32.mrf.mxu0
    %v521 = vadd.f32 0.0, %v520
    %v522 = vpop.f32.mrf.mxu0
    %523 = vmatprep.mubr.bf16.mxu0 0
    %524 = vmatmul.mubr.bf16.gmra.mxu0 %v246
    %v525 = vpop.f32.mrf.mxu0
    %v526 = vadd.f32 0.0, %v525
    %v527 = vpop.f32.mrf.mxu0
    %v528 = vpop.f32.mrf.mxu0
    %v529 = vadd.f32 0.0, %v528
    %v530 = vpop.f32.mrf.mxu0
    %531 = vmatprep.mubr.bf16.mxu0 0
    %532 = vmatmul.mubr.bf16.gmra.mxu0 %v247
    %v533 = vpop.f32.mrf.mxu0
    %v534 = vadd.f32 0.0, %v533
    %v535 = vpop.f32.mrf.mxu0
    %v536 = vpop.f32.mrf.mxu0
    %v537 = vadd.f32 0.0, %v536
    %v538 = vpop.f32.mrf.mxu0
    %539 = vmatprep.mubr.bf16.mxu0 0
    %540 = vmatmul.mubr.bf16.gmra.mxu0 %v248
    %v541 = vpop.f32.mrf.mxu0
    %v542 = vadd.f32 0.0, %v541
    %v543 = vpop.f32.mrf.mxu0
    %v544 = vpop.f32.mrf.mxu0
    %v545 = vadd.f32 0.0, %v544
    %v546 = vpop.f32.mrf.mxu0
    %547 = vmatprep.mubr.bf16.mxu0 0
    %548 = vmatmul.mubr.bf16.gmra.mxu0 %v249
    %v549 = vpop.f32.mrf.mxu0
    %v550 = vadd.f32 0.0, %v549
    %v551 = vpop.f32.mrf.mxu0
    %v552 = vpop.f32.mrf.mxu0
    %v553 = vadd.f32 0.0, %v552
    %v554 = vpop.f32.mrf.mxu0
    %555 = vmatprep.mubr.bf16.mxu0 0
    %556 = vmatmul.mubr.bf16.gmra.mxu0 %v250
    %v557 = vpop.f32.mrf.mxu0
    %v558 = vadd.f32 0.0, %v557
    %v559 = vpop.f32.mrf.mxu0
    %v560 = vpop.f32.mrf.mxu0
    %v561 = vadd.f32 0.0, %v560
    %v562 = vpop.f32.mrf.mxu0
    %563 = vmatprep.mubr.bf16.mxu0 0
    %564 = vmatmul.mubr.bf16.gmra.mxu0 %v251
    %v565 = vpop.f32.mrf.mxu0
    %v566 = vadd.f32 0.0, %v565
    %v567 = vpop.f32.mrf.mxu0
    %v568 = vpop.f32.mrf.mxu0
    %v569 = vadd.f32 0.0, %v568
    %v570 = vpop.f32.mrf.mxu0
    %571 = vmatprep.mubr.bf16.mxu0 0
    %572 = vmatmul.mubr.bf16.gmra.mxu0 %v252
    %v573 = vpop.f32.mrf.mxu0
    %v574 = vadd.f32 0.0, %v573
    %v575 = vpop.f32.mrf.mxu0
    %v576 = vpop.f32.mrf.mxu0
    %v577 = vadd.f32 0.0, %v576
    %v578 = vpop.f32.mrf.mxu0
    %579 = vmatprep.mubr.bf16.mxu0 0
    %580 = vmatmul.mubr.bf16.gmra.mxu0 %v253
    %v581 = vpop.f32.mrf.mxu0
    %v582 = vadd.f32 0.0, %v581
    %v583 = vpop.f32.mrf.mxu0
    %v584 = vpop.f32.mrf.mxu0
    %v585 = vadd.f32 0.0, %v584
    %v586 = vpop.f32.mrf.mxu0
    %587 = vmatprep.mubr.bf16.mxu0 0
    %588 = vmatmul.mubr.bf16.gmra.mxu0 %v254
    %v589 = vpop.f32.mrf.mxu0
    %v590 = vadd.f32 0.0, %v589
    %v591 = vpop.f32.mrf.mxu0
    %v592 = vpop.f32.mrf.mxu0
    %v593 = vadd.f32 0.0, %v592
    %v594 = vpop.f32.mrf.mxu0
    %595 = vmatprep.mubr.bf16.mxu0 0
    %596 = vmatmul.mubr.bf16.gmra.mxu0 %v255
    %v597 = vpop.f32.mrf.mxu0
    %v598 = vadd.f32 0.0, %v597
    %v599 = vpop.f32.mrf.mxu0
    %v600 = vpop.f32.mrf.mxu0
    %v601 = vadd.f32 0.0, %v600
    %v602 = vpop.f32.mrf.mxu0
    %603 = vmatprep.mubr.bf16.mxu0 0
    %604 = vmatmul.mubr.bf16.gmra.mxu0 %v256
    %v605 = vpop.f32.mrf.mxu0
    %v606 = vadd.f32 0.0, %v605
    %v607 = vpop.f32.mrf.mxu0
    %v608 = vpop.f32.mrf.mxu0
    %v609 = vadd.f32 0.0, %v608
    %v610 = vpop.f32.mrf.mxu0
    %611 = vmatprep.mubr.bf16.mxu0 0
    %612 = vmatmul.mubr.bf16.gmra.mxu0 %v257
    %v613 = vpop.f32.mrf.mxu0
    %v614 = vadd.f32 0.0, %v613
    %v615 = vpop.f32.mrf.mxu0
    %v616 = vpop.f32.mrf.mxu0
    %v617 = vadd.f32 0.0, %v616
    %v618 = vpop.f32.mrf.mxu0
    %619 = vmatprep.mubr.bf16.mxu0 0
    %620 = vmatmul.mubr.bf16.gmra.mxu0 %v258
    %v621 = vpop.f32.mrf.mxu0
    %v622 = vadd.f32 0.0, %v621
    %v623 = vpop.f32.mrf.mxu0
    %v624 = vpop.f32.mrf.mxu0
    %v625 = vadd.f32 0.0, %v624
    %v626 = vpop.f32.mrf.mxu0
    %627 = vdwg.mxu0
    %628 = vst [vmem:[#allocation2] sm:$0xff] %v374
    %629 = vst [vmem:[#allocation2 + $0x8] sm:$0xff] %v377
    %630 = vst [vmem:[#allocation2 + $0x10] sm:$0xff] %v382
    %631 = vst [vmem:[#allocation2 + $0x18] sm:$0xff] %v385
    %632 = vst [vmem:[#allocation2 + $0x20] sm:$0xff] %v390
    %633 = vst [vmem:[#allocation2 + $0x28] sm:$0xff] %v393
    %634 = vst [vmem:[#allocation2 + $0x30] sm:$0xff] %v398
    %635 = vst [vmem:[#allocation2 + $0x38] sm:$0xff] %v401
    %636 = vst [vmem:[#allocation2 + $0x40] sm:$0xff] %v406
    %637 = vst [vmem:[#allocation2 + $0x48] sm:$0xff] %v409
    %638 = vst [vmem:[#allocation2 + $0x50] sm:$0xff] %v414
    %639 = vst [vmem:[#allocation2 + $0x58] sm:$0xff] %v417
    %640 = vst [vmem:[#allocation2 + $0x60] sm:$0xff] %v422
    %641 = vst [vmem:[#allocation2 + $0x68] sm:$0xff] %v425
    %642 = vst [vmem:[#allocation2 + $0x70] sm:$0xff] %v430
    %643 = vst [vmem:[#allocation2 + $0x78] sm:$0xff] %v433
    %644 = vst [vmem:[#allocation2 + $0x80] sm:$0xff] %v438
    %645 = vst [vmem:[#allocation2 + $0x88] sm:$0xff] %v441
    %646 = vst [vmem:[#allocation2 + $0x90] sm:$0xff] %v446
    %647 = vst [vmem:[#allocation2 + $0x98] sm:$0xff] %v449
    %648 = vst [vmem:[#allocation2 + $0xa0] sm:$0xff] %v454
    %649 = vst [vmem:[#allocation2 + $0xa8] sm:$0xff] %v457
    %650 = vst [vmem:[#allocation2 + $0xb0] sm:$0xff] %v462
    %651 = vst [vmem:[#allocation2 + $0xb8] sm:$0xff] %v465
    %652 = vst [vmem:[#allocation2 + $0xc0] sm:$0xff] %v470
    %653 = vst [vmem:[#allocation2 + $0xc8] sm:$0xff] %v473
    %654 = vst [vmem:[#allocation2 + $0xd0] sm:$0xff] %v478
    %655 = vst [vmem:[#allocation2 + $0xd8] sm:$0xff] %v481
    %656 = vst [vmem:[#allocation2 + $0xe0] sm:$0xff] %v486
    %657 = vst [vmem:[#allocation2 + $0xe8] sm:$0xff] %v489
    %658 = vst [vmem:[#allocation2 + $0xf0] sm:$0xff] %v494
    %659 = vst [vmem:[#allocation2 + $0xf8] sm:$0xff] %v497
    %660 = vst [vmem:[#allocation2 + $0x100] sm:$0xff] %v502
    %661 = vst [vmem:[#allocation2 + $0x108] sm:$0xff] %v505
    %662 = vst [vmem:[#allocation2 + $0x110] sm:$0xff] %v510
    %663 = vst [vmem:[#allocation2 + $0x118] sm:$0xff] %v513
    %664 = vst [vmem:[#allocation2 + $0x120] sm:$0xff] %v518
    %665 = vst [vmem:[#allocation2 + $0x128] sm:$0xff] %v521
    %666 = vst [vmem:[#allocation2 + $0x130] sm:$0xff] %v526
    %667 = vst [vmem:[#allocation2 + $0x138] sm:$0xff] %v529
    %668 = vst [vmem:[#allocation2 + $0x140] sm:$0xff] %v534
    %669 = vst [vmem:[#allocation2 + $0x148] sm:$0xff] %v537
    %670 = vst [vmem:[#allocation2 + $0x150] sm:$0xff] %v542
    %671 = vst [vmem:[#allocation2 + $0x158] sm:$0xff] %v545
    %672 = vst [vmem:[#allocation2 + $0x160] sm:$0xff] %v550
    %673 = vst [vmem:[#allocation2 + $0x168] sm:$0xff] %v553
    %674 = vst [vmem:[#allocation2 + $0x170] sm:$0xff] %v558
    %675 = vst [vmem:[#allocation2 + $0x178] sm:$0xff] %v561
    %676 = vst [vmem:[#allocation2 + $0x180] sm:$0xff] %v566
    %677 = vst [vmem:[#allocation2 + $0x188] sm:$0xff] %v569
    %678 = vst [vmem:[#allocation2 + $0x190] sm:$0xff] %v574
    %679 = vst [vmem:[#allocation2 + $0x198] sm:$0xff] %v577
    %680 = vst [vmem:[#allocation2 + $0x1a0] sm:$0xff] %v582
    %681 = vst [vmem:[#allocation2 + $0x1a8] sm:$0xff] %v585
    %682 = vst [vmem:[#allocation2 + $0x1b0] sm:$0xff] %v590
    %683 = vst [vmem:[#allocation2 + $0x1b8] sm:$0xff] %v593
    %684 = vst [vmem:[#allocation2 + $0x1c0] sm:$0xff] %v598
    %685 = vst [vmem:[#allocation2 + $0x1c8] sm:$0xff] %v601
    %686 = vst [vmem:[#allocation2 + $0x1d0] sm:$0xff] %v606
    %687 = vst [vmem:[#allocation2 + $0x1d8] sm:$0xff] %v609
    %688 = vst [vmem:[#allocation2 + $0x1e0] sm:$0xff] %v614
    %689 = vst [vmem:[#allocation2 + $0x1e8] sm:$0xff] %v617
    %690 = vst [vmem:[#allocation2 + $0x1f0] sm:$0xff] %v622
    %691 = vst [vmem:[#allocation2 + $0x1f8] sm:$0xff] %v625
    %v692 = vld [vmem:[%s0] sm:$0xf]
    %v693 = vld [vmem:[%s0 + $0x4] sm:$0xf]
    %v694 = vld [vmem:[%s0 + $0x8] sm:$0x1]
    %v695 = vld [vmem:[%s0 + $0xc] sm:$0xf]
    %v696 = vld [vmem:[%s0 + $0x10] sm:$0xf]
    %v697 = vld [vmem:[%s0 + $0x14] sm:$0x1]
    %v698 = vld [vmem:[%s0 + $0x18] sm:$0xf]
    %v699 = vld [vmem:[%s0 + $0x1c] sm:$0xf]
    %v700 = vld [vmem:[%s0 + $0x20] sm:$0x1]
    %v701 = vld [vmem:[%s0 + $0x24] sm:$0xf]
    %v702 = vld [vmem:[%s0 + $0x28] sm:$0xf]
    %v703 = vld [vmem:[%s0 + $0x2c] sm:$0x1]
    %v704 = vld [vmem:[%s0 + $0x30] sm:$0xf]
    %v705 = vld [vmem:[%s0 + $0x34] sm:$0xf]
    %v706 = vld [vmem:[%s0 + $0x38] sm:$0x1]
    %v707 = vld [vmem:[%s0 + $0x3c] sm:$0xf]
    %v708 = vld [vmem:[%s0 + $0x40] sm:$0xf]
    %v709 = vld [vmem:[%s0 + $0x44] sm:$0x1]
    %v710 = vld [vmem:[%s0 + $0x48] sm:$0xf]
    %v711 = vld [vmem:[%s0 + $0x4c] sm:$0xf]
    %v712 = vld [vmem:[%s0 + $0x50] sm:$0x1]
    %v713 = vld [vmem:[%s0 + $0x54] sm:$0xf]
    %v714 = vld [vmem:[%s0 + $0x58] sm:$0xf]
    %v715 = vld [vmem:[%s0 + $0x5c] sm:$0x1]
    %v716 = vld [vmem:[%s0 + $0x60] sm:$0xf]
    %v717 = vld [vmem:[%s0 + $0x64] sm:$0xf]
    %v718 = vld [vmem:[%s0 + $0x68] sm:$0x1]
    %v719 = vld [vmem:[%s0 + $0x6c] sm:$0xf]
    %v720 = vld [vmem:[%s0 + $0x70] sm:$0xf]
    %v721 = vld [vmem:[%s0 + $0x74] sm:$0x1]
    %v722 = vld [vmem:[%s0 + $0x78] sm:$0xf]
    %v723 = vld [vmem:[%s0 + $0x7c] sm:$0xf]
    %v724 = vld [vmem:[%s0 + $0x80] sm:$0x1]
    %v725 = vld [vmem:[%s0 + $0x84] sm:$0xf]
    %v726 = vld [vmem:[%s0 + $0x88] sm:$0xf]
    %v727 = vld [vmem:[%s0 + $0x8c] sm:$0x1]
    %v728 = vld [vmem:[%s0 + $0x90] sm:$0xf]
    %v729 = vld [vmem:[%s0 + $0x94] sm:$0xf]
    %v730 = vld [vmem:[%s0 + $0x98] sm:$0x1]
    %v731 = vld [vmem:[%s0 + $0x9c] sm:$0xf]
    %v732 = vld [vmem:[%s0 + $0xa0] sm:$0xf]
    %v733 = vld [vmem:[%s0 + $0xa4] sm:$0x1]
    %v734 = vld [vmem:[%s0 + $0xa8] sm:$0xf]
    %v735 = vld [vmem:[%s0 + $0xac] sm:$0xf]
    %v736 = vld [vmem:[%s0 + $0xb0] sm:$0x1]
    %v737 = vld [vmem:[%s0 + $0xb4] sm:$0xf]
    %v738 = vld [vmem:[%s0 + $0xb8] sm:$0xf]
    %v739 = vld [vmem:[%s0 + $0xbc] sm:$0x1]
    %v740 = vld [vmem:[%s0 + $0xd8] sm:$0xf]
    %v741 = vld [vmem:[%s0 + $0xdc] sm:$0xf]
    %v742 = vld [vmem:[%s0 + $0xe0] sm:$0x1]
    %v743 = vld [vmem:[%s0 + $0xe4] sm:$0xf]
    %v744 = vld [vmem:[%s0 + $0xe8] sm:$0xf]
    %v745 = vld [vmem:[%s0 + $0xec] sm:$0x1]
    %v746 = vld [vmem:[%s0 + $0xf0] sm:$0xf]
    %v747 = vld [vmem:[%s0 + $0xf4] sm:$0xf]
    %v748 = vld [vmem:[%s0 + $0xf8] sm:$0x1]
    %v749 = vld [vmem:[%s0 + $0xfc] sm:$0xf]
    %v750 = vld [vmem:[%s0 + $0x100] sm:$0xf]
    %v751 = vld [vmem:[%s0 + $0x104] sm:$0x1]
    %v752 = vld [vmem:[%s0 + $0x108] sm:$0xf]
    %v753 = vld [vmem:[%s0 + $0x10c] sm:$0xf]
    %v754 = vld [vmem:[%s0 + $0x110] sm:$0x1]
    %v755 = vld [vmem:[%s0 + $0x114] sm:$0xf]
    %v756 = vld [vmem:[%s0 + $0x118] sm:$0xf]
    %v757 = vld [vmem:[%s0 + $0x11c] sm:$0x1]
    %v758 = vld [vmem:[%s0 + $0x120] sm:$0xf]
    %v759 = vld [vmem:[%s0 + $0x124] sm:$0xf]
    %v760 = vld [vmem:[%s0 + $0x128] sm:$0x1]
    %v761 = vld [vmem:[%s0 + $0x12c] sm:$0xf]
    %v762 = vld [vmem:[%s0 + $0x130] sm:$0xf]
    %v763 = vld [vmem:[%s0 + $0x134] sm:$0x1]
    %v764 = vld [vmem:[%s0 + $0x138] sm:$0xf]
    %v765 = vld [vmem:[%s0 + $0x13c] sm:$0xf]
    %v766 = vld [vmem:[%s0 + $0x140] sm:$0x1]
    %v767 = vld [vmem:[%s0 + $0x144] sm:$0xf]
    %v768 = vld [vmem:[%s0 + $0x148] sm:$0xf]
    %v769 = vld [vmem:[%s0 + $0x14c] sm:$0x1]
    %v770 = vld [vmem:[%s0 + $0x150] sm:$0xf]
    %v771 = vld [vmem:[%s0 + $0x154] sm:$0xf]
    %v772 = vld [vmem:[%s0 + $0x158] sm:$0x1]
    %v773 = vld [vmem:[%s0 + $0x15c] sm:$0xf]
    %v774 = vld [vmem:[%s0 + $0x160] sm:$0xf]
    %v775 = vld [vmem:[%s0 + $0x164] sm:$0x1]
    %v776 = vld [vmem:[%s0 + $0x168] sm:$0xf]
    %v777 = vld [vmem:[%s0 + $0x16c] sm:$0xf]
    %v778 = vld [vmem:[%s0 + $0x170] sm:$0x1]
    %v779 = vld [vmem:[%s0 + $0x174] sm:$0xf]
    %v780 = vld [vmem:[%s0 + $0x178] sm:$0xf]
    %v781 = vld [vmem:[%s0 + $0x17c] sm:$0x1]
    %v782 = vld [vmem:[%s0 + $0x180] sm:$0xf]
    %v783 = vld [vmem:[%s0 + $0x184] sm:$0xf]
    %v784 = vld [vmem:[%s0 + $0x188] sm:$0x1]
    %v785 = vld [vmem:[%s0 + $0x18c] sm:$0xf]
    %v786 = vld [vmem:[%s0 + $0x190] sm:$0xf]
    %v787 = vld [vmem:[%s0 + $0x194] sm:$0x1]
    %vm788 = vsmask.f32 3328
    %vm789 = vsmask.f32 7440
    %vm790 = vmor %vm788, %vm789
    %v792 = vshrl.u32 %v692, 16
    %v794 = vrot.slane %v792, 4
    %v795 = vshll.u32 %v692, 16
    %v797 = vrot.slane %v795, 5
    %v798 = vor.u32 %v794, %v797
    %v799 = vrot.slane %v798, 4
    %v801 = vshll.u32 %v693, 16
    %v803 = vrot.slane %v801, 5
    %v804 = vsel %vm790, %v799, %v803
    %v805 = vshrl.u32 %v693, 16
    %v807 = vrot.slane %v805, 4
    %v808 = vor.u32 %v807, %v803
    %v809 = vrot.slane %v808, 4
    %v811 = vshll.u32 %v694, 16
    %v813 = vrot.slane %v811, 5
    %v814 = vsel %vm790, %v809, %v813
    %v816 = vshrl.u32 %v695, 16
    %v818 = vrot.slane %v816, 4
    %v819 = vshll.u32 %v695, 16
    %v821 = vrot.slane %v819, 5
    %v822 = vor.u32 %v818, %v821
    %v823 = vrot.slane %v822, 4
    %v825 = vshll.u32 %v696, 16
    %v827 = vrot.slane %v825, 5
    %v828 = vsel %vm790, %v823, %v827
    %v829 = vshrl.u32 %v696, 16
    %v831 = vrot.slane %v829, 4
    %v832 = vor.u32 %v831, %v827
    %v833 = vrot.slane %v832, 4
    %v835 = vshll.u32 %v697, 16
    %v837 = vrot.slane %v835, 5
    %v838 = vsel %vm790, %v833, %v837
    %v840 = vshrl.u32 %v698, 16
    %v842 = vrot.slane %v840, 4
    %v843 = vshll.u32 %v698, 16
    %v845 = vrot.slane %v843, 5
    %v846 = vor.u32 %v842, %v845
    %v847 = vrot.slane %v846, 4
    %v849 = vshll.u32 %v699, 16
    %v851 = vrot.slane %v849, 5
    %v852 = vsel %vm790, %v847, %v851
    %v853 = vshrl.u32 %v699, 16
    %v855 = vrot.slane %v853, 4
    %v856 = vor.u32 %v855, %v851
    %v857 = vrot.slane %v856, 4
    %v859 = vshll.u32 %v700, 16
    %v861 = vrot.slane %v859, 5
    %v862 = vsel %vm790, %v857, %v861
    %v864 = vshrl.u32 %v701, 16
    %v866 = vrot.slane %v864, 4
    %v867 = vshll.u32 %v701, 16
    %v869 = vrot.slane %v867, 5
    %v870 = vor.u32 %v866, %v869
    %v871 = vrot.slane %v870, 4
    %v873 = vshll.u32 %v702, 16
    %v875 = vrot.slane %v873, 5
    %v876 = vsel %vm790, %v871, %v875
    %v877 = vshrl.u32 %v702, 16
    %v879 = vrot.slane %v877, 4
    %v880 = vor.u32 %v879, %v875
    %v881 = vrot.slane %v880, 4
    %v883 = vshll.u32 %v703, 16
    %v885 = vrot.slane %v883, 5
    %v886 = vsel %vm790, %v881, %v885
    %v888 = vshrl.u32 %v704, 16
    %v890 = vrot.slane %v888, 4
    %v891 = vshll.u32 %v704, 16
    %v893 = vrot.slane %v891, 5
    %v894 = vor.u32 %v890, %v893
    %v895 = vrot.slane %v894, 4
    %v897 = vshll.u32 %v705, 16
    %v899 = vrot.slane %v897, 5
    %v900 = vsel %vm790, %v895, %v899
    %v901 = vshrl.u32 %v705, 16
    %v903 = vrot.slane %v901, 4
    %v904 = vor.u32 %v903, %v899
    %v905 = vrot.slane %v904, 4
    %v907 = vshll.u32 %v706, 16
    %v909 = vrot.slane %v907, 5
    %v910 = vsel %vm790, %v905, %v909
    %v912 = vshrl.u32 %v707, 16
    %v914 = vrot.slane %v912, 4
    %v915 = vshll.u32 %v707, 16
    %v917 = vrot.slane %v915, 5
    %v918 = vor.u32 %v914, %v917
    %v919 = vrot.slane %v918, 4
    %v921 = vshll.u32 %v708, 16
    %v923 = vrot.slane %v921, 5
    %v924 = vsel %vm790, %v919, %v923
    %v925 = vshrl.u32 %v708, 16
    %v927 = vrot.slane %v925, 4
    %v928 = vor.u32 %v927, %v923
    %v929 = vrot.slane %v928, 4
    %v931 = vshll.u32 %v709, 16
    %v933 = vrot.slane %v931, 5
    %v934 = vsel %vm790, %v929, %v933
    %v936 = vshrl.u32 %v710, 16
    %v938 = vrot.slane %v936, 4
    %v939 = vshll.u32 %v710, 16
    %v941 = vrot.slane %v939, 5
    %v942 = vor.u32 %v938, %v941
    %v943 = vrot.slane %v942, 4
    %v945 = vshll.u32 %v711, 16
    %v947 = vrot.slane %v945, 5
    %v948 = vsel %vm790, %v943, %v947
    %v949 = vshrl.u32 %v711, 16
    %v951 = vrot.slane %v949, 4
    %v952 = vor.u32 %v951, %v947
    %v953 = vrot.slane %v952, 4
    %v955 = vshll.u32 %v712, 16
    %v957 = vrot.slane %v955, 5
    %v958 = vsel %vm790, %v953, %v957
    %v960 = vshrl.u32 %v713, 16
    %v962 = vrot.slane %v960, 4
    %v963 = vshll.u32 %v713, 16
    %v965 = vrot.slane %v963, 5
    %v966 = vor.u32 %v962, %v965
    %v967 = vrot.slane %v966, 4
    %v969 = vshll.u32 %v714, 16
    %v971 = vrot.slane %v969, 5
    %v972 = vsel %vm790, %v967, %v971
    %v973 = vshrl.u32 %v714, 16
    %v975 = vrot.slane %v973, 4
    %v976 = vor.u32 %v975, %v971
    %v977 = vrot.slane %v976, 4
    %v979 = vshll.u32 %v715, 16
    %v981 = vrot.slane %v979, 5
    %v982 = vsel %vm790, %v977, %v981
    %v984 = vshrl.u32 %v716, 16
    %v986 = vrot.slane %v984, 4
    %v987 = vshll.u32 %v716, 16
    %v989 = vrot.slane %v987, 5
    %v990 = vor.u32 %v986, %v989
    %v991 = vrot.slane %v990, 4
    %v993 = vshll.u32 %v717, 16
    %v995 = vrot.slane %v993, 5
    %v996 = vsel %vm790, %v991, %v995
    %v997 = vshrl.u32 %v717, 16
    %v999 = vrot.slane %v997, 4
    %v1000 = vor.u32 %v999, %v995
    %v1001 = vrot.slane %v1000, 4
    %v1003 = vshll.u32 %v718, 16
    %v1005 = vrot.slane %v1003, 5
    %v1006 = vsel %vm790, %v1001, %v1005
    %v1008 = vshrl.u32 %v719, 16
    %v1010 = vrot.slane %v1008, 4
    %v1011 = vshll.u32 %v719, 16
    %v1013 = vrot.slane %v1011, 5
    %v1014 = vor.u32 %v1010, %v1013
    %v1015 = vrot.slane %v1014, 4
    %v1017 = vshll.u32 %v720, 16
    %v1019 = vrot.slane %v1017, 5
    %v1020 = vsel %vm790, %v1015, %v1019
    %v1021 = vshrl.u32 %v720, 16
    %v1023 = vrot.slane %v1021, 4
    %v1024 = vor.u32 %v1023, %v1019
    %v1025 = vrot.slane %v1024, 4
    %v1027 = vshll.u32 %v721, 16
    %v1029 = vrot.slane %v1027, 5
    %v1030 = vsel %vm790, %v1025, %v1029
    %v1032 = vshrl.u32 %v722, 16
    %v1034 = vrot.slane %v1032, 4
    %v1035 = vshll.u32 %v722, 16
    %v1037 = vrot.slane %v1035, 5
    %v1038 = vor.u32 %v1034, %v1037
    %v1039 = vrot.slane %v1038, 4
    %v1041 = vshll.u32 %v723, 16
    %v1043 = vrot.slane %v1041, 5
    %v1044 = vsel %vm790, %v1039, %v1043
    %v1045 = vshrl.u32 %v723, 16
    %v1047 = vrot.slane %v1045, 4
    %v1048 = vor.u32 %v1047, %v1043
    %v1049 = vrot.slane %v1048, 4
    %v1051 = vshll.u32 %v724, 16
    %v1053 = vrot.slane %v1051, 5
    %v1054 = vsel %vm790, %v1049, %v1053
    %v1056 = vshrl.u32 %v725, 16
    %v1058 = vrot.slane %v1056, 4
    %v1059 = vshll.u32 %v725, 16
    %v1061 = vrot.slane %v1059, 5
    %v1062 = vor.u32 %v1058, %v1061
    %v1063 = vrot.slane %v1062, 4
    %v1065 = vshll.u32 %v726, 16
    %v1067 = vrot.slane %v1065, 5
    %v1068 = vsel %vm790, %v1063, %v1067
    %v1069 = vshrl.u32 %v726, 16
    %v1071 = vrot.slane %v1069, 4
    %v1072 = vor.u32 %v1071, %v1067
    %v1073 = vrot.slane %v1072, 4
    %v1075 = vshll.u32 %v727, 16
    %v1077 = vrot.slane %v1075, 5
    %v1078 = vsel %vm790, %v1073, %v1077
    %v1080 = vshrl.u32 %v728, 16
    %v1082 = vrot.slane %v1080, 4
    %v1083 = vshll.u32 %v728, 16
    %v1085 = vrot.slane %v1083, 5
    %v1086 = vor.u32 %v1082, %v1085
    %v1087 = vrot.slane %v1086, 4
    %v1089 = vshll.u32 %v729, 16
    %v1091 = vrot.slane %v1089, 5
    %v1092 = vsel %vm790, %v1087, %v1091
    %v1093 = vshrl.u32 %v729, 16
    %v1095 = vrot.slane %v1093, 4
    %v1096 = vor.u32 %v1095, %v1091
    %v1097 = vrot.slane %v1096, 4
    %v1099 = vshll.u32 %v730, 16
    %v1101 = vrot.slane %v1099, 5
    %v1102 = vsel %vm790, %v1097, %v1101
    %v1104 = vshrl.u32 %v731, 16
    %v1106 = vrot.slane %v1104, 4
    %v1107 = vshll.u32 %v731, 16
    %v1109 = vrot.slane %v1107, 5
    %v1110 = vor.u32 %v1106, %v1109
    %v1111 = vrot.slane %v1110, 4
    %v1113 = vshll.u32 %v732, 16
    %v1115 = vrot.slane %v1113, 5
    %v1116 = vsel %vm790, %v1111, %v1115
    %v1117 = vshrl.u32 %v732, 16
    %v1119 = vrot.slane %v1117, 4
    %v1120 = vor.u32 %v1119, %v1115
    %v1121 = vrot.slane %v1120, 4
    %v1123 = vshll.u32 %v733, 16
    %v1125 = vrot.slane %v1123, 5
    %v1126 = vsel %vm790, %v1121, %v1125
    %v1128 = vshrl.u32 %v734, 16
    %v1130 = vrot.slane %v1128, 4
    %v1131 = vshll.u32 %v734, 16
    %v1133 = vrot.slane %v1131, 5
    %v1134 = vor.u32 %v1130, %v1133
    %v1135 = vrot.slane %v1134, 4
    %v1137 = vshll.u32 %v735, 16
    %v1139 = vrot.slane %v1137, 5
    %v1140 = vsel %vm790, %v1135, %v1139
    %v1141 = vshrl.u32 %v735, 16
    %v1143 = vrot.slane %v1141, 4
    %v1144 = vor.u32 %v1143, %v1139
    %v1145 = vrot.slane %v1144, 4
    %v1147 = vshll.u32 %v736, 16
    %v1149 = vrot.slane %v1147, 5
    %v1150 = vsel %vm790, %v1145, %v1149
    %v1152 = vshrl.u32 %v737, 16
    %v1154 = vrot.slane %v1152, 4
    %v1155 = vshll.u32 %v737, 16
    %v1157 = vrot.slane %v1155, 5
    %v1158 = vor.u32 %v1154, %v1157
    %v1159 = vrot.slane %v1158, 4
    %v1161 = vshll.u32 %v738, 16
    %v1163 = vrot.slane %v1161, 5
    %v1164 = vsel %vm790, %v1159, %v1163
    %v1165 = vshrl.u32 %v738, 16
    %v1167 = vrot.slane %v1165, 4
    %v1168 = vor.u32 %v1167, %v1163
    %v1169 = vrot.slane %v1168, 4
    %v1171 = vshll.u32 %v739, 16
    %v1173 = vrot.slane %v1171, 5
    %v1174 = vsel %vm790, %v1169, %v1173
    %v1176 = vshrl.u32 %v740, 16
    %v1178 = vrot.slane %v1176, 4
    %v1179 = vshll.u32 %v740, 16
    %v1181 = vrot.slane %v1179, 5
    %v1182 = vor.u32 %v1178, %v1181
    %v1183 = vrot.slane %v1182, 4
    %v1185 = vshll.u32 %v741, 16
    %v1187 = vrot.slane %v1185, 5
    %v1188 = vsel %vm790, %v1183, %v1187
    %v1189 = vshrl.u32 %v741, 16
    %v1191 = vrot.slane %v1189, 4
    %v1192 = vor.u32 %v1191, %v1187
    %v1193 = vrot.slane %v1192, 4
    %v1195 = vshll.u32 %v742, 16
    %v1197 = vrot.slane %v1195, 5
    %v1198 = vsel %vm790, %v1193, %v1197
    %v1200 = vshrl.u32 %v743, 16
    %v1202 = vrot.slane %v1200, 4
    %v1203 = vshll.u32 %v743, 16
    %v1205 = vrot.slane %v1203, 5
    %v1206 = vor.u32 %v1202, %v1205
    %v1207 = vrot.slane %v1206, 4
    %v1209 = vshll.u32 %v744, 16
    %v1211 = vrot.slane %v1209, 5
    %v1212 = vsel %vm790, %v1207, %v1211
    %v1213 = vshrl.u32 %v744, 16
    %v1215 = vrot.slane %v1213, 4
    %v1216 = vor.u32 %v1215, %v1211
    %v1217 = vrot.slane %v1216, 4
    %v1219 = vshll.u32 %v745, 16
    %v1221 = vrot.slane %v1219, 5
    %v1222 = vsel %vm790, %v1217, %v1221
    %v1224 = vshrl.u32 %v746, 16
    %v1226 = vrot.slane %v1224, 4
    %v1227 = vshll.u32 %v746, 16
    %v1229 = vrot.slane %v1227, 5
    %v1230 = vor.u32 %v1226, %v1229
    %v1231 = vrot.slane %v1230, 4
    %v1233 = vshll.u32 %v747, 16
    %v1235 = vrot.slane %v1233, 5
    %v1236 = vsel %vm790, %v1231, %v1235
    %v1237 = vshrl.u32 %v747, 16
    %v1239 = vrot.slane %v1237, 4
    %v1240 = vor.u32 %v1239, %v1235
    %v1241 = vrot.slane %v1240, 4
    %v1243 = vshll.u32 %v748, 16
    %v1245 = vrot.slane %v1243, 5
    %v1246 = vsel %vm790, %v1241, %v1245
    %v1248 = vshrl.u32 %v749, 16
    %v1250 = vrot.slane %v1248, 4
    %v1251 = vshll.u32 %v749, 16
    %v1253 = vrot.slane %v1251, 5
    %v1254 = vor.u32 %v1250, %v1253
    %v1255 = vrot.slane %v1254, 4
    %v1257 = vshll.u32 %v750, 16
    %v1259 = vrot.slane %v1257, 5
    %v1260 = vsel %vm790, %v1255, %v1259
    %v1261 = vshrl.u32 %v750, 16
    %v1263 = vrot.slane %v1261, 4
    %v1264 = vor.u32 %v1263, %v1259
    %v1265 = vrot.slane %v1264, 4
    %v1267 = vshll.u32 %v751, 16
    %v1269 = vrot.slane %v1267, 5
    %v1270 = vsel %vm790, %v1265, %v1269
    %v1272 = vshrl.u32 %v752, 16
    %v1274 = vrot.slane %v1272, 4
    %v1275 = vshll.u32 %v752, 16
    %v1277 = vrot.slane %v1275, 5
    %v1278 = vor.u32 %v1274, %v1277
    %v1279 = vrot.slane %v1278, 4
    %v1281 = vshll.u32 %v753, 16
    %v1283 = vrot.slane %v1281, 5
    %v1284 = vsel %vm790, %v1279, %v1283
    %v1285 = vshrl.u32 %v753, 16
    %v1287 = vrot.slane %v1285, 4
    %v1288 = vor.u32 %v1287, %v1283
    %v1289 = vrot.slane %v1288, 4
    %v1291 = vshll.u32 %v754, 16
    %v1293 = vrot.slane %v1291, 5
    %v1294 = vsel %vm790, %v1289, %v1293
    %v1296 = vshrl.u32 %v755, 16
    %v1298 = vrot.slane %v1296, 4
    %v1299 = vshll.u32 %v755, 16
    %v1301 = vrot.slane %v1299, 5
    %v1302 = vor.u32 %v1298, %v1301
    %v1303 = vrot.slane %v1302, 4
    %v1305 = vshll.u32 %v756, 16
    %v1307 = vrot.slane %v1305, 5
    %v1308 = vsel %vm790, %v1303, %v1307
    %v1309 = vshrl.u32 %v756, 16
    %v1311 = vrot.slane %v1309, 4
    %v1312 = vor.u32 %v1311, %v1307
    %v1313 = vrot.slane %v1312, 4
    %v1315 = vshll.u32 %v757, 16
    %v1317 = vrot.slane %v1315, 5
    %v1318 = vsel %vm790, %v1313, %v1317
    %v1320 = vshrl.u32 %v758, 16
    %v1322 = vrot.slane %v1320, 4
    %v1323 = vshll.u32 %v758, 16
    %v1325 = vrot.slane %v1323, 5
    %v1326 = vor.u32 %v1322, %v1325
    %v1327 = vrot.slane %v1326, 4
    %v1329 = vshll.u32 %v759, 16
    %v1331 = vrot.slane %v1329, 5
    %v1332 = vsel %vm790, %v1327, %v1331
    %v1333 = vshrl.u32 %v759, 16
    %v1335 = vrot.slane %v1333, 4
    %v1336 = vor.u32 %v1335, %v1331
    %v1337 = vrot.slane %v1336, 4
    %v1339 = vshll.u32 %v760, 16
    %v1341 = vrot.slane %v1339, 5
    %v1342 = vsel %vm790, %v1337, %v1341
    %v1344 = vshrl.u32 %v761, 16
    %v1346 = vrot.slane %v1344, 4
    %v1347 = vshll.u32 %v761, 16
    %v1349 = vrot.slane %v1347, 5
    %v1350 = vor.u32 %v1346, %v1349
    %v1351 = vrot.slane %v1350, 4
    %v1353 = vshll.u32 %v762, 16
    %v1355 = vrot.slane %v1353, 5
    %v1356 = vsel %vm790, %v1351, %v1355
    %v1357 = vshrl.u32 %v762, 16
    %v1359 = vrot.slane %v1357, 4
    %v1360 = vor.u32 %v1359, %v1355
    %v1361 = vrot.slane %v1360, 4
    %v1363 = vshll.u32 %v763, 16
    %v1365 = vrot.slane %v1363, 5
    %v1366 = vsel %vm790, %v1361, %v1365
    %v1368 = vshrl.u32 %v764, 16
    %v1370 = vrot.slane %v1368, 4
    %v1371 = vshll.u32 %v764, 16
    %v1373 = vrot.slane %v1371, 5
    %v1374 = vor.u32 %v1370, %v1373
    %v1375 = vrot.slane %v1374, 4
    %v1377 = vshll.u32 %v765, 16
    %v1379 = vrot.slane %v1377, 5
    %v1380 = vsel %vm790, %v1375, %v1379
    %v1381 = vshrl.u32 %v765, 16
    %v1383 = vrot.slane %v1381, 4
    %v1384 = vor.u32 %v1383, %v1379
    %v1385 = vrot.slane %v1384, 4
    %v1387 = vshll.u32 %v766, 16
    %v1389 = vrot.slane %v1387, 5
    %v1390 = vsel %vm790, %v1385, %v1389
    %v1392 = vshrl.u32 %v767, 16
    %v1394 = vrot.slane %v1392, 4
    %v1395 = vshll.u32 %v767, 16
    %v1397 = vrot.slane %v1395, 5
    %v1398 = vor.u32 %v1394, %v1397
    %v1399 = vrot.slane %v1398, 4
    %v1401 = vshll.u32 %v768, 16
    %v1403 = vrot.slane %v1401, 5
    %v1404 = vsel %vm790, %v1399, %v1403
    %v1405 = vshrl.u32 %v768, 16
    %v1407 = vrot.slane %v1405, 4
    %v1408 = vor.u32 %v1407, %v1403
    %v1409 = vrot.slane %v1408, 4
    %v1411 = vshll.u32 %v769, 16
    %v1413 = vrot.slane %v1411, 5
    %v1414 = vsel %vm790, %v1409, %v1413
    %v1416 = vshrl.u32 %v770, 16
    %v1418 = vrot.slane %v1416, 4
    %v1419 = vshll.u32 %v770, 16
    %v1421 = vrot.slane %v1419, 5
    %v1422 = vor.u32 %v1418, %v1421
    %v1423 = vrot.slane %v1422, 4
    %v1425 = vshll.u32 %v771, 16
    %v1427 = vrot.slane %v1425, 5
    %v1428 = vsel %vm790, %v1423, %v1427
    %v1429 = vshrl.u32 %v771, 16
    %v1431 = vrot.slane %v1429, 4
    %v1432 = vor.u32 %v1431, %v1427
    %v1433 = vrot.slane %v1432, 4
    %v1435 = vshll.u32 %v772, 16
    %v1437 = vrot.slane %v1435, 5
    %v1438 = vsel %vm790, %v1433, %v1437
    %v1440 = vshrl.u32 %v773, 16
    %v1442 = vrot.slane %v1440, 4
    %v1443 = vshll.u32 %v773, 16
    %v1445 = vrot.slane %v1443, 5
    %v1446 = vor.u32 %v1442, %v1445
    %v1447 = vrot.slane %v1446, 4
    %v1449 = vshll.u32 %v774, 16
    %v1451 = vrot.slane %v1449, 5
    %v1452 = vsel %vm790, %v1447, %v1451
    %v1453 = vshrl.u32 %v774, 16
    %v1455 = vrot.slane %v1453, 4
    %v1456 = vor.u32 %v1455, %v1451
    %v1457 = vrot.slane %v1456, 4
    %v1459 = vshll.u32 %v775, 16
    %v1461 = vrot.slane %v1459, 5
    %v1462 = vsel %vm790, %v1457, %v1461
    %v1464 = vshrl.u32 %v776, 16
    %v1466 = vrot.slane %v1464, 4
    %v1467 = vshll.u32 %v776, 16
    %v1469 = vrot.slane %v1467, 5
    %v1470 = vor.u32 %v1466, %v1469
    %v1471 = vrot.slane %v1470, 4
    %v1473 = vshll.u32 %v777, 16
    %v1475 = vrot.slane %v1473, 5
    %v1476 = vsel %vm790, %v1471, %v1475
    %v1477 = vshrl.u32 %v777, 16
    %v1479 = vrot.slane %v1477, 4
    %v1480 = vor.u32 %v1479, %v1475
    %v1481 = vrot.slane %v1480, 4
    %v1483 = vshll.u32 %v778, 16
    %v1485 = vrot.slane %v1483, 5
    %v1486 = vsel %vm790, %v1481, %v1485
    %v1488 = vshrl.u32 %v779, 16
    %v1490 = vrot.slane %v1488, 4
    %v1491 = vshll.u32 %v779, 16
    %v1493 = vrot.slane %v1491, 5
    %v1494 = vor.u32 %v1490, %v1493
    %v1495 = vrot.slane %v1494, 4
    %v1497 = vshll.u32 %v780, 16
    %v1499 = vrot.slane %v1497, 5
    %v1500 = vsel %vm790, %v1495, %v1499
    %v1501 = vshrl.u32 %v780, 16
    %v1503 = vrot.slane %v1501, 4
    %v1504 = vor.u32 %v1503, %v1499
    %v1505 = vrot.slane %v1504, 4
    %v1507 = vshll.u32 %v781, 16
    %v1509 = vrot.slane %v1507, 5
    %v1510 = vsel %vm790, %v1505, %v1509
    %v1512 = vshrl.u32 %v782, 16
    %v1514 = vrot.slane %v1512, 4
    %v1515 = vshll.u32 %v782, 16
    %v1517 = vrot.slane %v1515, 5
    %v1518 = vor.u32 %v1514, %v1517
    %v1519 = vrot.slane %v1518, 4
    %v1521 = vshll.u32 %v783, 16
    %v1523 = vrot.slane %v1521, 5
    %v1524 = vsel %vm790, %v1519, %v1523
    %v1525 = vshrl.u32 %v783, 16
    %v1527 = vrot.slane %v1525, 4
    %v1528 = vor.u32 %v1527, %v1523
    %v1529 = vrot.slane %v1528, 4
    %v1531 = vshll.u32 %v784, 16
    %v1533 = vrot.slane %v1531, 5
    %v1534 = vsel %vm790, %v1529, %v1533
    %v1536 = vshrl.u32 %v785, 16
    %v1538 = vrot.slane %v1536, 4
    %v1539 = vshll.u32 %v785, 16
    %v1541 = vrot.slane %v1539, 5
    %v1542 = vor.u32 %v1538, %v1541
    %v1543 = vrot.slane %v1542, 4
    %v1545 = vshll.u32 %v786, 16
    %v1547 = vrot.slane %v1545, 5
    %v1548 = vsel %vm790, %v1543, %v1547
    %v1549 = vshrl.u32 %v786, 16
    %v1551 = vrot.slane %v1549, 4
    %v1552 = vor.u32 %v1551, %v1547
    %v1553 = vrot.slane %v1552, 4
    %v1555 = vshll.u32 %v787, 16
    %v1557 = vrot.slane %v1555, 5
    %v1558 = vsel %vm790, %v1553, %v1557
    %s1559 = scalar_lea.vmem %s2, 64
    %v1560 = vld [vmem:[%s1559] sm:$0xf]
    %v1561 = vld [vmem:[%s1559 + $0x4] sm:$0xf]
    %v1562 = vld [vmem:[%s1559 + $0x8] sm:$0xf]
    %v1563 = vld [vmem:[%s1559 + $0xc] sm:$0xf]
    %v1564 = vld [vmem:[%s1559 + $0x10] sm:$0xf]
    %v1565 = vld [vmem:[%s1559 + $0x14] sm:$0xf]
    %v1566 = vld [vmem:[%s1559 + $0x18] sm:$0xf]
    %v1567 = vld [vmem:[%s1559 + $0x1c] sm:$0xf]
    %v1568 = vld [vmem:[%s1559 + $0x20] sm:$0xf]
    %v1569 = vld [vmem:[%s1559 + $0x24] sm:$0xf]
    %v1570 = vld [vmem:[%s1559 + $0x28] sm:$0xf]
    %v1571 = vld [vmem:[%s1559 + $0x2c] sm:$0xf]
    %v1572 = vld [vmem:[%s1559 + $0x30] sm:$0xf]
    %v1573 = vld [vmem:[%s1559 + $0x34] sm:$0xf]
    %v1574 = vld [vmem:[%s1559 + $0x38] sm:$0xf]
    %v1575 = vld [vmem:[%s1559 + $0x3c] sm:$0xf]
    %v1576 = vunpack.c.l.b16 %v804
    %v1577 = vunpack.c.l.b16 %v814
    %v1578 = vunpack.c.l.b16 %v828
    %v1579 = vunpack.c.l.b16 %v838
    %v1580 = vunpack.c.l.b16 %v852
    %v1581 = vunpack.c.l.b16 %v862
    %v1582 = vunpack.c.l.b16 %v876
    %v1583 = vunpack.c.l.b16 %v886
    %v1584 = vunpack.c.l.b16 %v900
    %v1585 = vunpack.c.l.b16 %v910
    %v1586 = vunpack.c.l.b16 %v924
    %v1587 = vunpack.c.l.b16 %v934
    %v1588 = vunpack.c.l.b16 %v948
    %v1589 = vunpack.c.l.b16 %v958
    %v1590 = vunpack.c.l.b16 %v972
    %v1591 = vunpack.c.l.b16 %v982
    %v1592 = vunpack.c.l.b16 %v996
    %v1593 = vunpack.c.l.b16 %v1006
    %v1594 = vunpack.c.l.b16 %v1020
    %v1595 = vunpack.c.l.b16 %v1030
    %v1596 = vunpack.c.l.b16 %v1044
    %v1597 = vunpack.c.l.b16 %v1054
    %v1598 = vunpack.c.l.b16 %v1068
    %v1599 = vunpack.c.l.b16 %v1078
    %v1600 = vunpack.c.l.b16 %v1092
    %v1601 = vunpack.c.l.b16 %v1102
    %v1602 = vunpack.c.l.b16 %v1116
    %v1603 = vunpack.c.l.b16 %v1126
    %v1604 = vunpack.c.l.b16 %v1140
    %v1605 = vunpack.c.l.b16 %v1150
    %v1606 = vunpack.c.l.b16 %v1164
    %v1607 = vunpack.c.l.b16 %v1174
    %v1608 = vunpack.c.l.b16 %v1188
    %v1609 = vunpack.c.l.b16 %v1198
    %v1610 = vunpack.c.l.b16 %v1212
    %v1611 = vunpack.c.l.b16 %v1222
    %v1612 = vunpack.c.l.b16 %v1236
    %v1613 = vunpack.c.l.b16 %v1246
    %v1614 = vunpack.c.l.b16 %v1260
    %v1615 = vunpack.c.l.b16 %v1270
    %v1616 = vunpack.c.l.b16 %v1284
    %v1617 = vunpack.c.l.b16 %v1294
    %v1618 = vunpack.c.l.b16 %v1308
    %v1619 = vunpack.c.l.b16 %v1318
    %v1620 = vunpack.c.l.b16 %v1332
    %v1621 = vunpack.c.l.b16 %v1342
    %v1622 = vunpack.c.l.b16 %v1356
    %v1623 = vunpack.c.l.b16 %v1366
    %v1624 = vunpack.c.l.b16 %v1380
    %v1625 = vunpack.c.l.b16 %v1390
    %v1626 = vunpack.c.l.b16 %v1404
    %v1627 = vunpack.c.l.b16 %v1414
    %v1628 = vunpack.c.l.b16 %v1428
    %v1629 = vunpack.c.l.b16 %v1438
    %v1630 = vunpack.c.l.b16 %v1452
    %v1631 = vunpack.c.l.b16 %v1462
    %v1632 = vunpack.c.l.b16 %v1476
    %v1633 = vunpack.c.l.b16 %v1486
    %v1634 = vunpack.c.l.b16 %v1500
    %v1635 = vunpack.c.l.b16 %v1510
    %v1636 = vunpack.c.l.b16 %v1524
    %v1637 = vunpack.c.l.b16 %v1534
    %v1638 = vunpack.c.l.b16 %v1548
    %v1639 = vunpack.c.l.b16 %v1558
    %v1640 = vpack.c.b16 %v1577, %v1576
    %v1641 = vpack.c.b16 %v1579, %v1578
    %v1642 = vpack.c.b16 %v1581, %v1580
    %v1643 = vpack.c.b16 %v1583, %v1582
    %v1644 = vpack.c.b16 %v1585, %v1584
    %v1645 = vpack.c.b16 %v1587, %v1586
    %v1646 = vpack.c.b16 %v1589, %v1588
    %v1647 = vpack.c.b16 %v1591, %v1590
    %v1648 = vpack.c.b16 %v1593, %v1592
    %v1649 = vpack.c.b16 %v1595, %v1594
    %v1650 = vpack.c.b16 %v1597, %v1596
    %v1651 = vpack.c.b16 %v1599, %v1598
    %v1652 = vpack.c.b16 %v1601, %v1600
    %v1653 = vpack.c.b16 %v1603, %v1602
    %v1654 = vpack.c.b16 %v1605, %v1604
    %v1655 = vpack.c.b16 %v1607, %v1606
    %v1656 = vpack.c.b16 %v1609, %v1608
    %v1657 = vpack.c.b16 %v1611, %v1610
    %v1658 = vpack.c.b16 %v1613, %v1612
    %v1659 = vpack.c.b16 %v1615, %v1614
    %v1660 = vpack.c.b16 %v1617, %v1616
    %v1661 = vpack.c.b16 %v1619, %v1618
    %v1662 = vpack.c.b16 %v1621, %v1620
    %v1663 = vpack.c.b16 %v1623, %v1622
    %v1664 = vpack.c.b16 %v1625, %v1624
    %v1665 = vpack.c.b16 %v1627, %v1626
    %v1666 = vpack.c.b16 %v1629, %v1628
    %v1667 = vpack.c.b16 %v1631, %v1630
    %v1668 = vpack.c.b16 %v1633, %v1632
    %v1669 = vpack.c.b16 %v1635, %v1634
    %v1670 = vpack.c.b16 %v1637, %v1636
    %v1671 = vpack.c.b16 %v1639, %v1638
    %v1720 = vunpack.c.l.b16 %v1560
    %v1721 = vunpack.c.l.b16 %v1561
    %v1722 = vunpack.c.l.b16 %v1562
    %v1723 = vunpack.c.l.b16 %v1563
    %v1724 = vunpack.c.l.b16 %v1564
    %v1725 = vunpack.c.l.b16 %v1565
    %v1726 = vunpack.c.l.b16 %v1566
    %v1727 = vunpack.c.l.b16 %v1567
    %v1728 = vunpack.c.l.b16 %v1568
    %v1729 = vunpack.c.l.b16 %v1569
    %v1730 = vunpack.c.l.b16 %v1570
    %v1731 = vunpack.c.l.b16 %v1571
    %v1732 = vunpack.c.l.b16 %v1572
    %v1733 = vunpack.c.l.b16 %v1573
    %v1734 = vunpack.c.l.b16 %v1574
    %v1735 = vunpack.c.l.b16 %v1575
    %v1736 = vpack.c.b16 %v1721, %v1720
    %v1737 = vpack.c.b16 %v1723, %v1722
    %v1738 = vpack.c.b16 %v1725, %v1724
    %v1739 = vpack.c.b16 %v1727, %v1726
    %v1740 = vpack.c.b16 %v1729, %v1728
    %v1741 = vpack.c.b16 %v1731, %v1730
    %v1742 = vpack.c.b16 %v1733, %v1732
    %v1743 = vpack.c.b16 %v1735, %v1734
    %1752 = vmatprep.subr.bf16.mxu0 0
    %1753 = vmatpush1.bf16.msra.mxu0 %v1743
    %1754 = vmatprep.subr.bf16.mxu0 0
    %1755 = vmatpush1.bf16.msra.mxu0 %v1742
    %1756 = vmatprep.subr.bf16.mxu0 0
    %1757 = vmatpush1.bf16.msra.mxu0 %v1741
    %1758 = vmatprep.subr.bf16.mxu0 0
    %1759 = vmatpush1.bf16.msra.mxu0 %v1740
    %1760 = vmatprep.subr.bf16.mxu0 0
    %1761 = vmatpush1.bf16.msra.mxu0 %v1739
    %1762 = vmatprep.subr.bf16.mxu0 0
    %1763 = vmatpush1.bf16.msra.mxu0 %v1738
    %1764 = vmatprep.subr.bf16.mxu0 0
    %1765 = vmatpush1.bf16.msra.mxu0 %v1737
    %1766 = vmatprep.subr.bf16.mxu0 0
    %1767 = vmatpush1.bf16.msra.mxu0 %v1736
    %1768 = vmatprep.subr.bf16.mxu0 0
    %1769 = vmatpush2.bf16.msra.mxu0 0
    %1770 = vmatprep.subr.bf16.mxu0 0
    %1771 = vmatpush2.bf16.msra.mxu0 0
    %1772 = vmatprep.subr.bf16.mxu0 0
    %1773 = vmatpush2.bf16.msra.mxu0 0
    %1774 = vmatprep.subr.bf16.mxu0 0
    %1775 = vmatpush2.bf16.msra.mxu0 0
    %1776 = vmatprep.subr.bf16.mxu0 0
    %1777 = vmatpush2.bf16.msra.mxu0 0
    %1778 = vmatprep.subr.bf16.mxu0 0
    %1779 = vmatpush2.bf16.msra.mxu0 0
    %1780 = vmatprep.subr.bf16.mxu0 0
    %1781 = vmatpush2.bf16.msra.mxu0 0
    %1782 = vmatprep.subr.bf16.mxu0 0
    %1783 = vmatpush2.bf16.msra.mxu0 0
    %1784 = vmatprep.mubr.bf16.mxu0 0
    %1785 = vmatmul.mubr.bf16.gmra.mxu0 %v1640
    %v1786 = vpop.f32.mrf.mxu0
    %v1787 = vadd.f32 0.0, %v1786
    %v1788 = vpop.f32.mrf.mxu0
    %v1789 = vpop.f32.mrf.mxu0
    %v1790 = vadd.f32 0.0, %v1789
    %v1791 = vpop.f32.mrf.mxu0
    %1792 = vmatprep.mubr.bf16.mxu0 0
    %1793 = vmatmul.mubr.bf16.gmra.mxu0 %v1641
    %v1794 = vpop.f32.mrf.mxu0
    %v1795 = vadd.f32 0.0, %v1794
    %v1796 = vpop.f32.mrf.mxu0
    %v1797 = vpop.f32.mrf.mxu0
    %v1798 = vadd.f32 0.0, %v1797
    %v1799 = vpop.f32.mrf.mxu0
    %1800 = vmatprep.mubr.bf16.mxu0 0
    %1801 = vmatmul.mubr.bf16.gmra.mxu0 %v1642
    %v1802 = vpop.f32.mrf.mxu0
    %v1803 = vadd.f32 0.0, %v1802
    %v1804 = vpop.f32.mrf.mxu0
    %v1805 = vpop.f32.mrf.mxu0
    %v1806 = vadd.f32 0.0, %v1805
    %v1807 = vpop.f32.mrf.mxu0
    %1808 = vmatprep.mubr.bf16.mxu0 0
    %1809 = vmatmul.mubr.bf16.gmra.mxu0 %v1643
    %v1810 = vpop.f32.mrf.mxu0
    %v1811 = vadd.f32 0.0, %v1810
    %v1812 = vpop.f32.mrf.mxu0
    %v1813 = vpop.f32.mrf.mxu0
    %v1814 = vadd.f32 0.0, %v1813
    %v1815 = vpop.f32.mrf.mxu0
    %1816 = vmatprep.mubr.bf16.mxu0 0
    %1817 = vmatmul.mubr.bf16.gmra.mxu0 %v1644
    %v1818 = vpop.f32.mrf.mxu0
    %v1819 = vadd.f32 0.0, %v1818
    %v1820 = vpop.f32.mrf.mxu0
    %v1821 = vpop.f32.mrf.mxu0
    %v1822 = vadd.f32 0.0, %v1821
    %v1823 = vpop.f32.mrf.mxu0
    %1824 = vmatprep.mubr.bf16.mxu0 0
    %1825 = vmatmul.mubr.bf16.gmra.mxu0 %v1645
    %v1826 = vpop.f32.mrf.mxu0
    %v1827 = vadd.f32 0.0, %v1826
    %v1828 = vpop.f32.mrf.mxu0
    %v1829 = vpop.f32.mrf.mxu0
    %v1830 = vadd.f32 0.0, %v1829
    %v1831 = vpop.f32.mrf.mxu0
    %1832 = vmatprep.mubr.bf16.mxu0 0
    %1833 = vmatmul.mubr.bf16.gmra.mxu0 %v1646
    %v1834 = vpop.f32.mrf.mxu0
    %v1835 = vadd.f32 0.0, %v1834
    %v1836 = vpop.f32.mrf.mxu0
    %v1837 = vpop.f32.mrf.mxu0
    %v1838 = vadd.f32 0.0, %v1837
    %v1839 = vpop.f32.mrf.mxu0
    %1840 = vmatprep.mubr.bf16.mxu0 0
    %1841 = vmatmul.mubr.bf16.gmra.mxu0 %v1647
    %v1842 = vpop.f32.mrf.mxu0
    %v1843 = vadd.f32 0.0, %v1842
    %v1844 = vpop.f32.mrf.mxu0
    %v1845 = vpop.f32.mrf.mxu0
    %v1846 = vadd.f32 0.0, %v1845
    %v1847 = vpop.f32.mrf.mxu0
    %1848 = vmatprep.mubr.bf16.mxu0 0
    %1849 = vmatmul.mubr.bf16.gmra.mxu0 %v1648
    %v1850 = vpop.f32.mrf.mxu0
    %v1851 = vadd.f32 0.0, %v1850
    %v1852 = vpop.f32.mrf.mxu0
    %v1853 = vpop.f32.mrf.mxu0
    %v1854 = vadd.f32 0.0, %v1853
    %v1855 = vpop.f32.mrf.mxu0
    %1856 = vmatprep.mubr.bf16.mxu0 0
    %1857 = vmatmul.mubr.bf16.gmra.mxu0 %v1649
    %v1858 = vpop.f32.mrf.mxu0
    %v1859 = vadd.f32 0.0, %v1858
    %v1860 = vpop.f32.mrf.mxu0
    %v1861 = vpop.f32.mrf.mxu0
    %v1862 = vadd.f32 0.0, %v1861
    %v1863 = vpop.f32.mrf.mxu0
    %1864 = vmatprep.mubr.bf16.mxu0 0
    %1865 = vmatmul.mubr.bf16.gmra.mxu0 %v1650
    %v1866 = vpop.f32.mrf.mxu0
    %v1867 = vadd.f32 0.0, %v1866
    %v1868 = vpop.f32.mrf.mxu0
    %v1869 = vpop.f32.mrf.mxu0
    %v1870 = vadd.f32 0.0, %v1869
    %v1871 = vpop.f32.mrf.mxu0
    %1872 = vmatprep.mubr.bf16.mxu0 0
    %1873 = vmatmul.mubr.bf16.gmra.mxu0 %v1651
    %v1874 = vpop.f32.mrf.mxu0
    %v1875 = vadd.f32 0.0, %v1874
    %v1876 = vpop.f32.mrf.mxu0
    %v1877 = vpop.f32.mrf.mxu0
    %v1878 = vadd.f32 0.0, %v1877
    %v1879 = vpop.f32.mrf.mxu0
    %1880 = vmatprep.mubr.bf16.mxu0 0
    %1881 = vmatmul.mubr.bf16.gmra.mxu0 %v1652
    %v1882 = vpop.f32.mrf.mxu0
    %v1883 = vadd.f32 0.0, %v1882
    %v1884 = vpop.f32.mrf.mxu0
    %v1885 = vpop.f32.mrf.mxu0
    %v1886 = vadd.f32 0.0, %v1885
    %v1887 = vpop.f32.mrf.mxu0
    %1888 = vmatprep.mubr.bf16.mxu0 0
    %1889 = vmatmul.mubr.bf16.gmra.mxu0 %v1653
    %v1890 = vpop.f32.mrf.mxu0
    %v1891 = vadd.f32 0.0, %v1890
    %v1892 = vpop.f32.mrf.mxu0
    %v1893 = vpop.f32.mrf.mxu0
    %v1894 = vadd.f32 0.0, %v1893
    %v1895 = vpop.f32.mrf.mxu0
    %1896 = vmatprep.mubr.bf16.mxu0 0
    %1897 = vmatmul.mubr.bf16.gmra.mxu0 %v1654
    %v1898 = vpop.f32.mrf.mxu0
    %v1899 = vadd.f32 0.0, %v1898
    %v1900 = vpop.f32.mrf.mxu0
    %v1901 = vpop.f32.mrf.mxu0
    %v1902 = vadd.f32 0.0, %v1901
    %v1903 = vpop.f32.mrf.mxu0
    %1904 = vmatprep.mubr.bf16.mxu0 0
    %1905 = vmatmul.mubr.bf16.gmra.mxu0 %v1655
    %v1906 = vpop.f32.mrf.mxu0
    %v1907 = vadd.f32 0.0, %v1906
    %v1908 = vpop.f32.mrf.mxu0
    %v1909 = vpop.f32.mrf.mxu0
    %v1910 = vadd.f32 0.0, %v1909
    %v1911 = vpop.f32.mrf.mxu0
    %1912 = vmatprep.mubr.bf16.mxu0 0
    %1913 = vmatmul.mubr.bf16.gmra.mxu0 %v1656
    %v1914 = vpop.f32.mrf.mxu0
    %v1915 = vadd.f32 0.0, %v1914
    %v1916 = vpop.f32.mrf.mxu0
    %v1917 = vpop.f32.mrf.mxu0
    %v1918 = vadd.f32 0.0, %v1917
    %v1919 = vpop.f32.mrf.mxu0
    %1920 = vmatprep.mubr.bf16.mxu0 0
    %1921 = vmatmul.mubr.bf16.gmra.mxu0 %v1657
    %v1922 = vpop.f32.mrf.mxu0
    %v1923 = vadd.f32 0.0, %v1922
    %v1924 = vpop.f32.mrf.mxu0
    %v1925 = vpop.f32.mrf.mxu0
    %v1926 = vadd.f32 0.0, %v1925
    %v1927 = vpop.f32.mrf.mxu0
    %1928 = vmatprep.mubr.bf16.mxu0 0
    %1929 = vmatmul.mubr.bf16.gmra.mxu0 %v1658
    %v1930 = vpop.f32.mrf.mxu0
    %v1931 = vadd.f32 0.0, %v1930
    %v1932 = vpop.f32.mrf.mxu0
    %v1933 = vpop.f32.mrf.mxu0
    %v1934 = vadd.f32 0.0, %v1933
    %v1935 = vpop.f32.mrf.mxu0
    %1936 = vmatprep.mubr.bf16.mxu0 0
    %1937 = vmatmul.mubr.bf16.gmra.mxu0 %v1659
    %v1938 = vpop.f32.mrf.mxu0
    %v1939 = vadd.f32 0.0, %v1938
    %v1940 = vpop.f32.mrf.mxu0
    %v1941 = vpop.f32.mrf.mxu0
    %v1942 = vadd.f32 0.0, %v1941
    %v1943 = vpop.f32.mrf.mxu0
    %1944 = vmatprep.mubr.bf16.mxu0 0
    %1945 = vmatmul.mubr.bf16.gmra.mxu0 %v1660
    %v1946 = vpop.f32.mrf.mxu0
    %v1947 = vadd.f32 0.0, %v1946
    %v1948 = vpop.f32.mrf.mxu0
    %v1949 = vpop.f32.mrf.mxu0
    %v1950 = vadd.f32 0.0, %v1949
    %v1951 = vpop.f32.mrf.mxu0
    %1952 = vmatprep.mubr.bf16.mxu0 0
    %1953 = vmatmul.mubr.bf16.gmra.mxu0 %v1661
    %v1954 = vpop.f32.mrf.mxu0
    %v1955 = vadd.f32 0.0, %v1954
    %v1956 = vpop.f32.mrf.mxu0
    %v1957 = vpop.f32.mrf.mxu0
    %v1958 = vadd.f32 0.0, %v1957
    %v1959 = vpop.f32.mrf.mxu0
    %1960 = vmatprep.mubr.bf16.mxu0 0
    %1961 = vmatmul.mubr.bf16.gmra.mxu0 %v1662
    %v1962 = vpop.f32.mrf.mxu0
    %v1963 = vadd.f32 0.0, %v1962
    %v1964 = vpop.f32.mrf.mxu0
    %v1965 = vpop.f32.mrf.mxu0
    %v1966 = vadd.f32 0.0, %v1965
    %v1967 = vpop.f32.mrf.mxu0
    %1968 = vmatprep.mubr.bf16.mxu0 0
    %1969 = vmatmul.mubr.bf16.gmra.mxu0 %v1663
    %v1970 = vpop.f32.mrf.mxu0
    %v1971 = vadd.f32 0.0, %v1970
    %v1972 = vpop.f32.mrf.mxu0
    %v1973 = vpop.f32.mrf.mxu0
    %v1974 = vadd.f32 0.0, %v1973
    %v1975 = vpop.f32.mrf.mxu0
    %1976 = vmatprep.mubr.bf16.mxu0 0
    %1977 = vmatmul.mubr.bf16.gmra.mxu0 %v1664
    %v1978 = vpop.f32.mrf.mxu0
    %v1979 = vadd.f32 0.0, %v1978
    %v1980 = vpop.f32.mrf.mxu0
    %v1981 = vpop.f32.mrf.mxu0
    %v1982 = vadd.f32 0.0, %v1981
    %v1983 = vpop.f32.mrf.mxu0
    %1984 = vmatprep.mubr.bf16.mxu0 0
    %1985 = vmatmul.mubr.bf16.gmra.mxu0 %v1665
    %v1986 = vpop.f32.mrf.mxu0
    %v1987 = vadd.f32 0.0, %v1986
    %v1988 = vpop.f32.mrf.mxu0
    %v1989 = vpop.f32.mrf.mxu0
    %v1990 = vadd.f32 0.0, %v1989
    %v1991 = vpop.f32.mrf.mxu0
    %1992 = vmatprep.mubr.bf16.mxu0 0
    %1993 = vmatmul.mubr.bf16.gmra.mxu0 %v1666
    %v1994 = vpop.f32.mrf.mxu0
    %v1995 = vadd.f32 0.0, %v1994
    %v1996 = vpop.f32.mrf.mxu0
    %v1997 = vpop.f32.mrf.mxu0
    %v1998 = vadd.f32 0.0, %v1997
    %v1999 = vpop.f32.mrf.mxu0
    %2000 = vmatprep.mubr.bf16.mxu0 0
    %2001 = vmatmul.mubr.bf16.gmra.mxu0 %v1667
    %v2002 = vpop.f32.mrf.mxu0
    %v2003 = vadd.f32 0.0, %v2002
    %v2004 = vpop.f32.mrf.mxu0
    %v2005 = vpop.f32.mrf.mxu0
    %v2006 = vadd.f32 0.0, %v2005
    %v2007 = vpop.f32.mrf.mxu0
    %2008 = vmatprep.mubr.bf16.mxu0 0
    %2009 = vmatmul.mubr.bf16.gmra.mxu0 %v1668
    %v2010 = vpop.f32.mrf.mxu0
    %v2011 = vadd.f32 0.0, %v2010
    %v2012 = vpop.f32.mrf.mxu0
    %v2013 = vpop.f32.mrf.mxu0
    %v2014 = vadd.f32 0.0, %v2013
    %v2015 = vpop.f32.mrf.mxu0
    %2016 = vmatprep.mubr.bf16.mxu0 0
    %2017 = vmatmul.mubr.bf16.gmra.mxu0 %v1669
    %v2018 = vpop.f32.mrf.mxu0
    %v2019 = vadd.f32 0.0, %v2018
    %v2020 = vpop.f32.mrf.mxu0
    %v2021 = vpop.f32.mrf.mxu0
    %v2022 = vadd.f32 0.0, %v2021
    %v2023 = vpop.f32.mrf.mxu0
    %2024 = vmatprep.mubr.bf16.mxu0 0
    %2025 = vmatmul.mubr.bf16.gmra.mxu0 %v1670
    %v2026 = vpop.f32.mrf.mxu0
    %v2027 = vadd.f32 0.0, %v2026
    %v2028 = vpop.f32.mrf.mxu0
    %v2029 = vpop.f32.mrf.mxu0
    %v2030 = vadd.f32 0.0, %v2029
    %v2031 = vpop.f32.mrf.mxu0
    %2032 = vmatprep.mubr.bf16.mxu0 0
    %2033 = vmatmul.mubr.bf16.gmra.mxu0 %v1671
    %v2034 = vpop.f32.mrf.mxu0
    %v2035 = vadd.f32 0.0, %v2034
    %v2036 = vpop.f32.mrf.mxu0
    %v2037 = vpop.f32.mrf.mxu0
    %v2038 = vadd.f32 0.0, %v2037
    %v2039 = vpop.f32.mrf.mxu0
    %2040 = vdwg.mxu0
    %v2041 = vld [vmem:[#allocation2] sm:$0xff]
    %v2042 = vld [vmem:[#allocation2 + $0x8] sm:$0xff]
    %v2043 = vld [vmem:[#allocation2 + $0x10] sm:$0xff]
    %v2044 = vld [vmem:[#allocation2 + $0x18] sm:$0xff]
    %v2045 = vld [vmem:[#allocation2 + $0x20] sm:$0xff]
    %v2046 = vld [vmem:[#allocation2 + $0x28] sm:$0xff]
    %v2047 = vld [vmem:[#allocation2 + $0x30] sm:$0xff]
    %v2048 = vld [vmem:[#allocation2 + $0x38] sm:$0xff]
    %v2049 = vld [vmem:[#allocation2 + $0x40] sm:$0xff]
    %v2050 = vld [vmem:[#allocation2 + $0x48] sm:$0xff]
    %v2051 = vld [vmem:[#allocation2 + $0x50] sm:$0xff]
    %v2052 = vld [vmem:[#allocation2 + $0x58] sm:$0xff]
    %v2053 = vld [vmem:[#allocation2 + $0x60] sm:$0xff]
    %v2054 = vld [vmem:[#allocation2 + $0x68] sm:$0xff]
    %v2055 = vld [vmem:[#allocation2 + $0x70] sm:$0xff]
    %v2056 = vld [vmem:[#allocation2 + $0x78] sm:$0xff]
    %v2057 = vld [vmem:[#allocation2 + $0x80] sm:$0xff]
    %v2058 = vld [vmem:[#allocation2 + $0x88] sm:$0xff]
    %v2059 = vld [vmem:[#allocation2 + $0x90] sm:$0xff]
    %v2060 = vld [vmem:[#allocation2 + $0x98] sm:$0xff]
    %v2061 = vld [vmem:[#allocation2 + $0xa0] sm:$0xff]
    %v2062 = vld [vmem:[#allocation2 + $0xa8] sm:$0xff]
    %v2063 = vld [vmem:[#allocation2 + $0xb0] sm:$0xff]
    %v2064 = vld [vmem:[#allocation2 + $0xb8] sm:$0xff]
    %v2065 = vld [vmem:[#allocation2 + $0xc0] sm:$0xff]
    %v2066 = vld [vmem:[#allocation2 + $0xc8] sm:$0xff]
    %v2067 = vld [vmem:[#allocation2 + $0xd0] sm:$0xff]
    %v2068 = vld [vmem:[#allocation2 + $0xd8] sm:$0xff]
    %v2069 = vld [vmem:[#allocation2 + $0xe0] sm:$0xff]
    %v2070 = vld [vmem:[#allocation2 + $0xe8] sm:$0xff]
    %v2071 = vld [vmem:[#allocation2 + $0xf0] sm:$0xff]
    %v2072 = vld [vmem:[#allocation2 + $0xf8] sm:$0xff]
    %v2073 = vld [vmem:[#allocation2 + $0x100] sm:$0xff]
    %v2074 = vld [vmem:[#allocation2 + $0x108] sm:$0xff]
    %v2075 = vld [vmem:[#allocation2 + $0x110] sm:$0xff]
    %v2076 = vld [vmem:[#allocation2 + $0x118] sm:$0xff]
    %v2077 = vld [vmem:[#allocation2 + $0x120] sm:$0xff]
    %v2078 = vld [vmem:[#allocation2 + $0x128] sm:$0xff]
    %v2079 = vld [vmem:[#allocation2 + $0x130] sm:$0xff]
    %v2080 = vld [vmem:[#allocation2 + $0x138] sm:$0xff]
    %v2081 = vld [vmem:[#allocation2 + $0x140] sm:$0xff]
    %v2082 = vld [vmem:[#allocation2 + $0x148] sm:$0xff]
    %v2083 = vld [vmem:[#allocation2 + $0x150] sm:$0xff]
    %v2084 = vld [vmem:[#allocation2 + $0x158] sm:$0xff]
    %v2085 = vld [vmem:[#allocation2 + $0x160] sm:$0xff]
    %v2086 = vld [vmem:[#allocation2 + $0x168] sm:$0xff]
    %v2087 = vld [vmem:[#allocation2 + $0x170] sm:$0xff]
    %v2088 = vld [vmem:[#allocation2 + $0x178] sm:$0xff]
    %v2089 = vld [vmem:[#allocation2 + $0x180] sm:$0xff]
    %v2090 = vld [vmem:[#allocation2 + $0x188] sm:$0xff]
    %v2091 = vld [vmem:[#allocation2 + $0x190] sm:$0xff]
    %v2092 = vld [vmem:[#allocation2 + $0x198] sm:$0xff]
    %v2093 = vld [vmem:[#allocation2 + $0x1a0] sm:$0xff]
    %v2094 = vld [vmem:[#allocation2 + $0x1a8] sm:$0xff]
    %v2095 = vld [vmem:[#allocation2 + $0x1b0] sm:$0xff]
    %v2096 = vld [vmem:[#allocation2 + $0x1b8] sm:$0xff]
    %v2097 = vld [vmem:[#allocation2 + $0x1c0] sm:$0xff]
    %v2098 = vld [vmem:[#allocation2 + $0x1c8] sm:$0xff]
    %v2099 = vld [vmem:[#allocation2 + $0x1d0] sm:$0xff]
    %v2100 = vld [vmem:[#allocation2 + $0x1d8] sm:$0xff]
    %v2101 = vld [vmem:[#allocation2 + $0x1e0] sm:$0xff]
    %v2102 = vld [vmem:[#allocation2 + $0x1e8] sm:$0xff]
    %v2103 = vld [vmem:[#allocation2 + $0x1f0] sm:$0xff]
    %v2104 = vld [vmem:[#allocation2 + $0x1f8] sm:$0xff]
    %v2105 = vadd.f32 %v2041, %v1787
    %v2106 = vadd.f32 %v2042, %v1790
    %v2107 = vadd.f32 %v2043, %v1795
    %v2108 = vadd.f32 %v2044, %v1798
    %v2109 = vadd.f32 %v2045, %v1803
    %v2110 = vadd.f32 %v2046, %v1806
    %v2111 = vadd.f32 %v2047, %v1811
    %v2112 = vadd.f32 %v2048, %v1814
    %v2113 = vadd.f32 %v2049, %v1819
    %v2114 = vadd.f32 %v2050, %v1822
    %v2115 = vadd.f32 %v2051, %v1827
    %v2116 = vadd.f32 %v2052, %v1830
    %v2117 = vadd.f32 %v2053, %v1835
    %v2118 = vadd.f32 %v2054, %v1838
    %v2119 = vadd.f32 %v2055, %v1843
    %v2120 = vadd.f32 %v2056, %v1846
    %v2121 = vadd.f32 %v2057, %v1851
    %v2122 = vadd.f32 %v2058, %v1854
    %v2123 = vadd.f32 %v2059, %v1859
    %v2124 = vadd.f32 %v2060, %v1862
    %v2125 = vadd.f32 %v2061, %v1867
    %v2126 = vadd.f32 %v2062, %v1870
    %v2127 = vadd.f32 %v2063, %v1875
    %v2128 = vadd.f32 %v2064, %v1878
    %v2129 = vadd.f32 %v2065, %v1883
    %v2130 = vadd.f32 %v2066, %v1886
    %v2131 = vadd.f32 %v2067, %v1891
    %v2132 = vadd.f32 %v2068, %v1894
    %v2133 = vadd.f32 %v2069, %v1899
    %v2134 = vadd.f32 %v2070, %v1902
    %v2135 = vadd.f32 %v2071, %v1907
    %v2136 = vadd.f32 %v2072, %v1910
    %v2137 = vadd.f32 %v2073, %v1915
    %v2138 = vadd.f32 %v2074, %v1918
    %v2139 = vadd.f32 %v2075, %v1923
    %v2140 = vadd.f32 %v2076, %v1926
    %v2141 = vadd.f32 %v2077, %v1931
    %v2142 = vadd.f32 %v2078, %v1934
    %v2143 = vadd.f32 %v2079, %v1939
    %v2144 = vadd.f32 %v2080, %v1942
    %v2145 = vadd.f32 %v2081, %v1947
    %v2146 = vadd.f32 %v2082, %v1950
    %v2147 = vadd.f32 %v2083, %v1955
    %v2148 = vadd.f32 %v2084, %v1958
    %v2149 = vadd.f32 %v2085, %v1963
    %v2150 = vadd.f32 %v2086, %v1966
    %v2151 = vadd.f32 %v2087, %v1971
    %v2152 = vadd.f32 %v2088, %v1974
    %v2153 = vadd.f32 %v2089, %v1979
    %v2154 = vadd.f32 %v2090, %v1982
    %v2155 = vadd.f32 %v2091, %v1987
    %v2156 = vadd.f32 %v2092, %v1990
    %v2157 = vadd.f32 %v2093, %v1995
    %v2158 = vadd.f32 %v2094, %v1998
    %v2159 = vadd.f32 %v2095, %v2003
    %v2160 = vadd.f32 %v2096, %v2006
    %v2161 = vadd.f32 %v2097, %v2011
    %v2162 = vadd.f32 %v2098, %v2014
    %v2163 = vadd.f32 %v2099, %v2019
    %v2164 = vadd.f32 %v2100, %v2022
    %v2165 = vadd.f32 %v2101, %v2027
    %v2166 = vadd.f32 %v2102, %v2030
    %v2167 = vadd.f32 %v2103, %v2035
    %v2168 = vadd.f32 %v2104, %v2038
    %2169 = vst [vmem:[#allocation2] sm:$0xff] %v2105
    %2170 = vst [vmem:[#allocation2 + $0x8] sm:$0xff] %v2106
    %2171 = vst [vmem:[#allocation2 + $0x10] sm:$0xff] %v2107
    %2172 = vst [vmem:[#allocation2 + $0x18] sm:$0xff] %v2108
    %2173 = vst [vmem:[#allocation2 + $0x20] sm:$0xff] %v2109
    %2174 = vst [vmem:[#allocation2 + $0x28] sm:$0xff] %v2110
    %2175 = vst [vmem:[#allocation2 + $0x30] sm:$0xff] %v2111
    %2176 = vst [vmem:[#allocation2 + $0x38] sm:$0xff] %v2112
    %2177 = vst [vmem:[#allocation2 + $0x40] sm:$0xff] %v2113
    %2178 = vst [vmem:[#allocation2 + $0x48] sm:$0xff] %v2114
    %2179 = vst [vmem:[#allocation2 + $0x50] sm:$0xff] %v2115
    %2180 = vst [vmem:[#allocation2 + $0x58] sm:$0xff] %v2116
    %2181 = vst [vmem:[#allocation2 + $0x60] sm:$0xff] %v2117
    %2182 = vst [vmem:[#allocation2 + $0x68] sm:$0xff] %v2118
    %2183 = vst [vmem:[#allocation2 + $0x70] sm:$0xff] %v2119
    %2184 = vst [vmem:[#allocation2 + $0x78] sm:$0xff] %v2120
    %2185 = vst [vmem:[#allocation2 + $0x80] sm:$0xff] %v2121
    %2186 = vst [vmem:[#allocation2 + $0x88] sm:$0xff] %v2122
    %2187 = vst [vmem:[#allocation2 + $0x90] sm:$0xff] %v2123
    %2188 = vst [vmem:[#allocation2 + $0x98] sm:$0xff] %v2124
    %2189 = vst [vmem:[#allocation2 + $0xa0] sm:$0xff] %v2125
    %2190 = vst [vmem:[#allocation2 + $0xa8] sm:$0xff] %v2126
    %2191 = vst [vmem:[#allocation2 + $0xb0] sm:$0xff] %v2127
    %2192 = vst [vmem:[#allocation2 + $0xb8] sm:$0xff] %v2128
    %2193 = vst [vmem:[#allocation2 + $0xc0] sm:$0xff] %v2129
    %2194 = vst [vmem:[#allocation2 + $0xc8] sm:$0xff] %v2130
    %2195 = vst [vmem:[#allocation2 + $0xd0] sm:$0xff] %v2131
    %2196 = vst [vmem:[#allocation2 + $0xd8] sm:$0xff] %v2132
    %2197 = vst [vmem:[#allocation2 + $0xe0] sm:$0xff] %v2133
    %2198 = vst [vmem:[#allocation2 + $0xe8] sm:$0xff] %v2134
    %2199 = vst [vmem:[#allocation2 + $0xf0] sm:$0xff] %v2135
    %2200 = vst [vmem:[#allocation2 + $0xf8] sm:$0xff] %v2136
    %2201 = vst [vmem:[#allocation2 + $0x100] sm:$0xff] %v2137
    %2202 = vst [vmem:[#allocation2 + $0x108] sm:$0xff] %v2138
    %2203 = vst [vmem:[#allocation2 + $0x110] sm:$0xff] %v2139
    %2204 = vst [vmem:[#allocation2 + $0x118] sm:$0xff] %v2140
    %2205 = vst [vmem:[#allocation2 + $0x120] sm:$0xff] %v2141
    %2206 = vst [vmem:[#allocation2 + $0x128] sm:$0xff] %v2142
    %2207 = vst [vmem:[#allocation2 + $0x130] sm:$0xff] %v2143
    %2208 = vst [vmem:[#allocation2 + $0x138] sm:$0xff] %v2144
    %2209 = vst [vmem:[#allocation2 + $0x140] sm:$0xff] %v2145
    %2210 = vst [vmem:[#allocation2 + $0x148] sm:$0xff] %v2146
    %2211 = vst [vmem:[#allocation2 + $0x150] sm:$0xff] %v2147
    %2212 = vst [vmem:[#allocation2 + $0x158] sm:$0xff] %v2148
    %2213 = vst [vmem:[#allocation2 + $0x160] sm:$0xff] %v2149
    %2214 = vst [vmem:[#allocation2 + $0x168] sm:$0xff] %v2150
    %2215 = vst [vmem:[#allocation2 + $0x170] sm:$0xff] %v2151
    %2216 = vst [vmem:[#allocation2 + $0x178] sm:$0xff] %v2152
    %2217 = vst [vmem:[#allocation2 + $0x180] sm:$0xff] %v2153
    %2218 = vst [vmem:[#allocation2 + $0x188] sm:$0xff] %v2154
    %2219 = vst [vmem:[#allocation2 + $0x190] sm:$0xff] %v2155
    %2220 = vst [vmem:[#allocation2 + $0x198] sm:$0xff] %v2156
    %2221 = vst [vmem:[#allocation2 + $0x1a0] sm:$0xff] %v2157
    %2222 = vst [vmem:[#allocation2 + $0x1a8] sm:$0xff] %v2158
    %2223 = vst [vmem:[#allocation2 + $0x1b0] sm:$0xff] %v2159
    %2224 = vst [vmem:[#allocation2 + $0x1b8] sm:$0xff] %v2160
    %2225 = vst [vmem:[#allocation2 + $0x1c0] sm:$0xff] %v2161
    %2226 = vst [vmem:[#allocation2 + $0x1c8] sm:$0xff] %v2162
    %2227 = vst [vmem:[#allocation2 + $0x1d0] sm:$0xff] %v2163
    %2228 = vst [vmem:[#allocation2 + $0x1d8] sm:$0xff] %v2164
    %2229 = vst [vmem:[#allocation2 + $0x1e0] sm:$0xff] %v2165
    %2230 = vst [vmem:[#allocation2 + $0x1e8] sm:$0xff] %v2166
    %2231 = vst [vmem:[#allocation2 + $0x1f0] sm:$0xff] %v2167
    %2232 = vst [vmem:[#allocation2 + $0x1f8] sm:$0xff] %v2168
    %v2233 = vld [vmem:[%s0] sm:$0xe]
    %v2234 = vld [vmem:[%s0 + $0x4] sm:$0xf]
    %v2235 = vld [vmem:[%s0 + $0x8] sm:$0x1]
    %v2236 = vld [vmem:[%s0 + $0xc] sm:$0xe]
    %v2237 = vld [vmem:[%s0 + $0x10] sm:$0xf]
    %v2238 = vld [vmem:[%s0 + $0x14] sm:$0x1]
    %v2239 = vld [vmem:[%s0 + $0x18] sm:$0xe]
    %v2240 = vld [vmem:[%s0 + $0x1c] sm:$0xf]
    %v2241 = vld [vmem:[%s0 + $0x20] sm:$0x1]
    %v2242 = vld [vmem:[%s0 + $0x24] sm:$0xe]
    %v2243 = vld [vmem:[%s0 + $0x28] sm:$0xf]
    %v2244 = vld [vmem:[%s0 + $0x2c] sm:$0x1]
    %v2245 = vld [vmem:[%s0 + $0x30] sm:$0xe]
    %v2246 = vld [vmem:[%s0 + $0x34] sm:$0xf]
    %v2247 = vld [vmem:[%s0 + $0x38] sm:$0x1]
    %v2248 = vld [vmem:[%s0 + $0x3c] sm:$0xe]
    %v2249 = vld [vmem:[%s0 + $0x40] sm:$0xf]
    %v2250 = vld [vmem:[%s0 + $0x44] sm:$0x1]
    %v2251 = vld [vmem:[%s0 + $0x48] sm:$0xe]
    %v2252 = vld [vmem:[%s0 + $0x4c] sm:$0xf]
    %v2253 = vld [vmem:[%s0 + $0x50] sm:$0x1]
    %v2254 = vld [vmem:[%s0 + $0x54] sm:$0xe]
    %v2255 = vld [vmem:[%s0 + $0x58] sm:$0xf]
    %v2256 = vld [vmem:[%s0 + $0x5c] sm:$0x1]
    %v2257 = vld [vmem:[%s0 + $0x60] sm:$0xe]
    %v2258 = vld [vmem:[%s0 + $0x64] sm:$0xf]
    %v2259 = vld [vmem:[%s0 + $0x68] sm:$0x1]
    %v2260 = vld [vmem:[%s0 + $0x6c] sm:$0xe]
    %v2261 = vld [vmem:[%s0 + $0x70] sm:$0xf]
    %v2262 = vld [vmem:[%s0 + $0x74] sm:$0x1]
    %v2263 = vld [vmem:[%s0 + $0x78] sm:$0xe]
    %v2264 = vld [vmem:[%s0 + $0x7c] sm:$0xf]
    %v2265 = vld [vmem:[%s0 + $0x80] sm:$0x1]
    %v2266 = vld [vmem:[%s0 + $0x84] sm:$0xe]
    %v2267 = vld [vmem:[%s0 + $0x88] sm:$0xf]
    %v2268 = vld [vmem:[%s0 + $0x8c] sm:$0x1]
    %v2269 = vld [vmem:[%s0 + $0x90] sm:$0xe]
    %v2270 = vld [vmem:[%s0 + $0x94] sm:$0xf]
    %v2271 = vld [vmem:[%s0 + $0x98] sm:$0x1]
    %v2272 = vld [vmem:[%s0 + $0x9c] sm:$0xe]
    %v2273 = vld [vmem:[%s0 + $0xa0] sm:$0xf]
    %v2274 = vld [vmem:[%s0 + $0xa4] sm:$0x1]
    %v2275 = vld [vmem:[%s0 + $0xa8] sm:$0xe]
    %v2276 = vld [vmem:[%s0 + $0xac] sm:$0xf]
    %v2277 = vld [vmem:[%s0 + $0xb0] sm:$0x1]
    %v2278 = vld [vmem:[%s0 + $0xb4] sm:$0xe]
    %v2279 = vld [vmem:[%s0 + $0xb8] sm:$0xf]
    %v2280 = vld [vmem:[%s0 + $0xbc] sm:$0x1]
    %v2281 = vld [vmem:[%s0 + $0xd8] sm:$0xe]
    %v2282 = vld [vmem:[%s0 + $0xdc] sm:$0xf]
    %v2283 = vld [vmem:[%s0 + $0xe0] sm:$0x1]
    %v2284 = vld [vmem:[%s0 + $0xe4] sm:$0xe]
    %v2285 = vld [vmem:[%s0 + $0xe8] sm:$0xf]
    %v2286 = vld [vmem:[%s0 + $0xec] sm:$0x1]
    %v2287 = vld [vmem:[%s0 + $0xf0] sm:$0xe]
    %v2288 = vld [vmem:[%s0 + $0xf4] sm:$0xf]
    %v2289 = vld [vmem:[%s0 + $0xf8] sm:$0x1]
    %v2290 = vld [vmem:[%s0 + $0xfc] sm:$0xe]
    %v2291 = vld [vmem:[%s0 + $0x100] sm:$0xf]
    %v2292 = vld [vmem:[%s0 + $0x104] sm:$0x1]
    %v2293 = vld [vmem:[%s0 + $0x108] sm:$0xe]
    %v2294 = vld [vmem:[%s0 + $0x10c] sm:$0xf]
    %v2295 = vld [vmem:[%s0 + $0x110] sm:$0x1]
    %v2296 = vld [vmem:[%s0 + $0x114] sm:$0xe]
    %v2297 = vld [vmem:[%s0 + $0x118] sm:$0xf]
    %v2298 = vld [vmem:[%s0 + $0x11c] sm:$0x1]
    %v2299 = vld [vmem:[%s0 + $0x120] sm:$0xe]
    %v2300 = vld [vmem:[%s0 + $0x124] sm:$0xf]
    %v2301 = vld [vmem:[%s0 + $0x128] sm:$0x1]
    %v2302 = vld [vmem:[%s0 + $0x12c] sm:$0xe]
    %v2303 = vld [vmem:[%s0 + $0x130] sm:$0xf]
    %v2304 = vld [vmem:[%s0 + $0x134] sm:$0x1]
    %v2305 = vld [vmem:[%s0 + $0x138] sm:$0xe]
    %v2306 = vld [vmem:[%s0 + $0x13c] sm:$0xf]
    %v2307 = vld [vmem:[%s0 + $0x140] sm:$0x1]
    %v2308 = vld [vmem:[%s0 + $0x144] sm:$0xe]
    %v2309 = vld [vmem:[%s0 + $0x148] sm:$0xf]
    %v2310 = vld [vmem:[%s0 + $0x14c] sm:$0x1]
    %v2311 = vld [vmem:[%s0 + $0x150] sm:$0xe]
    %v2312 = vld [vmem:[%s0 + $0x154] sm:$0xf]
    %v2313 = vld [vmem:[%s0 + $0x158] sm:$0x1]
    %v2314 = vld [vmem:[%s0 + $0x15c] sm:$0xe]
    %v2315 = vld [vmem:[%s0 + $0x160] sm:$0xf]
    %v2316 = vld [vmem:[%s0 + $0x164] sm:$0x1]
    %v2317 = vld [vmem:[%s0 + $0x168] sm:$0xe]
    %v2318 = vld [vmem:[%s0 + $0x16c] sm:$0xf]
    %v2319 = vld [vmem:[%s0 + $0x170] sm:$0x1]
    %v2320 = vld [vmem:[%s0 + $0x174] sm:$0xe]
    %v2321 = vld [vmem:[%s0 + $0x178] sm:$0xf]
    %v2322 = vld [vmem:[%s0 + $0x17c] sm:$0x1]
    %v2323 = vld [vmem:[%s0 + $0x180] sm:$0xe]
    %v2324 = vld [vmem:[%s0 + $0x184] sm:$0xf]
    %v2325 = vld [vmem:[%s0 + $0x188] sm:$0x1]
    %v2326 = vld [vmem:[%s0 + $0x18c] sm:$0xe]
    %v2327 = vld [vmem:[%s0 + $0x190] sm:$0xf]
    %v2328 = vld [vmem:[%s0 + $0x194] sm:$0x1]
    %vm2425 = vcmask 1042432
    %vm2426 = vcmask 1046532
    %vm2427 = vmor %vm2425, %vm2426
    %v2428 = vrot.slane %v2233, 5
    %v2429 = vrot.slane %v2428, 4
    %v2430 = vrot.slane %v2234, 5
    %v2431 = vsel %vm2427, %v2429, %v2430
    %v2432 = vrot.slane %v2430, 4
    %v2433 = vrot.slane %v2235, 5
    %v2434 = vsel %vm2427, %v2432, %v2433
    %v2435 = vrot.slane %v2236, 5
    %v2436 = vrot.slane %v2435, 4
    %v2437 = vrot.slane %v2237, 5
    %v2438 = vsel %vm2427, %v2436, %v2437
    %v2439 = vrot.slane %v2437, 4
    %v2440 = vrot.slane %v2238, 5
    %v2441 = vsel %vm2427, %v2439, %v2440
    %v2442 = vrot.slane %v2239, 5
    %v2443 = vrot.slane %v2442, 4
    %v2444 = vrot.slane %v2240, 5
    %v2445 = vsel %vm2427, %v2443, %v2444
    %v2446 = vrot.slane %v2444, 4
    %v2447 = vrot.slane %v2241, 5
    %v2448 = vsel %vm2427, %v2446, %v2447
    %v2449 = vrot.slane %v2242, 5
    %v2450 = vrot.slane %v2449, 4
    %v2451 = vrot.slane %v2243, 5
    %v2452 = vsel %vm2427, %v2450, %v2451
    %v2453 = vrot.slane %v2451, 4
    %v2454 = vrot.slane %v2244, 5
    %v2455 = vsel %vm2427, %v2453, %v2454
    %v2456 = vrot.slane %v2245, 5
    %v2457 = vrot.slane %v2456, 4
    %v2458 = vrot.slane %v2246, 5
    %v2459 = vsel %vm2427, %v2457, %v2458
    %v2460 = vrot.slane %v2458, 4
    %v2461 = vrot.slane %v2247, 5
    %v2462 = vsel %vm2427, %v2460, %v2461
    %v2463 = vrot.slane %v2248, 5
    %v2464 = vrot.slane %v2463, 4
    %v2465 = vrot.slane %v2249, 5
    %v2466 = vsel %vm2427, %v2464, %v2465
    %v2467 = vrot.slane %v2465, 4
    %v2468 = vrot.slane %v2250, 5
    %v2469 = vsel %vm2427, %v2467, %v2468
    %v2470 = vrot.slane %v2251, 5
    %v2471 = vrot.slane %v2470, 4
    %v2472 = vrot.slane %v2252, 5
    %v2473 = vsel %vm2427, %v2471, %v2472
    %v2474 = vrot.slane %v2472, 4
    %v2475 = vrot.slane %v2253, 5
    %v2476 = vsel %vm2427, %v2474, %v2475
    %v2477 = vrot.slane %v2254, 5
    %v2478 = vrot.slane %v2477, 4
    %v2479 = vrot.slane %v2255, 5
    %v2480 = vsel %vm2427, %v2478, %v2479
    %v2481 = vrot.slane %v2479, 4
    %v2482 = vrot.slane %v2256, 5
    %v2483 = vsel %vm2427, %v2481, %v2482
    %v2484 = vrot.slane %v2257, 5
    %v2485 = vrot.slane %v2484, 4
    %v2486 = vrot.slane %v2258, 5
    %v2487 = vsel %vm2427, %v2485, %v2486
    %v2488 = vrot.slane %v2486, 4
    %v2489 = vrot.slane %v2259, 5
    %v2490 = vsel %vm2427, %v2488, %v2489
    %v2491 = vrot.slane %v2260, 5
    %v2492 = vrot.slane %v2491, 4
    %v2493 = vrot.slane %v2261, 5
    %v2494 = vsel %vm2427, %v2492, %v2493
    %v2495 = vrot.slane %v2493, 4
    %v2496 = vrot.slane %v2262, 5
    %v2497 = vsel %vm2427, %v2495, %v2496
    %v2498 = vrot.slane %v2263, 5
    %v2499 = vrot.slane %v2498, 4
    %v2500 = vrot.slane %v2264, 5
    %v2501 = vsel %vm2427, %v2499, %v2500
    %v2502 = vrot.slane %v2500, 4
    %v2503 = vrot.slane %v2265, 5
    %v2504 = vsel %vm2427, %v2502, %v2503
    %v2505 = vrot.slane %v2266, 5
    %v2506 = vrot.slane %v2505, 4
    %v2507 = vrot.slane %v2267, 5
    %v2508 = vsel %vm2427, %v2506, %v2507
    %v2509 = vrot.slane %v2507, 4
    %v2510 = vrot.slane %v2268, 5
    %v2511 = vsel %vm2427, %v2509, %v2510
    %v2512 = vrot.slane %v2269, 5
    %v2513 = vrot.slane %v2512, 4
    %v2514 = vrot.slane %v2270, 5
    %v2515 = vsel %vm2427, %v2513, %v2514
    %v2516 = vrot.slane %v2514, 4
    %v2517 = vrot.slane %v2271, 5
    %v2518 = vsel %vm2427, %v2516, %v2517
    %v2519 = vrot.slane %v2272, 5
    %v2520 = vrot.slane %v2519, 4
    %v2521 = vrot.slane %v2273, 5
    %v2522 = vsel %vm2427, %v2520, %v2521
    %v2523 = vrot.slane %v2521, 4
    %v2524 = vrot.slane %v2274, 5
    %v2525 = vsel %vm2427, %v2523, %v2524
    %v2526 = vrot.slane %v2275, 5
    %v2527 = vrot.slane %v2526, 4
    %v2528 = vrot.slane %v2276, 5
    %v2529 = vsel %vm2427, %v2527, %v2528
    %v2530 = vrot.slane %v2528, 4
    %v2531 = vrot.slane %v2277, 5
    %v2532 = vsel %vm2427, %v2530, %v2531
    %v2533 = vrot.slane %v2278, 5
    %v2534 = vrot.slane %v2533, 4
    %v2535 = vrot.slane %v2279, 5
    %v2536 = vsel %vm2427, %v2534, %v2535
    %v2537 = vrot.slane %v2535, 4
    %v2538 = vrot.slane %v2280, 5
    %v2539 = vsel %vm2427, %v2537, %v2538
    %v2540 = vrot.slane %v2281, 5
    %v2541 = vrot.slane %v2540, 4
    %v2542 = vrot.slane %v2282, 5
    %v2543 = vsel %vm2427, %v2541, %v2542
    %v2544 = vrot.slane %v2542, 4
    %v2545 = vrot.slane %v2283, 5
    %v2546 = vsel %vm2427, %v2544, %v2545
    %v2547 = vrot.slane %v2284, 5
    %v2548 = vrot.slane %v2547, 4
    %v2549 = vrot.slane %v2285, 5
    %v2550 = vsel %vm2427, %v2548, %v2549
    %v2551 = vrot.slane %v2549, 4
    %v2552 = vrot.slane %v2286, 5
    %v2553 = vsel %vm2427, %v2551, %v2552
    %v2554 = vrot.slane %v2287, 5
    %v2555 = vrot.slane %v2554, 4
    %v2556 = vrot.slane %v2288, 5
    %v2557 = vsel %vm2427, %v2555, %v2556
    %v2558 = vrot.slane %v2556, 4
    %v2559 = vrot.slane %v2289, 5
    %v2560 = vsel %vm2427, %v2558, %v2559
    %v2561 = vrot.slane %v2290, 5
    %v2562 = vrot.slane %v2561, 4
    %v2563 = vrot.slane %v2291, 5
    %v2564 = vsel %vm2427, %v2562, %v2563
    %v2565 = vrot.slane %v2563, 4
    %v2566 = vrot.slane %v2292, 5
    %v2567 = vsel %vm2427, %v2565, %v2566
    %v2568 = vrot.slane %v2293, 5
    %v2569 = vrot.slane %v2568, 4
    %v2570 = vrot.slane %v2294, 5
    %v2571 = vsel %vm2427, %v2569, %v2570
    %v2572 = vrot.slane %v2570, 4
    %v2573 = vrot.slane %v2295, 5
    %v2574 = vsel %vm2427, %v2572, %v2573
    %v2575 = vrot.slane %v2296, 5
    %v2576 = vrot.slane %v2575, 4
    %v2577 = vrot.slane %v2297, 5
    %v2578 = vsel %vm2427, %v2576, %v2577
    %v2579 = vrot.slane %v2577, 4
    %v2580 = vrot.slane %v2298, 5
    %v2581 = vsel %vm2427, %v2579, %v2580
    %v2582 = vrot.slane %v2299, 5
    %v2583 = vrot.slane %v2582, 4
    %v2584 = vrot.slane %v2300, 5
    %v2585 = vsel %vm2427, %v2583, %v2584
    %v2586 = vrot.slane %v2584, 4
    %v2587 = vrot.slane %v2301, 5
    %v2588 = vsel %vm2427, %v2586, %v2587
    %v2589 = vrot.slane %v2302, 5
    %v2590 = vrot.slane %v2589, 4
    %v2591 = vrot.slane %v2303, 5
    %v2592 = vsel %vm2427, %v2590, %v2591
    %v2593 = vrot.slane %v2591, 4
    %v2594 = vrot.slane %v2304, 5
    %v2595 = vsel %vm2427, %v2593, %v2594
    %v2596 = vrot.slane %v2305, 5
    %v2597 = vrot.slane %v2596, 4
    %v2598 = vrot.slane %v2306, 5
    %v2599 = vsel %vm2427, %v2597, %v2598
    %v2600 = vrot.slane %v2598, 4
    %v2601 = vrot.slane %v2307, 5
    %v2602 = vsel %vm2427, %v2600, %v2601
    %v2603 = vrot.slane %v2308, 5
    %v2604 = vrot.slane %v2603, 4
    %v2605 = vrot.slane %v2309, 5
    %v2606 = vsel %vm2427, %v2604, %v2605
    %v2607 = vrot.slane %v2605, 4
    %v2608 = vrot.slane %v2310, 5
    %v2609 = vsel %vm2427, %v2607, %v2608
    %v2610 = vrot.slane %v2311, 5
    %v2611 = vrot.slane %v2610, 4
    %v2612 = vrot.slane %v2312, 5
    %v2613 = vsel %vm2427, %v2611, %v2612
    %v2614 = vrot.slane %v2612, 4
    %v2615 = vrot.slane %v2313, 5
    %v2616 = vsel %vm2427, %v2614, %v2615
    %v2617 = vrot.slane %v2314, 5
    %v2618 = vrot.slane %v2617, 4
    %v2619 = vrot.slane %v2315, 5
    %v2620 = vsel %vm2427, %v2618, %v2619
    %v2621 = vrot.slane %v2619, 4
    %v2622 = vrot.slane %v2316, 5
    %v2623 = vsel %vm2427, %v2621, %v2622
    %v2624 = vrot.slane %v2317, 5
    %v2625 = vrot.slane %v2624, 4
    %v2626 = vrot.slane %v2318, 5
    %v2627 = vsel %vm2427, %v2625, %v2626
    %v2628 = vrot.slane %v2626, 4
    %v2629 = vrot.slane %v2319, 5
    %v2630 = vsel %vm2427, %v2628, %v2629
    %v2631 = vrot.slane %v2320, 5
    %v2632 = vrot.slane %v2631, 4
    %v2633 = vrot.slane %v2321, 5
    %v2634 = vsel %vm2427, %v2632, %v2633
    %v2635 = vrot.slane %v2633, 4
    %v2636 = vrot.slane %v2322, 5
    %v2637 = vsel %vm2427, %v2635, %v2636
    %v2638 = vrot.slane %v2323, 5
    %v2639 = vrot.slane %v2638, 4
    %v2640 = vrot.slane %v2324, 5
    %v2641 = vsel %vm2427, %v2639, %v2640
    %v2642 = vrot.slane %v2640, 4
    %v2643 = vrot.slane %v2325, 5
    %v2644 = vsel %vm2427, %v2642, %v2643
    %v2645 = vrot.slane %v2326, 5
    %v2646 = vrot.slane %v2645, 4
    %v2647 = vrot.slane %v2327, 5
    %v2648 = vsel %vm2427, %v2646, %v2647
    %v2649 = vrot.slane %v2647, 4
    %v2650 = vrot.slane %v2328, 5
    %v2651 = vsel %vm2427, %v2649, %v2650
    %s2652 = scalar_lea.vmem %s2, 128
    %v2653 = vld [vmem:[%s2652] sm:$0xf]
    %v2654 = vld [vmem:[%s2652 + $0x4] sm:$0xf]
    %v2655 = vld [vmem:[%s2652 + $0x8] sm:$0xf]
    %v2656 = vld [vmem:[%s2652 + $0xc] sm:$0xf]
    %v2657 = vld [vmem:[%s2652 + $0x10] sm:$0xf]
    %v2658 = vld [vmem:[%s2652 + $0x14] sm:$0xf]
    %v2659 = vld [vmem:[%s2652 + $0x18] sm:$0xf]
    %v2660 = vld [vmem:[%s2652 + $0x1c] sm:$0xf]
    %v2661 = vld [vmem:[%s2652 + $0x20] sm:$0xf]
    %v2662 = vld [vmem:[%s2652 + $0x24] sm:$0xf]
    %v2663 = vld [vmem:[%s2652 + $0x28] sm:$0xf]
    %v2664 = vld [vmem:[%s2652 + $0x2c] sm:$0xf]
    %v2665 = vld [vmem:[%s2652 + $0x30] sm:$0xf]
    %v2666 = vld [vmem:[%s2652 + $0x34] sm:$0xf]
    %v2667 = vld [vmem:[%s2652 + $0x38] sm:$0xf]
    %v2668 = vld [vmem:[%s2652 + $0x3c] sm:$0xf]
    %v2669 = vunpack.c.l.b16 %v2431
    %v2670 = vunpack.c.l.b16 %v2434
    %v2671 = vunpack.c.l.b16 %v2438
    %v2672 = vunpack.c.l.b16 %v2441
    %v2673 = vunpack.c.l.b16 %v2445
    %v2674 = vunpack.c.l.b16 %v2448
    %v2675 = vunpack.c.l.b16 %v2452
    %v2676 = vunpack.c.l.b16 %v2455
    %v2677 = vunpack.c.l.b16 %v2459
    %v2678 = vunpack.c.l.b16 %v2462
    %v2679 = vunpack.c.l.b16 %v2466
    %v2680 = vunpack.c.l.b16 %v2469
    %v2681 = vunpack.c.l.b16 %v2473
    %v2682 = vunpack.c.l.b16 %v2476
    %v2683 = vunpack.c.l.b16 %v2480
    %v2684 = vunpack.c.l.b16 %v2483
    %v2685 = vunpack.c.l.b16 %v2487
    %v2686 = vunpack.c.l.b16 %v2490
    %v2687 = vunpack.c.l.b16 %v2494
    %v2688 = vunpack.c.l.b16 %v2497
    %v2689 = vunpack.c.l.b16 %v2501
    %v2690 = vunpack.c.l.b16 %v2504
    %v2691 = vunpack.c.l.b16 %v2508
    %v2692 = vunpack.c.l.b16 %v2511
    %v2693 = vunpack.c.l.b16 %v2515
    %v2694 = vunpack.c.l.b16 %v2518
    %v2695 = vunpack.c.l.b16 %v2522
    %v2696 = vunpack.c.l.b16 %v2525
    %v2697 = vunpack.c.l.b16 %v2529
    %v2698 = vunpack.c.l.b16 %v2532
    %v2699 = vunpack.c.l.b16 %v2536
    %v2700 = vunpack.c.l.b16 %v2539
    %v2701 = vunpack.c.l.b16 %v2543
    %v2702 = vunpack.c.l.b16 %v2546
    %v2703 = vunpack.c.l.b16 %v2550
    %v2704 = vunpack.c.l.b16 %v2553
    %v2705 = vunpack.c.l.b16 %v2557
    %v2706 = vunpack.c.l.b16 %v2560
    %v2707 = vunpack.c.l.b16 %v2564
    %v2708 = vunpack.c.l.b16 %v2567
    %v2709 = vunpack.c.l.b16 %v2571
    %v2710 = vunpack.c.l.b16 %v2574
    %v2711 = vunpack.c.l.b16 %v2578
    %v2712 = vunpack.c.l.b16 %v2581
    %v2713 = vunpack.c.l.b16 %v2585
    %v2714 = vunpack.c.l.b16 %v2588
    %v2715 = vunpack.c.l.b16 %v2592
    %v2716 = vunpack.c.l.b16 %v2595
    %v2717 = vunpack.c.l.b16 %v2599
    %v2718 = vunpack.c.l.b16 %v2602
    %v2719 = vunpack.c.l.b16 %v2606
    %v2720 = vunpack.c.l.b16 %v2609
    %v2721 = vunpack.c.l.b16 %v2613
    %v2722 = vunpack.c.l.b16 %v2616
    %v2723 = vunpack.c.l.b16 %v2620
    %v2724 = vunpack.c.l.b16 %v2623
    %v2725 = vunpack.c.l.b16 %v2627
    %v2726 = vunpack.c.l.b16 %v2630
    %v2727 = vunpack.c.l.b16 %v2634
    %v2728 = vunpack.c.l.b16 %v2637
    %v2729 = vunpack.c.l.b16 %v2641
    %v2730 = vunpack.c.l.b16 %v2644
    %v2731 = vunpack.c.l.b16 %v2648
    %v2732 = vunpack.c.l.b16 %v2651
    %v2733 = vpack.c.b16 %v2670, %v2669
    %v2734 = vpack.c.b16 %v2672, %v2671
    %v2735 = vpack.c.b16 %v2674, %v2673
    %v2736 = vpack.c.b16 %v2676, %v2675
    %v2737 = vpack.c.b16 %v2678, %v2677
    %v2738 = vpack.c.b16 %v2680, %v2679
    %v2739 = vpack.c.b16 %v2682, %v2681
    %v2740 = vpack.c.b16 %v2684, %v2683
    %v2741 = vpack.c.b16 %v2686, %v2685
    %v2742 = vpack.c.b16 %v2688, %v2687
    %v2743 = vpack.c.b16 %v2690, %v2689
    %v2744 = vpack.c.b16 %v2692, %v2691
    %v2745 = vpack.c.b16 %v2694, %v2693
    %v2746 = vpack.c.b16 %v2696, %v2695
    %v2747 = vpack.c.b16 %v2698, %v2697
    %v2748 = vpack.c.b16 %v2700, %v2699
    %v2749 = vpack.c.b16 %v2702, %v2701
    %v2750 = vpack.c.b16 %v2704, %v2703
    %v2751 = vpack.c.b16 %v2706, %v2705
    %v2752 = vpack.c.b16 %v2708, %v2707
    %v2753 = vpack.c.b16 %v2710, %v2709
    %v2754 = vpack.c.b16 %v2712, %v2711
    %v2755 = vpack.c.b16 %v2714, %v2713
    %v2756 = vpack.c.b16 %v2716, %v2715
    %v2757 = vpack.c.b16 %v2718, %v2717
    %v2758 = vpack.c.b16 %v2720, %v2719
    %v2759 = vpack.c.b16 %v2722, %v2721
    %v2760 = vpack.c.b16 %v2724, %v2723
    %v2761 = vpack.c.b16 %v2726, %v2725
    %v2762 = vpack.c.b16 %v2728, %v2727
    %v2763 = vpack.c.b16 %v2730, %v2729
    %v2764 = vpack.c.b16 %v2732, %v2731
    %v2813 = vunpack.c.l.b16 %v2653
    %v2814 = vunpack.c.l.b16 %v2654
    %v2815 = vunpack.c.l.b16 %v2655
    %v2816 = vunpack.c.l.b16 %v2656
    %v2817 = vunpack.c.l.b16 %v2657
    %v2818 = vunpack.c.l.b16 %v2658
    %v2819 = vunpack.c.l.b16 %v2659
    %v2820 = vunpack.c.l.b16 %v2660
    %v2821 = vunpack.c.l.b16 %v2661
    %v2822 = vunpack.c.l.b16 %v2662
    %v2823 = vunpack.c.l.b16 %v2663
    %v2824 = vunpack.c.l.b16 %v2664
    %v2825 = vunpack.c.l.b16 %v2665
    %v2826 = vunpack.c.l.b16 %v2666
    %v2827 = vunpack.c.l.b16 %v2667
    %v2828 = vunpack.c.l.b16 %v2668
    %v2829 = vpack.c.b16 %v2814, %v2813
    %v2830 = vpack.c.b16 %v2816, %v2815
    %v2831 = vpack.c.b16 %v2818, %v2817
    %v2832 = vpack.c.b16 %v2820, %v2819
    %v2833 = vpack.c.b16 %v2822, %v2821
    %v2834 = vpack.c.b16 %v2824, %v2823
    %v2835 = vpack.c.b16 %v2826, %v2825
    %v2836 = vpack.c.b16 %v2828, %v2827
    %2845 = vmatprep.subr.bf16.mxu0 0
    %2846 = vmatpush1.bf16.msra.mxu0 %v2836
    %2847 = vmatprep.subr.bf16.mxu0 0
    %2848 = vmatpush1.bf16.msra.mxu0 %v2835
    %2849 = vmatprep.subr.bf16.mxu0 0
    %2850 = vmatpush1.bf16.msra.mxu0 %v2834
    %2851 = vmatprep.subr.bf16.mxu0 0
    %2852 = vmatpush1.bf16.msra.mxu0 %v2833
    %2853 = vmatprep.subr.bf16.mxu0 0
    %2854 = vmatpush1.bf16.msra.mxu0 %v2832
    %2855 = vmatprep.subr.bf16.mxu0 0
    %2856 = vmatpush1.bf16.msra.mxu0 %v2831
    %2857 = vmatprep.subr.bf16.mxu0 0
    %2858 = vmatpush1.bf16.msra.mxu0 %v2830
    %2859 = vmatprep.subr.bf16.mxu0 0
    %2860 = vmatpush1.bf16.msra.mxu0 %v2829
    %2861 = vmatprep.subr.bf16.mxu0 0
    %2862 = vmatpush2.bf16.msra.mxu0 0
    %2863 = vmatprep.subr.bf16.mxu0 0
    %2864 = vmatpush2.bf16.msra.mxu0 0
    %2865 = vmatprep.subr.bf16.mxu0 0
    %2866 = vmatpush2.bf16.msra.mxu0 0
    %2867 = vmatprep.subr.bf16.mxu0 0
    %2868 = vmatpush2.bf16.msra.mxu0 0
    %2869 = vmatprep.subr.bf16.mxu0 0
    %2870 = vmatpush2.bf16.msra.mxu0 0
    %2871 = vmatprep.subr.bf16.mxu0 0
    %2872 = vmatpush2.bf16.msra.mxu0 0
    %2873 = vmatprep.subr.bf16.mxu0 0
    %2874 = vmatpush2.bf16.msra.mxu0 0
    %2875 = vmatprep.subr.bf16.mxu0 0
    %2876 = vmatpush2.bf16.msra.mxu0 0
    %2877 = vmatprep.mubr.bf16.mxu0 0
    %2878 = vmatmul.mubr.bf16.gmra.mxu0 %v2733
    %v2879 = vpop.f32.mrf.mxu0
    %v2880 = vadd.f32 0.0, %v2879
    %v2881 = vpop.f32.mrf.mxu0
    %v2882 = vpop.f32.mrf.mxu0
    %v2883 = vadd.f32 0.0, %v2882
    %v2884 = vpop.f32.mrf.mxu0
    %2885 = vmatprep.mubr.bf16.mxu0 0
    %2886 = vmatmul.mubr.bf16.gmra.mxu0 %v2734
    %v2887 = vpop.f32.mrf.mxu0
    %v2888 = vadd.f32 0.0, %v2887
    %v2889 = vpop.f32.mrf.mxu0
    %v2890 = vpop.f32.mrf.mxu0
    %v2891 = vadd.f32 0.0, %v2890
    %v2892 = vpop.f32.mrf.mxu0
    %2893 = vmatprep.mubr.bf16.mxu0 0
    %2894 = vmatmul.mubr.bf16.gmra.mxu0 %v2735
    %v2895 = vpop.f32.mrf.mxu0
    %v2896 = vadd.f32 0.0, %v2895
    %v2897 = vpop.f32.mrf.mxu0
    %v2898 = vpop.f32.mrf.mxu0
    %v2899 = vadd.f32 0.0, %v2898
    %v2900 = vpop.f32.mrf.mxu0
    %2901 = vmatprep.mubr.bf16.mxu0 0
    %2902 = vmatmul.mubr.bf16.gmra.mxu0 %v2736
    %v2903 = vpop.f32.mrf.mxu0
    %v2904 = vadd.f32 0.0, %v2903
    %v2905 = vpop.f32.mrf.mxu0
    %v2906 = vpop.f32.mrf.mxu0
    %v2907 = vadd.f32 0.0, %v2906
    %v2908 = vpop.f32.mrf.mxu0
    %2909 = vmatprep.mubr.bf16.mxu0 0
    %2910 = vmatmul.mubr.bf16.gmra.mxu0 %v2737
    %v2911 = vpop.f32.mrf.mxu0
    %v2912 = vadd.f32 0.0, %v2911
    %v2913 = vpop.f32.mrf.mxu0
    %v2914 = vpop.f32.mrf.mxu0
    %v2915 = vadd.f32 0.0, %v2914
    %v2916 = vpop.f32.mrf.mxu0
    %2917 = vmatprep.mubr.bf16.mxu0 0
    %2918 = vmatmul.mubr.bf16.gmra.mxu0 %v2738
    %v2919 = vpop.f32.mrf.mxu0
    %v2920 = vadd.f32 0.0, %v2919
    %v2921 = vpop.f32.mrf.mxu0
    %v2922 = vpop.f32.mrf.mxu0
    %v2923 = vadd.f32 0.0, %v2922
    %v2924 = vpop.f32.mrf.mxu0
    %2925 = vmatprep.mubr.bf16.mxu0 0
    %2926 = vmatmul.mubr.bf16.gmra.mxu0 %v2739
    %v2927 = vpop.f32.mrf.mxu0
    %v2928 = vadd.f32 0.0, %v2927
    %v2929 = vpop.f32.mrf.mxu0
    %v2930 = vpop.f32.mrf.mxu0
    %v2931 = vadd.f32 0.0, %v2930
    %v2932 = vpop.f32.mrf.mxu0
    %2933 = vmatprep.mubr.bf16.mxu0 0
    %2934 = vmatmul.mubr.bf16.gmra.mxu0 %v2740
    %v2935 = vpop.f32.mrf.mxu0
    %v2936 = vadd.f32 0.0, %v2935
    %v2937 = vpop.f32.mrf.mxu0
    %v2938 = vpop.f32.mrf.mxu0
    %v2939 = vadd.f32 0.0, %v2938
    %v2940 = vpop.f32.mrf.mxu0
    %2941 = vmatprep.mubr.bf16.mxu0 0
    %2942 = vmatmul.mubr.bf16.gmra.mxu0 %v2741
    %v2943 = vpop.f32.mrf.mxu0
    %v2944 = vadd.f32 0.0, %v2943
    %v2945 = vpop.f32.mrf.mxu0
    %v2946 = vpop.f32.mrf.mxu0
    %v2947 = vadd.f32 0.0, %v2946
    %v2948 = vpop.f32.mrf.mxu0
    %2949 = vmatprep.mubr.bf16.mxu0 0
    %2950 = vmatmul.mubr.bf16.gmra.mxu0 %v2742
    %v2951 = vpop.f32.mrf.mxu0
    %v2952 = vadd.f32 0.0, %v2951
    %v2953 = vpop.f32.mrf.mxu0
    %v2954 = vpop.f32.mrf.mxu0
    %v2955 = vadd.f32 0.0, %v2954
    %v2956 = vpop.f32.mrf.mxu0
    %2957 = vmatprep.mubr.bf16.mxu0 0
    %2958 = vmatmul.mubr.bf16.gmra.mxu0 %v2743
    %v2959 = vpop.f32.mrf.mxu0
    %v2960 = vadd.f32 0.0, %v2959
    %v2961 = vpop.f32.mrf.mxu0
    %v2962 = vpop.f32.mrf.mxu0
    %v2963 = vadd.f32 0.0, %v2962
    %v2964 = vpop.f32.mrf.mxu0
    %2965 = vmatprep.mubr.bf16.mxu0 0
    %2966 = vmatmul.mubr.bf16.gmra.mxu0 %v2744
    %v2967 = vpop.f32.mrf.mxu0
    %v2968 = vadd.f32 0.0, %v2967
    %v2969 = vpop.f32.mrf.mxu0
    %v2970 = vpop.f32.mrf.mxu0
    %v2971 = vadd.f32 0.0, %v2970
    %v2972 = vpop.f32.mrf.mxu0
    %2973 = vmatprep.mubr.bf16.mxu0 0
    %2974 = vmatmul.mubr.bf16.gmra.mxu0 %v2745
    %v2975 = vpop.f32.mrf.mxu0
    %v2976 = vadd.f32 0.0, %v2975
    %v2977 = vpop.f32.mrf.mxu0
    %v2978 = vpop.f32.mrf.mxu0
    %v2979 = vadd.f32 0.0, %v2978
    %v2980 = vpop.f32.mrf.mxu0
    %2981 = vmatprep.mubr.bf16.mxu0 0
    %2982 = vmatmul.mubr.bf16.gmra.mxu0 %v2746
    %v2983 = vpop.f32.mrf.mxu0
    %v2984 = vadd.f32 0.0, %v2983
    %v2985 = vpop.f32.mrf.mxu0
    %v2986 = vpop.f32.mrf.mxu0
    %v2987 = vadd.f32 0.0, %v2986
    %v2988 = vpop.f32.mrf.mxu0
    %2989 = vmatprep.mubr.bf16.mxu0 0
    %2990 = vmatmul.mubr.bf16.gmra.mxu0 %v2747
    %v2991 = vpop.f32.mrf.mxu0
    %v2992 = vadd.f32 0.0, %v2991
    %v2993 = vpop.f32.mrf.mxu0
    %v2994 = vpop.f32.mrf.mxu0
    %v2995 = vadd.f32 0.0, %v2994
    %v2996 = vpop.f32.mrf.mxu0
    %2997 = vmatprep.mubr.bf16.mxu0 0
    %2998 = vmatmul.mubr.bf16.gmra.mxu0 %v2748
    %v2999 = vpop.f32.mrf.mxu0
    %v3000 = vadd.f32 0.0, %v2999
    %v3001 = vpop.f32.mrf.mxu0
    %v3002 = vpop.f32.mrf.mxu0
    %v3003 = vadd.f32 0.0, %v3002
    %v3004 = vpop.f32.mrf.mxu0
    %3005 = vmatprep.mubr.bf16.mxu0 0
    %3006 = vmatmul.mubr.bf16.gmra.mxu0 %v2749
    %v3007 = vpop.f32.mrf.mxu0
    %v3008 = vadd.f32 0.0, %v3007
    %v3009 = vpop.f32.mrf.mxu0
    %v3010 = vpop.f32.mrf.mxu0
    %v3011 = vadd.f32 0.0, %v3010
    %v3012 = vpop.f32.mrf.mxu0
    %3013 = vmatprep.mubr.bf16.mxu0 0
    %3014 = vmatmul.mubr.bf16.gmra.mxu0 %v2750
    %v3015 = vpop.f32.mrf.mxu0
    %v3016 = vadd.f32 0.0, %v3015
    %v3017 = vpop.f32.mrf.mxu0
    %v3018 = vpop.f32.mrf.mxu0
    %v3019 = vadd.f32 0.0, %v3018
    %v3020 = vpop.f32.mrf.mxu0
    %3021 = vmatprep.mubr.bf16.mxu0 0
    %3022 = vmatmul.mubr.bf16.gmra.mxu0 %v2751
    %v3023 = vpop.f32.mrf.mxu0
    %v3024 = vadd.f32 0.0, %v3023
    %v3025 = vpop.f32.mrf.mxu0
    %v3026 = vpop.f32.mrf.mxu0
    %v3027 = vadd.f32 0.0, %v3026
    %v3028 = vpop.f32.mrf.mxu0
    %3029 = vmatprep.mubr.bf16.mxu0 0
    %3030 = vmatmul.mubr.bf16.gmra.mxu0 %v2752
    %v3031 = vpop.f32.mrf.mxu0
    %v3032 = vadd.f32 0.0, %v3031
    %v3033 = vpop.f32.mrf.mxu0
    %v3034 = vpop.f32.mrf.mxu0
    %v3035 = vadd.f32 0.0, %v3034
    %v3036 = vpop.f32.mrf.mxu0
    %3037 = vmatprep.mubr.bf16.mxu0 0
    %3038 = vmatmul.mubr.bf16.gmra.mxu0 %v2753
    %v3039 = vpop.f32.mrf.mxu0
    %v3040 = vadd.f32 0.0, %v3039
    %v3041 = vpop.f32.mrf.mxu0
    %v3042 = vpop.f32.mrf.mxu0
    %v3043 = vadd.f32 0.0, %v3042
    %v3044 = vpop.f32.mrf.mxu0
    %3045 = vmatprep.mubr.bf16.mxu0 0
    %3046 = vmatmul.mubr.bf16.gmra.mxu0 %v2754
    %v3047 = vpop.f32.mrf.mxu0
    %v3048 = vadd.f32 0.0, %v3047
    %v3049 = vpop.f32.mrf.mxu0
    %v3050 = vpop.f32.mrf.mxu0
    %v3051 = vadd.f32 0.0, %v3050
    %v3052 = vpop.f32.mrf.mxu0
    %3053 = vmatprep.mubr.bf16.mxu0 0
    %3054 = vmatmul.mubr.bf16.gmra.mxu0 %v2755
    %v3055 = vpop.f32.mrf.mxu0
    %v3056 = vadd.f32 0.0, %v3055
    %v3057 = vpop.f32.mrf.mxu0
    %v3058 = vpop.f32.mrf.mxu0
    %v3059 = vadd.f32 0.0, %v3058
    %v3060 = vpop.f32.mrf.mxu0
    %3061 = vmatprep.mubr.bf16.mxu0 0
    %3062 = vmatmul.mubr.bf16.gmra.mxu0 %v2756
    %v3063 = vpop.f32.mrf.mxu0
    %v3064 = vadd.f32 0.0, %v3063
    %v3065 = vpop.f32.mrf.mxu0
    %v3066 = vpop.f32.mrf.mxu0
    %v3067 = vadd.f32 0.0, %v3066
    %v3068 = vpop.f32.mrf.mxu0
    %3069 = vmatprep.mubr.bf16.mxu0 0
    %3070 = vmatmul.mubr.bf16.gmra.mxu0 %v2757
    %v3071 = vpop.f32.mrf.mxu0
    %v3072 = vadd.f32 0.0, %v3071
    %v3073 = vpop.f32.mrf.mxu0
    %v3074 = vpop.f32.mrf.mxu0
    %v3075 = vadd.f32 0.0, %v3074
    %v3076 = vpop.f32.mrf.mxu0
    %3077 = vmatprep.mubr.bf16.mxu0 0
    %3078 = vmatmul.mubr.bf16.gmra.mxu0 %v2758
    %v3079 = vpop.f32.mrf.mxu0
    %v3080 = vadd.f32 0.0, %v3079
    %v3081 = vpop.f32.mrf.mxu0
    %v3082 = vpop.f32.mrf.mxu0
    %v3083 = vadd.f32 0.0, %v3082
    %v3084 = vpop.f32.mrf.mxu0
    %3085 = vmatprep.mubr.bf16.mxu0 0
    %3086 = vmatmul.mubr.bf16.gmra.mxu0 %v2759
    %v3087 = vpop.f32.mrf.mxu0
    %v3088 = vadd.f32 0.0, %v3087
    %v3089 = vpop.f32.mrf.mxu0
    %v3090 = vpop.f32.mrf.mxu0
    %v3091 = vadd.f32 0.0, %v3090
    %v3092 = vpop.f32.mrf.mxu0
    %3093 = vmatprep.mubr.bf16.mxu0 0
    %3094 = vmatmul.mubr.bf16.gmra.mxu0 %v2760
    %v3095 = vpop.f32.mrf.mxu0
    %v3096 = vadd.f32 0.0, %v3095
    %v3097 = vpop.f32.mrf.mxu0
    %v3098 = vpop.f32.mrf.mxu0
    %v3099 = vadd.f32 0.0, %v3098
    %v3100 = vpop.f32.mrf.mxu0
    %3101 = vmatprep.mubr.bf16.mxu0 0
    %3102 = vmatmul.mubr.bf16.gmra.mxu0 %v2761
    %v3103 = vpop.f32.mrf.mxu0
    %v3104 = vadd.f32 0.0, %v3103
    %v3105 = vpop.f32.mrf.mxu0
    %v3106 = vpop.f32.mrf.mxu0
    %v3107 = vadd.f32 0.0, %v3106
    %v3108 = vpop.f32.mrf.mxu0
    %3109 = vmatprep.mubr.bf16.mxu0 0
    %3110 = vmatmul.mubr.bf16.gmra.mxu0 %v2762
    %v3111 = vpop.f32.mrf.mxu0
    %v3112 = vadd.f32 0.0, %v3111
    %v3113 = vpop.f32.mrf.mxu0
    %v3114 = vpop.f32.mrf.mxu0
    %v3115 = vadd.f32 0.0, %v3114
    %v3116 = vpop.f32.mrf.mxu0
    %3117 = vmatprep.mubr.bf16.mxu0 0
    %3118 = vmatmul.mubr.bf16.gmra.mxu0 %v2763
    %v3119 = vpop.f32.mrf.mxu0
    %v3120 = vadd.f32 0.0, %v3119
    %v3121 = vpop.f32.mrf.mxu0
    %v3122 = vpop.f32.mrf.mxu0
    %v3123 = vadd.f32 0.0, %v3122
    %v3124 = vpop.f32.mrf.mxu0
    %3125 = vmatprep.mubr.bf16.mxu0 0
    %3126 = vmatmul.mubr.bf16.gmra.mxu0 %v2764
    %v3127 = vpop.f32.mrf.mxu0
    %v3128 = vadd.f32 0.0, %v3127
    %v3129 = vpop.f32.mrf.mxu0
    %v3130 = vpop.f32.mrf.mxu0
    %v3131 = vadd.f32 0.0, %v3130
    %v3132 = vpop.f32.mrf.mxu0
    %3133 = vdwg.mxu0
    %v3134 = vld [vmem:[#allocation2] sm:$0xff]
    %v3135 = vld [vmem:[#allocation2 + $0x8] sm:$0xff]
    %v3136 = vld [vmem:[#allocation2 + $0x10] sm:$0xff]
    %v3137 = vld [vmem:[#allocation2 + $0x18] sm:$0xff]
    %v3138 = vld [vmem:[#allocation2 + $0x20] sm:$0xff]
    %v3139 = vld [vmem:[#allocation2 + $0x28] sm:$0xff]
    %v3140 = vld [vmem:[#allocation2 + $0x30] sm:$0xff]
    %v3141 = vld [vmem:[#allocation2 + $0x38] sm:$0xff]
    %v3142 = vld [vmem:[#allocation2 + $0x40] sm:$0xff]
    %v3143 = vld [vmem:[#allocation2 + $0x48] sm:$0xff]
    %v3144 = vld [vmem:[#allocation2 + $0x50] sm:$0xff]
    %v3145 = vld [vmem:[#allocation2 + $0x58] sm:$0xff]
    %v3146 = vld [vmem:[#allocation2 + $0x60] sm:$0xff]
    %v3147 = vld [vmem:[#allocation2 + $0x68] sm:$0xff]
    %v3148 = vld [vmem:[#allocation2 + $0x70] sm:$0xff]
    %v3149 = vld [vmem:[#allocation2 + $0x78] sm:$0xff]
    %v3150 = vld [vmem:[#allocation2 + $0x80] sm:$0xff]
    %v3151 = vld [vmem:[#allocation2 + $0x88] sm:$0xff]
    %v3152 = vld [vmem:[#allocation2 + $0x90] sm:$0xff]
    %v3153 = vld [vmem:[#allocation2 + $0x98] sm:$0xff]
    %v3154 = vld [vmem:[#allocation2 + $0xa0] sm:$0xff]
    %v3155 = vld [vmem:[#allocation2 + $0xa8] sm:$0xff]
    %v3156 = vld [vmem:[#allocation2 + $0xb0] sm:$0xff]
    %v3157 = vld [vmem:[#allocation2 + $0xb8] sm:$0xff]
    %v3158 = vld [vmem:[#allocation2 + $0xc0] sm:$0xff]
    %v3159 = vld [vmem:[#allocation2 + $0xc8] sm:$0xff]
    %v3160 = vld [vmem:[#allocation2 + $0xd0] sm:$0xff]
    %v3161 = vld [vmem:[#allocation2 + $0xd8] sm:$0xff]
    %v3162 = vld [vmem:[#allocation2 + $0xe0] sm:$0xff]
    %v3163 = vld [vmem:[#allocation2 + $0xe8] sm:$0xff]
    %v3164 = vld [vmem:[#allocation2 + $0xf0] sm:$0xff]
    %v3165 = vld [vmem:[#allocation2 + $0xf8] sm:$0xff]
    %v3166 = vld [vmem:[#allocation2 + $0x100] sm:$0xff]
    %v3167 = vld [vmem:[#allocation2 + $0x108] sm:$0xff]
    %v3168 = vld [vmem:[#allocation2 + $0x110] sm:$0xff]
    %v3169 = vld [vmem:[#allocation2 + $0x118] sm:$0xff]
    %v3170 = vld [vmem:[#allocation2 + $0x120] sm:$0xff]
    %v3171 = vld [vmem:[#allocation2 + $0x128] sm:$0xff]
    %v3172 = vld [vmem:[#allocation2 + $0x130] sm:$0xff]
    %v3173 = vld [vmem:[#allocation2 + $0x138] sm:$0xff]
    %v3174 = vld [vmem:[#allocation2 + $0x140] sm:$0xff]
    %v3175 = vld [vmem:[#allocation2 + $0x148] sm:$0xff]
    %v3176 = vld [vmem:[#allocation2 + $0x150] sm:$0xff]
    %v3177 = vld [vmem:[#allocation2 + $0x158] sm:$0xff]
    %v3178 = vld [vmem:[#allocation2 + $0x160] sm:$0xff]
    %v3179 = vld [vmem:[#allocation2 + $0x168] sm:$0xff]
    %v3180 = vld [vmem:[#allocation2 + $0x170] sm:$0xff]
    %v3181 = vld [vmem:[#allocation2 + $0x178] sm:$0xff]
    %v3182 = vld [vmem:[#allocation2 + $0x180] sm:$0xff]
    %v3183 = vld [vmem:[#allocation2 + $0x188] sm:$0xff]
    %v3184 = vld [vmem:[#allocation2 + $0x190] sm:$0xff]
    %v3185 = vld [vmem:[#allocation2 + $0x198] sm:$0xff]
    %v3186 = vld [vmem:[#allocation2 + $0x1a0] sm:$0xff]
    %v3187 = vld [vmem:[#allocation2 + $0x1a8] sm:$0xff]
    %v3188 = vld [vmem:[#allocation2 + $0x1b0] sm:$0xff]
    %v3189 = vld [vmem:[#allocation2 + $0x1b8] sm:$0xff]
    %v3190 = vld [vmem:[#allocation2 + $0x1c0] sm:$0xff]
    %v3191 = vld [vmem:[#allocation2 + $0x1c8] sm:$0xff]
    %v3192 = vld [vmem:[#allocation2 + $0x1d0] sm:$0xff]
    %v3193 = vld [vmem:[#allocation2 + $0x1d8] sm:$0xff]
    %v3194 = vld [vmem:[#allocation2 + $0x1e0] sm:$0xff]
    %v3195 = vld [vmem:[#allocation2 + $0x1e8] sm:$0xff]
    %v3196 = vld [vmem:[#allocation2 + $0x1f0] sm:$0xff]
    %v3197 = vld [vmem:[#allocation2 + $0x1f8] sm:$0xff]
    %v3198 = vadd.f32 %v3134, %v2880
    %v3199 = vadd.f32 %v3135, %v2883
    %v3200 = vadd.f32 %v3136, %v2888
    %v3201 = vadd.f32 %v3137, %v2891
    %v3202 = vadd.f32 %v3138, %v2896
    %v3203 = vadd.f32 %v3139, %v2899
    %v3204 = vadd.f32 %v3140, %v2904
    %v3205 = vadd.f32 %v3141, %v2907
    %v3206 = vadd.f32 %v3142, %v2912
    %v3207 = vadd.f32 %v3143, %v2915
    %v3208 = vadd.f32 %v3144, %v2920
    %v3209 = vadd.f32 %v3145, %v2923
    %v3210 = vadd.f32 %v3146, %v2928
    %v3211 = vadd.f32 %v3147, %v2931
    %v3212 = vadd.f32 %v3148, %v2936
    %v3213 = vadd.f32 %v3149, %v2939
    %v3214 = vadd.f32 %v3150, %v2944
    %v3215 = vadd.f32 %v3151, %v2947
    %v3216 = vadd.f32 %v3152, %v2952
    %v3217 = vadd.f32 %v3153, %v2955
    %v3218 = vadd.f32 %v3154, %v2960
    %v3219 = vadd.f32 %v3155, %v2963
    %v3220 = vadd.f32 %v3156, %v2968
    %v3221 = vadd.f32 %v3157, %v2971
    %v3222 = vadd.f32 %v3158, %v2976
    %v3223 = vadd.f32 %v3159, %v2979
    %v3224 = vadd.f32 %v3160, %v2984
    %v3225 = vadd.f32 %v3161, %v2987
    %v3226 = vadd.f32 %v3162, %v2992
    %v3227 = vadd.f32 %v3163, %v2995
    %v3228 = vadd.f32 %v3164, %v3000
    %v3229 = vadd.f32 %v3165, %v3003
    %v3230 = vadd.f32 %v3166, %v3008
    %v3231 = vadd.f32 %v3167, %v3011
    %v3232 = vadd.f32 %v3168, %v3016
    %v3233 = vadd.f32 %v3169, %v3019
    %v3234 = vadd.f32 %v3170, %v3024
    %v3235 = vadd.f32 %v3171, %v3027
    %v3236 = vadd.f32 %v3172, %v3032
    %v3237 = vadd.f32 %v3173, %v3035
    %v3238 = vadd.f32 %v3174, %v3040
    %v3239 = vadd.f32 %v3175, %v3043
    %v3240 = vadd.f32 %v3176, %v3048
    %v3241 = vadd.f32 %v3177, %v3051
    %v3242 = vadd.f32 %v3178, %v3056
    %v3243 = vadd.f32 %v3179, %v3059
    %v3244 = vadd.f32 %v3180, %v3064
    %v3245 = vadd.f32 %v3181, %v3067
    %v3246 = vadd.f32 %v3182, %v3072
    %v3247 = vadd.f32 %v3183, %v3075
    %v3248 = vadd.f32 %v3184, %v3080
    %v3249 = vadd.f32 %v3185, %v3083
    %v3250 = vadd.f32 %v3186, %v3088
    %v3251 = vadd.f32 %v3187, %v3091
    %v3252 = vadd.f32 %v3188, %v3096
    %v3253 = vadd.f32 %v3189, %v3099
    %v3254 = vadd.f32 %v3190, %v3104
    %v3255 = vadd.f32 %v3191, %v3107
    %v3256 = vadd.f32 %v3192, %v3112
    %v3257 = vadd.f32 %v3193, %v3115
    %v3258 = vadd.f32 %v3194, %v3120
    %v3259 = vadd.f32 %v3195, %v3123
    %v3260 = vadd.f32 %v3196, %v3128
    %v3261 = vadd.f32 %v3197, %v3131
    %3262 = vst [vmem:[#allocation2] sm:$0xff] %v3198
    %3263 = vst [vmem:[#allocation2 + $0x8] sm:$0xff] %v3199
    %3264 = vst [vmem:[#allocation2 + $0x10] sm:$0xff] %v3200
    %3265 = vst [vmem:[#allocation2 + $0x18] sm:$0xff] %v3201
    %3266 = vst [vmem:[#allocation2 + $0x20] sm:$0xff] %v3202
    %3267 = vst [vmem:[#allocation2 + $0x28] sm:$0xff] %v3203
    %3268 = vst [vmem:[#allocation2 + $0x30] sm:$0xff] %v3204
    %3269 = vst [vmem:[#allocation2 + $0x38] sm:$0xff] %v3205
    %3270 = vst [vmem:[#allocation2 + $0x40] sm:$0xff] %v3206
    %3271 = vst [vmem:[#allocation2 + $0x48] sm:$0xff] %v3207
    %3272 = vst [vmem:[#allocation2 + $0x50] sm:$0xff] %v3208
    %3273 = vst [vmem:[#allocation2 + $0x58] sm:$0xff] %v3209
    %3274 = vst [vmem:[#allocation2 + $0x60] sm:$0xff] %v3210
    %3275 = vst [vmem:[#allocation2 + $0x68] sm:$0xff] %v3211
    %3276 = vst [vmem:[#allocation2 + $0x70] sm:$0xff] %v3212
    %3277 = vst [vmem:[#allocation2 + $0x78] sm:$0xff] %v3213
    %3278 = vst [vmem:[#allocation2 + $0x80] sm:$0xff] %v3214
    %3279 = vst [vmem:[#allocation2 + $0x88] sm:$0xff] %v3215
    %3280 = vst [vmem:[#allocation2 + $0x90] sm:$0xff] %v3216
    %3281 = vst [vmem:[#allocation2 + $0x98] sm:$0xff] %v3217
    %3282 = vst [vmem:[#allocation2 + $0xa0] sm:$0xff] %v3218
    %3283 = vst [vmem:[#allocation2 + $0xa8] sm:$0xff] %v3219
    %3284 = vst [vmem:[#allocation2 + $0xb0] sm:$0xff] %v3220
    %3285 = vst [vmem:[#allocation2 + $0xb8] sm:$0xff] %v3221
    %3286 = vst [vmem:[#allocation2 + $0xc0] sm:$0xff] %v3222
    %3287 = vst [vmem:[#allocation2 + $0xc8] sm:$0xff] %v3223
    %3288 = vst [vmem:[#allocation2 + $0xd0] sm:$0xff] %v3224
    %3289 = vst [vmem:[#allocation2 + $0xd8] sm:$0xff] %v3225
    %3290 = vst [vmem:[#allocation2 + $0xe0] sm:$0xff] %v3226
    %3291 = vst [vmem:[#allocation2 + $0xe8] sm:$0xff] %v3227
    %3292 = vst [vmem:[#allocation2 + $0xf0] sm:$0xff] %v3228
    %3293 = vst [vmem:[#allocation2 + $0xf8] sm:$0xff] %v3229
    %3294 = vst [vmem:[#allocation2 + $0x100] sm:$0xff] %v3230
    %3295 = vst [vmem:[#allocation2 + $0x108] sm:$0xff] %v3231
    %3296 = vst [vmem:[#allocation2 + $0x110] sm:$0xff] %v3232
    %3297 = vst [vmem:[#allocation2 + $0x118] sm:$0xff] %v3233
    %3298 = vst [vmem:[#allocation2 + $0x120] sm:$0xff] %v3234
    %3299 = vst [vmem:[#allocation2 + $0x128] sm:$0xff] %v3235
    %3300 = vst [vmem:[#allocation2 + $0x130] sm:$0xff] %v3236
    %3301 = vst [vmem:[#allocation2 + $0x138] sm:$0xff] %v3237
    %3302 = vst [vmem:[#allocation2 + $0x140] sm:$0xff] %v3238
    %3303 = vst [vmem:[#allocation2 + $0x148] sm:$0xff] %v3239
    %3304 = vst [vmem:[#allocation2 + $0x150] sm:$0xff] %v3240
    %3305 = vst [vmem:[#allocation2 + $0x158] sm:$0xff] %v3241
    %3306 = vst [vmem:[#allocation2 + $0x160] sm:$0xff] %v3242
    %3307 = vst [vmem:[#allocation2 + $0x168] sm:$0xff] %v3243
    %3308 = vst [vmem:[#allocation2 + $0x170] sm:$0xff] %v3244
    %3309 = vst [vmem:[#allocation2 + $0x178] sm:$0xff] %v3245
    %3310 = vst [vmem:[#allocation2 + $0x180] sm:$0xff] %v3246
    %3311 = vst [vmem:[#allocation2 + $0x188] sm:$0xff] %v3247
    %3312 = vst [vmem:[#allocation2 + $0x190] sm:$0xff] %v3248
    %3313 = vst [vmem:[#allocation2 + $0x198] sm:$0xff] %v3249
    %3314 = vst [vmem:[#allocation2 + $0x1a0] sm:$0xff] %v3250
    %3315 = vst [vmem:[#allocation2 + $0x1a8] sm:$0xff] %v3251
    %3316 = vst [vmem:[#allocation2 + $0x1b0] sm:$0xff] %v3252
    %3317 = vst [vmem:[#allocation2 + $0x1b8] sm:$0xff] %v3253
    %3318 = vst [vmem:[#allocation2 + $0x1c0] sm:$0xff] %v3254
    %3319 = vst [vmem:[#allocation2 + $0x1c8] sm:$0xff] %v3255
    %3320 = vst [vmem:[#allocation2 + $0x1d0] sm:$0xff] %v3256
    %3321 = vst [vmem:[#allocation2 + $0x1d8] sm:$0xff] %v3257
    %3322 = vst [vmem:[#allocation2 + $0x1e0] sm:$0xff] %v3258
    %3323 = vst [vmem:[#allocation2 + $0x1e8] sm:$0xff] %v3259
    %3324 = vst [vmem:[#allocation2 + $0x1f0] sm:$0xff] %v3260
    %3325 = vst [vmem:[#allocation2 + $0x1f8] sm:$0xff] %v3261
    %s3326 = scalar_lea.vmem %s0, 12
    %v3327 = vld [vmem:[%s3326] sm:$0xf]
    %v3328 = vld [vmem:[%s3326 + $0x4] sm:$0xf]
    %v3329 = vld [vmem:[%s3326 + $0xc] sm:$0xf]
    %v3330 = vld [vmem:[%s3326 + $0x10] sm:$0xf]
    %v3331 = vld [vmem:[%s3326 + $0x18] sm:$0xf]
    %v3332 = vld [vmem:[%s3326 + $0x1c] sm:$0xf]
    %v3333 = vld [vmem:[%s3326 + $0x24] sm:$0xf]
    %v3334 = vld [vmem:[%s3326 + $0x28] sm:$0xf]
    %v3335 = vld [vmem:[%s3326 + $0x30] sm:$0xf]
    %v3336 = vld [vmem:[%s3326 + $0x34] sm:$0xf]
    %v3337 = vld [vmem:[%s3326 + $0x3c] sm:$0xf]
    %v3338 = vld [vmem:[%s3326 + $0x40] sm:$0xf]
    %v3339 = vld [vmem:[%s3326 + $0x48] sm:$0xf]
    %v3340 = vld [vmem:[%s3326 + $0x4c] sm:$0xf]
    %v3341 = vld [vmem:[%s3326 + $0x54] sm:$0xf]
    %v3342 = vld [vmem:[%s3326 + $0x58] sm:$0xf]
    %v3343 = vld [vmem:[%s3326 + $0x60] sm:$0xf]
    %v3344 = vld [vmem:[%s3326 + $0x64] sm:$0xf]
    %v3345 = vld [vmem:[%s3326 + $0x6c] sm:$0xf]
    %v3346 = vld [vmem:[%s3326 + $0x70] sm:$0xf]
    %v3347 = vld [vmem:[%s3326 + $0x78] sm:$0xf]
    %v3348 = vld [vmem:[%s3326 + $0x7c] sm:$0xf]
    %v3349 = vld [vmem:[%s3326 + $0x84] sm:$0xf]
    %v3350 = vld [vmem:[%s3326 + $0x88] sm:$0xf]
    %v3351 = vld [vmem:[%s3326 + $0x90] sm:$0xf]
    %v3352 = vld [vmem:[%s3326 + $0x94] sm:$0xf]
    %v3353 = vld [vmem:[%s3326 + $0x9c] sm:$0xf]
    %v3354 = vld [vmem:[%s3326 + $0xa0] sm:$0xf]
    %v3355 = vld [vmem:[%s3326 + $0xa8] sm:$0xf]
    %v3356 = vld [vmem:[%s3326 + $0xac] sm:$0xf]
    %v3357 = vld [vmem:[%s3326 + $0xb4] sm:$0xf]
    %v3358 = vld [vmem:[%s3326 + $0xb8] sm:$0xf]
    %v3359 = vld [vmem:[%s3326 + $0xd8] sm:$0xf]
    %v3360 = vld [vmem:[%s3326 + $0xdc] sm:$0xf]
    %v3361 = vld [vmem:[%s3326 + $0xe4] sm:$0xf]
    %v3362 = vld [vmem:[%s3326 + $0xe8] sm:$0xf]
    %v3363 = vld [vmem:[%s3326 + $0xf0] sm:$0xf]
    %v3364 = vld [vmem:[%s3326 + $0xf4] sm:$0xf]
    %v3365 = vld [vmem:[%s3326 + $0xfc] sm:$0xf]
    %v3366 = vld [vmem:[%s3326 + $0x100] sm:$0xf]
    %v3367 = vld [vmem:[%s3326 + $0x108] sm:$0xf]
    %v3368 = vld [vmem:[%s3326 + $0x10c] sm:$0xf]
    %v3369 = vld [vmem:[%s3326 + $0x114] sm:$0xf]
    %v3370 = vld [vmem:[%s3326 + $0x118] sm:$0xf]
    %v3371 = vld [vmem:[%s3326 + $0x120] sm:$0xf]
    %v3372 = vld [vmem:[%s3326 + $0x124] sm:$0xf]
    %v3373 = vld [vmem:[%s3326 + $0x12c] sm:$0xf]
    %v3374 = vld [vmem:[%s3326 + $0x130] sm:$0xf]
    %v3375 = vld [vmem:[%s3326 + $0x138] sm:$0xf]
    %v3376 = vld [vmem:[%s3326 + $0x13c] sm:$0xf]
    %v3377 = vld [vmem:[%s3326 + $0x144] sm:$0xf]
    %v3378 = vld [vmem:[%s3326 + $0x148] sm:$0xf]
    %v3379 = vld [vmem:[%s3326 + $0x150] sm:$0xf]
    %v3380 = vld [vmem:[%s3326 + $0x154] sm:$0xf]
    %v3381 = vld [vmem:[%s3326 + $0x15c] sm:$0xf]
    %v3382 = vld [vmem:[%s3326 + $0x160] sm:$0xf]
    %v3383 = vld [vmem:[%s3326 + $0x168] sm:$0xf]
    %v3384 = vld [vmem:[%s3326 + $0x16c] sm:$0xf]
    %v3385 = vld [vmem:[%s3326 + $0x174] sm:$0xf]
    %v3386 = vld [vmem:[%s3326 + $0x178] sm:$0xf]
    %v3387 = vld [vmem:[%s3326 + $0x180] sm:$0xf]
    %v3388 = vld [vmem:[%s3326 + $0x184] sm:$0xf]
    %v3389 = vld [vmem:[%s3326 + $0x18c] sm:$0xf]
    %v3390 = vld [vmem:[%s3326 + $0x190] sm:$0xf]
    %s3391 = scalar_lea.vmem %s2, 192
    %v3392 = vld [vmem:[%s3391] sm:$0xf]
    %v3393 = vld [vmem:[%s3391 + $0x4] sm:$0xf]
    %v3394 = vld [vmem:[%s3391 + $0x8] sm:$0xf]
    %v3395 = vld [vmem:[%s3391 + $0xc] sm:$0xf]
    %v3396 = vld [vmem:[%s3391 + $0x10] sm:$0xf]
    %v3397 = vld [vmem:[%s3391 + $0x14] sm:$0xf]
    %v3398 = vld [vmem:[%s3391 + $0x18] sm:$0xf]
    %v3399 = vld [vmem:[%s3391 + $0x1c] sm:$0xf]
    %v3400 = vld [vmem:[%s3391 + $0x20] sm:$0xf]
    %v3401 = vld [vmem:[%s3391 + $0x24] sm:$0xf]
    %v3402 = vld [vmem:[%s3391 + $0x28] sm:$0xf]
    %v3403 = vld [vmem:[%s3391 + $0x2c] sm:$0xf]
    %v3404 = vld [vmem:[%s3391 + $0x30] sm:$0xf]
    %v3405 = vld [vmem:[%s3391 + $0x34] sm:$0xf]
    %v3406 = vld [vmem:[%s3391 + $0x38] sm:$0xf]
    %v3407 = vld [vmem:[%s3391 + $0x3c] sm:$0xf]
    %v3472 = vunpack.c.l.b16 %v3327
    %v3473 = vunpack.c.l.b16 %v3328
    %v3474 = vunpack.c.l.b16 %v3329
    %v3475 = vunpack.c.l.b16 %v3330
    %v3476 = vunpack.c.l.b16 %v3331
    %v3477 = vunpack.c.l.b16 %v3332
    %v3478 = vunpack.c.l.b16 %v3333
    %v3479 = vunpack.c.l.b16 %v3334
    %v3480 = vunpack.c.l.b16 %v3335
    %v3481 = vunpack.c.l.b16 %v3336
    %v3482 = vunpack.c.l.b16 %v3337
    %v3483 = vunpack.c.l.b16 %v3338
    %v3484 = vunpack.c.l.b16 %v3339
    %v3485 = vunpack.c.l.b16 %v3340
    %v3486 = vunpack.c.l.b16 %v3341
    %v3487 = vunpack.c.l.b16 %v3342
    %v3488 = vunpack.c.l.b16 %v3343
    %v3489 = vunpack.c.l.b16 %v3344
    %v3490 = vunpack.c.l.b16 %v3345
    %v3491 = vunpack.c.l.b16 %v3346
    %v3492 = vunpack.c.l.b16 %v3347
    %v3493 = vunpack.c.l.b16 %v3348
    %v3494 = vunpack.c.l.b16 %v3349
    %v3495 = vunpack.c.l.b16 %v3350
    %v3496 = vunpack.c.l.b16 %v3351
    %v3497 = vunpack.c.l.b16 %v3352
    %v3498 = vunpack.c.l.b16 %v3353
    %v3499 = vunpack.c.l.b16 %v3354
    %v3500 = vunpack.c.l.b16 %v3355
    %v3501 = vunpack.c.l.b16 %v3356
    %v3502 = vunpack.c.l.b16 %v3357
    %v3503 = vunpack.c.l.b16 %v3358
    %v3504 = vunpack.c.l.b16 %v3359
    %v3505 = vunpack.c.l.b16 %v3360
    %v3506 = vunpack.c.l.b16 %v3361
    %v3507 = vunpack.c.l.b16 %v3362
    %v3508 = vunpack.c.l.b16 %v3363
    %v3509 = vunpack.c.l.b16 %v3364
    %v3510 = vunpack.c.l.b16 %v3365
    %v3511 = vunpack.c.l.b16 %v3366
    %v3512 = vunpack.c.l.b16 %v3367
    %v3513 = vunpack.c.l.b16 %v3368
    %v3514 = vunpack.c.l.b16 %v3369
    %v3515 = vunpack.c.l.b16 %v3370
    %v3516 = vunpack.c.l.b16 %v3371
    %v3517 = vunpack.c.l.b16 %v3372
    %v3518 = vunpack.c.l.b16 %v3373
    %v3519 = vunpack.c.l.b16 %v3374
    %v3520 = vunpack.c.l.b16 %v3375
    %v3521 = vunpack.c.l.b16 %v3376
    %v3522 = vunpack.c.l.b16 %v3377
    %v3523 = vunpack.c.l.b16 %v3378
    %v3524 = vunpack.c.l.b16 %v3379
    %v3525 = vunpack.c.l.b16 %v3380
    %v3526 = vunpack.c.l.b16 %v3381
    %v3527 = vunpack.c.l.b16 %v3382
    %v3528 = vunpack.c.l.b16 %v3383
    %v3529 = vunpack.c.l.b16 %v3384
    %v3530 = vunpack.c.l.b16 %v3385
    %v3531 = vunpack.c.l.b16 %v3386
    %v3532 = vunpack.c.l.b16 %v3387
    %v3533 = vunpack.c.l.b16 %v3388
    %v3534 = vunpack.c.l.b16 %v3389
    %v3535 = vunpack.c.l.b16 %v3390
    %v3536 = vpack.c.b16 %v3473, %v3472
    %v3537 = vpack.c.b16 %v3475, %v3474
    %v3538 = vpack.c.b16 %v3477, %v3476
    %v3539 = vpack.c.b16 %v3479, %v3478
    %v3540 = vpack.c.b16 %v3481, %v3480
    %v3541 = vpack.c.b16 %v3483, %v3482
    %v3542 = vpack.c.b16 %v3485, %v3484
    %v3543 = vpack.c.b16 %v3487, %v3486
    %v3544 = vpack.c.b16 %v3489, %v3488
    %v3545 = vpack.c.b16 %v3491, %v3490
    %v3546 = vpack.c.b16 %v3493, %v3492
    %v3547 = vpack.c.b16 %v3495, %v3494
    %v3548 = vpack.c.b16 %v3497, %v3496
    %v3549 = vpack.c.b16 %v3499, %v3498
    %v3550 = vpack.c.b16 %v3501, %v3500
    %v3551 = vpack.c.b16 %v3503, %v3502
    %v3552 = vpack.c.b16 %v3505, %v3504
    %v3553 = vpack.c.b16 %v3507, %v3506
    %v3554 = vpack.c.b16 %v3509, %v3508
    %v3555 = vpack.c.b16 %v3511, %v3510
    %v3556 = vpack.c.b16 %v3513, %v3512
    %v3557 = vpack.c.b16 %v3515, %v3514
    %v3558 = vpack.c.b16 %v3517, %v3516
    %v3559 = vpack.c.b16 %v3519, %v3518
    %v3560 = vpack.c.b16 %v3521, %v3520
    %v3561 = vpack.c.b16 %v3523, %v3522
    %v3562 = vpack.c.b16 %v3525, %v3524
    %v3563 = vpack.c.b16 %v3527, %v3526
    %v3564 = vpack.c.b16 %v3529, %v3528
    %v3565 = vpack.c.b16 %v3531, %v3530
    %v3566 = vpack.c.b16 %v3533, %v3532
    %v3567 = vpack.c.b16 %v3535, %v3534
    %v3616 = vunpack.c.l.b16 %v3392
    %v3617 = vunpack.c.l.b16 %v3393
    %v3618 = vunpack.c.l.b16 %v3394
    %v3619 = vunpack.c.l.b16 %v3395
    %v3620 = vunpack.c.l.b16 %v3396
    %v3621 = vunpack.c.l.b16 %v3397
    %v3622 = vunpack.c.l.b16 %v3398
    %v3623 = vunpack.c.l.b16 %v3399
    %v3624 = vunpack.c.l.b16 %v3400
    %v3625 = vunpack.c.l.b16 %v3401
    %v3626 = vunpack.c.l.b16 %v3402
    %v3627 = vunpack.c.l.b16 %v3403
    %v3628 = vunpack.c.l.b16 %v3404
    %v3629 = vunpack.c.l.b16 %v3405
    %v3630 = vunpack.c.l.b16 %v3406
    %v3631 = vunpack.c.l.b16 %v3407
    %v3632 = vpack.c.b16 %v3617, %v3616
    %v3633 = vpack.c.b16 %v3619, %v3618
    %v3634 = vpack.c.b16 %v3621, %v3620
    %v3635 = vpack.c.b16 %v3623, %v3622
    %v3636 = vpack.c.b16 %v3625, %v3624
    %v3637 = vpack.c.b16 %v3627, %v3626
    %v3638 = vpack.c.b16 %v3629, %v3628
    %v3639 = vpack.c.b16 %v3631, %v3630
    %3648 = vmatprep.subr.bf16.mxu0 0
    %3649 = vmatpush1.bf16.msra.mxu0 %v3639
    %3650 = vmatprep.subr.bf16.mxu0 0
    %3651 = vmatpush1.bf16.msra.mxu0 %v3638
    %3652 = vmatprep.subr.bf16.mxu0 0
    %3653 = vmatpush1.bf16.msra.mxu0 %v3637
    %3654 = vmatprep.subr.bf16.mxu0 0
    %3655 = vmatpush1.bf16.msra.mxu0 %v3636
    %3656 = vmatprep.subr.bf16.mxu0 0
    %3657 = vmatpush1.bf16.msra.mxu0 %v3635
    %3658 = vmatprep.subr.bf16.mxu0 0
    %3659 = vmatpush1.bf16.msra.mxu0 %v3634
    %3660 = vmatprep.subr.bf16.mxu0 0
    %3661 = vmatpush1.bf16.msra.mxu0 %v3633
    %3662 = vmatprep.subr.bf16.mxu0 0
    %3663 = vmatpush1.bf16.msra.mxu0 %v3632
    %3664 = vmatprep.subr.bf16.mxu0 0
    %3665 = vmatpush2.bf16.msra.mxu0 0
    %3666 = vmatprep.subr.bf16.mxu0 0
    %3667 = vmatpush2.bf16.msra.mxu0 0
    %3668 = vmatprep.subr.bf16.mxu0 0
    %3669 = vmatpush2.bf16.msra.mxu0 0
    %3670 = vmatprep.subr.bf16.mxu0 0
    %3671 = vmatpush2.bf16.msra.mxu0 0
    %3672 = vmatprep.subr.bf16.mxu0 0
    %3673 = vmatpush2.bf16.msra.mxu0 0
    %3674 = vmatprep.subr.bf16.mxu0 0
    %3675 = vmatpush2.bf16.msra.mxu0 0
    %3676 = vmatprep.subr.bf16.mxu0 0
    %3677 = vmatpush2.bf16.msra.mxu0 0
    %3678 = vmatprep.subr.bf16.mxu0 0
    %3679 = vmatpush2.bf16.msra.mxu0 0
    %3680 = vmatprep.mubr.bf16.mxu0 0
    %3681 = vmatmul.mubr.bf16.gmra.mxu0 %v3536
    %v3682 = vpop.f32.mrf.mxu0
    %v3683 = vadd.f32 0.0, %v3682
    %v3684 = vpop.f32.mrf.mxu0
    %v3685 = vpop.f32.mrf.mxu0
    %v3686 = vadd.f32 0.0, %v3685
    %v3687 = vpop.f32.mrf.mxu0
    %3688 = vmatprep.mubr.bf16.mxu0 0
    %3689 = vmatmul.mubr.bf16.gmra.mxu0 %v3537
    %v3690 = vpop.f32.mrf.mxu0
    %v3691 = vadd.f32 0.0, %v3690
    %v3692 = vpop.f32.mrf.mxu0
    %v3693 = vpop.f32.mrf.mxu0
    %v3694 = vadd.f32 0.0, %v3693
    %v3695 = vpop.f32.mrf.mxu0
    %3696 = vmatprep.mubr.bf16.mxu0 0
    %3697 = vmatmul.mubr.bf16.gmra.mxu0 %v3538
    %v3698 = vpop.f32.mrf.mxu0
    %v3699 = vadd.f32 0.0, %v3698
    %v3700 = vpop.f32.mrf.mxu0
    %v3701 = vpop.f32.mrf.mxu0
    %v3702 = vadd.f32 0.0, %v3701
    %v3703 = vpop.f32.mrf.mxu0
    %3704 = vmatprep.mubr.bf16.mxu0 0
    %3705 = vmatmul.mubr.bf16.gmra.mxu0 %v3539
    %v3706 = vpop.f32.mrf.mxu0
    %v3707 = vadd.f32 0.0, %v3706
    %v3708 = vpop.f32.mrf.mxu0
    %v3709 = vpop.f32.mrf.mxu0
    %v3710 = vadd.f32 0.0, %v3709
    %v3711 = vpop.f32.mrf.mxu0
    %3712 = vmatprep.mubr.bf16.mxu0 0
    %3713 = vmatmul.mubr.bf16.gmra.mxu0 %v3540
    %v3714 = vpop.f32.mrf.mxu0
    %v3715 = vadd.f32 0.0, %v3714
    %v3716 = vpop.f32.mrf.mxu0
    %v3717 = vpop.f32.mrf.mxu0
    %v3718 = vadd.f32 0.0, %v3717
    %v3719 = vpop.f32.mrf.mxu0
    %3720 = vmatprep.mubr.bf16.mxu0 0
    %3721 = vmatmul.mubr.bf16.gmra.mxu0 %v3541
    %v3722 = vpop.f32.mrf.mxu0
    %v3723 = vadd.f32 0.0, %v3722
    %v3724 = vpop.f32.mrf.mxu0
    %v3725 = vpop.f32.mrf.mxu0
    %v3726 = vadd.f32 0.0, %v3725
    %v3727 = vpop.f32.mrf.mxu0
    %3728 = vmatprep.mubr.bf16.mxu0 0
    %3729 = vmatmul.mubr.bf16.gmra.mxu0 %v3542
    %v3730 = vpop.f32.mrf.mxu0
    %v3731 = vadd.f32 0.0, %v3730
    %v3732 = vpop.f32.mrf.mxu0
    %v3733 = vpop.f32.mrf.mxu0
    %v3734 = vadd.f32 0.0, %v3733
    %v3735 = vpop.f32.mrf.mxu0
    %3736 = vmatprep.mubr.bf16.mxu0 0
    %3737 = vmatmul.mubr.bf16.gmra.mxu0 %v3543
    %v3738 = vpop.f32.mrf.mxu0
    %v3739 = vadd.f32 0.0, %v3738
    %v3740 = vpop.f32.mrf.mxu0
    %v3741 = vpop.f32.mrf.mxu0
    %v3742 = vadd.f32 0.0, %v3741
    %v3743 = vpop.f32.mrf.mxu0
    %3744 = vmatprep.mubr.bf16.mxu0 0
    %3745 = vmatmul.mubr.bf16.gmra.mxu0 %v3544
    %v3746 = vpop.f32.mrf.mxu0
    %v3747 = vadd.f32 0.0, %v3746
    %v3748 = vpop.f32.mrf.mxu0
    %v3749 = vpop.f32.mrf.mxu0
    %v3750 = vadd.f32 0.0, %v3749
    %v3751 = vpop.f32.mrf.mxu0
    %3752 = vmatprep.mubr.bf16.mxu0 0
    %3753 = vmatmul.mubr.bf16.gmra.mxu0 %v3545
    %v3754 = vpop.f32.mrf.mxu0
    %v3755 = vadd.f32 0.0, %v3754
    %v3756 = vpop.f32.mrf.mxu0
    %v3757 = vpop.f32.mrf.mxu0
    %v3758 = vadd.f32 0.0, %v3757
    %v3759 = vpop.f32.mrf.mxu0
    %3760 = vmatprep.mubr.bf16.mxu0 0
    %3761 = vmatmul.mubr.bf16.gmra.mxu0 %v3546
    %v3762 = vpop.f32.mrf.mxu0
    %v3763 = vadd.f32 0.0, %v3762
    %v3764 = vpop.f32.mrf.mxu0
    %v3765 = vpop.f32.mrf.mxu0
    %v3766 = vadd.f32 0.0, %v3765
    %v3767 = vpop.f32.mrf.mxu0
    %3768 = vmatprep.mubr.bf16.mxu0 0
    %3769 = vmatmul.mubr.bf16.gmra.mxu0 %v3547
    %v3770 = vpop.f32.mrf.mxu0
    %v3771 = vadd.f32 0.0, %v3770
    %v3772 = vpop.f32.mrf.mxu0
    %v3773 = vpop.f32.mrf.mxu0
    %v3774 = vadd.f32 0.0, %v3773
    %v3775 = vpop.f32.mrf.mxu0
    %3776 = vmatprep.mubr.bf16.mxu0 0
    %3777 = vmatmul.mubr.bf16.gmra.mxu0 %v3548
    %v3778 = vpop.f32.mrf.mxu0
    %v3779 = vadd.f32 0.0, %v3778
    %v3780 = vpop.f32.mrf.mxu0
    %v3781 = vpop.f32.mrf.mxu0
    %v3782 = vadd.f32 0.0, %v3781
    %v3783 = vpop.f32.mrf.mxu0
    %3784 = vmatprep.mubr.bf16.mxu0 0
    %3785 = vmatmul.mubr.bf16.gmra.mxu0 %v3549
    %v3786 = vpop.f32.mrf.mxu0
    %v3787 = vadd.f32 0.0, %v3786
    %v3788 = vpop.f32.mrf.mxu0
    %v3789 = vpop.f32.mrf.mxu0
    %v3790 = vadd.f32 0.0, %v3789
    %v3791 = vpop.f32.mrf.mxu0
    %3792 = vmatprep.mubr.bf16.mxu0 0
    %3793 = vmatmul.mubr.bf16.gmra.mxu0 %v3550
    %v3794 = vpop.f32.mrf.mxu0
    %v3795 = vadd.f32 0.0, %v3794
    %v3796 = vpop.f32.mrf.mxu0
    %v3797 = vpop.f32.mrf.mxu0
    %v3798 = vadd.f32 0.0, %v3797
    %v3799 = vpop.f32.mrf.mxu0
    %3800 = vmatprep.mubr.bf16.mxu0 0
    %3801 = vmatmul.mubr.bf16.gmra.mxu0 %v3551
    %v3802 = vpop.f32.mrf.mxu0
    %v3803 = vadd.f32 0.0, %v3802
    %v3804 = vpop.f32.mrf.mxu0
    %v3805 = vpop.f32.mrf.mxu0
    %v3806 = vadd.f32 0.0, %v3805
    %v3807 = vpop.f32.mrf.mxu0
    %3808 = vmatprep.mubr.bf16.mxu0 0
    %3809 = vmatmul.mubr.bf16.gmra.mxu0 %v3552
    %v3810 = vpop.f32.mrf.mxu0
    %v3811 = vadd.f32 0.0, %v3810
    %v3812 = vpop.f32.mrf.mxu0
    %v3813 = vpop.f32.mrf.mxu0
    %v3814 = vadd.f32 0.0, %v3813
    %v3815 = vpop.f32.mrf.mxu0
    %3816 = vmatprep.mubr.bf16.mxu0 0
    %3817 = vmatmul.mubr.bf16.gmra.mxu0 %v3553
    %v3818 = vpop.f32.mrf.mxu0
    %v3819 = vadd.f32 0.0, %v3818
    %v3820 = vpop.f32.mrf.mxu0
    %v3821 = vpop.f32.mrf.mxu0
    %v3822 = vadd.f32 0.0, %v3821
    %v3823 = vpop.f32.mrf.mxu0
    %3824 = vmatprep.mubr.bf16.mxu0 0
    %3825 = vmatmul.mubr.bf16.gmra.mxu0 %v3554
    %v3826 = vpop.f32.mrf.mxu0
    %v3827 = vadd.f32 0.0, %v3826
    %v3828 = vpop.f32.mrf.mxu0
    %v3829 = vpop.f32.mrf.mxu0
    %v3830 = vadd.f32 0.0, %v3829
    %v3831 = vpop.f32.mrf.mxu0
    %3832 = vmatprep.mubr.bf16.mxu0 0
    %3833 = vmatmul.mubr.bf16.gmra.mxu0 %v3555
    %v3834 = vpop.f32.mrf.mxu0
    %v3835 = vadd.f32 0.0, %v3834
    %v3836 = vpop.f32.mrf.mxu0
    %v3837 = vpop.f32.mrf.mxu0
    %v3838 = vadd.f32 0.0, %v3837
    %v3839 = vpop.f32.mrf.mxu0
    %3840 = vmatprep.mubr.bf16.mxu0 0
    %3841 = vmatmul.mubr.bf16.gmra.mxu0 %v3556
    %v3842 = vpop.f32.mrf.mxu0
    %v3843 = vadd.f32 0.0, %v3842
    %v3844 = vpop.f32.mrf.mxu0
    %v3845 = vpop.f32.mrf.mxu0
    %v3846 = vadd.f32 0.0, %v3845
    %v3847 = vpop.f32.mrf.mxu0
    %3848 = vmatprep.mubr.bf16.mxu0 0
    %3849 = vmatmul.mubr.bf16.gmra.mxu0 %v3557
    %v3850 = vpop.f32.mrf.mxu0
    %v3851 = vadd.f32 0.0, %v3850
    %v3852 = vpop.f32.mrf.mxu0
    %v3853 = vpop.f32.mrf.mxu0
    %v3854 = vadd.f32 0.0, %v3853
    %v3855 = vpop.f32.mrf.mxu0
    %3856 = vmatprep.mubr.bf16.mxu0 0
    %3857 = vmatmul.mubr.bf16.gmra.mxu0 %v3558
    %v3858 = vpop.f32.mrf.mxu0
    %v3859 = vadd.f32 0.0, %v3858
    %v3860 = vpop.f32.mrf.mxu0
    %v3861 = vpop.f32.mrf.mxu0
    %v3862 = vadd.f32 0.0, %v3861
    %v3863 = vpop.f32.mrf.mxu0
    %3864 = vmatprep.mubr.bf16.mxu0 0
    %3865 = vmatmul.mubr.bf16.gmra.mxu0 %v3559
    %v3866 = vpop.f32.mrf.mxu0
    %v3867 = vadd.f32 0.0, %v3866
    %v3868 = vpop.f32.mrf.mxu0
    %v3869 = vpop.f32.mrf.mxu0
    %v3870 = vadd.f32 0.0, %v3869
    %v3871 = vpop.f32.mrf.mxu0
    %3872 = vmatprep.mubr.bf16.mxu0 0
    %3873 = vmatmul.mubr.bf16.gmra.mxu0 %v3560
    %v3874 = vpop.f32.mrf.mxu0
    %v3875 = vadd.f32 0.0, %v3874
    %v3876 = vpop.f32.mrf.mxu0
    %v3877 = vpop.f32.mrf.mxu0
    %v3878 = vadd.f32 0.0, %v3877
    %v3879 = vpop.f32.mrf.mxu0
    %3880 = vmatprep.mubr.bf16.mxu0 0
    %3881 = vmatmul.mubr.bf16.gmra.mxu0 %v3561
    %v3882 = vpop.f32.mrf.mxu0
    %v3883 = vadd.f32 0.0, %v3882
    %v3884 = vpop.f32.mrf.mxu0
    %v3885 = vpop.f32.mrf.mxu0
    %v3886 = vadd.f32 0.0, %v3885
    %v3887 = vpop.f32.mrf.mxu0
    %3888 = vmatprep.mubr.bf16.mxu0 0
    %3889 = vmatmul.mubr.bf16.gmra.mxu0 %v3562
    %v3890 = vpop.f32.mrf.mxu0
    %v3891 = vadd.f32 0.0, %v3890
    %v3892 = vpop.f32.mrf.mxu0
    %v3893 = vpop.f32.mrf.mxu0
    %v3894 = vadd.f32 0.0, %v3893
    %v3895 = vpop.f32.mrf.mxu0
    %3896 = vmatprep.mubr.bf16.mxu0 0
    %3897 = vmatmul.mubr.bf16.gmra.mxu0 %v3563
    %v3898 = vpop.f32.mrf.mxu0
    %v3899 = vadd.f32 0.0, %v3898
    %v3900 = vpop.f32.mrf.mxu0
    %v3901 = vpop.f32.mrf.mxu0
    %v3902 = vadd.f32 0.0, %v3901
    %v3903 = vpop.f32.mrf.mxu0
    %3904 = vmatprep.mubr.bf16.mxu0 0
    %3905 = vmatmul.mubr.bf16.gmra.mxu0 %v3564
    %v3906 = vpop.f32.mrf.mxu0
    %v3907 = vadd.f32 0.0, %v3906
    %v3908 = vpop.f32.mrf.mxu0
    %v3909 = vpop.f32.mrf.mxu0
    %v3910 = vadd.f32 0.0, %v3909
    %v3911 = vpop.f32.mrf.mxu0
    %3912 = vmatprep.mubr.bf16.mxu0 0
    %3913 = vmatmul.mubr.bf16.gmra.mxu0 %v3565
    %v3914 = vpop.f32.mrf.mxu0
    %v3915 = vadd.f32 0.0, %v3914
    %v3916 = vpop.f32.mrf.mxu0
    %v3917 = vpop.f32.mrf.mxu0
    %v3918 = vadd.f32 0.0, %v3917
    %v3919 = vpop.f32.mrf.mxu0
    %3920 = vmatprep.mubr.bf16.mxu0 0
    %3921 = vmatmul.mubr.bf16.gmra.mxu0 %v3566
    %v3922 = vpop.f32.mrf.mxu0
    %v3923 = vadd.f32 0.0, %v3922
    %v3924 = vpop.f32.mrf.mxu0
    %v3925 = vpop.f32.mrf.mxu0
    %v3926 = vadd.f32 0.0, %v3925
    %v3927 = vpop.f32.mrf.mxu0
    %3928 = vmatprep.mubr.bf16.mxu0 0
    %3929 = vmatmul.mubr.bf16.gmra.mxu0 %v3567
    %v3930 = vpop.f32.mrf.mxu0
    %v3931 = vadd.f32 0.0, %v3930
    %v3932 = vpop.f32.mrf.mxu0
    %v3933 = vpop.f32.mrf.mxu0
    %v3934 = vadd.f32 0.0, %v3933
    %v3935 = vpop.f32.mrf.mxu0
    %3936 = vdwg.mxu0
    %v3937 = vld [vmem:[#allocation2] sm:$0xff]
    %v3938 = vld [vmem:[#allocation2 + $0x8] sm:$0xff]
    %v3939 = vld [vmem:[#allocation2 + $0x10] sm:$0xff]
    %v3940 = vld [vmem:[#allocation2 + $0x18] sm:$0xff]
    %v3941 = vld [vmem:[#allocation2 + $0x20] sm:$0xff]
    %v3942 = vld [vmem:[#allocation2 + $0x28] sm:$0xff]
    %v3943 = vld [vmem:[#allocation2 + $0x30] sm:$0xff]
    %v3944 = vld [vmem:[#allocation2 + $0x38] sm:$0xff]
    %v3945 = vld [vmem:[#allocation2 + $0x40] sm:$0xff]
    %v3946 = vld [vmem:[#allocation2 + $0x48] sm:$0xff]
    %v3947 = vld [vmem:[#allocation2 + $0x50] sm:$0xff]
    %v3948 = vld [vmem:[#allocation2 + $0x58] sm:$0xff]
    %v3949 = vld [vmem:[#allocation2 + $0x60] sm:$0xff]
    %v3950 = vld [vmem:[#allocation2 + $0x68] sm:$0xff]
    %v3951 = vld [vmem:[#allocation2 + $0x70] sm:$0xff]
    %v3952 = vld [vmem:[#allocation2 + $0x78] sm:$0xff]
    %v3953 = vld [vmem:[#allocation2 + $0x80] sm:$0xff]
    %v3954 = vld [vmem:[#allocation2 + $0x88] sm:$0xff]
    %v3955 = vld [vmem:[#allocation2 + $0x90] sm:$0xff]
    %v3956 = vld [vmem:[#allocation2 + $0x98] sm:$0xff]
    %v3957 = vld [vmem:[#allocation2 + $0xa0] sm:$0xff]
    %v3958 = vld [vmem:[#allocation2 + $0xa8] sm:$0xff]
    %v3959 = vld [vmem:[#allocation2 + $0xb0] sm:$0xff]
    %v3960 = vld [vmem:[#allocation2 + $0xb8] sm:$0xff]
    %v3961 = vld [vmem:[#allocation2 + $0xc0] sm:$0xff]
    %v3962 = vld [vmem:[#allocation2 + $0xc8] sm:$0xff]
    %v3963 = vld [vmem:[#allocation2 + $0xd0] sm:$0xff]
    %v3964 = vld [vmem:[#allocation2 + $0xd8] sm:$0xff]
    %v3965 = vld [vmem:[#allocation2 + $0xe0] sm:$0xff]
    %v3966 = vld [vmem:[#allocation2 + $0xe8] sm:$0xff]
    %v3967 = vld [vmem:[#allocation2 + $0xf0] sm:$0xff]
    %v3968 = vld [vmem:[#allocation2 + $0xf8] sm:$0xff]
    %v3969 = vld [vmem:[#allocation2 + $0x100] sm:$0xff]
    %v3970 = vld [vmem:[#allocation2 + $0x108] sm:$0xff]
    %v3971 = vld [vmem:[#allocation2 + $0x110] sm:$0xff]
    %v3972 = vld [vmem:[#allocation2 + $0x118] sm:$0xff]
    %v3973 = vld [vmem:[#allocation2 + $0x120] sm:$0xff]
    %v3974 = vld [vmem:[#allocation2 + $0x128] sm:$0xff]
    %v3975 = vld [vmem:[#allocation2 + $0x130] sm:$0xff]
    %v3976 = vld [vmem:[#allocation2 + $0x138] sm:$0xff]
    %v3977 = vld [vmem:[#allocation2 + $0x140] sm:$0xff]
    %v3978 = vld [vmem:[#allocation2 + $0x148] sm:$0xff]
    %v3979 = vld [vmem:[#allocation2 + $0x150] sm:$0xff]
    %v3980 = vld [vmem:[#allocation2 + $0x158] sm:$0xff]
    %v3981 = vld [vmem:[#allocation2 + $0x160] sm:$0xff]
    %v3982 = vld [vmem:[#allocation2 + $0x168] sm:$0xff]
    %v3983 = vld [vmem:[#allocation2 + $0x170] sm:$0xff]
    %v3984 = vld [vmem:[#allocation2 + $0x178] sm:$0xff]
    %v3985 = vld [vmem:[#allocation2 + $0x180] sm:$0xff]
    %v3986 = vld [vmem:[#allocation2 + $0x188] sm:$0xff]
    %v3987 = vld [vmem:[#allocation2 + $0x190] sm:$0xff]
    %v3988 = vld [vmem:[#allocation2 + $0x198] sm:$0xff]
    %v3989 = vld [vmem:[#allocation2 + $0x1a0] sm:$0xff]
    %v3990 = vld [vmem:[#allocation2 + $0x1a8] sm:$0xff]
    %v3991 = vld [vmem:[#allocation2 + $0x1b0] sm:$0xff]
    %v3992 = vld [vmem:[#allocation2 + $0x1b8] sm:$0xff]
    %v3993 = vld [vmem:[#allocation2 + $0x1c0] sm:$0xff]
    %v3994 = vld [vmem:[#allocation2 + $0x1c8] sm:$0xff]
    %v3995 = vld [vmem:[#allocation2 + $0x1d0] sm:$0xff]
    %v3996 = vld [vmem:[#allocation2 + $0x1d8] sm:$0xff]
    %v3997 = vld [vmem:[#allocation2 + $0x1e0] sm:$0xff]
    %v3998 = vld [vmem:[#allocation2 + $0x1e8] sm:$0xff]
    %v3999 = vld [vmem:[#allocation2 + $0x1f0] sm:$0xff]
    %v4000 = vld [vmem:[#allocation2 + $0x1f8] sm:$0xff]
    %v4001 = vadd.f32 %v3937, %v3683
    %v4002 = vadd.f32 %v3938, %v3686
    %v4003 = vadd.f32 %v3939, %v3691
    %v4004 = vadd.f32 %v3940, %v3694
    %v4005 = vadd.f32 %v3941, %v3699
    %v4006 = vadd.f32 %v3942, %v3702
    %v4007 = vadd.f32 %v3943, %v3707
    %v4008 = vadd.f32 %v3944, %v3710
    %v4009 = vadd.f32 %v3945, %v3715
    %v4010 = vadd.f32 %v3946, %v3718
    %v4011 = vadd.f32 %v3947, %v3723
    %v4012 = vadd.f32 %v3948, %v3726
    %v4013 = vadd.f32 %v3949, %v3731
    %v4014 = vadd.f32 %v3950, %v3734
    %v4015 = vadd.f32 %v3951, %v3739
    %v4016 = vadd.f32 %v3952, %v3742
    %v4017 = vadd.f32 %v3953, %v3747
    %v4018 = vadd.f32 %v3954, %v3750
    %v4019 = vadd.f32 %v3955, %v3755
    %v4020 = vadd.f32 %v3956, %v3758
    %v4021 = vadd.f32 %v3957, %v3763
    %v4022 = vadd.f32 %v3958, %v3766
    %v4023 = vadd.f32 %v3959, %v3771
    %v4024 = vadd.f32 %v3960, %v3774
    %v4025 = vadd.f32 %v3961, %v3779
    %v4026 = vadd.f32 %v3962, %v3782
    %v4027 = vadd.f32 %v3963, %v3787
    %v4028 = vadd.f32 %v3964, %v3790
    %v4029 = vadd.f32 %v3965, %v3795
    %v4030 = vadd.f32 %v3966, %v3798
    %v4031 = vadd.f32 %v3967, %v3803
    %v4032 = vadd.f32 %v3968, %v3806
    %v4033 = vadd.f32 %v3969, %v3811
    %v4034 = vadd.f32 %v3970, %v3814
    %v4035 = vadd.f32 %v3971, %v3819
    %v4036 = vadd.f32 %v3972, %v3822
    %v4037 = vadd.f32 %v3973, %v3827
    %v4038 = vadd.f32 %v3974, %v3830
    %v4039 = vadd.f32 %v3975, %v3835
    %v4040 = vadd.f32 %v3976, %v3838
    %v4041 = vadd.f32 %v3977, %v3843
    %v4042 = vadd.f32 %v3978, %v3846
    %v4043 = vadd.f32 %v3979, %v3851
    %v4044 = vadd.f32 %v3980, %v3854
    %v4045 = vadd.f32 %v3981, %v3859
    %v4046 = vadd.f32 %v3982, %v3862
    %v4047 = vadd.f32 %v3983, %v3867
    %v4048 = vadd.f32 %v3984, %v3870
    %v4049 = vadd.f32 %v3985, %v3875
    %v4050 = vadd.f32 %v3986, %v3878
    %v4051 = vadd.f32 %v3987, %v3883
    %v4052 = vadd.f32 %v3988, %v3886
    %v4053 = vadd.f32 %v3989, %v3891
    %v4054 = vadd.f32 %v3990, %v3894
    %v4055 = vadd.f32 %v3991, %v3899
    %v4056 = vadd.f32 %v3992, %v3902
    %v4057 = vadd.f32 %v3993, %v3907
    %v4058 = vadd.f32 %v3994, %v3910
    %v4059 = vadd.f32 %v3995, %v3915
    %v4060 = vadd.f32 %v3996, %v3918
    %v4061 = vadd.f32 %v3997, %v3923
    %v4062 = vadd.f32 %v3998, %v3926
    %v4063 = vadd.f32 %v3999, %v3931
    %v4064 = vadd.f32 %v4000, %v3934
    %4065 = vst [vmem:[#allocation2] sm:$0xff] %v4001
    %4066 = vst [vmem:[#allocation2 + $0x8] sm:$0xff] %v4002
    %4067 = vst [vmem:[#allocation2 + $0x10] sm:$0xff] %v4003
    %4068 = vst [vmem:[#allocation2 + $0x18] sm:$0xff] %v4004
    %4069 = vst [vmem:[#allocation2 + $0x20] sm:$0xff] %v4005
    %4070 = vst [vmem:[#allocation2 + $0x28] sm:$0xff] %v4006
    %4071 = vst [vmem:[#allocation2 + $0x30] sm:$0xff] %v4007
    %4072 = vst [vmem:[#allocation2 + $0x38] sm:$0xff] %v4008
    %4073 = vst [vmem:[#allocation2 + $0x40] sm:$0xff] %v4009
    %4074 = vst [vmem:[#allocation2 + $0x48] sm:$0xff] %v4010
    %4075 = vst [vmem:[#allocation2 + $0x50] sm:$0xff] %v4011
    %4076 = vst [vmem:[#allocation2 + $0x58] sm:$0xff] %v4012
    %4077 = vst [vmem:[#allocation2 + $0x60] sm:$0xff] %v4013
    %4078 = vst [vmem:[#allocation2 + $0x68] sm:$0xff] %v4014
    %4079 = vst [vmem:[#allocation2 + $0x70] sm:$0xff] %v4015
    %4080 = vst [vmem:[#allocation2 + $0x78] sm:$0xff] %v4016
    %4081 = vst [vmem:[#allocation2 + $0x80] sm:$0xff] %v4017
    %4082 = vst [vmem:[#allocation2 + $0x88] sm:$0xff] %v4018
    %4083 = vst [vmem:[#allocation2 + $0x90] sm:$0xff] %v4019
    %4084 = vst [vmem:[#allocation2 + $0x98] sm:$0xff] %v4020
    %4085 = vst [vmem:[#allocation2 + $0xa0] sm:$0xff] %v4021
    %4086 = vst [vmem:[#allocation2 + $0xa8] sm:$0xff] %v4022
    %4087 = vst [vmem:[#allocation2 + $0xb0] sm:$0xff] %v4023
    %4088 = vst [vmem:[#allocation2 + $0xb8] sm:$0xff] %v4024
    %4089 = vst [vmem:[#allocation2 + $0xc0] sm:$0xff] %v4025
    %4090 = vst [vmem:[#allocation2 + $0xc8] sm:$0xff] %v4026
    %4091 = vst [vmem:[#allocation2 + $0xd0] sm:$0xff] %v4027
    %4092 = vst [vmem:[#allocation2 + $0xd8] sm:$0xff] %v4028
    %4093 = vst [vmem:[#allocation2 + $0xe0] sm:$0xff] %v4029
    %4094 = vst [vmem:[#allocation2 + $0xe8] sm:$0xff] %v4030
    %4095 = vst [vmem:[#allocation2 + $0xf0] sm:$0xff] %v4031
    %4096 = vst [vmem:[#allocation2 + $0xf8] sm:$0xff] %v4032
    %4097 = vst [vmem:[#allocation2 + $0x100] sm:$0xff] %v4033
    %4098 = vst [vmem:[#allocation2 + $0x108] sm:$0xff] %v4034
    %4099 = vst [vmem:[#allocation2 + $0x110] sm:$0xff] %v4035
    %4100 = vst [vmem:[#allocation2 + $0x118] sm:$0xff] %v4036
    %4101 = vst [vmem:[#allocation2 + $0x120] sm:$0xff] %v4037
    %4102 = vst [vmem:[#allocation2 + $0x128] sm:$0xff] %v4038
    %4103 = vst [vmem:[#allocation2 + $0x130] sm:$0xff] %v4039
    %4104 = vst [vmem:[#allocation2 + $0x138] sm:$0xff] %v4040
    %4105 = vst [vmem:[#allocation2 + $0x140] sm:$0xff] %v4041
    %4106 = vst [vmem:[#allocation2 + $0x148] sm:$0xff] %v4042
    %4107 = vst [vmem:[#allocation2 + $0x150] sm:$0xff] %v4043
    %4108 = vst [vmem:[#allocation2 + $0x158] sm:$0xff] %v4044
    %4109 = vst [vmem:[#allocation2 + $0x160] sm:$0xff] %v4045
    %4110 = vst [vmem:[#allocation2 + $0x168] sm:$0xff] %v4046
    %4111 = vst [vmem:[#allocation2 + $0x170] sm:$0xff] %v4047
    %4112 = vst [vmem:[#allocation2 + $0x178] sm:$0xff] %v4048
    %4113 = vst [vmem:[#allocation2 + $0x180] sm:$0xff] %v4049
    %4114 = vst [vmem:[#allocation2 + $0x188] sm:$0xff] %v4050
    %4115 = vst [vmem:[#allocation2 + $0x190] sm:$0xff] %v4051
    %4116 = vst [vmem:[#allocation2 + $0x198] sm:$0xff] %v4052
    %4117 = vst [vmem:[#allocation2 + $0x1a0] sm:$0xff] %v4053
    %4118 = vst [vmem:[#allocation2 + $0x1a8] sm:$0xff] %v4054
    %4119 = vst [vmem:[#allocation2 + $0x1b0] sm:$0xff] %v4055
    %4120 = vst [vmem:[#allocation2 + $0x1b8] sm:$0xff] %v4056
    %4121 = vst [vmem:[#allocation2 + $0x1c0] sm:$0xff] %v4057
    %4122 = vst [vmem:[#allocation2 + $0x1c8] sm:$0xff] %v4058
    %4123 = vst [vmem:[#allocation2 + $0x1d0] sm:$0xff] %v4059
    %4124 = vst [vmem:[#allocation2 + $0x1d8] sm:$0xff] %v4060
    %4125 = vst [vmem:[#allocation2 + $0x1e0] sm:$0xff] %v4061
    %4126 = vst [vmem:[#allocation2 + $0x1e8] sm:$0xff] %v4062
    %4127 = vst [vmem:[#allocation2 + $0x1f0] sm:$0xff] %v4063
    %4128 = vst [vmem:[#allocation2 + $0x1f8] sm:$0xff] %v4064
    %v4129 = vld [vmem:[%s3326] sm:$0xf]
    %v4130 = vld [vmem:[%s3326 + $0x4] sm:$0xf]
    %v4131 = vld [vmem:[%s3326 + $0x8] sm:$0x1]
    %v4132 = vld [vmem:[%s3326 + $0xc] sm:$0xf]
    %v4133 = vld [vmem:[%s3326 + $0x10] sm:$0xf]
    %v4134 = vld [vmem:[%s3326 + $0x14] sm:$0x1]
    %v4135 = vld [vmem:[%s3326 + $0x18] sm:$0xf]
    %v4136 = vld [vmem:[%s3326 + $0x1c] sm:$0xf]
    %v4137 = vld [vmem:[%s3326 + $0x20] sm:$0x1]
    %v4138 = vld [vmem:[%s3326 + $0x24] sm:$0xf]
    %v4139 = vld [vmem:[%s3326 + $0x28] sm:$0xf]
    %v4140 = vld [vmem:[%s3326 + $0x2c] sm:$0x1]
    %v4141 = vld [vmem:[%s3326 + $0x30] sm:$0xf]
    %v4142 = vld [vmem:[%s3326 + $0x34] sm:$0xf]
    %v4143 = vld [vmem:[%s3326 + $0x38] sm:$0x1]
    %v4144 = vld [vmem:[%s3326 + $0x3c] sm:$0xf]
    %v4145 = vld [vmem:[%s3326 + $0x40] sm:$0xf]
    %v4146 = vld [vmem:[%s3326 + $0x44] sm:$0x1]
    %v4147 = vld [vmem:[%s3326 + $0x48] sm:$0xf]
    %v4148 = vld [vmem:[%s3326 + $0x4c] sm:$0xf]
    %v4149 = vld [vmem:[%s3326 + $0x50] sm:$0x1]
    %v4150 = vld [vmem:[%s3326 + $0x54] sm:$0xf]
    %v4151 = vld [vmem:[%s3326 + $0x58] sm:$0xf]
    %v4152 = vld [vmem:[%s3326 + $0x5c] sm:$0x1]
    %v4153 = vld [vmem:[%s3326 + $0x60] sm:$0xf]
    %v4154 = vld [vmem:[%s3326 + $0x64] sm:$0xf]
    %v4155 = vld [vmem:[%s3326 + $0x68] sm:$0x1]
    %v4156 = vld [vmem:[%s3326 + $0x6c] sm:$0xf]
    %v4157 = vld [vmem:[%s3326 + $0x70] sm:$0xf]
    %v4158 = vld [vmem:[%s3326 + $0x74] sm:$0x1]
    %v4159 = vld [vmem:[%s3326 + $0x78] sm:$0xf]
    %v4160 = vld [vmem:[%s3326 + $0x7c] sm:$0xf]
    %v4161 = vld [vmem:[%s3326 + $0x80] sm:$0x1]
    %v4162 = vld [vmem:[%s3326 + $0x84] sm:$0xf]
    %v4163 = vld [vmem:[%s3326 + $0x88] sm:$0xf]
    %v4164 = vld [vmem:[%s3326 + $0x8c] sm:$0x1]
    %v4165 = vld [vmem:[%s3326 + $0x90] sm:$0xf]
    %v4166 = vld [vmem:[%s3326 + $0x94] sm:$0xf]
    %v4167 = vld [vmem:[%s3326 + $0x98] sm:$0x1]
    %v4168 = vld [vmem:[%s3326 + $0x9c] sm:$0xf]
    %v4169 = vld [vmem:[%s3326 + $0xa0] sm:$0xf]
    %v4170 = vld [vmem:[%s3326 + $0xa4] sm:$0x1]
    %v4171 = vld [vmem:[%s3326 + $0xa8] sm:$0xf]
    %v4172 = vld [vmem:[%s3326 + $0xac] sm:$0xf]
    %v4173 = vld [vmem:[%s3326 + $0xb0] sm:$0x1]
    %v4174 = vld [vmem:[%s3326 + $0xb4] sm:$0xf]
    %v4175 = vld [vmem:[%s3326 + $0xb8] sm:$0xf]
    %v4176 = vld [vmem:[%s3326 + $0xbc] sm:$0x1]
    %v4177 = vld [vmem:[%s3326 + $0xd8] sm:$0xf]
    %v4178 = vld [vmem:[%s3326 + $0xdc] sm:$0xf]
    %v4179 = vld [vmem:[%s3326 + $0xe0] sm:$0x1]
    %v4180 = vld [vmem:[%s3326 + $0xe4] sm:$0xf]
    %v4181 = vld [vmem:[%s3326 + $0xe8] sm:$0xf]
    %v4182 = vld [vmem:[%s3326 + $0xec] sm:$0x1]
    %v4183 = vld [vmem:[%s3326 + $0xf0] sm:$0xf]
    %v4184 = vld [vmem:[%s3326 + $0xf4] sm:$0xf]
    %v4185 = vld [vmem:[%s3326 + $0xf8] sm:$0x1]
    %v4186 = vld [vmem:[%s3326 + $0xfc] sm:$0xf]
    %v4187 = vld [vmem:[%s3326 + $0x100] sm:$0xf]
    %v4188 = vld [vmem:[%s3326 + $0x104] sm:$0x1]
    %v4189 = vld [vmem:[%s3326 + $0x108] sm:$0xf]
    %v4190 = vld [vmem:[%s3326 + $0x10c] sm:$0xf]
    %v4191 = vld [vmem:[%s3326 + $0x110] sm:$0x1]
    %v4192 = vld [vmem:[%s3326 + $0x114] sm:$0xf]
    %v4193 = vld [vmem:[%s3326 + $0x118] sm:$0xf]
    %v4194 = vld [vmem:[%s3326 + $0x11c] sm:$0x1]
    %v4195 = vld [vmem:[%s3326 + $0x120] sm:$0xf]
    %v4196 = vld [vmem:[%s3326 + $0x124] sm:$0xf]
    %v4197 = vld [vmem:[%s3326 + $0x128] sm:$0x1]
    %v4198 = vld [vmem:[%s3326 + $0x12c] sm:$0xf]
    %v4199 = vld [vmem:[%s3326 + $0x130] sm:$0xf]
    %v4200 = vld [vmem:[%s3326 + $0x134] sm:$0x1]
    %v4201 = vld [vmem:[%s3326 + $0x138] sm:$0xf]
    %v4202 = vld [vmem:[%s3326 + $0x13c] sm:$0xf]
    %v4203 = vld [vmem:[%s3326 + $0x140] sm:$0x1]
    %v4204 = vld [vmem:[%s3326 + $0x144] sm:$0xf]
    %v4205 = vld [vmem:[%s3326 + $0x148] sm:$0xf]
    %v4206 = vld [vmem:[%s3326 + $0x14c] sm:$0x1]
    %v4207 = vld [vmem:[%s3326 + $0x150] sm:$0xf]
    %v4208 = vld [vmem:[%s3326 + $0x154] sm:$0xf]
    %v4209 = vld [vmem:[%s3326 + $0x158] sm:$0x1]
    %v4210 = vld [vmem:[%s3326 + $0x15c] sm:$0xf]
    %v4211 = vld [vmem:[%s3326 + $0x160] sm:$0xf]
    %v4212 = vld [vmem:[%s3326 + $0x164] sm:$0x1]
    %v4213 = vld [vmem:[%s3326 + $0x168] sm:$0xf]
    %v4214 = vld [vmem:[%s3326 + $0x16c] sm:$0xf]
    %v4215 = vld [vmem:[%s3326 + $0x170] sm:$0x1]
    %v4216 = vld [vmem:[%s3326 + $0x174] sm:$0xf]
    %v4217 = vld [vmem:[%s3326 + $0x178] sm:$0xf]
    %v4218 = vld [vmem:[%s3326 + $0x17c] sm:$0x1]
    %v4219 = vld [vmem:[%s3326 + $0x180] sm:$0xf]
    %v4220 = vld [vmem:[%s3326 + $0x184] sm:$0xf]
    %v4221 = vld [vmem:[%s3326 + $0x188] sm:$0x1]
    %v4222 = vld [vmem:[%s3326 + $0x18c] sm:$0xf]
    %v4223 = vld [vmem:[%s3326 + $0x190] sm:$0xf]
    %v4224 = vld [vmem:[%s3326 + $0x194] sm:$0x1]
    %v4226 = vshrl.u32 %v4129, 16
    %v4228 = vrot.slane %v4226, 4
    %v4229 = vshll.u32 %v4129, 16
    %v4231 = vrot.slane %v4229, 5
    %v4232 = vor.u32 %v4228, %v4231
    %v4233 = vrot.slane %v4232, 4
    %v4235 = vshll.u32 %v4130, 16
    %v4237 = vrot.slane %v4235, 5
    %v4238 = vsel %vm790, %v4233, %v4237
    %v4239 = vshrl.u32 %v4130, 16
    %v4241 = vrot.slane %v4239, 4
    %v4242 = vor.u32 %v4241, %v4237
    %v4243 = vrot.slane %v4242, 4
    %v4245 = vshll.u32 %v4131, 16
    %v4247 = vrot.slane %v4245, 5
    %v4248 = vsel %vm790, %v4243, %v4247
    %v4250 = vshrl.u32 %v4132, 16
    %v4252 = vrot.slane %v4250, 4
    %v4253 = vshll.u32 %v4132, 16
    %v4255 = vrot.slane %v4253, 5
    %v4256 = vor.u32 %v4252, %v4255
    %v4257 = vrot.slane %v4256, 4
    %v4259 = vshll.u32 %v4133, 16
    %v4261 = vrot.slane %v4259, 5
    %v4262 = vsel %vm790, %v4257, %v4261
    %v4263 = vshrl.u32 %v4133, 16
    %v4265 = vrot.slane %v4263, 4
    %v4266 = vor.u32 %v4265, %v4261
    %v4267 = vrot.slane %v4266, 4
    %v4269 = vshll.u32 %v4134, 16
    %v4271 = vrot.slane %v4269, 5
    %v4272 = vsel %vm790, %v4267, %v4271
    %v4274 = vshrl.u32 %v4135, 16
    %v4276 = vrot.slane %v4274, 4
    %v4277 = vshll.u32 %v4135, 16
    %v4279 = vrot.slane %v4277, 5
    %v4280 = vor.u32 %v4276, %v4279
    %v4281 = vrot.slane %v4280, 4
    %v4283 = vshll.u32 %v4136, 16
    %v4285 = vrot.slane %v4283, 5
    %v4286 = vsel %vm790, %v4281, %v4285
    %v4287 = vshrl.u32 %v4136, 16
    %v4289 = vrot.slane %v4287, 4
    %v4290 = vor.u32 %v4289, %v4285
    %v4291 = vrot.slane %v4290, 4
    %v4293 = vshll.u32 %v4137, 16
    %v4295 = vrot.slane %v4293, 5
    %v4296 = vsel %vm790, %v4291, %v4295
    %v4298 = vshrl.u32 %v4138, 16
    %v4300 = vrot.slane %v4298, 4
    %v4301 = vshll.u32 %v4138, 16
    %v4303 = vrot.slane %v4301, 5
    %v4304 = vor.u32 %v4300, %v4303
    %v4305 = vrot.slane %v4304, 4
    %v4307 = vshll.u32 %v4139, 16
    %v4309 = vrot.slane %v4307, 5
    %v4310 = vsel %vm790, %v4305, %v4309
    %v4311 = vshrl.u32 %v4139, 16
    %v4313 = vrot.slane %v4311, 4
    %v4314 = vor.u32 %v4313, %v4309
    %v4315 = vrot.slane %v4314, 4
    %v4317 = vshll.u32 %v4140, 16
    %v4319 = vrot.slane %v4317, 5
    %v4320 = vsel %vm790, %v4315, %v4319
    %v4322 = vshrl.u32 %v4141, 16
    %v4324 = vrot.slane %v4322, 4
    %v4325 = vshll.u32 %v4141, 16
    %v4327 = vrot.slane %v4325, 5
    %v4328 = vor.u32 %v4324, %v4327
    %v4329 = vrot.slane %v4328, 4
    %v4331 = vshll.u32 %v4142, 16
    %v4333 = vrot.slane %v4331, 5
    %v4334 = vsel %vm790, %v4329, %v4333
    %v4335 = vshrl.u32 %v4142, 16
    %v4337 = vrot.slane %v4335, 4
    %v4338 = vor.u32 %v4337, %v4333
    %v4339 = vrot.slane %v4338, 4
    %v4341 = vshll.u32 %v4143, 16
    %v4343 = vrot.slane %v4341, 5
    %v4344 = vsel %vm790, %v4339, %v4343
    %v4346 = vshrl.u32 %v4144, 16
    %v4348 = vrot.slane %v4346, 4
    %v4349 = vshll.u32 %v4144, 16
    %v4351 = vrot.slane %v4349, 5
    %v4352 = vor.u32 %v4348, %v4351
    %v4353 = vrot.slane %v4352, 4
    %v4355 = vshll.u32 %v4145, 16
    %v4357 = vrot.slane %v4355, 5
    %v4358 = vsel %vm790, %v4353, %v4357
    %v4359 = vshrl.u32 %v4145, 16
    %v4361 = vrot.slane %v4359, 4
    %v4362 = vor.u32 %v4361, %v4357
    %v4363 = vrot.slane %v4362, 4
    %v4365 = vshll.u32 %v4146, 16
    %v4367 = vrot.slane %v4365, 5
    %v4368 = vsel %vm790, %v4363, %v4367
    %v4370 = vshrl.u32 %v4147, 16
    %v4372 = vrot.slane %v4370, 4
    %v4373 = vshll.u32 %v4147, 16
    %v4375 = vrot.slane %v4373, 5
    %v4376 = vor.u32 %v4372, %v4375
    %v4377 = vrot.slane %v4376, 4
    %v4379 = vshll.u32 %v4148, 16
    %v4381 = vrot.slane %v4379, 5
    %v4382 = vsel %vm790, %v4377, %v4381
    %v4383 = vshrl.u32 %v4148, 16
    %v4385 = vrot.slane %v4383, 4
    %v4386 = vor.u32 %v4385, %v4381
    %v4387 = vrot.slane %v4386, 4
    %v4389 = vshll.u32 %v4149, 16
    %v4391 = vrot.slane %v4389, 5
    %v4392 = vsel %vm790, %v4387, %v4391
    %v4394 = vshrl.u32 %v4150, 16
    %v4396 = vrot.slane %v4394, 4
    %v4397 = vshll.u32 %v4150, 16
    %v4399 = vrot.slane %v4397, 5
    %v4400 = vor.u32 %v4396, %v4399
    %v4401 = vrot.slane %v4400, 4
    %v4403 = vshll.u32 %v4151, 16
    %v4405 = vrot.slane %v4403, 5
    %v4406 = vsel %vm790, %v4401, %v4405
    %v4407 = vshrl.u32 %v4151, 16
    %v4409 = vrot.slane %v4407, 4
    %v4410 = vor.u32 %v4409, %v4405
    %v4411 = vrot.slane %v4410, 4
    %v4413 = vshll.u32 %v4152, 16
    %v4415 = vrot.slane %v4413, 5
    %v4416 = vsel %vm790, %v4411, %v4415
    %v4418 = vshrl.u32 %v4153, 16
    %v4420 = vrot.slane %v4418, 4
    %v4421 = vshll.u32 %v4153, 16
    %v4423 = vrot.slane %v4421, 5
    %v4424 = vor.u32 %v4420, %v4423
    %v4425 = vrot.slane %v4424, 4
    %v4427 = vshll.u32 %v4154, 16
    %v4429 = vrot.slane %v4427, 5
    %v4430 = vsel %vm790, %v4425, %v4429
    %v4431 = vshrl.u32 %v4154, 16
    %v4433 = vrot.slane %v4431, 4
    %v4434 = vor.u32 %v4433, %v4429
    %v4435 = vrot.slane %v4434, 4
    %v4437 = vshll.u32 %v4155, 16
    %v4439 = vrot.slane %v4437, 5
    %v4440 = vsel %vm790, %v4435, %v4439
    %v4442 = vshrl.u32 %v4156, 16
    %v4444 = vrot.slane %v4442, 4
    %v4445 = vshll.u32 %v4156, 16
    %v4447 = vrot.slane %v4445, 5
    %v4448 = vor.u32 %v4444, %v4447
    %v4449 = vrot.slane %v4448, 4
    %v4451 = vshll.u32 %v4157, 16
    %v4453 = vrot.slane %v4451, 5
    %v4454 = vsel %vm790, %v4449, %v4453
    %v4455 = vshrl.u32 %v4157, 16
    %v4457 = vrot.slane %v4455, 4
    %v4458 = vor.u32 %v4457, %v4453
    %v4459 = vrot.slane %v4458, 4
    %v4461 = vshll.u32 %v4158, 16
    %v4463 = vrot.slane %v4461, 5
    %v4464 = vsel %vm790, %v4459, %v4463
    %v4466 = vshrl.u32 %v4159, 16
    %v4468 = vrot.slane %v4466, 4
    %v4469 = vshll.u32 %v4159, 16
    %v4471 = vrot.slane %v4469, 5
    %v4472 = vor.u32 %v4468, %v4471
    %v4473 = vrot.slane %v4472, 4
    %v4475 = vshll.u32 %v4160, 16
    %v4477 = vrot.slane %v4475, 5
    %v4478 = vsel %vm790, %v4473, %v4477
    %v4479 = vshrl.u32 %v4160, 16
    %v4481 = vrot.slane %v4479, 4
    %v4482 = vor.u32 %v4481, %v4477
    %v4483 = vrot.slane %v4482, 4
    %v4485 = vshll.u32 %v4161, 16
    %v4487 = vrot.slane %v4485, 5
    %v4488 = vsel %vm790, %v4483, %v4487
    %v4490 = vshrl.u32 %v4162, 16
    %v4492 = vrot.slane %v4490, 4
    %v4493 = vshll.u32 %v4162, 16
    %v4495 = vrot.slane %v4493, 5
    %v4496 = vor.u32 %v4492, %v4495
    %v4497 = vrot.slane %v4496, 4
    %v4499 = vshll.u32 %v4163, 16
    %v4501 = vrot.slane %v4499, 5
    %v4502 = vsel %vm790, %v4497, %v4501
    %v4503 = vshrl.u32 %v4163, 16
    %v4505 = vrot.slane %v4503, 4
    %v4506 = vor.u32 %v4505, %v4501
    %v4507 = vrot.slane %v4506, 4
    %v4509 = vshll.u32 %v4164, 16
    %v4511 = vrot.slane %v4509, 5
    %v4512 = vsel %vm790, %v4507, %v4511
    %v4514 = vshrl.u32 %v4165, 16
    %v4516 = vrot.slane %v4514, 4
    %v4517 = vshll.u32 %v4165, 16
    %v4519 = vrot.slane %v4517, 5
    %v4520 = vor.u32 %v4516, %v4519
    %v4521 = vrot.slane %v4520, 4
    %v4523 = vshll.u32 %v4166, 16
    %v4525 = vrot.slane %v4523, 5
    %v4526 = vsel %vm790, %v4521, %v4525
    %v4527 = vshrl.u32 %v4166, 16
    %v4529 = vrot.slane %v4527, 4
    %v4530 = vor.u32 %v4529, %v4525
    %v4531 = vrot.slane %v4530, 4
    %v4533 = vshll.u32 %v4167, 16
    %v4535 = vrot.slane %v4533, 5
    %v4536 = vsel %vm790, %v4531, %v4535
    %v4538 = vshrl.u32 %v4168, 16
    %v4540 = vrot.slane %v4538, 4
    %v4541 = vshll.u32 %v4168, 16
    %v4543 = vrot.slane %v4541, 5
    %v4544 = vor.u32 %v4540, %v4543
    %v4545 = vrot.slane %v4544, 4
    %v4547 = vshll.u32 %v4169, 16
    %v4549 = vrot.slane %v4547, 5
    %v4550 = vsel %vm790, %v4545, %v4549
    %v4551 = vshrl.u32 %v4169, 16
    %v4553 = vrot.slane %v4551, 4
    %v4554 = vor.u32 %v4553, %v4549
    %v4555 = vrot.slane %v4554, 4
    %v4557 = vshll.u32 %v4170, 16
    %v4559 = vrot.slane %v4557, 5
    %v4560 = vsel %vm790, %v4555, %v4559
    %v4562 = vshrl.u32 %v4171, 16
    %v4564 = vrot.slane %v4562, 4
    %v4565 = vshll.u32 %v4171, 16
    %v4567 = vrot.slane %v4565, 5
    %v4568 = vor.u32 %v4564, %v4567
    %v4569 = vrot.slane %v4568, 4
    %v4571 = vshll.u32 %v4172, 16
    %v4573 = vrot.slane %v4571, 5
    %v4574 = vsel %vm790, %v4569, %v4573
    %v4575 = vshrl.u32 %v4172, 16
    %v4577 = vrot.slane %v4575, 4
    %v4578 = vor.u32 %v4577, %v4573
    %v4579 = vrot.slane %v4578, 4
    %v4581 = vshll.u32 %v4173, 16
    %v4583 = vrot.slane %v4581, 5
    %v4584 = vsel %vm790, %v4579, %v4583
    %v4586 = vshrl.u32 %v4174, 16
    %v4588 = vrot.slane %v4586, 4
    %v4589 = vshll.u32 %v4174, 16
    %v4591 = vrot.slane %v4589, 5
    %v4592 = vor.u32 %v4588, %v4591
    %v4593 = vrot.slane %v4592, 4
    %v4595 = vshll.u32 %v4175, 16
    %v4597 = vrot.slane %v4595, 5
    %v4598 = vsel %vm790, %v4593, %v4597
    %v4599 = vshrl.u32 %v4175, 16
    %v4601 = vrot.slane %v4599, 4
    %v4602 = vor.u32 %v4601, %v4597
    %v4603 = vrot.slane %v4602, 4
    %v4605 = vshll.u32 %v4176, 16
    %v4607 = vrot.slane %v4605, 5
    %v4608 = vsel %vm790, %v4603, %v4607
    %v4610 = vshrl.u32 %v4177, 16
    %v4612 = vrot.slane %v4610, 4
    %v4613 = vshll.u32 %v4177, 16
    %v4615 = vrot.slane %v4613, 5
    %v4616 = vor.u32 %v4612, %v4615
    %v4617 = vrot.slane %v4616, 4
    %v4619 = vshll.u32 %v4178, 16
    %v4621 = vrot.slane %v4619, 5
    %v4622 = vsel %vm790, %v4617, %v4621
    %v4623 = vshrl.u32 %v4178, 16
    %v4625 = vrot.slane %v4623, 4
    %v4626 = vor.u32 %v4625, %v4621
    %v4627 = vrot.slane %v4626, 4
    %v4629 = vshll.u32 %v4179, 16
    %v4631 = vrot.slane %v4629, 5
    %v4632 = vsel %vm790, %v4627, %v4631
    %v4634 = vshrl.u32 %v4180, 16
    %v4636 = vrot.slane %v4634, 4
    %v4637 = vshll.u32 %v4180, 16
    %v4639 = vrot.slane %v4637, 5
    %v4640 = vor.u32 %v4636, %v4639
    %v4641 = vrot.slane %v4640, 4
    %v4643 = vshll.u32 %v4181, 16
    %v4645 = vrot.slane %v4643, 5
    %v4646 = vsel %vm790, %v4641, %v4645
    %v4647 = vshrl.u32 %v4181, 16
    %v4649 = vrot.slane %v4647, 4
    %v4650 = vor.u32 %v4649, %v4645
    %v4651 = vrot.slane %v4650, 4
    %v4653 = vshll.u32 %v4182, 16
    %v4655 = vrot.slane %v4653, 5
    %v4656 = vsel %vm790, %v4651, %v4655
    %v4658 = vshrl.u32 %v4183, 16
    %v4660 = vrot.slane %v4658, 4
    %v4661 = vshll.u32 %v4183, 16
    %v4663 = vrot.slane %v4661, 5
    %v4664 = vor.u32 %v4660, %v4663
    %v4665 = vrot.slane %v4664, 4
    %v4667 = vshll.u32 %v4184, 16
    %v4669 = vrot.slane %v4667, 5
    %v4670 = vsel %vm790, %v4665, %v4669
    %v4671 = vshrl.u32 %v4184, 16
    %v4673 = vrot.slane %v4671, 4
    %v4674 = vor.u32 %v4673, %v4669
    %v4675 = vrot.slane %v4674, 4
    %v4677 = vshll.u32 %v4185, 16
    %v4679 = vrot.slane %v4677, 5
    %v4680 = vsel %vm790, %v4675, %v4679
    %v4682 = vshrl.u32 %v4186, 16
    %v4684 = vrot.slane %v4682, 4
    %v4685 = vshll.u32 %v4186, 16
    %v4687 = vrot.slane %v4685, 5
    %v4688 = vor.u32 %v4684, %v4687
    %v4689 = vrot.slane %v4688, 4
    %v4691 = vshll.u32 %v4187, 16
    %v4693 = vrot.slane %v4691, 5
    %v4694 = vsel %vm790, %v4689, %v4693
    %v4695 = vshrl.u32 %v4187, 16
    %v4697 = vrot.slane %v4695, 4
    %v4698 = vor.u32 %v4697, %v4693
    %v4699 = vrot.slane %v4698, 4
    %v4701 = vshll.u32 %v4188, 16
    %v4703 = vrot.slane %v4701, 5
    %v4704 = vsel %vm790, %v4699, %v4703
    %v4706 = vshrl.u32 %v4189, 16
    %v4708 = vrot.slane %v4706, 4
    %v4709 = vshll.u32 %v4189, 16
    %v4711 = vrot.slane %v4709, 5
    %v4712 = vor.u32 %v4708, %v4711
    %v4713 = vrot.slane %v4712, 4
    %v4715 = vshll.u32 %v4190, 16
    %v4717 = vrot.slane %v4715, 5
    %v4718 = vsel %vm790, %v4713, %v4717
    %v4719 = vshrl.u32 %v4190, 16
    %v4721 = vrot.slane %v4719, 4
    %v4722 = vor.u32 %v4721, %v4717
    %v4723 = vrot.slane %v4722, 4
    %v4725 = vshll.u32 %v4191, 16
    %v4727 = vrot.slane %v4725, 5
    %v4728 = vsel %vm790, %v4723, %v4727
    %v4730 = vshrl.u32 %v4192, 16
    %v4732 = vrot.slane %v4730, 4
    %v4733 = vshll.u32 %v4192, 16
    %v4735 = vrot.slane %v4733, 5
    %v4736 = vor.u32 %v4732, %v4735
    %v4737 = vrot.slane %v4736, 4
    %v4739 = vshll.u32 %v4193, 16
    %v4741 = vrot.slane %v4739, 5
    %v4742 = vsel %vm790, %v4737, %v4741
    %v4743 = vshrl.u32 %v4193, 16
    %v4745 = vrot.slane %v4743, 4
    %v4746 = vor.u32 %v4745, %v4741
    %v4747 = vrot.slane %v4746, 4
    %v4749 = vshll.u32 %v4194, 16
    %v4751 = vrot.slane %v4749, 5
    %v4752 = vsel %vm790, %v4747, %v4751
    %v4754 = vshrl.u32 %v4195, 16
    %v4756 = vrot.slane %v4754, 4
    %v4757 = vshll.u32 %v4195, 16
    %v4759 = vrot.slane %v4757, 5
    %v4760 = vor.u32 %v4756, %v4759
    %v4761 = vrot.slane %v4760, 4
    %v4763 = vshll.u32 %v4196, 16
    %v4765 = vrot.slane %v4763, 5
    %v4766 = vsel %vm790, %v4761, %v4765
    %v4767 = vshrl.u32 %v4196, 16
    %v4769 = vrot.slane %v4767, 4
    %v4770 = vor.u32 %v4769, %v4765
    %v4771 = vrot.slane %v4770, 4
    %v4773 = vshll.u32 %v4197, 16
    %v4775 = vrot.slane %v4773, 5
    %v4776 = vsel %vm790, %v4771, %v4775
    %v4778 = vshrl.u32 %v4198, 16
    %v4780 = vrot.slane %v4778, 4
    %v4781 = vshll.u32 %v4198, 16
    %v4783 = vrot.slane %v4781, 5
    %v4784 = vor.u32 %v4780, %v4783
    %v4785 = vrot.slane %v4784, 4
    %v4787 = vshll.u32 %v4199, 16
    %v4789 = vrot.slane %v4787, 5
    %v4790 = vsel %vm790, %v4785, %v4789
    %v4791 = vshrl.u32 %v4199, 16
    %v4793 = vrot.slane %v4791, 4
    %v4794 = vor.u32 %v4793, %v4789
    %v4795 = vrot.slane %v4794, 4
    %v4797 = vshll.u32 %v4200, 16
    %v4799 = vrot.slane %v4797, 5
    %v4800 = vsel %vm790, %v4795, %v4799
    %v4802 = vshrl.u32 %v4201, 16
    %v4804 = vrot.slane %v4802, 4
    %v4805 = vshll.u32 %v4201, 16
    %v4807 = vrot.slane %v4805, 5
    %v4808 = vor.u32 %v4804, %v4807
    %v4809 = vrot.slane %v4808, 4
    %v4811 = vshll.u32 %v4202, 16
    %v4813 = vrot.slane %v4811, 5
    %v4814 = vsel %vm790, %v4809, %v4813
    %v4815 = vshrl.u32 %v4202, 16
    %v4817 = vrot.slane %v4815, 4
    %v4818 = vor.u32 %v4817, %v4813
    %v4819 = vrot.slane %v4818, 4
    %v4821 = vshll.u32 %v4203, 16
    %v4823 = vrot.slane %v4821, 5
    %v4824 = vsel %vm790, %v4819, %v4823
    %v4826 = vshrl.u32 %v4204, 16
    %v4828 = vrot.slane %v4826, 4
    %v4829 = vshll.u32 %v4204, 16
    %v4831 = vrot.slane %v4829, 5
    %v4832 = vor.u32 %v4828, %v4831
    %v4833 = vrot.slane %v4832, 4
    %v4835 = vshll.u32 %v4205, 16
    %v4837 = vrot.slane %v4835, 5
    %v4838 = vsel %vm790, %v4833, %v4837
    %v4839 = vshrl.u32 %v4205, 16
    %v4841 = vrot.slane %v4839, 4
    %v4842 = vor.u32 %v4841, %v4837
    %v4843 = vrot.slane %v4842, 4
    %v4845 = vshll.u32 %v4206, 16
    %v4847 = vrot.slane %v4845, 5
    %v4848 = vsel %vm790, %v4843, %v4847
    %v4850 = vshrl.u32 %v4207, 16
    %v4852 = vrot.slane %v4850, 4
    %v4853 = vshll.u32 %v4207, 16
    %v4855 = vrot.slane %v4853, 5
    %v4856 = vor.u32 %v4852, %v4855
    %v4857 = vrot.slane %v4856, 4
    %v4859 = vshll.u32 %v4208, 16
    %v4861 = vrot.slane %v4859, 5
    %v4862 = vsel %vm790, %v4857, %v4861
    %v4863 = vshrl.u32 %v4208, 16
    %v4865 = vrot.slane %v4863, 4
    %v4866 = vor.u32 %v4865, %v4861
    %v4867 = vrot.slane %v4866, 4
    %v4869 = vshll.u32 %v4209, 16
    %v4871 = vrot.slane %v4869, 5
    %v4872 = vsel %vm790, %v4867, %v4871
    %v4874 = vshrl.u32 %v4210, 16
    %v4876 = vrot.slane %v4874, 4
    %v4877 = vshll.u32 %v4210, 16
    %v4879 = vrot.slane %v4877, 5
    %v4880 = vor.u32 %v4876, %v4879
    %v4881 = vrot.slane %v4880, 4
    %v4883 = vshll.u32 %v4211, 16
    %v4885 = vrot.slane %v4883, 5
    %v4886 = vsel %vm790, %v4881, %v4885
    %v4887 = vshrl.u32 %v4211, 16
    %v4889 = vrot.slane %v4887, 4
    %v4890 = vor.u32 %v4889, %v4885
    %v4891 = vrot.slane %v4890, 4
    %v4893 = vshll.u32 %v4212, 16
    %v4895 = vrot.slane %v4893, 5
    %v4896 = vsel %vm790, %v4891, %v4895
    %v4898 = vshrl.u32 %v4213, 16
    %v4900 = vrot.slane %v4898, 4
    %v4901 = vshll.u32 %v4213, 16
    %v4903 = vrot.slane %v4901, 5
    %v4904 = vor.u32 %v4900, %v4903
    %v4905 = vrot.slane %v4904, 4
    %v4907 = vshll.u32 %v4214, 16
    %v4909 = vrot.slane %v4907, 5
    %v4910 = vsel %vm790, %v4905, %v4909
    %v4911 = vshrl.u32 %v4214, 16
    %v4913 = vrot.slane %v4911, 4
    %v4914 = vor.u32 %v4913, %v4909
    %v4915 = vrot.slane %v4914, 4
    %v4917 = vshll.u32 %v4215, 16
    %v4919 = vrot.slane %v4917, 5
    %v4920 = vsel %vm790, %v4915, %v4919
    %v4922 = vshrl.u32 %v4216, 16
    %v4924 = vrot.slane %v4922, 4
    %v4925 = vshll.u32 %v4216, 16
    %v4927 = vrot.slane %v4925, 5
    %v4928 = vor.u32 %v4924, %v4927
    %v4929 = vrot.slane %v4928, 4
    %v4931 = vshll.u32 %v4217, 16
    %v4933 = vrot.slane %v4931, 5
    %v4934 = vsel %vm790, %v4929, %v4933
    %v4935 = vshrl.u32 %v4217, 16
    %v4937 = vrot.slane %v4935, 4
    %v4938 = vor.u32 %v4937, %v4933
    %v4939 = vrot.slane %v4938, 4
    %v4941 = vshll.u32 %v4218, 16
    %v4943 = vrot.slane %v4941, 5
    %v4944 = vsel %vm790, %v4939, %v4943
    %v4946 = vshrl.u32 %v4219, 16
    %v4948 = vrot.slane %v4946, 4
    %v4949 = vshll.u32 %v4219, 16
    %v4951 = vrot.slane %v4949, 5
    %v4952 = vor.u32 %v4948, %v4951
    %v4953 = vrot.slane %v4952, 4
    %v4955 = vshll.u32 %v4220, 16
    %v4957 = vrot.slane %v4955, 5
    %v4958 = vsel %vm790, %v4953, %v4957
    %v4959 = vshrl.u32 %v4220, 16
    %v4961 = vrot.slane %v4959, 4
    %v4962 = vor.u32 %v4961, %v4957
    %v4963 = vrot.slane %v4962, 4
    %v4965 = vshll.u32 %v4221, 16
    %v4967 = vrot.slane %v4965, 5
    %v4968 = vsel %vm790, %v4963, %v4967
    %v4970 = vshrl.u32 %v4222, 16
    %v4972 = vrot.slane %v4970, 4
    %v4973 = vshll.u32 %v4222, 16
    %v4975 = vrot.slane %v4973, 5
    %v4976 = vor.u32 %v4972, %v4975
    %v4977 = vrot.slane %v4976, 4
    %v4979 = vshll.u32 %v4223, 16
    %v4981 = vrot.slane %v4979, 5
    %v4982 = vsel %vm790, %v4977, %v4981
    %v4983 = vshrl.u32 %v4223, 16
    %v4985 = vrot.slane %v4983, 4
    %v4986 = vor.u32 %v4985, %v4981
    %v4987 = vrot.slane %v4986, 4
    %v4989 = vshll.u32 %v4224, 16
    %v4991 = vrot.slane %v4989, 5
    %v4992 = vsel %vm790, %v4987, %v4991
    %s4993 = scalar_lea.vmem %s2, 256
    %v4994 = vld [vmem:[%s4993] sm:$0xf]
    %v4995 = vld [vmem:[%s4993 + $0x4] sm:$0xf]
    %v4996 = vld [vmem:[%s4993 + $0x8] sm:$0xf]
    %v4997 = vld [vmem:[%s4993 + $0xc] sm:$0xf]
    %v4998 = vld [vmem:[%s4993 + $0x10] sm:$0xf]
    %v4999 = vld [vmem:[%s4993 + $0x14] sm:$0xf]
    %v5000 = vld [vmem:[%s4993 + $0x18] sm:$0xf]
    %v5001 = vld [vmem:[%s4993 + $0x1c] sm:$0xf]
    %v5002 = vld [vmem:[%s4993 + $0x20] sm:$0xf]
    %v5003 = vld [vmem:[%s4993 + $0x24] sm:$0xf]
    %v5004 = vld [vmem:[%s4993 + $0x28] sm:$0xf]
    %v5005 = vld [vmem:[%s4993 + $0x2c] sm:$0xf]
    %v5006 = vld [vmem:[%s4993 + $0x30] sm:$0xf]
    %v5007 = vld [vmem:[%s4993 + $0x34] sm:$0xf]
    %v5008 = vld [vmem:[%s4993 + $0x38] sm:$0xf]
    %v5009 = vld [vmem:[%s4993 + $0x3c] sm:$0xf]
    %v5010 = vunpack.c.l.b16 %v4238
    %v5011 = vunpack.c.l.b16 %v4248
    %v5012 = vunpack.c.l.b16 %v4262
    %v5013 = vunpack.c.l.b16 %v4272
    %v5014 = vunpack.c.l.b16 %v4286
    %v5015 = vunpack.c.l.b16 %v4296
    %v5016 = vunpack.c.l.b16 %v4310
    %v5017 = vunpack.c.l.b16 %v4320
    %v5018 = vunpack.c.l.b16 %v4334
    %v5019 = vunpack.c.l.b16 %v4344
    %v5020 = vunpack.c.l.b16 %v4358
    %v5021 = vunpack.c.l.b16 %v4368
    %v5022 = vunpack.c.l.b16 %v4382
    %v5023 = vunpack.c.l.b16 %v4392
    %v5024 = vunpack.c.l.b16 %v4406
    %v5025 = vunpack.c.l.b16 %v4416
    %v5026 = vunpack.c.l.b16 %v4430
    %v5027 = vunpack.c.l.b16 %v4440
    %v5028 = vunpack.c.l.b16 %v4454
    %v5029 = vunpack.c.l.b16 %v4464
    %v5030 = vunpack.c.l.b16 %v4478
    %v5031 = vunpack.c.l.b16 %v4488
    %v5032 = vunpack.c.l.b16 %v4502
    %v5033 = vunpack.c.l.b16 %v4512
    %v5034 = vunpack.c.l.b16 %v4526
    %v5035 = vunpack.c.l.b16 %v4536
    %v5036 = vunpack.c.l.b16 %v4550
    %v5037 = vunpack.c.l.b16 %v4560
    %v5038 = vunpack.c.l.b16 %v4574
    %v5039 = vunpack.c.l.b16 %v4584
    %v5040 = vunpack.c.l.b16 %v4598
    %v5041 = vunpack.c.l.b16 %v4608
    %v5042 = vunpack.c.l.b16 %v4622
    %v5043 = vunpack.c.l.b16 %v4632
    %v5044 = vunpack.c.l.b16 %v4646
    %v5045 = vunpack.c.l.b16 %v4656
    %v5046 = vunpack.c.l.b16 %v4670
    %v5047 = vunpack.c.l.b16 %v4680
    %v5048 = vunpack.c.l.b16 %v4694
    %v5049 = vunpack.c.l.b16 %v4704
    %v5050 = vunpack.c.l.b16 %v4718
    %v5051 = vunpack.c.l.b16 %v4728
    %v5052 = vunpack.c.l.b16 %v4742
    %v5053 = vunpack.c.l.b16 %v4752
    %v5054 = vunpack.c.l.b16 %v4766
    %v5055 = vunpack.c.l.b16 %v4776
    %v5056 = vunpack.c.l.b16 %v4790
    %v5057 = vunpack.c.l.b16 %v4800
    %v5058 = vunpack.c.l.b16 %v4814
    %v5059 = vunpack.c.l.b16 %v4824
    %v5060 = vunpack.c.l.b16 %v4838
    %v5061 = vunpack.c.l.b16 %v4848
    %v5062 = vunpack.c.l.b16 %v4862
    %v5063 = vunpack.c.l.b16 %v4872
    %v5064 = vunpack.c.l.b16 %v4886
    %v5065 = vunpack.c.l.b16 %v4896
    %v5066 = vunpack.c.l.b16 %v4910
    %v5067 = vunpack.c.l.b16 %v4920
    %v5068 = vunpack.c.l.b16 %v4934
    %v5069 = vunpack.c.l.b16 %v4944
    %v5070 = vunpack.c.l.b16 %v4958
    %v5071 = vunpack.c.l.b16 %v4968
    %v5072 = vunpack.c.l.b16 %v4982
    %v5073 = vunpack.c.l.b16 %v4992
    %v5074 = vpack.c.b16 %v5011, %v5010
    %v5075 = vpack.c.b16 %v5013, %v5012
    %v5076 = vpack.c.b16 %v5015, %v5014
    %v5077 = vpack.c.b16 %v5017, %v5016
    %v5078 = vpack.c.b16 %v5019, %v5018
    %v5079 = vpack.c.b16 %v5021, %v5020
    %v5080 = vpack.c.b16 %v5023, %v5022
    %v5081 = vpack.c.b16 %v5025, %v5024
    %v5082 = vpack.c.b16 %v5027, %v5026
    %v5083 = vpack.c.b16 %v5029, %v5028
    %v5084 = vpack.c.b16 %v5031, %v5030
    %v5085 = vpack.c.b16 %v5033, %v5032
    %v5086 = vpack.c.b16 %v5035, %v5034
    %v5087 = vpack.c.b16 %v5037, %v5036
    %v5088 = vpack.c.b16 %v5039, %v5038
    %v5089 = vpack.c.b16 %v5041, %v5040
    %v5090 = vpack.c.b16 %v5043, %v5042
    %v5091 = vpack.c.b16 %v5045, %v5044
    %v5092 = vpack.c.b16 %v5047, %v5046
    %v5093 = vpack.c.b16 %v5049, %v5048
    %v5094 = vpack.c.b16 %v5051, %v5050
    %v5095 = vpack.c.b16 %v5053, %v5052
    %v5096 = vpack.c.b16 %v5055, %v5054
    %v5097 = vpack.c.b16 %v5057, %v5056
    %v5098 = vpack.c.b16 %v5059, %v5058
    %v5099 = vpack.c.b16 %v5061, %v5060
    %v5100 = vpack.c.b16 %v5063, %v5062
    %v5101 = vpack.c.b16 %v5065, %v5064
    %v5102 = vpack.c.b16 %v5067, %v5066
    %v5103 = vpack.c.b16 %v5069, %v5068
    %v5104 = vpack.c.b16 %v5071, %v5070
    %v5105 = vpack.c.b16 %v5073, %v5072
    %v5154 = vunpack.c.l.b16 %v4994
    %v5155 = vunpack.c.l.b16 %v4995
    %v5156 = vunpack.c.l.b16 %v4996
    %v5157 = vunpack.c.l.b16 %v4997
    %v5158 = vunpack.c.l.b16 %v4998
    %v5159 = vunpack.c.l.b16 %v4999
    %v5160 = vunpack.c.l.b16 %v5000
    %v5161 = vunpack.c.l.b16 %v5001
    %v5162 = vunpack.c.l.b16 %v5002
    %v5163 = vunpack.c.l.b16 %v5003
    %v5164 = vunpack.c.l.b16 %v5004
    %v5165 = vunpack.c.l.b16 %v5005
    %v5166 = vunpack.c.l.b16 %v5006
    %v5167 = vunpack.c.l.b16 %v5007
    %v5168 = vunpack.c.l.b16 %v5008
    %v5169 = vunpack.c.l.b16 %v5009
    %v5170 = vpack.c.b16 %v5155, %v5154
    %v5171 = vpack.c.b16 %v5157, %v5156
    %v5172 = vpack.c.b16 %v5159, %v5158
    %v5173 = vpack.c.b16 %v5161, %v5160
    %v5174 = vpack.c.b16 %v5163, %v5162
    %v5175 = vpack.c.b16 %v5165, %v5164
    %v5176 = vpack.c.b16 %v5167, %v5166
    %v5177 = vpack.c.b16 %v5169, %v5168
    %5186 = vmatprep.subr.bf16.mxu0 0
    %5187 = vmatpush1.bf16.msra.mxu0 %v5177
    %5188 = vmatprep.subr.bf16.mxu0 0
    %5189 = vmatpush1.bf16.msra.mxu0 %v5176
    %5190 = vmatprep.subr.bf16.mxu0 0
    %5191 = vmatpush1.bf16.msra.mxu0 %v5175
    %5192 = vmatprep.subr.bf16.mxu0 0
    %5193 = vmatpush1.bf16.msra.mxu0 %v5174
    %5194 = vmatprep.subr.bf16.mxu0 0
    %5195 = vmatpush1.bf16.msra.mxu0 %v5173
    %5196 = vmatprep.subr.bf16.mxu0 0
    %5197 = vmatpush1.bf16.msra.mxu0 %v5172
    %5198 = vmatprep.subr.bf16.mxu0 0
    %5199 = vmatpush1.bf16.msra.mxu0 %v5171
    %5200 = vmatprep.subr.bf16.mxu0 0
    %5201 = vmatpush1.bf16.msra.mxu0 %v5170
    %5202 = vmatprep.subr.bf16.mxu0 0
    %5203 = vmatpush2.bf16.msra.mxu0 0
    %5204 = vmatprep.subr.bf16.mxu0 0
    %5205 = vmatpush2.bf16.msra.mxu0 0
    %5206 = vmatprep.subr.bf16.mxu0 0
    %5207 = vmatpush2.bf16.msra.mxu0 0
    %5208 = vmatprep.subr.bf16.mxu0 0
    %5209 = vmatpush2.bf16.msra.mxu0 0
    %5210 = vmatprep.subr.bf16.mxu0 0
    %5211 = vmatpush2.bf16.msra.mxu0 0
    %5212 = vmatprep.subr.bf16.mxu0 0
    %5213 = vmatpush2.bf16.msra.mxu0 0
    %5214 = vmatprep.subr.bf16.mxu0 0
    %5215 = vmatpush2.bf16.msra.mxu0 0
    %5216 = vmatprep.subr.bf16.mxu0 0
    %5217 = vmatpush2.bf16.msra.mxu0 0
    %5218 = vmatprep.mubr.bf16.mxu0 0
    %5219 = vmatmul.mubr.bf16.gmra.mxu0 %v5074
    %v5220 = vpop.f32.mrf.mxu0
    %v5221 = vadd.f32 0.0, %v5220
    %v5222 = vpop.f32.mrf.mxu0
    %v5223 = vpop.f32.mrf.mxu0
    %v5224 = vadd.f32 0.0, %v5223
    %v5225 = vpop.f32.mrf.mxu0
    %5226 = vmatprep.mubr.bf16.mxu0 0
    %5227 = vmatmul.mubr.bf16.gmra.mxu0 %v5075
    %v5228 = vpop.f32.mrf.mxu0
    %v5229 = vadd.f32 0.0, %v5228
    %v5230 = vpop.f32.mrf.mxu0
    %v5231 = vpop.f32.mrf.mxu0
    %v5232 = vadd.f32 0.0, %v5231
    %v5233 = vpop.f32.mrf.mxu0
    %5234 = vmatprep.mubr.bf16.mxu0 0
    %5235 = vmatmul.mubr.bf16.gmra.mxu0 %v5076
    %v5236 = vpop.f32.mrf.mxu0
    %v5237 = vadd.f32 0.0, %v5236
    %v5238 = vpop.f32.mrf.mxu0
    %v5239 = vpop.f32.mrf.mxu0
    %v5240 = vadd.f32 0.0, %v5239
    %v5241 = vpop.f32.mrf.mxu0
    %5242 = vmatprep.mubr.bf16.mxu0 0
    %5243 = vmatmul.mubr.bf16.gmra.mxu0 %v5077
    %v5244 = vpop.f32.mrf.mxu0
    %v5245 = vadd.f32 0.0, %v5244
    %v5246 = vpop.f32.mrf.mxu0
    %v5247 = vpop.f32.mrf.mxu0
    %v5248 = vadd.f32 0.0, %v5247
    %v5249 = vpop.f32.mrf.mxu0
    %5250 = vmatprep.mubr.bf16.mxu0 0
    %5251 = vmatmul.mubr.bf16.gmra.mxu0 %v5078
    %v5252 = vpop.f32.mrf.mxu0
    %v5253 = vadd.f32 0.0, %v5252
    %v5254 = vpop.f32.mrf.mxu0
    %v5255 = vpop.f32.mrf.mxu0
    %v5256 = vadd.f32 0.0, %v5255
    %v5257 = vpop.f32.mrf.mxu0
    %5258 = vmatprep.mubr.bf16.mxu0 0
    %5259 = vmatmul.mubr.bf16.gmra.mxu0 %v5079
    %v5260 = vpop.f32.mrf.mxu0
    %v5261 = vadd.f32 0.0, %v5260
    %v5262 = vpop.f32.mrf.mxu0
    %v5263 = vpop.f32.mrf.mxu0
    %v5264 = vadd.f32 0.0, %v5263
    %v5265 = vpop.f32.mrf.mxu0
    %5266 = vmatprep.mubr.bf16.mxu0 0
    %5267 = vmatmul.mubr.bf16.gmra.mxu0 %v5080
    %v5268 = vpop.f32.mrf.mxu0
    %v5269 = vadd.f32 0.0, %v5268
    %v5270 = vpop.f32.mrf.mxu0
    %v5271 = vpop.f32.mrf.mxu0
    %v5272 = vadd.f32 0.0, %v5271
    %v5273 = vpop.f32.mrf.mxu0
    %5274 = vmatprep.mubr.bf16.mxu0 0
    %5275 = vmatmul.mubr.bf16.gmra.mxu0 %v5081
    %v5276 = vpop.f32.mrf.mxu0
    %v5277 = vadd.f32 0.0, %v5276
    %v5278 = vpop.f32.mrf.mxu0
    %v5279 = vpop.f32.mrf.mxu0
    %v5280 = vadd.f32 0.0, %v5279
    %v5281 = vpop.f32.mrf.mxu0
    %5282 = vmatprep.mubr.bf16.mxu0 0
    %5283 = vmatmul.mubr.bf16.gmra.mxu0 %v5082
    %v5284 = vpop.f32.mrf.mxu0
    %v5285 = vadd.f32 0.0, %v5284
    %v5286 = vpop.f32.mrf.mxu0
    %v5287 = vpop.f32.mrf.mxu0
    %v5288 = vadd.f32 0.0, %v5287
    %v5289 = vpop.f32.mrf.mxu0
    %5290 = vmatprep.mubr.bf16.mxu0 0
    %5291 = vmatmul.mubr.bf16.gmra.mxu0 %v5083
    %v5292 = vpop.f32.mrf.mxu0
    %v5293 = vadd.f32 0.0, %v5292
    %v5294 = vpop.f32.mrf.mxu0
    %v5295 = vpop.f32.mrf.mxu0
    %v5296 = vadd.f32 0.0, %v5295
    %v5297 = vpop.f32.mrf.mxu0
    %5298 = vmatprep.mubr.bf16.mxu0 0
    %5299 = vmatmul.mubr.bf16.gmra.mxu0 %v5084
    %v5300 = vpop.f32.mrf.mxu0
    %v5301 = vadd.f32 0.0, %v5300
    %v5302 = vpop.f32.mrf.mxu0
    %v5303 = vpop.f32.mrf.mxu0
    %v5304 = vadd.f32 0.0, %v5303
    %v5305 = vpop.f32.mrf.mxu0
    %5306 = vmatprep.mubr.bf16.mxu0 0
    %5307 = vmatmul.mubr.bf16.gmra.mxu0 %v5085
    %v5308 = vpop.f32.mrf.mxu0
    %v5309 = vadd.f32 0.0, %v5308
    %v5310 = vpop.f32.mrf.mxu0
    %v5311 = vpop.f32.mrf.mxu0
    %v5312 = vadd.f32 0.0, %v5311
    %v5313 = vpop.f32.mrf.mxu0
    %5314 = vmatprep.mubr.bf16.mxu0 0
    %5315 = vmatmul.mubr.bf16.gmra.mxu0 %v5086
    %v5316 = vpop.f32.mrf.mxu0
    %v5317 = vadd.f32 0.0, %v5316
    %v5318 = vpop.f32.mrf.mxu0
    %v5319 = vpop.f32.mrf.mxu0
    %v5320 = vadd.f32 0.0, %v5319
    %v5321 = vpop.f32.mrf.mxu0
    %5322 = vmatprep.mubr.bf16.mxu0 0
    %5323 = vmatmul.mubr.bf16.gmra.mxu0 %v5087
    %v5324 = vpop.f32.mrf.mxu0
    %v5325 = vadd.f32 0.0, %v5324
    %v5326 = vpop.f32.mrf.mxu0
    %v5327 = vpop.f32.mrf.mxu0
    %v5328 = vadd.f32 0.0, %v5327
    %v5329 = vpop.f32.mrf.mxu0
    %5330 = vmatprep.mubr.bf16.mxu0 0
    %5331 = vmatmul.mubr.bf16.gmra.mxu0 %v5088
    %v5332 = vpop.f32.mrf.mxu0
    %v5333 = vadd.f32 0.0, %v5332
    %v5334 = vpop.f32.mrf.mxu0
    %v5335 = vpop.f32.mrf.mxu0
    %v5336 = vadd.f32 0.0, %v5335
    %v5337 = vpop.f32.mrf.mxu0
    %5338 = vmatprep.mubr.bf16.mxu0 0
    %5339 = vmatmul.mubr.bf16.gmra.mxu0 %v5089
    %v5340 = vpop.f32.mrf.mxu0
    %v5341 = vadd.f32 0.0, %v5340
    %v5342 = vpop.f32.mrf.mxu0
    %v5343 = vpop.f32.mrf.mxu0
    %v5344 = vadd.f32 0.0, %v5343
    %v5345 = vpop.f32.mrf.mxu0
    %5346 = vmatprep.mubr.bf16.mxu0 0
    %5347 = vmatmul.mubr.bf16.gmra.mxu0 %v5090
    %v5348 = vpop.f32.mrf.mxu0
    %v5349 = vadd.f32 0.0, %v5348
    %v5350 = vpop.f32.mrf.mxu0
    %v5351 = vpop.f32.mrf.mxu0
    %v5352 = vadd.f32 0.0, %v5351
    %v5353 = vpop.f32.mrf.mxu0
    %5354 = vmatprep.mubr.bf16.mxu0 0
    %5355 = vmatmul.mubr.bf16.gmra.mxu0 %v5091
    %v5356 = vpop.f32.mrf.mxu0
    %v5357 = vadd.f32 0.0, %v5356
    %v5358 = vpop.f32.mrf.mxu0
    %v5359 = vpop.f32.mrf.mxu0
    %v5360 = vadd.f32 0.0, %v5359
    %v5361 = vpop.f32.mrf.mxu0
    %5362 = vmatprep.mubr.bf16.mxu0 0
    %5363 = vmatmul.mubr.bf16.gmra.mxu0 %v5092
    %v5364 = vpop.f32.mrf.mxu0
    %v5365 = vadd.f32 0.0, %v5364
    %v5366 = vpop.f32.mrf.mxu0
    %v5367 = vpop.f32.mrf.mxu0
    %v5368 = vadd.f32 0.0, %v5367
    %v5369 = vpop.f32.mrf.mxu0
    %5370 = vmatprep.mubr.bf16.mxu0 0
    %5371 = vmatmul.mubr.bf16.gmra.mxu0 %v5093
    %v5372 = vpop.f32.mrf.mxu0
    %v5373 = vadd.f32 0.0, %v5372
    %v5374 = vpop.f32.mrf.mxu0
    %v5375 = vpop.f32.mrf.mxu0
    %v5376 = vadd.f32 0.0, %v5375
    %v5377 = vpop.f32.mrf.mxu0
    %5378 = vmatprep.mubr.bf16.mxu0 0
    %5379 = vmatmul.mubr.bf16.gmra.mxu0 %v5094
    %v5380 = vpop.f32.mrf.mxu0
    %v5381 = vadd.f32 0.0, %v5380
    %v5382 = vpop.f32.mrf.mxu0
    %v5383 = vpop.f32.mrf.mxu0
    %v5384 = vadd.f32 0.0, %v5383
    %v5385 = vpop.f32.mrf.mxu0
    %5386 = vmatprep.mubr.bf16.mxu0 0
    %5387 = vmatmul.mubr.bf16.gmra.mxu0 %v5095
    %v5388 = vpop.f32.mrf.mxu0
    %v5389 = vadd.f32 0.0, %v5388
    %v5390 = vpop.f32.mrf.mxu0
    %v5391 = vpop.f32.mrf.mxu0
    %v5392 = vadd.f32 0.0, %v5391
    %v5393 = vpop.f32.mrf.mxu0
    %5394 = vmatprep.mubr.bf16.mxu0 0
    %5395 = vmatmul.mubr.bf16.gmra.mxu0 %v5096
    %v5396 = vpop.f32.mrf.mxu0
    %v5397 = vadd.f32 0.0, %v5396
    %v5398 = vpop.f32.mrf.mxu0
    %v5399 = vpop.f32.mrf.mxu0
    %v5400 = vadd.f32 0.0, %v5399
    %v5401 = vpop.f32.mrf.mxu0
    %5402 = vmatprep.mubr.bf16.mxu0 0
    %5403 = vmatmul.mubr.bf16.gmra.mxu0 %v5097
    %v5404 = vpop.f32.mrf.mxu0
    %v5405 = vadd.f32 0.0, %v5404
    %v5406 = vpop.f32.mrf.mxu0
    %v5407 = vpop.f32.mrf.mxu0
    %v5408 = vadd.f32 0.0, %v5407
    %v5409 = vpop.f32.mrf.mxu0
    %5410 = vmatprep.mubr.bf16.mxu0 0
    %5411 = vmatmul.mubr.bf16.gmra.mxu0 %v5098
    %v5412 = vpop.f32.mrf.mxu0
    %v5413 = vadd.f32 0.0, %v5412
    %v5414 = vpop.f32.mrf.mxu0
    %v5415 = vpop.f32.mrf.mxu0
    %v5416 = vadd.f32 0.0, %v5415
    %v5417 = vpop.f32.mrf.mxu0
    %5418 = vmatprep.mubr.bf16.mxu0 0
    %5419 = vmatmul.mubr.bf16.gmra.mxu0 %v5099
    %v5420 = vpop.f32.mrf.mxu0
    %v5421 = vadd.f32 0.0, %v5420
    %v5422 = vpop.f32.mrf.mxu0
    %v5423 = vpop.f32.mrf.mxu0
    %v5424 = vadd.f32 0.0, %v5423
    %v5425 = vpop.f32.mrf.mxu0
    %5426 = vmatprep.mubr.bf16.mxu0 0
    %5427 = vmatmul.mubr.bf16.gmra.mxu0 %v5100
    %v5428 = vpop.f32.mrf.mxu0
    %v5429 = vadd.f32 0.0, %v5428
    %v5430 = vpop.f32.mrf.mxu0
    %v5431 = vpop.f32.mrf.mxu0
    %v5432 = vadd.f32 0.0, %v5431
    %v5433 = vpop.f32.mrf.mxu0
    %5434 = vmatprep.mubr.bf16.mxu0 0
    %5435 = vmatmul.mubr.bf16.gmra.mxu0 %v5101
    %v5436 = vpop.f32.mrf.mxu0
    %v5437 = vadd.f32 0.0, %v5436
    %v5438 = vpop.f32.mrf.mxu0
    %v5439 = vpop.f32.mrf.mxu0
    %v5440 = vadd.f32 0.0, %v5439
    %v5441 = vpop.f32.mrf.mxu0
    %5442 = vmatprep.mubr.bf16.mxu0 0
    %5443 = vmatmul.mubr.bf16.gmra.mxu0 %v5102
    %v5444 = vpop.f32.mrf.mxu0
    %v5445 = vadd.f32 0.0, %v5444
    %v5446 = vpop.f32.mrf.mxu0
    %v5447 = vpop.f32.mrf.mxu0
    %v5448 = vadd.f32 0.0, %v5447
    %v5449 = vpop.f32.mrf.mxu0
    %5450 = vmatprep.mubr.bf16.mxu0 0
    %5451 = vmatmul.mubr.bf16.gmra.mxu0 %v5103
    %v5452 = vpop.f32.mrf.mxu0
    %v5453 = vadd.f32 0.0, %v5452
    %v5454 = vpop.f32.mrf.mxu0
    %v5455 = vpop.f32.mrf.mxu0
    %v5456 = vadd.f32 0.0, %v5455
    %v5457 = vpop.f32.mrf.mxu0
    %5458 = vmatprep.mubr.bf16.mxu0 0
    %5459 = vmatmul.mubr.bf16.gmra.mxu0 %v5104
    %v5460 = vpop.f32.mrf.mxu0
    %v5461 = vadd.f32 0.0, %v5460
    %v5462 = vpop.f32.mrf.mxu0
    %v5463 = vpop.f32.mrf.mxu0
    %v5464 = vadd.f32 0.0, %v5463
    %v5465 = vpop.f32.mrf.mxu0
    %5466 = vmatprep.mubr.bf16.mxu0 0
    %5467 = vmatmul.mubr.bf16.gmra.mxu0 %v5105
    %v5468 = vpop.f32.mrf.mxu0
    %v5469 = vadd.f32 0.0, %v5468
    %v5470 = vpop.f32.mrf.mxu0
    %v5471 = vpop.f32.mrf.mxu0
    %v5472 = vadd.f32 0.0, %v5471
    %v5473 = vpop.f32.mrf.mxu0
    %5474 = vdwg.mxu0
    %v5475 = vld [vmem:[#allocation2] sm:$0xff]
    %v5476 = vld [vmem:[#allocation2 + $0x8] sm:$0xff]
    %v5477 = vld [vmem:[#allocation2 + $0x10] sm:$0xff]
    %v5478 = vld [vmem:[#allocation2 + $0x18] sm:$0xff]
    %v5479 = vld [vmem:[#allocation2 + $0x20] sm:$0xff]
    %v5480 = vld [vmem:[#allocation2 + $0x28] sm:$0xff]
    %v5481 = vld [vmem:[#allocation2 + $0x30] sm:$0xff]
    %v5482 = vld [vmem:[#allocation2 + $0x38] sm:$0xff]
    %v5483 = vld [vmem:[#allocation2 + $0x40] sm:$0xff]
    %v5484 = vld [vmem:[#allocation2 + $0x48] sm:$0xff]
    %v5485 = vld [vmem:[#allocation2 + $0x50] sm:$0xff]
    %v5486 = vld [vmem:[#allocation2 + $0x58] sm:$0xff]
    %v5487 = vld [vmem:[#allocation2 + $0x60] sm:$0xff]
    %v5488 = vld [vmem:[#allocation2 + $0x68] sm:$0xff]
    %v5489 = vld [vmem:[#allocation2 + $0x70] sm:$0xff]
    %v5490 = vld [vmem:[#allocation2 + $0x78] sm:$0xff]
    %v5491 = vld [vmem:[#allocation2 + $0x80] sm:$0xff]
    %v5492 = vld [vmem:[#allocation2 + $0x88] sm:$0xff]
    %v5493 = vld [vmem:[#allocation2 + $0x90] sm:$0xff]
    %v5494 = vld [vmem:[#allocation2 + $0x98] sm:$0xff]
    %v5495 = vld [vmem:[#allocation2 + $0xa0] sm:$0xff]
    %v5496 = vld [vmem:[#allocation2 + $0xa8] sm:$0xff]
    %v5497 = vld [vmem:[#allocation2 + $0xb0] sm:$0xff]
    %v5498 = vld [vmem:[#allocation2 + $0xb8] sm:$0xff]
    %v5499 = vld [vmem:[#allocation2 + $0xc0] sm:$0xff]
    %v5500 = vld [vmem:[#allocation2 + $0xc8] sm:$0xff]
    %v5501 = vld [vmem:[#allocation2 + $0xd0] sm:$0xff]
    %v5502 = vld [vmem:[#allocation2 + $0xd8] sm:$0xff]
    %v5503 = vld [vmem:[#allocation2 + $0xe0] sm:$0xff]
    %v5504 = vld [vmem:[#allocation2 + $0xe8] sm:$0xff]
    %v5505 = vld [vmem:[#allocation2 + $0xf0] sm:$0xff]
    %v5506 = vld [vmem:[#allocation2 + $0xf8] sm:$0xff]
    %v5507 = vld [vmem:[#allocation2 + $0x100] sm:$0xff]
    %v5508 = vld [vmem:[#allocation2 + $0x108] sm:$0xff]
    %v5509 = vld [vmem:[#allocation2 + $0x110] sm:$0xff]
    %v5510 = vld [vmem:[#allocation2 + $0x118] sm:$0xff]
    %v5511 = vld [vmem:[#allocation2 + $0x120] sm:$0xff]
    %v5512 = vld [vmem:[#allocation2 + $0x128] sm:$0xff]
    %v5513 = vld [vmem:[#allocation2 + $0x130] sm:$0xff]
    %v5514 = vld [vmem:[#allocation2 + $0x138] sm:$0xff]
    %v5515 = vld [vmem:[#allocation2 + $0x140] sm:$0xff]
    %v5516 = vld [vmem:[#allocation2 + $0x148] sm:$0xff]
    %v5517 = vld [vmem:[#allocation2 + $0x150] sm:$0xff]
    %v5518 = vld [vmem:[#allocation2 + $0x158] sm:$0xff]
    %v5519 = vld [vmem:[#allocation2 + $0x160] sm:$0xff]
    %v5520 = vld [vmem:[#allocation2 + $0x168] sm:$0xff]
    %v5521 = vld [vmem:[#allocation2 + $0x170] sm:$0xff]
    %v5522 = vld [vmem:[#allocation2 + $0x178] sm:$0xff]
    %v5523 = vld [vmem:[#allocation2 + $0x180] sm:$0xff]
    %v5524 = vld [vmem:[#allocation2 + $0x188] sm:$0xff]
    %v5525 = vld [vmem:[#allocation2 + $0x190] sm:$0xff]
    %v5526 = vld [vmem:[#allocation2 + $0x198] sm:$0xff]
    %v5527 = vld [vmem:[#allocation2 + $0x1a0] sm:$0xff]
    %v5528 = vld [vmem:[#allocation2 + $0x1a8] sm:$0xff]
    %v5529 = vld [vmem:[#allocation2 + $0x1b0] sm:$0xff]
    %v5530 = vld [vmem:[#allocation2 + $0x1b8] sm:$0xff]
    %v5531 = vld [vmem:[#allocation2 + $0x1c0] sm:$0xff]
    %v5532 = vld [vmem:[#allocation2 + $0x1c8] sm:$0xff]
    %v5533 = vld [vmem:[#allocation2 + $0x1d0] sm:$0xff]
    %v5534 = vld [vmem:[#allocation2 + $0x1d8] sm:$0xff]
    %v5535 = vld [vmem:[#allocation2 + $0x1e0] sm:$0xff]
    %v5536 = vld [vmem:[#allocation2 + $0x1e8] sm:$0xff]
    %v5537 = vld [vmem:[#allocation2 + $0x1f0] sm:$0xff]
    %v5538 = vld [vmem:[#allocation2 + $0x1f8] sm:$0xff]
    %v5539 = vadd.f32 %v5475, %v5221
    %v5540 = vadd.f32 %v5476, %v5224
    %v5541 = vadd.f32 %v5477, %v5229
    %v5542 = vadd.f32 %v5478, %v5232
    %v5543 = vadd.f32 %v5479, %v5237
    %v5544 = vadd.f32 %v5480, %v5240
    %v5545 = vadd.f32 %v5481, %v5245
    %v5546 = vadd.f32 %v5482, %v5248
    %v5547 = vadd.f32 %v5483, %v5253
    %v5548 = vadd.f32 %v5484, %v5256
    %v5549 = vadd.f32 %v5485, %v5261
    %v5550 = vadd.f32 %v5486, %v5264
    %v5551 = vadd.f32 %v5487, %v5269
    %v5552 = vadd.f32 %v5488, %v5272
    %v5553 = vadd.f32 %v5489, %v5277
    %v5554 = vadd.f32 %v5490, %v5280
    %v5555 = vadd.f32 %v5491, %v5285
    %v5556 = vadd.f32 %v5492, %v5288
    %v5557 = vadd.f32 %v5493, %v5293
    %v5558 = vadd.f32 %v5494, %v5296
    %v5559 = vadd.f32 %v5495, %v5301
    %v5560 = vadd.f32 %v5496, %v5304
    %v5561 = vadd.f32 %v5497, %v5309
    %v5562 = vadd.f32 %v5498, %v5312
    %v5563 = vadd.f32 %v5499, %v5317
    %v5564 = vadd.f32 %v5500, %v5320
    %v5565 = vadd.f32 %v5501, %v5325
    %v5566 = vadd.f32 %v5502, %v5328
    %v5567 = vadd.f32 %v5503, %v5333
    %v5568 = vadd.f32 %v5504, %v5336
    %v5569 = vadd.f32 %v5505, %v5341
    %v5570 = vadd.f32 %v5506, %v5344
    %v5571 = vadd.f32 %v5507, %v5349
    %v5572 = vadd.f32 %v5508, %v5352
    %v5573 = vadd.f32 %v5509, %v5357
    %v5574 = vadd.f32 %v5510, %v5360
    %v5575 = vadd.f32 %v5511, %v5365
    %v5576 = vadd.f32 %v5512, %v5368
    %v5577 = vadd.f32 %v5513, %v5373
    %v5578 = vadd.f32 %v5514, %v5376
    %v5579 = vadd.f32 %v5515, %v5381
    %v5580 = vadd.f32 %v5516, %v5384
    %v5581 = vadd.f32 %v5517, %v5389
    %v5582 = vadd.f32 %v5518, %v5392
    %v5583 = vadd.f32 %v5519, %v5397
    %v5584 = vadd.f32 %v5520, %v5400
    %v5585 = vadd.f32 %v5521, %v5405
    %v5586 = vadd.f32 %v5522, %v5408
    %v5587 = vadd.f32 %v5523, %v5413
    %v5588 = vadd.f32 %v5524, %v5416
    %v5589 = vadd.f32 %v5525, %v5421
    %v5590 = vadd.f32 %v5526, %v5424
    %v5591 = vadd.f32 %v5527, %v5429
    %v5592 = vadd.f32 %v5528, %v5432
    %v5593 = vadd.f32 %v5529, %v5437
    %v5594 = vadd.f32 %v5530, %v5440
    %v5595 = vadd.f32 %v5531, %v5445
    %v5596 = vadd.f32 %v5532, %v5448
    %v5597 = vadd.f32 %v5533, %v5453
    %v5598 = vadd.f32 %v5534, %v5456
    %v5599 = vadd.f32 %v5535, %v5461
    %v5600 = vadd.f32 %v5536, %v5464
    %v5601 = vadd.f32 %v5537, %v5469
    %v5602 = vadd.f32 %v5538, %v5472
    %5603 = vst [vmem:[#allocation2] sm:$0xff] %v5539
    %5604 = vst [vmem:[#allocation2 + $0x8] sm:$0xff] %v5540
    %5605 = vst [vmem:[#allocation2 + $0x10] sm:$0xff] %v5541
    %5606 = vst [vmem:[#allocation2 + $0x18] sm:$0xff] %v5542
    %5607 = vst [vmem:[#allocation2 + $0x20] sm:$0xff] %v5543
    %5608 = vst [vmem:[#allocation2 + $0x28] sm:$0xff] %v5544
    %5609 = vst [vmem:[#allocation2 + $0x30] sm:$0xff] %v5545
    %5610 = vst [vmem:[#allocation2 + $0x38] sm:$0xff] %v5546
    %5611 = vst [vmem:[#allocation2 + $0x40] sm:$0xff] %v5547
    %5612 = vst [vmem:[#allocation2 + $0x48] sm:$0xff] %v5548
    %5613 = vst [vmem:[#allocation2 + $0x50] sm:$0xff] %v5549
    %5614 = vst [vmem:[#allocation2 + $0x58] sm:$0xff] %v5550
    %5615 = vst [vmem:[#allocation2 + $0x60] sm:$0xff] %v5551
    %5616 = vst [vmem:[#allocation2 + $0x68] sm:$0xff] %v5552
    %5617 = vst [vmem:[#allocation2 + $0x70] sm:$0xff] %v5553
    %5618 = vst [vmem:[#allocation2 + $0x78] sm:$0xff] %v5554
    %5619 = vst [vmem:[#allocation2 + $0x80] sm:$0xff] %v5555
    %5620 = vst [vmem:[#allocation2 + $0x88] sm:$0xff] %v5556
    %5621 = vst [vmem:[#allocation2 + $0x90] sm:$0xff] %v5557
    %5622 = vst [vmem:[#allocation2 + $0x98] sm:$0xff] %v5558
    %5623 = vst [vmem:[#allocation2 + $0xa0] sm:$0xff] %v5559
    %5624 = vst [vmem:[#allocation2 + $0xa8] sm:$0xff] %v5560
    %5625 = vst [vmem:[#allocation2 + $0xb0] sm:$0xff] %v5561
    %5626 = vst [vmem:[#allocation2 + $0xb8] sm:$0xff] %v5562
    %5627 = vst [vmem:[#allocation2 + $0xc0] sm:$0xff] %v5563
    %5628 = vst [vmem:[#allocation2 + $0xc8] sm:$0xff] %v5564
    %5629 = vst [vmem:[#allocation2 + $0xd0] sm:$0xff] %v5565
    %5630 = vst [vmem:[#allocation2 + $0xd8] sm:$0xff] %v5566
    %5631 = vst [vmem:[#allocation2 + $0xe0] sm:$0xff] %v5567
    %5632 = vst [vmem:[#allocation2 + $0xe8] sm:$0xff] %v5568
    %5633 = vst [vmem:[#allocation2 + $0xf0] sm:$0xff] %v5569
    %5634 = vst [vmem:[#allocation2 + $0xf8] sm:$0xff] %v5570
    %5635 = vst [vmem:[#allocation2 + $0x100] sm:$0xff] %v5571
    %5636 = vst [vmem:[#allocation2 + $0x108] sm:$0xff] %v5572
    %5637 = vst [vmem:[#allocation2 + $0x110] sm:$0xff] %v5573
    %5638 = vst [vmem:[#allocation2 + $0x118] sm:$0xff] %v5574
    %5639 = vst [vmem:[#allocation2 + $0x120] sm:$0xff] %v5575
    %5640 = vst [vmem:[#allocation2 + $0x128] sm:$0xff] %v5576
    %5641 = vst [vmem:[#allocation2 + $0x130] sm:$0xff] %v5577
    %5642 = vst [vmem:[#allocation2 + $0x138] sm:$0xff] %v5578
    %5643 = vst [vmem:[#allocation2 + $0x140] sm:$0xff] %v5579
    %5644 = vst [vmem:[#allocation2 + $0x148] sm:$0xff] %v5580
    %5645 = vst [vmem:[#allocation2 + $0x150] sm:$0xff] %v5581
    %5646 = vst [vmem:[#allocation2 + $0x158] sm:$0xff] %v5582
    %5647 = vst [vmem:[#allocation2 + $0x160] sm:$0xff] %v5583
    %5648 = vst [vmem:[#allocation2 + $0x168] sm:$0xff] %v5584
    %5649 = vst [vmem:[#allocation2 + $0x170] sm:$0xff] %v5585
    %5650 = vst [vmem:[#allocation2 + $0x178] sm:$0xff] %v5586
    %5651 = vst [vmem:[#allocation2 + $0x180] sm:$0xff] %v5587
    %5652 = vst [vmem:[#allocation2 + $0x188] sm:$0xff] %v5588
    %5653 = vst [vmem:[#allocation2 + $0x190] sm:$0xff] %v5589
    %5654 = vst [vmem:[#allocation2 + $0x198] sm:$0xff] %v5590
    %5655 = vst [vmem:[#allocation2 + $0x1a0] sm:$0xff] %v5591
    %5656 = vst [vmem:[#allocation2 + $0x1a8] sm:$0xff] %v5592
    %5657 = vst [vmem:[#allocation2 + $0x1b0] sm:$0xff] %v5593
    %5658 = vst [vmem:[#allocation2 + $0x1b8] sm:$0xff] %v5594
    %5659 = vst [vmem:[#allocation2 + $0x1c0] sm:$0xff] %v5595
    %5660 = vst [vmem:[#allocation2 + $0x1c8] sm:$0xff] %v5596
    %5661 = vst [vmem:[#allocation2 + $0x1d0] sm:$0xff] %v5597
    %5662 = vst [vmem:[#allocation2 + $0x1d8] sm:$0xff] %v5598
    %5663 = vst [vmem:[#allocation2 + $0x1e0] sm:$0xff] %v5599
    %5664 = vst [vmem:[#allocation2 + $0x1e8] sm:$0xff] %v5600
    %5665 = vst [vmem:[#allocation2 + $0x1f0] sm:$0xff] %v5601
    %5666 = vst [vmem:[#allocation2 + $0x1f8] sm:$0xff] %v5602
    %v5667 = vld [vmem:[%s3326] sm:$0xe]
    %v5668 = vld [vmem:[%s3326 + $0x4] sm:$0xf]
    %v5669 = vld [vmem:[%s3326 + $0x8] sm:$0x1]
    %v5670 = vld [vmem:[%s3326 + $0xc] sm:$0xe]
    %v5671 = vld [vmem:[%s3326 + $0x10] sm:$0xf]
    %v5672 = vld [vmem:[%s3326 + $0x14] sm:$0x1]
    %v5673 = vld [vmem:[%s3326 + $0x18] sm:$0xe]
    %v5674 = vld [vmem:[%s3326 + $0x1c] sm:$0xf]
    %v5675 = vld [vmem:[%s3326 + $0x20] sm:$0x1]
    %v5676 = vld [vmem:[%s3326 + $0x24] sm:$0xe]
    %v5677 = vld [vmem:[%s3326 + $0x28] sm:$0xf]
    %v5678 = vld [vmem:[%s3326 + $0x2c] sm:$0x1]
    %v5679 = vld [vmem:[%s3326 + $0x30] sm:$0xe]
    %v5680 = vld [vmem:[%s3326 + $0x34] sm:$0xf]
    %v5681 = vld [vmem:[%s3326 + $0x38] sm:$0x1]
    %v5682 = vld [vmem:[%s3326 + $0x3c] sm:$0xe]
    %v5683 = vld [vmem:[%s3326 + $0x40] sm:$0xf]
    %v5684 = vld [vmem:[%s3326 + $0x44] sm:$0x1]
    %v5685 = vld [vmem:[%s3326 + $0x48] sm:$0xe]
    %v5686 = vld [vmem:[%s3326 + $0x4c] sm:$0xf]
    %v5687 = vld [vmem:[%s3326 + $0x50] sm:$0x1]
    %v5688 = vld [vmem:[%s3326 + $0x54] sm:$0xe]
    %v5689 = vld [vmem:[%s3326 + $0x58] sm:$0xf]
    %v5690 = vld [vmem:[%s3326 + $0x5c] sm:$0x1]
    %v5691 = vld [vmem:[%s3326 + $0x60] sm:$0xe]
    %v5692 = vld [vmem:[%s3326 + $0x64] sm:$0xf]
    %v5693 = vld [vmem:[%s3326 + $0x68] sm:$0x1]
    %v5694 = vld [vmem:[%s3326 + $0x6c] sm:$0xe]
    %v5695 = vld [vmem:[%s3326 + $0x70] sm:$0xf]
    %v5696 = vld [vmem:[%s3326 + $0x74] sm:$0x1]
    %v5697 = vld [vmem:[%s3326 + $0x78] sm:$0xe]
    %v5698 = vld [vmem:[%s3326 + $0x7c] sm:$0xf]
    %v5699 = vld [vmem:[%s3326 + $0x80] sm:$0x1]
    %v5700 = vld [vmem:[%s3326 + $0x84] sm:$0xe]
    %v5701 = vld [vmem:[%s3326 + $0x88] sm:$0xf]
    %v5702 = vld [vmem:[%s3326 + $0x8c] sm:$0x1]
    %v5703 = vld [vmem:[%s3326 + $0x90] sm:$0xe]
    %v5704 = vld [vmem:[%s3326 + $0x94] sm:$0xf]
    %v5705 = vld [vmem:[%s3326 + $0x98] sm:$0x1]
    %v5706 = vld [vmem:[%s3326 + $0x9c] sm:$0xe]
    %v5707 = vld [vmem:[%s3326 + $0xa0] sm:$0xf]
    %v5708 = vld [vmem:[%s3326 + $0xa4] sm:$0x1]
    %v5709 = vld [vmem:[%s3326 + $0xa8] sm:$0xe]
    %v5710 = vld [vmem:[%s3326 + $0xac] sm:$0xf]
    %v5711 = vld [vmem:[%s3326 + $0xb0] sm:$0x1]
    %v5712 = vld [vmem:[%s3326 + $0xb4] sm:$0xe]
    %v5713 = vld [vmem:[%s3326 + $0xb8] sm:$0xf]
    %v5714 = vld [vmem:[%s3326 + $0xbc] sm:$0x1]
    %v5715 = vld [vmem:[%s3326 + $0xd8] sm:$0xe]
    %v5716 = vld [vmem:[%s3326 + $0xdc] sm:$0xf]
    %v5717 = vld [vmem:[%s3326 + $0xe0] sm:$0x1]
    %v5718 = vld [vmem:[%s3326 + $0xe4] sm:$0xe]
    %v5719 = vld [vmem:[%s3326 + $0xe8] sm:$0xf]
    %v5720 = vld [vmem:[%s3326 + $0xec] sm:$0x1]
    %v5721 = vld [vmem:[%s3326 + $0xf0] sm:$0xe]
    %v5722 = vld [vmem:[%s3326 + $0xf4] sm:$0xf]
    %v5723 = vld [vmem:[%s3326 + $0xf8] sm:$0x1]
    %v5724 = vld [vmem:[%s3326 + $0xfc] sm:$0xe]
    %v5725 = vld [vmem:[%s3326 + $0x100] sm:$0xf]
    %v5726 = vld [vmem:[%s3326 + $0x104] sm:$0x1]
    %v5727 = vld [vmem:[%s3326 + $0x108] sm:$0xe]
    %v5728 = vld [vmem:[%s3326 + $0x10c] sm:$0xf]
    %v5729 = vld [vmem:[%s3326 + $0x110] sm:$0x1]
    %v5730 = vld [vmem:[%s3326 + $0x114] sm:$0xe]
    %v5731 = vld [vmem:[%s3326 + $0x118] sm:$0xf]
    %v5732 = vld [vmem:[%s3326 + $0x11c] sm:$0x1]
    %v5733 = vld [vmem:[%s3326 + $0x120] sm:$0xe]
    %v5734 = vld [vmem:[%s3326 + $0x124] sm:$0xf]
    %v5735 = vld [vmem:[%s3326 + $0x128] sm:$0x1]
    %v5736 = vld [vmem:[%s3326 + $0x12c] sm:$0xe]
    %v5737 = vld [vmem:[%s3326 + $0x130] sm:$0xf]
    %v5738 = vld [vmem:[%s3326 + $0x134] sm:$0x1]
    %v5739 = vld [vmem:[%s3326 + $0x138] sm:$0xe]
    %v5740 = vld [vmem:[%s3326 + $0x13c] sm:$0xf]
    %v5741 = vld [vmem:[%s3326 + $0x140] sm:$0x1]
    %v5742 = vld [vmem:[%s3326 + $0x144] sm:$0xe]
    %v5743 = vld [vmem:[%s3326 + $0x148] sm:$0xf]
    %v5744 = vld [vmem:[%s3326 + $0x14c] sm:$0x1]
    %v5745 = vld [vmem:[%s3326 + $0x150] sm:$0xe]
    %v5746 = vld [vmem:[%s3326 + $0x154] sm:$0xf]
    %v5747 = vld [vmem:[%s3326 + $0x158] sm:$0x1]
    %v5748 = vld [vmem:[%s3326 + $0x15c] sm:$0xe]
    %v5749 = vld [vmem:[%s3326 + $0x160] sm:$0xf]
    %v5750 = vld [vmem:[%s3326 + $0x164] sm:$0x1]
    %v5751 = vld [vmem:[%s3326 + $0x168] sm:$0xe]
    %v5752 = vld [vmem:[%s3326 + $0x16c] sm:$0xf]
    %v5753 = vld [vmem:[%s3326 + $0x170] sm:$0x1]
    %v5754 = vld [vmem:[%s3326 + $0x174] sm:$0xe]
    %v5755 = vld [vmem:[%s3326 + $0x178] sm:$0xf]
    %v5756 = vld [vmem:[%s3326 + $0x17c] sm:$0x1]
    %v5757 = vld [vmem:[%s3326 + $0x180] sm:$0xe]
    %v5758 = vld [vmem:[%s3326 + $0x184] sm:$0xf]
    %v5759 = vld [vmem:[%s3326 + $0x188] sm:$0x1]
    %v5760 = vld [vmem:[%s3326 + $0x18c] sm:$0xe]
    %v5761 = vld [vmem:[%s3326 + $0x190] sm:$0xf]
    %v5762 = vld [vmem:[%s3326 + $0x194] sm:$0x1]
    %v5859 = vrot.slane %v5667, 5
    %v5860 = vrot.slane %v5859, 4
    %v5861 = vrot.slane %v5668, 5
    %v5862 = vsel %vm2427, %v5860, %v5861
    %v5863 = vrot.slane %v5861, 4
    %v5864 = vrot.slane %v5669, 5
    %v5865 = vsel %vm2427, %v5863, %v5864
    %v5866 = vrot.slane %v5670, 5
    %v5867 = vrot.slane %v5866, 4
    %v5868 = vrot.slane %v5671, 5
    %v5869 = vsel %vm2427, %v5867, %v5868
    %v5870 = vrot.slane %v5868, 4
    %v5871 = vrot.slane %v5672, 5
    %v5872 = vsel %vm2427, %v5870, %v5871
    %v5873 = vrot.slane %v5673, 5
    %v5874 = vrot.slane %v5873, 4
    %v5875 = vrot.slane %v5674, 5
    %v5876 = vsel %vm2427, %v5874, %v5875
    %v5877 = vrot.slane %v5875, 4
    %v5878 = vrot.slane %v5675, 5
    %v5879 = vsel %vm2427, %v5877, %v5878
    %v5880 = vrot.slane %v5676, 5
    %v5881 = vrot.slane %v5880, 4
    %v5882 = vrot.slane %v5677, 5
    %v5883 = vsel %vm2427, %v5881, %v5882
    %v5884 = vrot.slane %v5882, 4
    %v5885 = vrot.slane %v5678, 5
    %v5886 = vsel %vm2427, %v5884, %v5885
    %v5887 = vrot.slane %v5679, 5
    %v5888 = vrot.slane %v5887, 4
    %v5889 = vrot.slane %v5680, 5
    %v5890 = vsel %vm2427, %v5888, %v5889
    %v5891 = vrot.slane %v5889, 4
    %v5892 = vrot.slane %v5681, 5
    %v5893 = vsel %vm2427, %v5891, %v5892
    %v5894 = vrot.slane %v5682, 5
    %v5895 = vrot.slane %v5894, 4
    %v5896 = vrot.slane %v5683, 5
    %v5897 = vsel %vm2427, %v5895, %v5896
    %v5898 = vrot.slane %v5896, 4
    %v5899 = vrot.slane %v5684, 5
    %v5900 = vsel %vm2427, %v5898, %v5899
    %v5901 = vrot.slane %v5685, 5
    %v5902 = vrot.slane %v5901, 4
    %v5903 = vrot.slane %v5686, 5
    %v5904 = vsel %vm2427, %v5902, %v5903
    %v5905 = vrot.slane %v5903, 4
    %v5906 = vrot.slane %v5687, 5
    %v5907 = vsel %vm2427, %v5905, %v5906
    %v5908 = vrot.slane %v5688, 5
    %v5909 = vrot.slane %v5908, 4
    %v5910 = vrot.slane %v5689, 5
    %v5911 = vsel %vm2427, %v5909, %v5910
    %v5912 = vrot.slane %v5910, 4
    %v5913 = vrot.slane %v5690, 5
    %v5914 = vsel %vm2427, %v5912, %v5913
    %v5915 = vrot.slane %v5691, 5
    %v5916 = vrot.slane %v5915, 4
    %v5917 = vrot.slane %v5692, 5
    %v5918 = vsel %vm2427, %v5916, %v5917
    %v5919 = vrot.slane %v5917, 4
    %v5920 = vrot.slane %v5693, 5
    %v5921 = vsel %vm2427, %v5919, %v5920
    %v5922 = vrot.slane %v5694, 5
    %v5923 = vrot.slane %v5922, 4
    %v5924 = vrot.slane %v5695, 5
    %v5925 = vsel %vm2427, %v5923, %v5924
    %v5926 = vrot.slane %v5924, 4
    %v5927 = vrot.slane %v5696, 5
    %v5928 = vsel %vm2427, %v5926, %v5927
    %v5929 = vrot.slane %v5697, 5
    %v5930 = vrot.slane %v5929, 4
    %v5931 = vrot.slane %v5698, 5
    %v5932 = vsel %vm2427, %v5930, %v5931
    %v5933 = vrot.slane %v5931, 4
    %v5934 = vrot.slane %v5699, 5
    %v5935 = vsel %vm2427, %v5933, %v5934
    %v5936 = vrot.slane %v5700, 5
    %v5937 = vrot.slane %v5936, 4
    %v5938 = vrot.slane %v5701, 5
    %v5939 = vsel %vm2427, %v5937, %v5938
    %v5940 = vrot.slane %v5938, 4
    %v5941 = vrot.slane %v5702, 5
    %v5942 = vsel %vm2427, %v5940, %v5941
    %v5943 = vrot.slane %v5703, 5
    %v5944 = vrot.slane %v5943, 4
    %v5945 = vrot.slane %v5704, 5
    %v5946 = vsel %vm2427, %v5944, %v5945
    %v5947 = vrot.slane %v5945, 4
    %v5948 = vrot.slane %v5705, 5
    %v5949 = vsel %vm2427, %v5947, %v5948
    %v5950 = vrot.slane %v5706, 5
    %v5951 = vrot.slane %v5950, 4
    %v5952 = vrot.slane %v5707, 5
    %v5953 = vsel %vm2427, %v5951, %v5952
    %v5954 = vrot.slane %v5952, 4
    %v5955 = vrot.slane %v5708, 5
    %v5956 = vsel %vm2427, %v5954, %v5955
    %v5957 = vrot.slane %v5709, 5
    %v5958 = vrot.slane %v5957, 4
    %v5959 = vrot.slane %v5710, 5
    %v5960 = vsel %vm2427, %v5958, %v5959
    %v5961 = vrot.slane %v5959, 4
    %v5962 = vrot.slane %v5711, 5
    %v5963 = vsel %vm2427, %v5961, %v5962
    %v5964 = vrot.slane %v5712, 5
    %v5965 = vrot.slane %v5964, 4
    %v5966 = vrot.slane %v5713, 5
    %v5967 = vsel %vm2427, %v5965, %v5966
    %v5968 = vrot.slane %v5966, 4
    %v5969 = vrot.slane %v5714, 5
    %v5970 = vsel %vm2427, %v5968, %v5969
    %v5971 = vrot.slane %v5715, 5
    %v5972 = vrot.slane %v5971, 4
    %v5973 = vrot.slane %v5716, 5
    %v5974 = vsel %vm2427, %v5972, %v5973
    %v5975 = vrot.slane %v5973, 4
    %v5976 = vrot.slane %v5717, 5
    %v5977 = vsel %vm2427, %v5975, %v5976
    %v5978 = vrot.slane %v5718, 5
    %v5979 = vrot.slane %v5978, 4
    %v5980 = vrot.slane %v5719, 5
    %v5981 = vsel %vm2427, %v5979, %v5980
    %v5982 = vrot.slane %v5980, 4
    %v5983 = vrot.slane %v5720, 5
    %v5984 = vsel %vm2427, %v5982, %v5983
    %v5985 = vrot.slane %v5721, 5
    %v5986 = vrot.slane %v5985, 4
    %v5987 = vrot.slane %v5722, 5
    %v5988 = vsel %vm2427, %v5986, %v5987
    %v5989 = vrot.slane %v5987, 4
    %v5990 = vrot.slane %v5723, 5
    %v5991 = vsel %vm2427, %v5989, %v5990
    %v5992 = vrot.slane %v5724, 5
    %v5993 = vrot.slane %v5992, 4
    %v5994 = vrot.slane %v5725, 5
    %v5995 = vsel %vm2427, %v5993, %v5994
    %v5996 = vrot.slane %v5994, 4
    %v5997 = vrot.slane %v5726, 5
    %v5998 = vsel %vm2427, %v5996, %v5997
    %v5999 = vrot.slane %v5727, 5
    %v6000 = vrot.slane %v5999, 4
    %v6001 = vrot.slane %v5728, 5
    %v6002 = vsel %vm2427, %v6000, %v6001
    %v6003 = vrot.slane %v6001, 4
    %v6004 = vrot.slane %v5729, 5
    %v6005 = vsel %vm2427, %v6003, %v6004
    %v6006 = vrot.slane %v5730, 5
    %v6007 = vrot.slane %v6006, 4
    %v6008 = vrot.slane %v5731, 5
    %v6009 = vsel %vm2427, %v6007, %v6008
    %v6010 = vrot.slane %v6008, 4
    %v6011 = vrot.slane %v5732, 5
    %v6012 = vsel %vm2427, %v6010, %v6011
    %v6013 = vrot.slane %v5733, 5
    %v6014 = vrot.slane %v6013, 4
    %v6015 = vrot.slane %v5734, 5
    %v6016 = vsel %vm2427, %v6014, %v6015
    %v6017 = vrot.slane %v6015, 4
    %v6018 = vrot.slane %v5735, 5
    %v6019 = vsel %vm2427, %v6017, %v6018
    %v6020 = vrot.slane %v5736, 5
    %v6021 = vrot.slane %v6020, 4
    %v6022 = vrot.slane %v5737, 5
    %v6023 = vsel %vm2427, %v6021, %v6022
    %v6024 = vrot.slane %v6022, 4
    %v6025 = vrot.slane %v5738, 5
    %v6026 = vsel %vm2427, %v6024, %v6025
    %v6027 = vrot.slane %v5739, 5
    %v6028 = vrot.slane %v6027, 4
    %v6029 = vrot.slane %v5740, 5
    %v6030 = vsel %vm2427, %v6028, %v6029
    %v6031 = vrot.slane %v6029, 4
    %v6032 = vrot.slane %v5741, 5
    %v6033 = vsel %vm2427, %v6031, %v6032
    %v6034 = vrot.slane %v5742, 5
    %v6035 = vrot.slane %v6034, 4
    %v6036 = vrot.slane %v5743, 5
    %v6037 = vsel %vm2427, %v6035, %v6036
    %v6038 = vrot.slane %v6036, 4
    %v6039 = vrot.slane %v5744, 5
    %v6040 = vsel %vm2427, %v6038, %v6039
    %v6041 = vrot.slane %v5745, 5
    %v6042 = vrot.slane %v6041, 4
    %v6043 = vrot.slane %v5746, 5
    %v6044 = vsel %vm2427, %v6042, %v6043
    %v6045 = vrot.slane %v6043, 4
    %v6046 = vrot.slane %v5747, 5
    %v6047 = vsel %vm2427, %v6045, %v6046
    %v6048 = vrot.slane %v5748, 5
    %v6049 = vrot.slane %v6048, 4
    %v6050 = vrot.slane %v5749, 5
    %v6051 = vsel %vm2427, %v6049, %v6050
    %v6052 = vrot.slane %v6050, 4
    %v6053 = vrot.slane %v5750, 5
    %v6054 = vsel %vm2427, %v6052, %v6053
    %v6055 = vrot.slane %v5751, 5
    %v6056 = vrot.slane %v6055, 4
    %v6057 = vrot.slane %v5752, 5
    %v6058 = vsel %vm2427, %v6056, %v6057
    %v6059 = vrot.slane %v6057, 4
    %v6060 = vrot.slane %v5753, 5
    %v6061 = vsel %vm2427, %v6059, %v6060
    %v6062 = vrot.slane %v5754, 5
    %v6063 = vrot.slane %v6062, 4
    %v6064 = vrot.slane %v5755, 5
    %v6065 = vsel %vm2427, %v6063, %v6064
    %v6066 = vrot.slane %v6064, 4
    %v6067 = vrot.slane %v5756, 5
    %v6068 = vsel %vm2427, %v6066, %v6067
    %v6069 = vrot.slane %v5757, 5
    %v6070 = vrot.slane %v6069, 4
    %v6071 = vrot.slane %v5758, 5
    %v6072 = vsel %vm2427, %v6070, %v6071
    %v6073 = vrot.slane %v6071, 4
    %v6074 = vrot.slane %v5759, 5
    %v6075 = vsel %vm2427, %v6073, %v6074
    %v6076 = vrot.slane %v5760, 5
    %v6077 = vrot.slane %v6076, 4
    %v6078 = vrot.slane %v5761, 5
    %v6079 = vsel %vm2427, %v6077, %v6078
    %v6080 = vrot.slane %v6078, 4
    %v6081 = vrot.slane %v5762, 5
    %v6082 = vsel %vm2427, %v6080, %v6081
    %s6083 = scalar_lea.vmem %s2, 320
    %v6084 = vld [vmem:[%s6083] sm:$0xf]
    %v6085 = vld [vmem:[%s6083 + $0x4] sm:$0xf]
    %v6086 = vld [vmem:[%s6083 + $0x8] sm:$0xf]
    %v6087 = vld [vmem:[%s6083 + $0xc] sm:$0xf]
    %v6088 = vld [vmem:[%s6083 + $0x10] sm:$0xf]
    %v6089 = vld [vmem:[%s6083 + $0x14] sm:$0xf]
    %v6090 = vld [vmem:[%s6083 + $0x18] sm:$0xf]
    %v6091 = vld [vmem:[%s6083 + $0x1c] sm:$0xf]
    %v6092 = vld [vmem:[%s6083 + $0x20] sm:$0xf]
    %v6093 = vld [vmem:[%s6083 + $0x24] sm:$0xf]
    %v6094 = vld [vmem:[%s6083 + $0x28] sm:$0xf]
    %v6095 = vld [vmem:[%s6083 + $0x2c] sm:$0xf]
    %v6096 = vld [vmem:[%s6083 + $0x30] sm:$0xf]
    %v6097 = vld [vmem:[%s6083 + $0x34] sm:$0xf]
    %v6098 = vld [vmem:[%s6083 + $0x38] sm:$0xf]
    %v6099 = vld [vmem:[%s6083 + $0x3c] sm:$0xf]
    %v6100 = vunpack.c.l.b16 %v5862
    %v6101 = vunpack.c.l.b16 %v5865
    %v6102 = vunpack.c.l.b16 %v5869
    %v6103 = vunpack.c.l.b16 %v5872
    %v6104 = vunpack.c.l.b16 %v5876
    %v6105 = vunpack.c.l.b16 %v5879
    %v6106 = vunpack.c.l.b16 %v5883
    %v6107 = vunpack.c.l.b16 %v5886
    %v6108 = vunpack.c.l.b16 %v5890
    %v6109 = vunpack.c.l.b16 %v5893
    %v6110 = vunpack.c.l.b16 %v5897
    %v6111 = vunpack.c.l.b16 %v5900
    %v6112 = vunpack.c.l.b16 %v5904
    %v6113 = vunpack.c.l.b16 %v5907
    %v6114 = vunpack.c.l.b16 %v5911
    %v6115 = vunpack.c.l.b16 %v5914
    %v6116 = vunpack.c.l.b16 %v5918
    %v6117 = vunpack.c.l.b16 %v5921
    %v6118 = vunpack.c.l.b16 %v5925
    %v6119 = vunpack.c.l.b16 %v5928
    %v6120 = vunpack.c.l.b16 %v5932
    %v6121 = vunpack.c.l.b16 %v5935
    %v6122 = vunpack.c.l.b16 %v5939
    %v6123 = vunpack.c.l.b16 %v5942
    %v6124 = vunpack.c.l.b16 %v5946
    %v6125 = vunpack.c.l.b16 %v5949
    %v6126 = vunpack.c.l.b16 %v5953
    %v6127 = vunpack.c.l.b16 %v5956
    %v6128 = vunpack.c.l.b16 %v5960
    %v6129 = vunpack.c.l.b16 %v5963
    %v6130 = vunpack.c.l.b16 %v5967
    %v6131 = vunpack.c.l.b16 %v5970
    %v6132 = vunpack.c.l.b16 %v5974
    %v6133 = vunpack.c.l.b16 %v5977
    %v6134 = vunpack.c.l.b16 %v5981
    %v6135 = vunpack.c.l.b16 %v5984
    %v6136 = vunpack.c.l.b16 %v5988
    %v6137 = vunpack.c.l.b16 %v5991
    %v6138 = vunpack.c.l.b16 %v5995
    %v6139 = vunpack.c.l.b16 %v5998
    %v6140 = vunpack.c.l.b16 %v6002
    %v6141 = vunpack.c.l.b16 %v6005
    %v6142 = vunpack.c.l.b16 %v6009
    %v6143 = vunpack.c.l.b16 %v6012
    %v6144 = vunpack.c.l.b16 %v6016
    %v6145 = vunpack.c.l.b16 %v6019
    %v6146 = vunpack.c.l.b16 %v6023
    %v6147 = vunpack.c.l.b16 %v6026
    %v6148 = vunpack.c.l.b16 %v6030
    %v6149 = vunpack.c.l.b16 %v6033
    %v6150 = vunpack.c.l.b16 %v6037
    %v6151 = vunpack.c.l.b16 %v6040
    %v6152 = vunpack.c.l.b16 %v6044
    %v6153 = vunpack.c.l.b16 %v6047
    %v6154 = vunpack.c.l.b16 %v6051
    %v6155 = vunpack.c.l.b16 %v6054
    %v6156 = vunpack.c.l.b16 %v6058
    %v6157 = vunpack.c.l.b16 %v6061
    %v6158 = vunpack.c.l.b16 %v6065
    %v6159 = vunpack.c.l.b16 %v6068
    %v6160 = vunpack.c.l.b16 %v6072
    %v6161 = vunpack.c.l.b16 %v6075
    %v6162 = vunpack.c.l.b16 %v6079
    %v6163 = vunpack.c.l.b16 %v6082
    %v6164 = vpack.c.b16 %v6101, %v6100
    %v6165 = vpack.c.b16 %v6103, %v6102
    %v6166 = vpack.c.b16 %v6105, %v6104
    %v6167 = vpack.c.b16 %v6107, %v6106
    %v6168 = vpack.c.b16 %v6109, %v6108
    %v6169 = vpack.c.b16 %v6111, %v6110
    %v6170 = vpack.c.b16 %v6113, %v6112
    %v6171 = vpack.c.b16 %v6115, %v6114
    %v6172 = vpack.c.b16 %v6117, %v6116
    %v6173 = vpack.c.b16 %v6119, %v6118
    %v6174 = vpack.c.b16 %v6121, %v6120
    %v6175 = vpack.c.b16 %v6123, %v6122
    %v6176 = vpack.c.b16 %v6125, %v6124
    %v6177 = vpack.c.b16 %v6127, %v6126
    %v6178 = vpack.c.b16 %v6129, %v6128
    %v6179 = vpack.c.b16 %v6131, %v6130
    %v6180 = vpack.c.b16 %v6133, %v6132
    %v6181 = vpack.c.b16 %v6135, %v6134
    %v6182 = vpack.c.b16 %v6137, %v6136
    %v6183 = vpack.c.b16 %v6139, %v6138
    %v6184 = vpack.c.b16 %v6141, %v6140
    %v6185 = vpack.c.b16 %v6143, %v6142
    %v6186 = vpack.c.b16 %v6145, %v6144
    %v6187 = vpack.c.b16 %v6147, %v6146
    %v6188 = vpack.c.b16 %v6149, %v6148
    %v6189 = vpack.c.b16 %v6151, %v6150
    %v6190 = vpack.c.b16 %v6153, %v6152
    %v6191 = vpack.c.b16 %v6155, %v6154
    %v6192 = vpack.c.b16 %v6157, %v6156
    %v6193 = vpack.c.b16 %v6159, %v6158
    %v6194 = vpack.c.b16 %v6161, %v6160
    %v6195 = vpack.c.b16 %v6163, %v6162
    %v6244 = vunpack.c.l.b16 %v6084
    %v6245 = vunpack.c.l.b16 %v6085
    %v6246 = vunpack.c.l.b16 %v6086
    %v6247 = vunpack.c.l.b16 %v6087
    %v6248 = vunpack.c.l.b16 %v6088
    %v6249 = vunpack.c.l.b16 %v6089
    %v6250 = vunpack.c.l.b16 %v6090
    %v6251 = vunpack.c.l.b16 %v6091
    %v6252 = vunpack.c.l.b16 %v6092
    %v6253 = vunpack.c.l.b16 %v6093
    %v6254 = vunpack.c.l.b16 %v6094
    %v6255 = vunpack.c.l.b16 %v6095
    %v6256 = vunpack.c.l.b16 %v6096
    %v6257 = vunpack.c.l.b16 %v6097
    %v6258 = vunpack.c.l.b16 %v6098
    %v6259 = vunpack.c.l.b16 %v6099
    %v6260 = vpack.c.b16 %v6245, %v6244
    %v6261 = vpack.c.b16 %v6247, %v6246
    %v6262 = vpack.c.b16 %v6249, %v6248
    %v6263 = vpack.c.b16 %v6251, %v6250
    %v6264 = vpack.c.b16 %v6253, %v6252
    %v6265 = vpack.c.b16 %v6255, %v6254
    %v6266 = vpack.c.b16 %v6257, %v6256
    %v6267 = vpack.c.b16 %v6259, %v6258
    %6276 = vmatprep.subr.bf16.mxu0 0
    %6277 = vmatpush1.bf16.msra.mxu0 %v6267
    %6278 = vmatprep.subr.bf16.mxu0 0
    %6279 = vmatpush1.bf16.msra.mxu0 %v6266
    %6280 = vmatprep.subr.bf16.mxu0 0
    %6281 = vmatpush1.bf16.msra.mxu0 %v6265
    %6282 = vmatprep.subr.bf16.mxu0 0
    %6283 = vmatpush1.bf16.msra.mxu0 %v6264
    %6284 = vmatprep.subr.bf16.mxu0 0
    %6285 = vmatpush1.bf16.msra.mxu0 %v6263
    %6286 = vmatprep.subr.bf16.mxu0 0
    %6287 = vmatpush1.bf16.msra.mxu0 %v6262
    %6288 = vmatprep.subr.bf16.mxu0 0
    %6289 = vmatpush1.bf16.msra.mxu0 %v6261
    %6290 = vmatprep.subr.bf16.mxu0 0
    %6291 = vmatpush1.bf16.msra.mxu0 %v6260
    %6292 = vmatprep.subr.bf16.mxu0 0
    %6293 = vmatpush2.bf16.msra.mxu0 0
    %6294 = vmatprep.subr.bf16.mxu0 0
    %6295 = vmatpush2.bf16.msra.mxu0 0
    %6296 = vmatprep.subr.bf16.mxu0 0
    %6297 = vmatpush2.bf16.msra.mxu0 0
    %6298 = vmatprep.subr.bf16.mxu0 0
    %6299 = vmatpush2.bf16.msra.mxu0 0
    %6300 = vmatprep.subr.bf16.mxu0 0
    %6301 = vmatpush2.bf16.msra.mxu0 0
    %6302 = vmatprep.subr.bf16.mxu0 0
    %6303 = vmatpush2.bf16.msra.mxu0 0
    %6304 = vmatprep.subr.bf16.mxu0 0
    %6305 = vmatpush2.bf16.msra.mxu0 0
    %6306 = vmatprep.subr.bf16.mxu0 0
    %6307 = vmatpush2.bf16.msra.mxu0 0
    %6308 = vmatprep.mubr.bf16.mxu0 0
    %6309 = vmatmul.mubr.bf16.gmra.mxu0 %v6164
    %v6310 = vpop.f32.mrf.mxu0
    %v6311 = vadd.f32 0.0, %v6310
    %v6312 = vpop.f32.mrf.mxu0
    %v6313 = vpop.f32.mrf.mxu0
    %v6314 = vadd.f32 0.0, %v6313
    %v6315 = vpop.f32.mrf.mxu0
    %6316 = vmatprep.mubr.bf16.mxu0 0
    %6317 = vmatmul.mubr.bf16.gmra.mxu0 %v6165
    %v6318 = vpop.f32.mrf.mxu0
    %v6319 = vadd.f32 0.0, %v6318
    %v6320 = vpop.f32.mrf.mxu0
    %v6321 = vpop.f32.mrf.mxu0
    %v6322 = vadd.f32 0.0, %v6321
    %v6323 = vpop.f32.mrf.mxu0
    %6324 = vmatprep.mubr.bf16.mxu0 0
    %6325 = vmatmul.mubr.bf16.gmra.mxu0 %v6166
    %v6326 = vpop.f32.mrf.mxu0
    %v6327 = vadd.f32 0.0, %v6326
    %v6328 = vpop.f32.mrf.mxu0
    %v6329 = vpop.f32.mrf.mxu0
    %v6330 = vadd.f32 0.0, %v6329
    %v6331 = vpop.f32.mrf.mxu0
    %6332 = vmatprep.mubr.bf16.mxu0 0
    %6333 = vmatmul.mubr.bf16.gmra.mxu0 %v6167
    %v6334 = vpop.f32.mrf.mxu0
    %v6335 = vadd.f32 0.0, %v6334
    %v6336 = vpop.f32.mrf.mxu0
    %v6337 = vpop.f32.mrf.mxu0
    %v6338 = vadd.f32 0.0, %v6337
    %v6339 = vpop.f32.mrf.mxu0
    %6340 = vmatprep.mubr.bf16.mxu0 0
    %6341 = vmatmul.mubr.bf16.gmra.mxu0 %v6168
    %v6342 = vpop.f32.mrf.mxu0
    %v6343 = vadd.f32 0.0, %v6342
    %v6344 = vpop.f32.mrf.mxu0
    %v6345 = vpop.f32.mrf.mxu0
    %v6346 = vadd.f32 0.0, %v6345
    %v6347 = vpop.f32.mrf.mxu0
    %6348 = vmatprep.mubr.bf16.mxu0 0
    %6349 = vmatmul.mubr.bf16.gmra.mxu0 %v6169
    %v6350 = vpop.f32.mrf.mxu0
    %v6351 = vadd.f32 0.0, %v6350
    %v6352 = vpop.f32.mrf.mxu0
    %v6353 = vpop.f32.mrf.mxu0
    %v6354 = vadd.f32 0.0, %v6353
    %v6355 = vpop.f32.mrf.mxu0
    %6356 = vmatprep.mubr.bf16.mxu0 0
    %6357 = vmatmul.mubr.bf16.gmra.mxu0 %v6170
    %v6358 = vpop.f32.mrf.mxu0
    %v6359 = vadd.f32 0.0, %v6358
    %v6360 = vpop.f32.mrf.mxu0
    %v6361 = vpop.f32.mrf.mxu0
    %v6362 = vadd.f32 0.0, %v6361
    %v6363 = vpop.f32.mrf.mxu0
    %6364 = vmatprep.mubr.bf16.mxu0 0
    %6365 = vmatmul.mubr.bf16.gmra.mxu0 %v6171
    %v6366 = vpop.f32.mrf.mxu0
    %v6367 = vadd.f32 0.0, %v6366
    %v6368 = vpop.f32.mrf.mxu0
    %v6369 = vpop.f32.mrf.mxu0
    %v6370 = vadd.f32 0.0, %v6369
    %v6371 = vpop.f32.mrf.mxu0
    %6372 = vmatprep.mubr.bf16.mxu0 0
    %6373 = vmatmul.mubr.bf16.gmra.mxu0 %v6172
    %v6374 = vpop.f32.mrf.mxu0
    %v6375 = vadd.f32 0.0, %v6374
    %v6376 = vpop.f32.mrf.mxu0
    %v6377 = vpop.f32.mrf.mxu0
    %v6378 = vadd.f32 0.0, %v6377
    %v6379 = vpop.f32.mrf.mxu0
    %6380 = vmatprep.mubr.bf16.mxu0 0
    %6381 = vmatmul.mubr.bf16.gmra.mxu0 %v6173
    %v6382 = vpop.f32.mrf.mxu0
    %v6383 = vadd.f32 0.0, %v6382
    %v6384 = vpop.f32.mrf.mxu0
    %v6385 = vpop.f32.mrf.mxu0
    %v6386 = vadd.f32 0.0, %v6385
    %v6387 = vpop.f32.mrf.mxu0
    %6388 = vmatprep.mubr.bf16.mxu0 0
    %6389 = vmatmul.mubr.bf16.gmra.mxu0 %v6174
    %v6390 = vpop.f32.mrf.mxu0
    %v6391 = vadd.f32 0.0, %v6390
    %v6392 = vpop.f32.mrf.mxu0
    %v6393 = vpop.f32.mrf.mxu0
    %v6394 = vadd.f32 0.0, %v6393
    %v6395 = vpop.f32.mrf.mxu0
    %6396 = vmatprep.mubr.bf16.mxu0 0
    %6397 = vmatmul.mubr.bf16.gmra.mxu0 %v6175
    %v6398 = vpop.f32.mrf.mxu0
    %v6399 = vadd.f32 0.0, %v6398
    %v6400 = vpop.f32.mrf.mxu0
    %v6401 = vpop.f32.mrf.mxu0
    %v6402 = vadd.f32 0.0, %v6401
    %v6403 = vpop.f32.mrf.mxu0
    %6404 = vmatprep.mubr.bf16.mxu0 0
    %6405 = vmatmul.mubr.bf16.gmra.mxu0 %v6176
    %v6406 = vpop.f32.mrf.mxu0
    %v6407 = vadd.f32 0.0, %v6406
    %v6408 = vpop.f32.mrf.mxu0
    %v6409 = vpop.f32.mrf.mxu0
    %v6410 = vadd.f32 0.0, %v6409
    %v6411 = vpop.f32.mrf.mxu0
    %6412 = vmatprep.mubr.bf16.mxu0 0
    %6413 = vmatmul.mubr.bf16.gmra.mxu0 %v6177
    %v6414 = vpop.f32.mrf.mxu0
    %v6415 = vadd.f32 0.0, %v6414
    %v6416 = vpop.f32.mrf.mxu0
    %v6417 = vpop.f32.mrf.mxu0
    %v6418 = vadd.f32 0.0, %v6417
    %v6419 = vpop.f32.mrf.mxu0
    %6420 = vmatprep.mubr.bf16.mxu0 0
    %6421 = vmatmul.mubr.bf16.gmra.mxu0 %v6178
    %v6422 = vpop.f32.mrf.mxu0
    %v6423 = vadd.f32 0.0, %v6422
    %v6424 = vpop.f32.mrf.mxu0
    %v6425 = vpop.f32.mrf.mxu0
    %v6426 = vadd.f32 0.0, %v6425
    %v6427 = vpop.f32.mrf.mxu0
    %6428 = vmatprep.mubr.bf16.mxu0 0
    %6429 = vmatmul.mubr.bf16.gmra.mxu0 %v6179
    %v6430 = vpop.f32.mrf.mxu0
    %v6431 = vadd.f32 0.0, %v6430
    %v6432 = vpop.f32.mrf.mxu0
    %v6433 = vpop.f32.mrf.mxu0
    %v6434 = vadd.f32 0.0, %v6433
    %v6435 = vpop.f32.mrf.mxu0
    %6436 = vmatprep.mubr.bf16.mxu0 0
    %6437 = vmatmul.mubr.bf16.gmra.mxu0 %v6180
    %v6438 = vpop.f32.mrf.mxu0
    %v6439 = vadd.f32 0.0, %v6438
    %v6440 = vpop.f32.mrf.mxu0
    %v6441 = vpop.f32.mrf.mxu0
    %v6442 = vadd.f32 0.0, %v6441
    %v6443 = vpop.f32.mrf.mxu0
    %6444 = vmatprep.mubr.bf16.mxu0 0
    %6445 = vmatmul.mubr.bf16.gmra.mxu0 %v6181
    %v6446 = vpop.f32.mrf.mxu0
    %v6447 = vadd.f32 0.0, %v6446
    %v6448 = vpop.f32.mrf.mxu0
    %v6449 = vpop.f32.mrf.mxu0
    %v6450 = vadd.f32 0.0, %v6449
    %v6451 = vpop.f32.mrf.mxu0
    %6452 = vmatprep.mubr.bf16.mxu0 0
    %6453 = vmatmul.mubr.bf16.gmra.mxu0 %v6182
    %v6454 = vpop.f32.mrf.mxu0
    %v6455 = vadd.f32 0.0, %v6454
    %v6456 = vpop.f32.mrf.mxu0
    %v6457 = vpop.f32.mrf.mxu0
    %v6458 = vadd.f32 0.0, %v6457
    %v6459 = vpop.f32.mrf.mxu0
    %6460 = vmatprep.mubr.bf16.mxu0 0
    %6461 = vmatmul.mubr.bf16.gmra.mxu0 %v6183
    %v6462 = vpop.f32.mrf.mxu0
    %v6463 = vadd.f32 0.0, %v6462
    %v6464 = vpop.f32.mrf.mxu0
    %v6465 = vpop.f32.mrf.mxu0
    %v6466 = vadd.f32 0.0, %v6465
    %v6467 = vpop.f32.mrf.mxu0
    %6468 = vmatprep.mubr.bf16.mxu0 0
    %6469 = vmatmul.mubr.bf16.gmra.mxu0 %v6184
    %v6470 = vpop.f32.mrf.mxu0
    %v6471 = vadd.f32 0.0, %v6470
    %v6472 = vpop.f32.mrf.mxu0
    %v6473 = vpop.f32.mrf.mxu0
    %v6474 = vadd.f32 0.0, %v6473
    %v6475 = vpop.f32.mrf.mxu0
    %6476 = vmatprep.mubr.bf16.mxu0 0
    %6477 = vmatmul.mubr.bf16.gmra.mxu0 %v6185
    %v6478 = vpop.f32.mrf.mxu0
    %v6479 = vadd.f32 0.0, %v6478
    %v6480 = vpop.f32.mrf.mxu0
    %v6481 = vpop.f32.mrf.mxu0
    %v6482 = vadd.f32 0.0, %v6481
    %v6483 = vpop.f32.mrf.mxu0
    %6484 = vmatprep.mubr.bf16.mxu0 0
    %6485 = vmatmul.mubr.bf16.gmra.mxu0 %v6186
    %v6486 = vpop.f32.mrf.mxu0
    %v6487 = vadd.f32 0.0, %v6486
    %v6488 = vpop.f32.mrf.mxu0
    %v6489 = vpop.f32.mrf.mxu0
    %v6490 = vadd.f32 0.0, %v6489
    %v6491 = vpop.f32.mrf.mxu0
    %6492 = vmatprep.mubr.bf16.mxu0 0
    %6493 = vmatmul.mubr.bf16.gmra.mxu0 %v6187
    %v6494 = vpop.f32.mrf.mxu0
    %v6495 = vadd.f32 0.0, %v6494
    %v6496 = vpop.f32.mrf.mxu0
    %v6497 = vpop.f32.mrf.mxu0
    %v6498 = vadd.f32 0.0, %v6497
    %v6499 = vpop.f32.mrf.mxu0
    %6500 = vmatprep.mubr.bf16.mxu0 0
    %6501 = vmatmul.mubr.bf16.gmra.mxu0 %v6188
    %v6502 = vpop.f32.mrf.mxu0
    %v6503 = vadd.f32 0.0, %v6502
    %v6504 = vpop.f32.mrf.mxu0
    %v6505 = vpop.f32.mrf.mxu0
    %v6506 = vadd.f32 0.0, %v6505
    %v6507 = vpop.f32.mrf.mxu0
    %6508 = vmatprep.mubr.bf16.mxu0 0
    %6509 = vmatmul.mubr.bf16.gmra.mxu0 %v6189
    %v6510 = vpop.f32.mrf.mxu0
    %v6511 = vadd.f32 0.0, %v6510
    %v6512 = vpop.f32.mrf.mxu0
    %v6513 = vpop.f32.mrf.mxu0
    %v6514 = vadd.f32 0.0, %v6513
    %v6515 = vpop.f32.mrf.mxu0
    %6516 = vmatprep.mubr.bf16.mxu0 0
    %6517 = vmatmul.mubr.bf16.gmra.mxu0 %v6190
    %v6518 = vpop.f32.mrf.mxu0
    %v6519 = vadd.f32 0.0, %v6518
    %v6520 = vpop.f32.mrf.mxu0
    %v6521 = vpop.f32.mrf.mxu0
    %v6522 = vadd.f32 0.0, %v6521
    %v6523 = vpop.f32.mrf.mxu0
    %6524 = vmatprep.mubr.bf16.mxu0 0
    %6525 = vmatmul.mubr.bf16.gmra.mxu0 %v6191
    %v6526 = vpop.f32.mrf.mxu0
    %v6527 = vadd.f32 0.0, %v6526
    %v6528 = vpop.f32.mrf.mxu0
    %v6529 = vpop.f32.mrf.mxu0
    %v6530 = vadd.f32 0.0, %v6529
    %v6531 = vpop.f32.mrf.mxu0
    %6532 = vmatprep.mubr.bf16.mxu0 0
    %6533 = vmatmul.mubr.bf16.gmra.mxu0 %v6192
    %v6534 = vpop.f32.mrf.mxu0
    %v6535 = vadd.f32 0.0, %v6534
    %v6536 = vpop.f32.mrf.mxu0
    %v6537 = vpop.f32.mrf.mxu0
    %v6538 = vadd.f32 0.0, %v6537
    %v6539 = vpop.f32.mrf.mxu0
    %6540 = vmatprep.mubr.bf16.mxu0 0
    %6541 = vmatmul.mubr.bf16.gmra.mxu0 %v6193
    %v6542 = vpop.f32.mrf.mxu0
    %v6543 = vadd.f32 0.0, %v6542
    %v6544 = vpop.f32.mrf.mxu0
    %v6545 = vpop.f32.mrf.mxu0
    %v6546 = vadd.f32 0.0, %v6545
    %v6547 = vpop.f32.mrf.mxu0
    %6548 = vmatprep.mubr.bf16.mxu0 0
    %6549 = vmatmul.mubr.bf16.gmra.mxu0 %v6194
    %v6550 = vpop.f32.mrf.mxu0
    %v6551 = vadd.f32 0.0, %v6550
    %v6552 = vpop.f32.mrf.mxu0
    %v6553 = vpop.f32.mrf.mxu0
    %v6554 = vadd.f32 0.0, %v6553
    %v6555 = vpop.f32.mrf.mxu0
    %6556 = vmatprep.mubr.bf16.mxu0 0
    %6557 = vmatmul.mubr.bf16.gmra.mxu0 %v6195
    %v6558 = vpop.f32.mrf.mxu0
    %v6559 = vadd.f32 0.0, %v6558
    %v6560 = vpop.f32.mrf.mxu0
    %v6561 = vpop.f32.mrf.mxu0
    %v6562 = vadd.f32 0.0, %v6561
    %v6563 = vpop.f32.mrf.mxu0
    %6564 = vdwg.mxu0
    %v6565 = vld [vmem:[#allocation2] sm:$0xff]
    %v6566 = vld [vmem:[#allocation2 + $0x8] sm:$0xff]
    %v6567 = vld [vmem:[#allocation2 + $0x10] sm:$0xff]
    %v6568 = vld [vmem:[#allocation2 + $0x18] sm:$0xff]
    %v6569 = vld [vmem:[#allocation2 + $0x20] sm:$0xff]
    %v6570 = vld [vmem:[#allocation2 + $0x28] sm:$0xff]
    %v6571 = vld [vmem:[#allocation2 + $0x30] sm:$0xff]
    %v6572 = vld [vmem:[#allocation2 + $0x38] sm:$0xff]
    %v6573 = vld [vmem:[#allocation2 + $0x40] sm:$0xff]
    %v6574 = vld [vmem:[#allocation2 + $0x48] sm:$0xff]
    %v6575 = vld [vmem:[#allocation2 + $0x50] sm:$0xff]
    %v6576 = vld [vmem:[#allocation2 + $0x58] sm:$0xff]
    %v6577 = vld [vmem:[#allocation2 + $0x60] sm:$0xff]
    %v6578 = vld [vmem:[#allocation2 + $0x68] sm:$0xff]
    %v6579 = vld [vmem:[#allocation2 + $0x70] sm:$0xff]
    %v6580 = vld [vmem:[#allocation2 + $0x78] sm:$0xff]
    %v6581 = vld [vmem:[#allocation2 + $0x80] sm:$0xff]
    %v6582 = vld [vmem:[#allocation2 + $0x88] sm:$0xff]
    %v6583 = vld [vmem:[#allocation2 + $0x90] sm:$0xff]
    %v6584 = vld [vmem:[#allocation2 + $0x98] sm:$0xff]
    %v6585 = vld [vmem:[#allocation2 + $0xa0] sm:$0xff]
    %v6586 = vld [vmem:[#allocation2 + $0xa8] sm:$0xff]
    %v6587 = vld [vmem:[#allocation2 + $0xb0] sm:$0xff]
    %v6588 = vld [vmem:[#allocation2 + $0xb8] sm:$0xff]
    %v6589 = vld [vmem:[#allocation2 + $0xc0] sm:$0xff]
    %v6590 = vld [vmem:[#allocation2 + $0xc8] sm:$0xff]
    %v6591 = vld [vmem:[#allocation2 + $0xd0] sm:$0xff]
    %v6592 = vld [vmem:[#allocation2 + $0xd8] sm:$0xff]
    %v6593 = vld [vmem:[#allocation2 + $0xe0] sm:$0xff]
    %v6594 = vld [vmem:[#allocation2 + $0xe8] sm:$0xff]
    %v6595 = vld [vmem:[#allocation2 + $0xf0] sm:$0xff]
    %v6596 = vld [vmem:[#allocation2 + $0xf8] sm:$0xff]
    %v6597 = vld [vmem:[#allocation2 + $0x100] sm:$0xff]
    %v6598 = vld [vmem:[#allocation2 + $0x108] sm:$0xff]
    %v6599 = vld [vmem:[#allocation2 + $0x110] sm:$0xff]
    %v6600 = vld [vmem:[#allocation2 + $0x118] sm:$0xff]
    %v6601 = vld [vmem:[#allocation2 + $0x120] sm:$0xff]
    %v6602 = vld [vmem:[#allocation2 + $0x128] sm:$0xff]
    %v6603 = vld [vmem:[#allocation2 + $0x130] sm:$0xff]
    %v6604 = vld [vmem:[#allocation2 + $0x138] sm:$0xff]
    %v6605 = vld [vmem:[#allocation2 + $0x140] sm:$0xff]
    %v6606 = vld [vmem:[#allocation2 + $0x148] sm:$0xff]
    %v6607 = vld [vmem:[#allocation2 + $0x150] sm:$0xff]
    %v6608 = vld [vmem:[#allocation2 + $0x158] sm:$0xff]
    %v6609 = vld [vmem:[#allocation2 + $0x160] sm:$0xff]
    %v6610 = vld [vmem:[#allocation2 + $0x168] sm:$0xff]
    %v6611 = vld [vmem:[#allocation2 + $0x170] sm:$0xff]
    %v6612 = vld [vmem:[#allocation2 + $0x178] sm:$0xff]
    %v6613 = vld [vmem:[#allocation2 + $0x180] sm:$0xff]
    %v6614 = vld [vmem:[#allocation2 + $0x188] sm:$0xff]
    %v6615 = vld [vmem:[#allocation2 + $0x190] sm:$0xff]
    %v6616 = vld [vmem:[#allocation2 + $0x198] sm:$0xff]
    %v6617 = vld [vmem:[#allocation2 + $0x1a0] sm:$0xff]
    %v6618 = vld [vmem:[#allocation2 + $0x1a8] sm:$0xff]
    %v6619 = vld [vmem:[#allocation2 + $0x1b0] sm:$0xff]
    %v6620 = vld [vmem:[#allocation2 + $0x1b8] sm:$0xff]
    %v6621 = vld [vmem:[#allocation2 + $0x1c0] sm:$0xff]
    %v6622 = vld [vmem:[#allocation2 + $0x1c8] sm:$0xff]
    %v6623 = vld [vmem:[#allocation2 + $0x1d0] sm:$0xff]
    %v6624 = vld [vmem:[#allocation2 + $0x1d8] sm:$0xff]
    %v6625 = vld [vmem:[#allocation2 + $0x1e0] sm:$0xff]
    %v6626 = vld [vmem:[#allocation2 + $0x1e8] sm:$0xff]
    %v6627 = vld [vmem:[#allocation2 + $0x1f0] sm:$0xff]
    %v6628 = vld [vmem:[#allocation2 + $0x1f8] sm:$0xff]
    %v6629 = vadd.f32 %v6565, %v6311
    %v6630 = vadd.f32 %v6566, %v6314
    %v6631 = vadd.f32 %v6567, %v6319
    %v6632 = vadd.f32 %v6568, %v6322
    %v6633 = vadd.f32 %v6569, %v6327
    %v6634 = vadd.f32 %v6570, %v6330
    %v6635 = vadd.f32 %v6571, %v6335
    %v6636 = vadd.f32 %v6572, %v6338
    %v6637 = vadd.f32 %v6573, %v6343
    %v6638 = vadd.f32 %v6574, %v6346
    %v6639 = vadd.f32 %v6575, %v6351
    %v6640 = vadd.f32 %v6576, %v6354
    %v6641 = vadd.f32 %v6577, %v6359
    %v6642 = vadd.f32 %v6578, %v6362
    %v6643 = vadd.f32 %v6579, %v6367
    %v6644 = vadd.f32 %v6580, %v6370
    %v6645 = vadd.f32 %v6581, %v6375
    %v6646 = vadd.f32 %v6582, %v6378
    %v6647 = vadd.f32 %v6583, %v6383
    %v6648 = vadd.f32 %v6584, %v6386
    %v6649 = vadd.f32 %v6585, %v6391
    %v6650 = vadd.f32 %v6586, %v6394
    %v6651 = vadd.f32 %v6587, %v6399
    %v6652 = vadd.f32 %v6588, %v6402
    %v6653 = vadd.f32 %v6589, %v6407
    %v6654 = vadd.f32 %v6590, %v6410
    %v6655 = vadd.f32 %v6591, %v6415
    %v6656 = vadd.f32 %v6592, %v6418
    %v6657 = vadd.f32 %v6593, %v6423
    %v6658 = vadd.f32 %v6594, %v6426
    %v6659 = vadd.f32 %v6595, %v6431
    %v6660 = vadd.f32 %v6596, %v6434
    %v6661 = vadd.f32 %v6597, %v6439
    %v6662 = vadd.f32 %v6598, %v6442
    %v6663 = vadd.f32 %v6599, %v6447
    %v6664 = vadd.f32 %v6600, %v6450
    %v6665 = vadd.f32 %v6601, %v6455
    %v6666 = vadd.f32 %v6602, %v6458
    %v6667 = vadd.f32 %v6603, %v6463
    %v6668 = vadd.f32 %v6604, %v6466
    %v6669 = vadd.f32 %v6605, %v6471
    %v6670 = vadd.f32 %v6606, %v6474
    %v6671 = vadd.f32 %v6607, %v6479
    %v6672 = vadd.f32 %v6608, %v6482
    %v6673 = vadd.f32 %v6609, %v6487
    %v6674 = vadd.f32 %v6610, %v6490
    %v6675 = vadd.f32 %v6611, %v6495
    %v6676 = vadd.f32 %v6612, %v6498
    %v6677 = vadd.f32 %v6613, %v6503
    %v6678 = vadd.f32 %v6614, %v6506
    %v6679 = vadd.f32 %v6615, %v6511
    %v6680 = vadd.f32 %v6616, %v6514
    %v6681 = vadd.f32 %v6617, %v6519
    %v6682 = vadd.f32 %v6618, %v6522
    %v6683 = vadd.f32 %v6619, %v6527
    %v6684 = vadd.f32 %v6620, %v6530
    %v6685 = vadd.f32 %v6621, %v6535
    %v6686 = vadd.f32 %v6622, %v6538
    %v6687 = vadd.f32 %v6623, %v6543
    %v6688 = vadd.f32 %v6624, %v6546
    %v6689 = vadd.f32 %v6625, %v6551
    %v6690 = vadd.f32 %v6626, %v6554
    %v6691 = vadd.f32 %v6627, %v6559
    %v6692 = vadd.f32 %v6628, %v6562
    %6693 = vst [vmem:[#allocation2] sm:$0xff] %v6629
    %6694 = vst [vmem:[#allocation2 + $0x8] sm:$0xff] %v6630
    %6695 = vst [vmem:[#allocation2 + $0x10] sm:$0xff] %v6631
    %6696 = vst [vmem:[#allocation2 + $0x18] sm:$0xff] %v6632
    %6697 = vst [vmem:[#allocation2 + $0x20] sm:$0xff] %v6633
    %6698 = vst [vmem:[#allocation2 + $0x28] sm:$0xff] %v6634
    %6699 = vst [vmem:[#allocation2 + $0x30] sm:$0xff] %v6635
    %6700 = vst [vmem:[#allocation2 + $0x38] sm:$0xff] %v6636
    %6701 = vst [vmem:[#allocation2 + $0x40] sm:$0xff] %v6637
    %6702 = vst [vmem:[#allocation2 + $0x48] sm:$0xff] %v6638
    %6703 = vst [vmem:[#allocation2 + $0x50] sm:$0xff] %v6639
    %6704 = vst [vmem:[#allocation2 + $0x58] sm:$0xff] %v6640
    %6705 = vst [vmem:[#allocation2 + $0x60] sm:$0xff] %v6641
    %6706 = vst [vmem:[#allocation2 + $0x68] sm:$0xff] %v6642
    %6707 = vst [vmem:[#allocation2 + $0x70] sm:$0xff] %v6643
    %6708 = vst [vmem:[#allocation2 + $0x78] sm:$0xff] %v6644
    %6709 = vst [vmem:[#allocation2 + $0x80] sm:$0xff] %v6645
    %6710 = vst [vmem:[#allocation2 + $0x88] sm:$0xff] %v6646
    %6711 = vst [vmem:[#allocation2 + $0x90] sm:$0xff] %v6647
    %6712 = vst [vmem:[#allocation2 + $0x98] sm:$0xff] %v6648
    %6713 = vst [vmem:[#allocation2 + $0xa0] sm:$0xff] %v6649
    %6714 = vst [vmem:[#allocation2 + $0xa8] sm:$0xff] %v6650
    %6715 = vst [vmem:[#allocation2 + $0xb0] sm:$0xff] %v6651
    %6716 = vst [vmem:[#allocation2 + $0xb8] sm:$0xff] %v6652
    %6717 = vst [vmem:[#allocation2 + $0xc0] sm:$0xff] %v6653
    %6718 = vst [vmem:[#allocation2 + $0xc8] sm:$0xff] %v6654
    %6719 = vst [vmem:[#allocation2 + $0xd0] sm:$0xff] %v6655
    %6720 = vst [vmem:[#allocation2 + $0xd8] sm:$0xff] %v6656
    %6721 = vst [vmem:[#allocation2 + $0xe0] sm:$0xff] %v6657
    %6722 = vst [vmem:[#allocation2 + $0xe8] sm:$0xff] %v6658
    %6723 = vst [vmem:[#allocation2 + $0xf0] sm:$0xff] %v6659
    %6724 = vst [vmem:[#allocation2 + $0xf8] sm:$0xff] %v6660
    %6725 = vst [vmem:[#allocation2 + $0x100] sm:$0xff] %v6661
    %6726 = vst [vmem:[#allocation2 + $0x108] sm:$0xff] %v6662
    %6727 = vst [vmem:[#allocation2 + $0x110] sm:$0xff] %v6663
    %6728 = vst [vmem:[#allocation2 + $0x118] sm:$0xff] %v6664
    %6729 = vst [vmem:[#allocation2 + $0x120] sm:$0xff] %v6665
    %6730 = vst [vmem:[#allocation2 + $0x128] sm:$0xff] %v6666
    %6731 = vst [vmem:[#allocation2 + $0x130] sm:$0xff] %v6667
    %6732 = vst [vmem:[#allocation2 + $0x138] sm:$0xff] %v6668
    %6733 = vst [vmem:[#allocation2 + $0x140] sm:$0xff] %v6669
    %6734 = vst [vmem:[#allocation2 + $0x148] sm:$0xff] %v6670
    %6735 = vst [vmem:[#allocation2 + $0x150] sm:$0xff] %v6671
    %6736 = vst [vmem:[#allocation2 + $0x158] sm:$0xff] %v6672
    %6737 = vst [vmem:[#allocation2 + $0x160] sm:$0xff] %v6673
    %6738 = vst [vmem:[#allocation2 + $0x168] sm:$0xff] %v6674
    %6739 = vst [vmem:[#allocation2 + $0x170] sm:$0xff] %v6675
    %6740 = vst [vmem:[#allocation2 + $0x178] sm:$0xff] %v6676
    %6741 = vst [vmem:[#allocation2 + $0x180] sm:$0xff] %v6677
    %6742 = vst [vmem:[#allocation2 + $0x188] sm:$0xff] %v6678
    %6743 = vst [vmem:[#allocation2 + $0x190] sm:$0xff] %v6679
    %6744 = vst [vmem:[#allocation2 + $0x198] sm:$0xff] %v6680
    %6745 = vst [vmem:[#allocation2 + $0x1a0] sm:$0xff] %v6681
    %6746 = vst [vmem:[#allocation2 + $0x1a8] sm:$0xff] %v6682
    %6747 = vst [vmem:[#allocation2 + $0x1b0] sm:$0xff] %v6683
    %6748 = vst [vmem:[#allocation2 + $0x1b8] sm:$0xff] %v6684
    %6749 = vst [vmem:[#allocation2 + $0x1c0] sm:$0xff] %v6685
    %6750 = vst [vmem:[#allocation2 + $0x1c8] sm:$0xff] %v6686
    %6751 = vst [vmem:[#allocation2 + $0x1d0] sm:$0xff] %v6687
    %6752 = vst [vmem:[#allocation2 + $0x1d8] sm:$0xff] %v6688
    %6753 = vst [vmem:[#allocation2 + $0x1e0] sm:$0xff] %v6689
    %6754 = vst [vmem:[#allocation2 + $0x1e8] sm:$0xff] %v6690
    %6755 = vst [vmem:[#allocation2 + $0x1f0] sm:$0xff] %v6691
    %6756 = vst [vmem:[#allocation2 + $0x1f8] sm:$0xff] %v6692
    %s6757 = scalar_lea.vmem %s0, 24
    %v6758 = vld [vmem:[%s6757] sm:$0xf]
    %v6759 = vld [vmem:[%s6757 + $0x4] sm:$0xf]
    %v6760 = vld [vmem:[%s6757 + $0xc] sm:$0xf]
    %v6761 = vld [vmem:[%s6757 + $0x10] sm:$0xf]
    %v6762 = vld [vmem:[%s6757 + $0x18] sm:$0xf]
    %v6763 = vld [vmem:[%s6757 + $0x1c] sm:$0xf]
    %v6764 = vld [vmem:[%s6757 + $0x24] sm:$0xf]
    %v6765 = vld [vmem:[%s6757 + $0x28] sm:$0xf]
    %v6766 = vld [vmem:[%s6757 + $0x30] sm:$0xf]
    %v6767 = vld [vmem:[%s6757 + $0x34] sm:$0xf]
    %v6768 = vld [vmem:[%s6757 + $0x3c] sm:$0xf]
    %v6769 = vld [vmem:[%s6757 + $0x40] sm:$0xf]
    %v6770 = vld [vmem:[%s6757 + $0x48] sm:$0xf]
    %v6771 = vld [vmem:[%s6757 + $0x4c] sm:$0xf]
    %v6772 = vld [vmem:[%s6757 + $0x54] sm:$0xf]
    %v6773 = vld [vmem:[%s6757 + $0x58] sm:$0xf]
    %v6774 = vld [vmem:[%s6757 + $0x60] sm:$0xf]
    %v6775 = vld [vmem:[%s6757 + $0x64] sm:$0xf]
    %v6776 = vld [vmem:[%s6757 + $0x6c] sm:$0xf]
    %v6777 = vld [vmem:[%s6757 + $0x70] sm:$0xf]
    %v6778 = vld [vmem:[%s6757 + $0x78] sm:$0xf]
    %v6779 = vld [vmem:[%s6757 + $0x7c] sm:$0xf]
    %v6780 = vld [vmem:[%s6757 + $0x84] sm:$0xf]
    %v6781 = vld [vmem:[%s6757 + $0x88] sm:$0xf]
    %v6782 = vld [vmem:[%s6757 + $0x90] sm:$0xf]
    %v6783 = vld [vmem:[%s6757 + $0x94] sm:$0xf]
    %v6784 = vld [vmem:[%s6757 + $0x9c] sm:$0xf]
    %v6785 = vld [vmem:[%s6757 + $0xa0] sm:$0xf]
    %v6786 = vld [vmem:[%s6757 + $0xa8] sm:$0xf]
    %v6787 = vld [vmem:[%s6757 + $0xac] sm:$0xf]
    %v6788 = vld [vmem:[%s6757 + $0xb4] sm:$0xf]
    %v6789 = vld [vmem:[%s6757 + $0xb8] sm:$0xf]
    %v6790 = vld [vmem:[%s6757 + $0xd8] sm:$0xf]
    %v6791 = vld [vmem:[%s6757 + $0xdc] sm:$0xf]
    %v6792 = vld [vmem:[%s6757 + $0xe4] sm:$0xf]
    %v6793 = vld [vmem:[%s6757 + $0xe8] sm:$0xf]
    %v6794 = vld [vmem:[%s6757 + $0xf0] sm:$0xf]
    %v6795 = vld [vmem:[%s6757 + $0xf4] sm:$0xf]
    %v6796 = vld [vmem:[%s6757 + $0xfc] sm:$0xf]
    %v6797 = vld [vmem:[%s6757 + $0x100] sm:$0xf]
    %v6798 = vld [vmem:[%s6757 + $0x108] sm:$0xf]
    %v6799 = vld [vmem:[%s6757 + $0x10c] sm:$0xf]
    %v6800 = vld [vmem:[%s6757 + $0x114] sm:$0xf]
    %v6801 = vld [vmem:[%s6757 + $0x118] sm:$0xf]
    %v6802 = vld [vmem:[%s6757 + $0x120] sm:$0xf]
    %v6803 = vld [vmem:[%s6757 + $0x124] sm:$0xf]
    %v6804 = vld [vmem:[%s6757 + $0x12c] sm:$0xf]
    %v6805 = vld [vmem:[%s6757 + $0x130] sm:$0xf]
    %v6806 = vld [vmem:[%s6757 + $0x138] sm:$0xf]
    %v6807 = vld [vmem:[%s6757 + $0x13c] sm:$0xf]
    %v6808 = vld [vmem:[%s6757 + $0x144] sm:$0xf]
    %v6809 = vld [vmem:[%s6757 + $0x148] sm:$0xf]
    %v6810 = vld [vmem:[%s6757 + $0x150] sm:$0xf]
    %v6811 = vld [vmem:[%s6757 + $0x154] sm:$0xf]
    %v6812 = vld [vmem:[%s6757 + $0x15c] sm:$0xf]
    %v6813 = vld [vmem:[%s6757 + $0x160] sm:$0xf]
    %v6814 = vld [vmem:[%s6757 + $0x168] sm:$0xf]
    %v6815 = vld [vmem:[%s6757 + $0x16c] sm:$0xf]
    %v6816 = vld [vmem:[%s6757 + $0x174] sm:$0xf]
    %v6817 = vld [vmem:[%s6757 + $0x178] sm:$0xf]
    %v6818 = vld [vmem:[%s6757 + $0x180] sm:$0xf]
    %v6819 = vld [vmem:[%s6757 + $0x184] sm:$0xf]
    %v6820 = vld [vmem:[%s6757 + $0x18c] sm:$0xf]
    %v6821 = vld [vmem:[%s6757 + $0x190] sm:$0xf]
    %s6822 = scalar_lea.vmem %s2, 384
    %v6823 = vld [vmem:[%s6822] sm:$0xf]
    %v6824 = vld [vmem:[%s6822 + $0x4] sm:$0xf]
    %v6825 = vld [vmem:[%s6822 + $0x8] sm:$0xf]
    %v6826 = vld [vmem:[%s6822 + $0xc] sm:$0xf]
    %v6827 = vld [vmem:[%s6822 + $0x10] sm:$0xf]
    %v6828 = vld [vmem:[%s6822 + $0x14] sm:$0xf]
    %v6829 = vld [vmem:[%s6822 + $0x18] sm:$0xf]
    %v6830 = vld [vmem:[%s6822 + $0x1c] sm:$0xf]
    %v6831 = vld [vmem:[%s6822 + $0x20] sm:$0xf]
    %v6832 = vld [vmem:[%s6822 + $0x24] sm:$0xf]
    %v6833 = vld [vmem:[%s6822 + $0x28] sm:$0xf]
    %v6834 = vld [vmem:[%s6822 + $0x2c] sm:$0xf]
    %v6835 = vld [vmem:[%s6822 + $0x30] sm:$0xf]
    %v6836 = vld [vmem:[%s6822 + $0x34] sm:$0xf]
    %v6837 = vld [vmem:[%s6822 + $0x38] sm:$0xf]
    %v6838 = vld [vmem:[%s6822 + $0x3c] sm:$0xf]
    %v6903 = vunpack.c.l.b16 %v6758
    %v6904 = vunpack.c.l.b16 %v6759
    %v6905 = vunpack.c.l.b16 %v6760
    %v6906 = vunpack.c.l.b16 %v6761
    %v6907 = vunpack.c.l.b16 %v6762
    %v6908 = vunpack.c.l.b16 %v6763
    %v6909 = vunpack.c.l.b16 %v6764
    %v6910 = vunpack.c.l.b16 %v6765
    %v6911 = vunpack.c.l.b16 %v6766
    %v6912 = vunpack.c.l.b16 %v6767
    %v6913 = vunpack.c.l.b16 %v6768
    %v6914 = vunpack.c.l.b16 %v6769
    %v6915 = vunpack.c.l.b16 %v6770
    %v6916 = vunpack.c.l.b16 %v6771
    %v6917 = vunpack.c.l.b16 %v6772
    %v6918 = vunpack.c.l.b16 %v6773
    %v6919 = vunpack.c.l.b16 %v6774
    %v6920 = vunpack.c.l.b16 %v6775
    %v6921 = vunpack.c.l.b16 %v6776
    %v6922 = vunpack.c.l.b16 %v6777
    %v6923 = vunpack.c.l.b16 %v6778
    %v6924 = vunpack.c.l.b16 %v6779
    %v6925 = vunpack.c.l.b16 %v6780
    %v6926 = vunpack.c.l.b16 %v6781
    %v6927 = vunpack.c.l.b16 %v6782
    %v6928 = vunpack.c.l.b16 %v6783
    %v6929 = vunpack.c.l.b16 %v6784
    %v6930 = vunpack.c.l.b16 %v6785
    %v6931 = vunpack.c.l.b16 %v6786
    %v6932 = vunpack.c.l.b16 %v6787
    %v6933 = vunpack.c.l.b16 %v6788
    %v6934 = vunpack.c.l.b16 %v6789
    %v6935 = vunpack.c.l.b16 %v6790
    %v6936 = vunpack.c.l.b16 %v6791
    %v6937 = vunpack.c.l.b16 %v6792
    %v6938 = vunpack.c.l.b16 %v6793
    %v6939 = vunpack.c.l.b16 %v6794
    %v6940 = vunpack.c.l.b16 %v6795
    %v6941 = vunpack.c.l.b16 %v6796
    %v6942 = vunpack.c.l.b16 %v6797
    %v6943 = vunpack.c.l.b16 %v6798
    %v6944 = vunpack.c.l.b16 %v6799
    %v6945 = vunpack.c.l.b16 %v6800
    %v6946 = vunpack.c.l.b16 %v6801
    %v6947 = vunpack.c.l.b16 %v6802
    %v6948 = vunpack.c.l.b16 %v6803
    %v6949 = vunpack.c.l.b16 %v6804
    %v6950 = vunpack.c.l.b16 %v6805
    %v6951 = vunpack.c.l.b16 %v6806
    %v6952 = vunpack.c.l.b16 %v6807
    %v6953 = vunpack.c.l.b16 %v6808
    %v6954 = vunpack.c.l.b16 %v6809
    %v6955 = vunpack.c.l.b16 %v6810
    %v6956 = vunpack.c.l.b16 %v6811
    %v6957 = vunpack.c.l.b16 %v6812
    %v6958 = vunpack.c.l.b16 %v6813
    %v6959 = vunpack.c.l.b16 %v6814
    %v6960 = vunpack.c.l.b16 %v6815
    %v6961 = vunpack.c.l.b16 %v6816
    %v6962 = vunpack.c.l.b16 %v6817
    %v6963 = vunpack.c.l.b16 %v6818
    %v6964 = vunpack.c.l.b16 %v6819
    %v6965 = vunpack.c.l.b16 %v6820
    %v6966 = vunpack.c.l.b16 %v6821
    %v6967 = vpack.c.b16 %v6904, %v6903
    %v6968 = vpack.c.b16 %v6906, %v6905
    %v6969 = vpack.c.b16 %v6908, %v6907
    %v6970 = vpack.c.b16 %v6910, %v6909
    %v6971 = vpack.c.b16 %v6912, %v6911
    %v6972 = vpack.c.b16 %v6914, %v6913
    %v6973 = vpack.c.b16 %v6916, %v6915
    %v6974 = vpack.c.b16 %v6918, %v6917
    %v6975 = vpack.c.b16 %v6920, %v6919
    %v6976 = vpack.c.b16 %v6922, %v6921
    %v6977 = vpack.c.b16 %v6924, %v6923
    %v6978 = vpack.c.b16 %v6926, %v6925
    %v6979 = vpack.c.b16 %v6928, %v6927
    %v6980 = vpack.c.b16 %v6930, %v6929
    %v6981 = vpack.c.b16 %v6932, %v6931
    %v6982 = vpack.c.b16 %v6934, %v6933
    %v6983 = vpack.c.b16 %v6936, %v6935
    %v6984 = vpack.c.b16 %v6938, %v6937
    %v6985 = vpack.c.b16 %v6940, %v6939
    %v6986 = vpack.c.b16 %v6942, %v6941
    %v6987 = vpack.c.b16 %v6944, %v6943
    %v6988 = vpack.c.b16 %v6946, %v6945
    %v6989 = vpack.c.b16 %v6948, %v6947
    %v6990 = vpack.c.b16 %v6950, %v6949
    %v6991 = vpack.c.b16 %v6952, %v6951
    %v6992 = vpack.c.b16 %v6954, %v6953
    %v6993 = vpack.c.b16 %v6956, %v6955
    %v6994 = vpack.c.b16 %v6958, %v6957
    %v6995 = vpack.c.b16 %v6960, %v6959
    %v6996 = vpack.c.b16 %v6962, %v6961
    %v6997 = vpack.c.b16 %v6964, %v6963
    %v6998 = vpack.c.b16 %v6966, %v6965
    %v7047 = vunpack.c.l.b16 %v6823
    %v7048 = vunpack.c.l.b16 %v6824
    %v7049 = vunpack.c.l.b16 %v6825
    %v7050 = vunpack.c.l.b16 %v6826
    %v7051 = vunpack.c.l.b16 %v6827
    %v7052 = vunpack.c.l.b16 %v6828
    %v7053 = vunpack.c.l.b16 %v6829
    %v7054 = vunpack.c.l.b16 %v6830
    %v7055 = vunpack.c.l.b16 %v6831
    %v7056 = vunpack.c.l.b16 %v6832
    %v7057 = vunpack.c.l.b16 %v6833
    %v7058 = vunpack.c.l.b16 %v6834
    %v7059 = vunpack.c.l.b16 %v6835
    %v7060 = vunpack.c.l.b16 %v6836
    %v7061 = vunpack.c.l.b16 %v6837
    %v7062 = vunpack.c.l.b16 %v6838
    %v7063 = vpack.c.b16 %v7048, %v7047
    %v7064 = vpack.c.b16 %v7050, %v7049
    %v7065 = vpack.c.b16 %v7052, %v7051
    %v7066 = vpack.c.b16 %v7054, %v7053
    %v7067 = vpack.c.b16 %v7056, %v7055
    %v7068 = vpack.c.b16 %v7058, %v7057
    %v7069 = vpack.c.b16 %v7060, %v7059
    %v7070 = vpack.c.b16 %v7062, %v7061
    %7079 = vmatprep.subr.bf16.mxu0 0
    %7080 = vmatpush1.bf16.msra.mxu0 %v7070
    %7081 = vmatprep.subr.bf16.mxu0 0
    %7082 = vmatpush1.bf16.msra.mxu0 %v7069
    %7083 = vmatprep.subr.bf16.mxu0 0
    %7084 = vmatpush1.bf16.msra.mxu0 %v7068
    %7085 = vmatprep.subr.bf16.mxu0 0
    %7086 = vmatpush1.bf16.msra.mxu0 %v7067
    %7087 = vmatprep.subr.bf16.mxu0 0
    %7088 = vmatpush1.bf16.msra.mxu0 %v7066
    %7089 = vmatprep.subr.bf16.mxu0 0
    %7090 = vmatpush1.bf16.msra.mxu0 %v7065
    %7091 = vmatprep.subr.bf16.mxu0 0
    %7092 = vmatpush1.bf16.msra.mxu0 %v7064
    %7093 = vmatprep.subr.bf16.mxu0 0
    %7094 = vmatpush1.bf16.msra.mxu0 %v7063
    %7095 = vmatprep.subr.bf16.mxu0 0
    %7096 = vmatpush2.bf16.msra.mxu0 0
    %7097 = vmatprep.subr.bf16.mxu0 0
    %7098 = vmatpush2.bf16.msra.mxu0 0
    %7099 = vmatprep.subr.bf16.mxu0 0
    %7100 = vmatpush2.bf16.msra.mxu0 0
    %7101 = vmatprep.subr.bf16.mxu0 0
    %7102 = vmatpush2.bf16.msra.mxu0 0
    %7103 = vmatprep.subr.bf16.mxu0 0
    %7104 = vmatpush2.bf16.msra.mxu0 0
    %7105 = vmatprep.subr.bf16.mxu0 0
    %7106 = vmatpush2.bf16.msra.mxu0 0
    %7107 = vmatprep.subr.bf16.mxu0 0
    %7108 = vmatpush2.bf16.msra.mxu0 0
    %7109 = vmatprep.subr.bf16.mxu0 0
    %7110 = vmatpush2.bf16.msra.mxu0 0
    %7111 = vmatprep.mubr.bf16.mxu0 0
    %7112 = vmatmul.mubr.bf16.gmra.mxu0 %v6967
    %v7113 = vpop.f32.mrf.mxu0
    %v7114 = vadd.f32 0.0, %v7113
    %v7115 = vpop.f32.mrf.mxu0
    %v7116 = vpop.f32.mrf.mxu0
    %v7117 = vadd.f32 0.0, %v7116
    %v7118 = vpop.f32.mrf.mxu0
    %7119 = vmatprep.mubr.bf16.mxu0 0
    %7120 = vmatmul.mubr.bf16.gmra.mxu0 %v6968
    %v7121 = vpop.f32.mrf.mxu0
    %v7122 = vadd.f32 0.0, %v7121
    %v7123 = vpop.f32.mrf.mxu0
    %v7124 = vpop.f32.mrf.mxu0
    %v7125 = vadd.f32 0.0, %v7124
    %v7126 = vpop.f32.mrf.mxu0
    %7127 = vmatprep.mubr.bf16.mxu0 0
    %7128 = vmatmul.mubr.bf16.gmra.mxu0 %v6969
    %v7129 = vpop.f32.mrf.mxu0
    %v7130 = vadd.f32 0.0, %v7129
    %v7131 = vpop.f32.mrf.mxu0
    %v7132 = vpop.f32.mrf.mxu0
    %v7133 = vadd.f32 0.0, %v7132
    %v7134 = vpop.f32.mrf.mxu0
    %7135 = vmatprep.mubr.bf16.mxu0 0
    %7136 = vmatmul.mubr.bf16.gmra.mxu0 %v6970
    %v7137 = vpop.f32.mrf.mxu0
    %v7138 = vadd.f32 0.0, %v7137
    %v7139 = vpop.f32.mrf.mxu0
    %v7140 = vpop.f32.mrf.mxu0
    %v7141 = vadd.f32 0.0, %v7140
    %v7142 = vpop.f32.mrf.mxu0
    %7143 = vmatprep.mubr.bf16.mxu0 0
    %7144 = vmatmul.mubr.bf16.gmra.mxu0 %v6971
    %v7145 = vpop.f32.mrf.mxu0
    %v7146 = vadd.f32 0.0, %v7145
    %v7147 = vpop.f32.mrf.mxu0
    %v7148 = vpop.f32.mrf.mxu0
    %v7149 = vadd.f32 0.0, %v7148
    %v7150 = vpop.f32.mrf.mxu0
    %7151 = vmatprep.mubr.bf16.mxu0 0
    %7152 = vmatmul.mubr.bf16.gmra.mxu0 %v6972
    %v7153 = vpop.f32.mrf.mxu0
    %v7154 = vadd.f32 0.0, %v7153
    %v7155 = vpop.f32.mrf.mxu0
    %v7156 = vpop.f32.mrf.mxu0
    %v7157 = vadd.f32 0.0, %v7156
    %v7158 = vpop.f32.mrf.mxu0
    %7159 = vmatprep.mubr.bf16.mxu0 0
    %7160 = vmatmul.mubr.bf16.gmra.mxu0 %v6973
    %v7161 = vpop.f32.mrf.mxu0
    %v7162 = vadd.f32 0.0, %v7161
    %v7163 = vpop.f32.mrf.mxu0
    %v7164 = vpop.f32.mrf.mxu0
    %v7165 = vadd.f32 0.0, %v7164
    %v7166 = vpop.f32.mrf.mxu0
    %7167 = vmatprep.mubr.bf16.mxu0 0
    %7168 = vmatmul.mubr.bf16.gmra.mxu0 %v6974
    %v7169 = vpop.f32.mrf.mxu0
    %v7170 = vadd.f32 0.0, %v7169
    %v7171 = vpop.f32.mrf.mxu0
    %v7172 = vpop.f32.mrf.mxu0
    %v7173 = vadd.f32 0.0, %v7172
    %v7174 = vpop.f32.mrf.mxu0
    %7175 = vmatprep.mubr.bf16.mxu0 0
    %7176 = vmatmul.mubr.bf16.gmra.mxu0 %v6975
    %v7177 = vpop.f32.mrf.mxu0
    %v7178 = vadd.f32 0.0, %v7177
    %v7179 = vpop.f32.mrf.mxu0
    %v7180 = vpop.f32.mrf.mxu0
    %v7181 = vadd.f32 0.0, %v7180
    %v7182 = vpop.f32.mrf.mxu0
    %7183 = vmatprep.mubr.bf16.mxu0 0
    %7184 = vmatmul.mubr.bf16.gmra.mxu0 %v6976
    %v7185 = vpop.f32.mrf.mxu0
    %v7186 = vadd.f32 0.0, %v7185
    %v7187 = vpop.f32.mrf.mxu0
    %v7188 = vpop.f32.mrf.mxu0
    %v7189 = vadd.f32 0.0, %v7188
    %v7190 = vpop.f32.mrf.mxu0
    %7191 = vmatprep.mubr.bf16.mxu0 0
    %7192 = vmatmul.mubr.bf16.gmra.mxu0 %v6977
    %v7193 = vpop.f32.mrf.mxu0
    %v7194 = vadd.f32 0.0, %v7193
    %v7195 = vpop.f32.mrf.mxu0
    %v7196 = vpop.f32.mrf.mxu0
    %v7197 = vadd.f32 0.0, %v7196
    %v7198 = vpop.f32.mrf.mxu0
    %7199 = vmatprep.mubr.bf16.mxu0 0
    %7200 = vmatmul.mubr.bf16.gmra.mxu0 %v6978
    %v7201 = vpop.f32.mrf.mxu0
    %v7202 = vadd.f32 0.0, %v7201
    %v7203 = vpop.f32.mrf.mxu0
    %v7204 = vpop.f32.mrf.mxu0
    %v7205 = vadd.f32 0.0, %v7204
    %v7206 = vpop.f32.mrf.mxu0
    %7207 = vmatprep.mubr.bf16.mxu0 0
    %7208 = vmatmul.mubr.bf16.gmra.mxu0 %v6979
    %v7209 = vpop.f32.mrf.mxu0
    %v7210 = vadd.f32 0.0, %v7209
    %v7211 = vpop.f32.mrf.mxu0
    %v7212 = vpop.f32.mrf.mxu0
    %v7213 = vadd.f32 0.0, %v7212
    %v7214 = vpop.f32.mrf.mxu0
    %7215 = vmatprep.mubr.bf16.mxu0 0
    %7216 = vmatmul.mubr.bf16.gmra.mxu0 %v6980
    %v7217 = vpop.f32.mrf.mxu0
    %v7218 = vadd.f32 0.0, %v7217
    %v7219 = vpop.f32.mrf.mxu0
    %v7220 = vpop.f32.mrf.mxu0
    %v7221 = vadd.f32 0.0, %v7220
    %v7222 = vpop.f32.mrf.mxu0
    %7223 = vmatprep.mubr.bf16.mxu0 0
    %7224 = vmatmul.mubr.bf16.gmra.mxu0 %v6981
    %v7225 = vpop.f32.mrf.mxu0
    %v7226 = vadd.f32 0.0, %v7225
    %v7227 = vpop.f32.mrf.mxu0
    %v7228 = vpop.f32.mrf.mxu0
    %v7229 = vadd.f32 0.0, %v7228
    %v7230 = vpop.f32.mrf.mxu0
    %7231 = vmatprep.mubr.bf16.mxu0 0
    %7232 = vmatmul.mubr.bf16.gmra.mxu0 %v6982
    %v7233 = vpop.f32.mrf.mxu0
    %v7234 = vadd.f32 0.0, %v7233
    %v7235 = vpop.f32.mrf.mxu0
    %v7236 = vpop.f32.mrf.mxu0
    %v7237 = vadd.f32 0.0, %v7236
    %v7238 = vpop.f32.mrf.mxu0
    %7239 = vmatprep.mubr.bf16.mxu0 0
    %7240 = vmatmul.mubr.bf16.gmra.mxu0 %v6983
    %v7241 = vpop.f32.mrf.mxu0
    %v7242 = vadd.f32 0.0, %v7241
    %v7243 = vpop.f32.mrf.mxu0
    %v7244 = vpop.f32.mrf.mxu0
    %v7245 = vadd.f32 0.0, %v7244
    %v7246 = vpop.f32.mrf.mxu0
    %7247 = vmatprep.mubr.bf16.mxu0 0
    %7248 = vmatmul.mubr.bf16.gmra.mxu0 %v6984
    %v7249 = vpop.f32.mrf.mxu0
    %v7250 = vadd.f32 0.0, %v7249
    %v7251 = vpop.f32.mrf.mxu0
    %v7252 = vpop.f32.mrf.mxu0
    %v7253 = vadd.f32 0.0, %v7252
    %v7254 = vpop.f32.mrf.mxu0
    %7255 = vmatprep.mubr.bf16.mxu0 0
    %7256 = vmatmul.mubr.bf16.gmra.mxu0 %v6985
    %v7257 = vpop.f32.mrf.mxu0
    %v7258 = vadd.f32 0.0, %v7257
    %v7259 = vpop.f32.mrf.mxu0
    %v7260 = vpop.f32.mrf.mxu0
    %v7261 = vadd.f32 0.0, %v7260
    %v7262 = vpop.f32.mrf.mxu0
    %7263 = vmatprep.mubr.bf16.mxu0 0
    %7264 = vmatmul.mubr.bf16.gmra.mxu0 %v6986
    %v7265 = vpop.f32.mrf.mxu0
    %v7266 = vadd.f32 0.0, %v7265
    %v7267 = vpop.f32.mrf.mxu0
    %v7268 = vpop.f32.mrf.mxu0
    %v7269 = vadd.f32 0.0, %v7268
    %v7270 = vpop.f32.mrf.mxu0
    %7271 = vmatprep.mubr.bf16.mxu0 0
    %7272 = vmatmul.mubr.bf16.gmra.mxu0 %v6987
    %v7273 = vpop.f32.mrf.mxu0
    %v7274 = vadd.f32 0.0, %v7273
    %v7275 = vpop.f32.mrf.mxu0
    %v7276 = vpop.f32.mrf.mxu0
    %v7277 = vadd.f32 0.0, %v7276
    %v7278 = vpop.f32.mrf.mxu0
    %7279 = vmatprep.mubr.bf16.mxu0 0
    %7280 = vmatmul.mubr.bf16.gmra.mxu0 %v6988
    %v7281 = vpop.f32.mrf.mxu0
    %v7282 = vadd.f32 0.0, %v7281
    %v7283 = vpop.f32.mrf.mxu0
    %v7284 = vpop.f32.mrf.mxu0
    %v7285 = vadd.f32 0.0, %v7284
    %v7286 = vpop.f32.mrf.mxu0
    %7287 = vmatprep.mubr.bf16.mxu0 0
    %7288 = vmatmul.mubr.bf16.gmra.mxu0 %v6989
    %v7289 = vpop.f32.mrf.mxu0
    %v7290 = vadd.f32 0.0, %v7289
    %v7291 = vpop.f32.mrf.mxu0
    %v7292 = vpop.f32.mrf.mxu0
    %v7293 = vadd.f32 0.0, %v7292
    %v7294 = vpop.f32.mrf.mxu0
    %7295 = vmatprep.mubr.bf16.mxu0 0
    %7296 = vmatmul.mubr.bf16.gmra.mxu0 %v6990
    %v7297 = vpop.f32.mrf.mxu0
    %v7298 = vadd.f32 0.0, %v7297
    %v7299 = vpop.f32.mrf.mxu0
    %v7300 = vpop.f32.mrf.mxu0
    %v7301 = vadd.f32 0.0, %v7300
    %v7302 = vpop.f32.mrf.mxu0
    %7303 = vmatprep.mubr.bf16.mxu0 0
    %7304 = vmatmul.mubr.bf16.gmra.mxu0 %v6991
    %v7305 = vpop.f32.mrf.mxu0
    %v7306 = vadd.f32 0.0, %v7305
    %v7307 = vpop.f32.mrf.mxu0
    %v7308 = vpop.f32.mrf.mxu0
    %v7309 = vadd.f32 0.0, %v7308
    %v7310 = vpop.f32.mrf.mxu0
    %7311 = vmatprep.mubr.bf16.mxu0 0
    %7312 = vmatmul.mubr.bf16.gmra.mxu0 %v6992
    %v7313 = vpop.f32.mrf.mxu0
    %v7314 = vadd.f32 0.0, %v7313
    %v7315 = vpop.f32.mrf.mxu0
    %v7316 = vpop.f32.mrf.mxu0
    %v7317 = vadd.f32 0.0, %v7316
    %v7318 = vpop.f32.mrf.mxu0
    %7319 = vmatprep.mubr.bf16.mxu0 0
    %7320 = vmatmul.mubr.bf16.gmra.mxu0 %v6993
    %v7321 = vpop.f32.mrf.mxu0
    %v7322 = vadd.f32 0.0, %v7321
    %v7323 = vpop.f32.mrf.mxu0
    %v7324 = vpop.f32.mrf.mxu0
    %v7325 = vadd.f32 0.0, %v7324
    %v7326 = vpop.f32.mrf.mxu0
    %7327 = vmatprep.mubr.bf16.mxu0 0
    %7328 = vmatmul.mubr.bf16.gmra.mxu0 %v6994
    %v7329 = vpop.f32.mrf.mxu0
    %v7330 = vadd.f32 0.0, %v7329
    %v7331 = vpop.f32.mrf.mxu0
    %v7332 = vpop.f32.mrf.mxu0
    %v7333 = vadd.f32 0.0, %v7332
    %v7334 = vpop.f32.mrf.mxu0
    %7335 = vmatprep.mubr.bf16.mxu0 0
    %7336 = vmatmul.mubr.bf16.gmra.mxu0 %v6995
    %v7337 = vpop.f32.mrf.mxu0
    %v7338 = vadd.f32 0.0, %v7337
    %v7339 = vpop.f32.mrf.mxu0
    %v7340 = vpop.f32.mrf.mxu0
    %v7341 = vadd.f32 0.0, %v7340
    %v7342 = vpop.f32.mrf.mxu0
    %7343 = vmatprep.mubr.bf16.mxu0 0
    %7344 = vmatmul.mubr.bf16.gmra.mxu0 %v6996
    %v7345 = vpop.f32.mrf.mxu0
    %v7346 = vadd.f32 0.0, %v7345
    %v7347 = vpop.f32.mrf.mxu0
    %v7348 = vpop.f32.mrf.mxu0
    %v7349 = vadd.f32 0.0, %v7348
    %v7350 = vpop.f32.mrf.mxu0
    %7351 = vmatprep.mubr.bf16.mxu0 0
    %7352 = vmatmul.mubr.bf16.gmra.mxu0 %v6997
    %v7353 = vpop.f32.mrf.mxu0
    %v7354 = vadd.f32 0.0, %v7353
    %v7355 = vpop.f32.mrf.mxu0
    %v7356 = vpop.f32.mrf.mxu0
    %v7357 = vadd.f32 0.0, %v7356
    %v7358 = vpop.f32.mrf.mxu0
    %7359 = vmatprep.mubr.bf16.mxu0 0
    %7360 = vmatmul.mubr.bf16.gmra.mxu0 %v6998
    %v7361 = vpop.f32.mrf.mxu0
    %v7362 = vadd.f32 0.0, %v7361
    %v7363 = vpop.f32.mrf.mxu0
    %v7364 = vpop.f32.mrf.mxu0
    %v7365 = vadd.f32 0.0, %v7364
    %v7366 = vpop.f32.mrf.mxu0
    %7367 = vdwg.mxu0
    %v7368 = vld [vmem:[#allocation2] sm:$0xff]
    %v7369 = vld [vmem:[#allocation2 + $0x8] sm:$0xff]
    %v7370 = vld [vmem:[#allocation2 + $0x10] sm:$0xff]
    %v7371 = vld [vmem:[#allocation2 + $0x18] sm:$0xff]
    %v7372 = vld [vmem:[#allocation2 + $0x20] sm:$0xff]
    %v7373 = vld [vmem:[#allocation2 + $0x28] sm:$0xff]
    %v7374 = vld [vmem:[#allocation2 + $0x30] sm:$0xff]
    %v7375 = vld [vmem:[#allocation2 + $0x38] sm:$0xff]
    %v7376 = vld [vmem:[#allocation2 + $0x40] sm:$0xff]
    %v7377 = vld [vmem:[#allocation2 + $0x48] sm:$0xff]
    %v7378 = vld [vmem:[#allocation2 + $0x50] sm:$0xff]
    %v7379 = vld [vmem:[#allocation2 + $0x58] sm:$0xff]
    %v7380 = vld [vmem:[#allocation2 + $0x60] sm:$0xff]
    %v7381 = vld [vmem:[#allocation2 + $0x68] sm:$0xff]
    %v7382 = vld [vmem:[#allocation2 + $0x70] sm:$0xff]
    %v7383 = vld [vmem:[#allocation2 + $0x78] sm:$0xff]
    %v7384 = vld [vmem:[#allocation2 + $0x80] sm:$0xff]
    %v7385 = vld [vmem:[#allocation2 + $0x88] sm:$0xff]
    %v7386 = vld [vmem:[#allocation2 + $0x90] sm:$0xff]
    %v7387 = vld [vmem:[#allocation2 + $0x98] sm:$0xff]
    %v7388 = vld [vmem:[#allocation2 + $0xa0] sm:$0xff]
    %v7389 = vld [vmem:[#allocation2 + $0xa8] sm:$0xff]
    %v7390 = vld [vmem:[#allocation2 + $0xb0] sm:$0xff]
    %v7391 = vld [vmem:[#allocation2 + $0xb8] sm:$0xff]
    %v7392 = vld [vmem:[#allocation2 + $0xc0] sm:$0xff]
    %v7393 = vld [vmem:[#allocation2 + $0xc8] sm:$0xff]
    %v7394 = vld [vmem:[#allocation2 + $0xd0] sm:$0xff]
    %v7395 = vld [vmem:[#allocation2 + $0xd8] sm:$0xff]
    %v7396 = vld [vmem:[#allocation2 + $0xe0] sm:$0xff]
    %v7397 = vld [vmem:[#allocation2 + $0xe8] sm:$0xff]
    %v7398 = vld [vmem:[#allocation2 + $0xf0] sm:$0xff]
    %v7399 = vld [vmem:[#allocation2 + $0xf8] sm:$0xff]
    %v7400 = vld [vmem:[#allocation2 + $0x100] sm:$0xff]
    %v7401 = vld [vmem:[#allocation2 + $0x108] sm:$0xff]
    %v7402 = vld [vmem:[#allocation2 + $0x110] sm:$0xff]
    %v7403 = vld [vmem:[#allocation2 + $0x118] sm:$0xff]
    %v7404 = vld [vmem:[#allocation2 + $0x120] sm:$0xff]
    %v7405 = vld [vmem:[#allocation2 + $0x128] sm:$0xff]
    %v7406 = vld [vmem:[#allocation2 + $0x130] sm:$0xff]
    %v7407 = vld [vmem:[#allocation2 + $0x138] sm:$0xff]
    %v7408 = vld [vmem:[#allocation2 + $0x140] sm:$0xff]
    %v7409 = vld [vmem:[#allocation2 + $0x148] sm:$0xff]
    %v7410 = vld [vmem:[#allocation2 + $0x150] sm:$0xff]
    %v7411 = vld [vmem:[#allocation2 + $0x158] sm:$0xff]
    %v7412 = vld [vmem:[#allocation2 + $0x160] sm:$0xff]
    %v7413 = vld [vmem:[#allocation2 + $0x168] sm:$0xff]
    %v7414 = vld [vmem:[#allocation2 + $0x170] sm:$0xff]
    %v7415 = vld [vmem:[#allocation2 + $0x178] sm:$0xff]
    %v7416 = vld [vmem:[#allocation2 + $0x180] sm:$0xff]
    %v7417 = vld [vmem:[#allocation2 + $0x188] sm:$0xff]
    %v7418 = vld [vmem:[#allocation2 + $0x190] sm:$0xff]
    %v7419 = vld [vmem:[#allocation2 + $0x198] sm:$0xff]
    %v7420 = vld [vmem:[#allocation2 + $0x1a0] sm:$0xff]
    %v7421 = vld [vmem:[#allocation2 + $0x1a8] sm:$0xff]
    %v7422 = vld [vmem:[#allocation2 + $0x1b0] sm:$0xff]
    %v7423 = vld [vmem:[#allocation2 + $0x1b8] sm:$0xff]
    %v7424 = vld [vmem:[#allocation2 + $0x1c0] sm:$0xff]
    %v7425 = vld [vmem:[#allocation2 + $0x1c8] sm:$0xff]
    %v7426 = vld [vmem:[#allocation2 + $0x1d0] sm:$0xff]
    %v7427 = vld [vmem:[#allocation2 + $0x1d8] sm:$0xff]
    %v7428 = vld [vmem:[#allocation2 + $0x1e0] sm:$0xff]
    %v7429 = vld [vmem:[#allocation2 + $0x1e8] sm:$0xff]
    %v7430 = vld [vmem:[#allocation2 + $0x1f0] sm:$0xff]
    %v7431 = vld [vmem:[#allocation2 + $0x1f8] sm:$0xff]
    %v7432 = vadd.f32 %v7368, %v7114
    %v7433 = vadd.f32 %v7369, %v7117
    %v7434 = vadd.f32 %v7370, %v7122
    %v7435 = vadd.f32 %v7371, %v7125
    %v7436 = vadd.f32 %v7372, %v7130
    %v7437 = vadd.f32 %v7373, %v7133
    %v7438 = vadd.f32 %v7374, %v7138
    %v7439 = vadd.f32 %v7375, %v7141
    %v7440 = vadd.f32 %v7376, %v7146
    %v7441 = vadd.f32 %v7377, %v7149
    %v7442 = vadd.f32 %v7378, %v7154
    %v7443 = vadd.f32 %v7379, %v7157
    %v7444 = vadd.f32 %v7380, %v7162
    %v7445 = vadd.f32 %v7381, %v7165
    %v7446 = vadd.f32 %v7382, %v7170
    %v7447 = vadd.f32 %v7383, %v7173
    %v7448 = vadd.f32 %v7384, %v7178
    %v7449 = vadd.f32 %v7385, %v7181
    %v7450 = vadd.f32 %v7386, %v7186
    %v7451 = vadd.f32 %v7387, %v7189
    %v7452 = vadd.f32 %v7388, %v7194
    %v7453 = vadd.f32 %v7389, %v7197
    %v7454 = vadd.f32 %v7390, %v7202
    %v7455 = vadd.f32 %v7391, %v7205
    %v7456 = vadd.f32 %v7392, %v7210
    %v7457 = vadd.f32 %v7393, %v7213
    %v7458 = vadd.f32 %v7394, %v7218
    %v7459 = vadd.f32 %v7395, %v7221
    %v7460 = vadd.f32 %v7396, %v7226
    %v7461 = vadd.f32 %v7397, %v7229
    %v7462 = vadd.f32 %v7398, %v7234
    %v7463 = vadd.f32 %v7399, %v7237
    %v7464 = vadd.f32 %v7400, %v7242
    %v7465 = vadd.f32 %v7401, %v7245
    %v7466 = vadd.f32 %v7402, %v7250
    %v7467 = vadd.f32 %v7403, %v7253
    %v7468 = vadd.f32 %v7404, %v7258
    %v7469 = vadd.f32 %v7405, %v7261
    %v7470 = vadd.f32 %v7406, %v7266
    %v7471 = vadd.f32 %v7407, %v7269
    %v7472 = vadd.f32 %v7408, %v7274
    %v7473 = vadd.f32 %v7409, %v7277
    %v7474 = vadd.f32 %v7410, %v7282
    %v7475 = vadd.f32 %v7411, %v7285
    %v7476 = vadd.f32 %v7412, %v7290
    %v7477 = vadd.f32 %v7413, %v7293
    %v7478 = vadd.f32 %v7414, %v7298
    %v7479 = vadd.f32 %v7415, %v7301
    %v7480 = vadd.f32 %v7416, %v7306
    %v7481 = vadd.f32 %v7417, %v7309
    %v7482 = vadd.f32 %v7418, %v7314
    %v7483 = vadd.f32 %v7419, %v7317
    %v7484 = vadd.f32 %v7420, %v7322
    %v7485 = vadd.f32 %v7421, %v7325
    %v7486 = vadd.f32 %v7422, %v7330
    %v7487 = vadd.f32 %v7423, %v7333
    %v7488 = vadd.f32 %v7424, %v7338
    %v7489 = vadd.f32 %v7425, %v7341
    %v7490 = vadd.f32 %v7426, %v7346
    %v7491 = vadd.f32 %v7427, %v7349
    %v7492 = vadd.f32 %v7428, %v7354
    %v7493 = vadd.f32 %v7429, %v7357
    %v7494 = vadd.f32 %v7430, %v7362
    %v7495 = vadd.f32 %v7431, %v7365
    %7496 = vst [vmem:[#allocation2] sm:$0xff] %v7432
    %7497 = vst [vmem:[#allocation2 + $0x8] sm:$0xff] %v7433
    %7498 = vst [vmem:[#allocation2 + $0x10] sm:$0xff] %v7434
    %7499 = vst [vmem:[#allocation2 + $0x18] sm:$0xff] %v7435
    %7500 = vst [vmem:[#allocation2 + $0x20] sm:$0xff] %v7436
    %7501 = vst [vmem:[#allocation2 + $0x28] sm:$0xff] %v7437
    %7502 = vst [vmem:[#allocation2 + $0x30] sm:$0xff] %v7438
    %7503 = vst [vmem:[#allocation2 + $0x38] sm:$0xff] %v7439
    %7504 = vst [vmem:[#allocation2 + $0x40] sm:$0xff] %v7440
    %7505 = vst [vmem:[#allocation2 + $0x48] sm:$0xff] %v7441
    %7506 = vst [vmem:[#allocation2 + $0x50] sm:$0xff] %v7442
    %7507 = vst [vmem:[#allocation2 + $0x58] sm:$0xff] %v7443
    %7508 = vst [vmem:[#allocation2 + $0x60] sm:$0xff] %v7444
    %7509 = vst [vmem:[#allocation2 + $0x68] sm:$0xff] %v7445
    %7510 = vst [vmem:[#allocation2 + $0x70] sm:$0xff] %v7446
    %7511 = vst [vmem:[#allocation2 + $0x78] sm:$0xff] %v7447
    %7512 = vst [vmem:[#allocation2 + $0x80] sm:$0xff] %v7448
    %7513 = vst [vmem:[#allocation2 + $0x88] sm:$0xff] %v7449
    %7514 = vst [vmem:[#allocation2 + $0x90] sm:$0xff] %v7450
    %7515 = vst [vmem:[#allocation2 + $0x98] sm:$0xff] %v7451
    %7516 = vst [vmem:[#allocation2 + $0xa0] sm:$0xff] %v7452
    %7517 = vst [vmem:[#allocation2 + $0xa8] sm:$0xff] %v7453
    %7518 = vst [vmem:[#allocation2 + $0xb0] sm:$0xff] %v7454
    %7519 = vst [vmem:[#allocation2 + $0xb8] sm:$0xff] %v7455
    %7520 = vst [vmem:[#allocation2 + $0xc0] sm:$0xff] %v7456
    %7521 = vst [vmem:[#allocation2 + $0xc8] sm:$0xff] %v7457
    %7522 = vst [vmem:[#allocation2 + $0xd0] sm:$0xff] %v7458
    %7523 = vst [vmem:[#allocation2 + $0xd8] sm:$0xff] %v7459
    %7524 = vst [vmem:[#allocation2 + $0xe0] sm:$0xff] %v7460
    %7525 = vst [vmem:[#allocation2 + $0xe8] sm:$0xff] %v7461
    %7526 = vst [vmem:[#allocation2 + $0xf0] sm:$0xff] %v7462
    %7527 = vst [vmem:[#allocation2 + $0xf8] sm:$0xff] %v7463
    %7528 = vst [vmem:[#allocation2 + $0x100] sm:$0xff] %v7464
    %7529 = vst [vmem:[#allocation2 + $0x108] sm:$0xff] %v7465
    %7530 = vst [vmem:[#allocation2 + $0x110] sm:$0xff] %v7466
    %7531 = vst [vmem:[#allocation2 + $0x118] sm:$0xff] %v7467
    %7532 = vst [vmem:[#allocation2 + $0x120] sm:$0xff] %v7468
    %7533 = vst [vmem:[#allocation2 + $0x128] sm:$0xff] %v7469
    %7534 = vst [vmem:[#allocation2 + $0x130] sm:$0xff] %v7470
    %7535 = vst [vmem:[#allocation2 + $0x138] sm:$0xff] %v7471
    %7536 = vst [vmem:[#allocation2 + $0x140] sm:$0xff] %v7472
    %7537 = vst [vmem:[#allocation2 + $0x148] sm:$0xff] %v7473
    %7538 = vst [vmem:[#allocation2 + $0x150] sm:$0xff] %v7474
    %7539 = vst [vmem:[#allocation2 + $0x158] sm:$0xff] %v7475
    %7540 = vst [vmem:[#allocation2 + $0x160] sm:$0xff] %v7476
    %7541 = vst [vmem:[#allocation2 + $0x168] sm:$0xff] %v7477
    %7542 = vst [vmem:[#allocation2 + $0x170] sm:$0xff] %v7478
    %7543 = vst [vmem:[#allocation2 + $0x178] sm:$0xff] %v7479
    %7544 = vst [vmem:[#allocation2 + $0x180] sm:$0xff] %v7480
    %7545 = vst [vmem:[#allocation2 + $0x188] sm:$0xff] %v7481
    %7546 = vst [vmem:[#allocation2 + $0x190] sm:$0xff] %v7482
    %7547 = vst [vmem:[#allocation2 + $0x198] sm:$0xff] %v7483
    %7548 = vst [vmem:[#allocation2 + $0x1a0] sm:$0xff] %v7484
    %7549 = vst [vmem:[#allocation2 + $0x1a8] sm:$0xff] %v7485
    %7550 = vst [vmem:[#allocation2 + $0x1b0] sm:$0xff] %v7486
    %7551 = vst [vmem:[#allocation2 + $0x1b8] sm:$0xff] %v7487
    %7552 = vst [vmem:[#allocation2 + $0x1c0] sm:$0xff] %v7488
    %7553 = vst [vmem:[#allocation2 + $0x1c8] sm:$0xff] %v7489
    %7554 = vst [vmem:[#allocation2 + $0x1d0] sm:$0xff] %v7490
    %7555 = vst [vmem:[#allocation2 + $0x1d8] sm:$0xff] %v7491
    %7556 = vst [vmem:[#allocation2 + $0x1e0] sm:$0xff] %v7492
    %7557 = vst [vmem:[#allocation2 + $0x1e8] sm:$0xff] %v7493
    %7558 = vst [vmem:[#allocation2 + $0x1f0] sm:$0xff] %v7494
    %7559 = vst [vmem:[#allocation2 + $0x1f8] sm:$0xff] %v7495
    %v7560 = vld [vmem:[%s6757] sm:$0xf]
    %v7561 = vld [vmem:[%s6757 + $0x4] sm:$0xf]
    %v7562 = vld [vmem:[%s6757 + $0x8] sm:$0x1]
    %v7563 = vld [vmem:[%s6757 + $0xc] sm:$0xf]
    %v7564 = vld [vmem:[%s6757 + $0x10] sm:$0xf]
    %v7565 = vld [vmem:[%s6757 + $0x14] sm:$0x1]
    %v7566 = vld [vmem:[%s6757 + $0x18] sm:$0xf]
    %v7567 = vld [vmem:[%s6757 + $0x1c] sm:$0xf]
    %v7568 = vld [vmem:[%s6757 + $0x20] sm:$0x1]
    %v7569 = vld [vmem:[%s6757 + $0x24] sm:$0xf]
    %v7570 = vld [vmem:[%s6757 + $0x28] sm:$0xf]
    %v7571 = vld [vmem:[%s6757 + $0x2c] sm:$0x1]
    %v7572 = vld [vmem:[%s6757 + $0x30] sm:$0xf]
    %v7573 = vld [vmem:[%s6757 + $0x34] sm:$0xf]
    %v7574 = vld [vmem:[%s6757 + $0x38] sm:$0x1]
    %v7575 = vld [vmem:[%s6757 + $0x3c] sm:$0xf]
    %v7576 = vld [vmem:[%s6757 + $0x40] sm:$0xf]
    %v7577 = vld [vmem:[%s6757 + $0x44] sm:$0x1]
    %v7578 = vld [vmem:[%s6757 + $0x48] sm:$0xf]
    %v7579 = vld [vmem:[%s6757 + $0x4c] sm:$0xf]
    %v7580 = vld [vmem:[%s6757 + $0x50] sm:$0x1]
    %v7581 = vld [vmem:[%s6757 + $0x54] sm:$0xf]
    %v7582 = vld [vmem:[%s6757 + $0x58] sm:$0xf]
    %v7583 = vld [vmem:[%s6757 + $0x5c] sm:$0x1]
    %v7584 = vld [vmem:[%s6757 + $0x60] sm:$0xf]
    %v7585 = vld [vmem:[%s6757 + $0x64] sm:$0xf]
    %v7586 = vld [vmem:[%s6757 + $0x68] sm:$0x1]
    %v7587 = vld [vmem:[%s6757 + $0x6c] sm:$0xf]
    %v7588 = vld [vmem:[%s6757 + $0x70] sm:$0xf]
    %v7589 = vld [vmem:[%s6757 + $0x74] sm:$0x1]
    %v7590 = vld [vmem:[%s6757 + $0x78] sm:$0xf]
    %v7591 = vld [vmem:[%s6757 + $0x7c] sm:$0xf]
    %v7592 = vld [vmem:[%s6757 + $0x80] sm:$0x1]
    %v7593 = vld [vmem:[%s6757 + $0x84] sm:$0xf]
    %v7594 = vld [vmem:[%s6757 + $0x88] sm:$0xf]
    %v7595 = vld [vmem:[%s6757 + $0x8c] sm:$0x1]
    %v7596 = vld [vmem:[%s6757 + $0x90] sm:$0xf]
    %v7597 = vld [vmem:[%s6757 + $0x94] sm:$0xf]
    %v7598 = vld [vmem:[%s6757 + $0x98] sm:$0x1]
    %v7599 = vld [vmem:[%s6757 + $0x9c] sm:$0xf]
    %v7600 = vld [vmem:[%s6757 + $0xa0] sm:$0xf]
    %v7601 = vld [vmem:[%s6757 + $0xa4] sm:$0x1]
    %v7602 = vld [vmem:[%s6757 + $0xa8] sm:$0xf]
    %v7603 = vld [vmem:[%s6757 + $0xac] sm:$0xf]
    %v7604 = vld [vmem:[%s6757 + $0xb0] sm:$0x1]
    %v7605 = vld [vmem:[%s6757 + $0xb4] sm:$0xf]
    %v7606 = vld [vmem:[%s6757 + $0xb8] sm:$0xf]
    %v7607 = vld [vmem:[%s6757 + $0xbc] sm:$0x1]
    %v7608 = vld [vmem:[%s6757 + $0xd8] sm:$0xf]
    %v7609 = vld [vmem:[%s6757 + $0xdc] sm:$0xf]
    %v7610 = vld [vmem:[%s6757 + $0xe0] sm:$0x1]
    %v7611 = vld [vmem:[%s6757 + $0xe4] sm:$0xf]
    %v7612 = vld [vmem:[%s6757 + $0xe8] sm:$0xf]
    %v7613 = vld [vmem:[%s6757 + $0xec] sm:$0x1]
    %v7614 = vld [vmem:[%s6757 + $0xf0] sm:$0xf]
    %v7615 = vld [vmem:[%s6757 + $0xf4] sm:$0xf]
    %v7616 = vld [vmem:[%s6757 + $0xf8] sm:$0x1]
    %v7617 = vld [vmem:[%s6757 + $0xfc] sm:$0xf]
    %v7618 = vld [vmem:[%s6757 + $0x100] sm:$0xf]
    %v7619 = vld [vmem:[%s6757 + $0x104] sm:$0x1]
    %v7620 = vld [vmem:[%s6757 + $0x108] sm:$0xf]
    %v7621 = vld [vmem:[%s6757 + $0x10c] sm:$0xf]
    %v7622 = vld [vmem:[%s6757 + $0x110] sm:$0x1]
    %v7623 = vld [vmem:[%s6757 + $0x114] sm:$0xf]
    %v7624 = vld [vmem:[%s6757 + $0x118] sm:$0xf]
    %v7625 = vld [vmem:[%s6757 + $0x11c] sm:$0x1]
    %v7626 = vld [vmem:[%s6757 + $0x120] sm:$0xf]
    %v7627 = vld [vmem:[%s6757 + $0x124] sm:$0xf]
    %v7628 = vld [vmem:[%s6757 + $0x128] sm:$0x1]
    %v7629 = vld [vmem:[%s6757 + $0x12c] sm:$0xf]
    %v7630 = vld [vmem:[%s6757 + $0x130] sm:$0xf]
    %v7631 = vld [vmem:[%s6757 + $0x134] sm:$0x1]
    %v7632 = vld [vmem:[%s6757 + $0x138] sm:$0xf]
    %v7633 = vld [vmem:[%s6757 + $0x13c] sm:$0xf]
    %v7634 = vld [vmem:[%s6757 + $0x140] sm:$0x1]
    %v7635 = vld [vmem:[%s6757 + $0x144] sm:$0xf]
    %v7636 = vld [vmem:[%s6757 + $0x148] sm:$0xf]
    %v7637 = vld [vmem:[%s6757 + $0x14c] sm:$0x1]
    %v7638 = vld [vmem:[%s6757 + $0x150] sm:$0xf]
    %v7639 = vld [vmem:[%s6757 + $0x154] sm:$0xf]
    %v7640 = vld [vmem:[%s6757 + $0x158] sm:$0x1]
    %v7641 = vld [vmem:[%s6757 + $0x15c] sm:$0xf]
    %v7642 = vld [vmem:[%s6757 + $0x160] sm:$0xf]
    %v7643 = vld [vmem:[%s6757 + $0x164] sm:$0x1]
    %v7644 = vld [vmem:[%s6757 + $0x168] sm:$0xf]
    %v7645 = vld [vmem:[%s6757 + $0x16c] sm:$0xf]
    %v7646 = vld [vmem:[%s6757 + $0x170] sm:$0x1]
    %v7647 = vld [vmem:[%s6757 + $0x174] sm:$0xf]
    %v7648 = vld [vmem:[%s6757 + $0x178] sm:$0xf]
    %v7649 = vld [vmem:[%s6757 + $0x17c] sm:$0x1]
    %v7650 = vld [vmem:[%s6757 + $0x180] sm:$0xf]
    %v7651 = vld [vmem:[%s6757 + $0x184] sm:$0xf]
    %v7652 = vld [vmem:[%s6757 + $0x188] sm:$0x1]
    %v7653 = vld [vmem:[%s6757 + $0x18c] sm:$0xf]
    %v7654 = vld [vmem:[%s6757 + $0x190] sm:$0xf]
    %v7655 = vld [vmem:[%s6757 + $0x194] sm:$0x1]
    %v7657 = vshrl.u32 %v7560, 16
    %v7659 = vrot.slane %v7657, 4
    %v7660 = vshll.u32 %v7560, 16
    %v7662 = vrot.slane %v7660, 5
    %v7663 = vor.u32 %v7659, %v7662
    %v7664 = vrot.slane %v7663, 4
    %v7666 = vshll.u32 %v7561, 16
    %v7668 = vrot.slane %v7666, 5
    %v7669 = vsel %vm790, %v7664, %v7668
    %v7670 = vshrl.u32 %v7561, 16
    %v7672 = vrot.slane %v7670, 4
    %v7673 = vor.u32 %v7672, %v7668
    %v7674 = vrot.slane %v7673, 4
    %v7676 = vshll.u32 %v7562, 16
    %v7678 = vrot.slane %v7676, 5
    %v7679 = vsel %vm790, %v7674, %v7678
    %v7681 = vshrl.u32 %v7563, 16
    %v7683 = vrot.slane %v7681, 4
    %v7684 = vshll.u32 %v7563, 16
    %v7686 = vrot.slane %v7684, 5
    %v7687 = vor.u32 %v7683, %v7686
    %v7688 = vrot.slane %v7687, 4
    %v7690 = vshll.u32 %v7564, 16
    %v7692 = vrot.slane %v7690, 5
    %v7693 = vsel %vm790, %v7688, %v7692
    %v7694 = vshrl.u32 %v7564, 16
    %v7696 = vrot.slane %v7694, 4
    %v7697 = vor.u32 %v7696, %v7692
    %v7698 = vrot.slane %v7697, 4
    %v7700 = vshll.u32 %v7565, 16
    %v7702 = vrot.slane %v7700, 5
    %v7703 = vsel %vm790, %v7698, %v7702
    %v7705 = vshrl.u32 %v7566, 16
    %v7707 = vrot.slane %v7705, 4
    %v7708 = vshll.u32 %v7566, 16
    %v7710 = vrot.slane %v7708, 5
    %v7711 = vor.u32 %v7707, %v7710
    %v7712 = vrot.slane %v7711, 4
    %v7714 = vshll.u32 %v7567, 16
    %v7716 = vrot.slane %v7714, 5
    %v7717 = vsel %vm790, %v7712, %v7716
    %v7718 = vshrl.u32 %v7567, 16
    %v7720 = vrot.slane %v7718, 4
    %v7721 = vor.u32 %v7720, %v7716
    %v7722 = vrot.slane %v7721, 4
    %v7724 = vshll.u32 %v7568, 16
    %v7726 = vrot.slane %v7724, 5
    %v7727 = vsel %vm790, %v7722, %v7726
    %v7729 = vshrl.u32 %v7569, 16
    %v7731 = vrot.slane %v7729, 4
    %v7732 = vshll.u32 %v7569, 16
    %v7734 = vrot.slane %v7732, 5
    %v7735 = vor.u32 %v7731, %v7734
    %v7736 = vrot.slane %v7735, 4
    %v7738 = vshll.u32 %v7570, 16
    %v7740 = vrot.slane %v7738, 5
    %v7741 = vsel %vm790, %v7736, %v7740
    %v7742 = vshrl.u32 %v7570, 16
    %v7744 = vrot.slane %v7742, 4
    %v7745 = vor.u32 %v7744, %v7740
    %v7746 = vrot.slane %v7745, 4
    %v7748 = vshll.u32 %v7571, 16
    %v7750 = vrot.slane %v7748, 5
    %v7751 = vsel %vm790, %v7746, %v7750
    %v7753 = vshrl.u32 %v7572, 16
    %v7755 = vrot.slane %v7753, 4
    %v7756 = vshll.u32 %v7572, 16
    %v7758 = vrot.slane %v7756, 5
    %v7759 = vor.u32 %v7755, %v7758
    %v7760 = vrot.slane %v7759, 4
    %v7762 = vshll.u32 %v7573, 16
    %v7764 = vrot.slane %v7762, 5
    %v7765 = vsel %vm790, %v7760, %v7764
    %v7766 = vshrl.u32 %v7573, 16
    %v7768 = vrot.slane %v7766, 4
    %v7769 = vor.u32 %v7768, %v7764
    %v7770 = vrot.slane %v7769, 4
    %v7772 = vshll.u32 %v7574, 16
    %v7774 = vrot.slane %v7772, 5
    %v7775 = vsel %vm790, %v7770, %v7774
    %v7777 = vshrl.u32 %v7575, 16
    %v7779 = vrot.slane %v7777, 4
    %v7780 = vshll.u32 %v7575, 16
    %v7782 = vrot.slane %v7780, 5
    %v7783 = vor.u32 %v7779, %v7782
    %v7784 = vrot.slane %v7783, 4
    %v7786 = vshll.u32 %v7576, 16
    %v7788 = vrot.slane %v7786, 5
    %v7789 = vsel %vm790, %v7784, %v7788
    %v7790 = vshrl.u32 %v7576, 16
    %v7792 = vrot.slane %v7790, 4
    %v7793 = vor.u32 %v7792, %v7788
    %v7794 = vrot.slane %v7793, 4
    %v7796 = vshll.u32 %v7577, 16
    %v7798 = vrot.slane %v7796, 5
    %v7799 = vsel %vm790, %v7794, %v7798
    %v7801 = vshrl.u32 %v7578, 16
    %v7803 = vrot.slane %v7801, 4
    %v7804 = vshll.u32 %v7578, 16
    %v7806 = vrot.slane %v7804, 5
    %v7807 = vor.u32 %v7803, %v7806
    %v7808 = vrot.slane %v7807, 4
    %v7810 = vshll.u32 %v7579, 16
    %v7812 = vrot.slane %v7810, 5
    %v7813 = vsel %vm790, %v7808, %v7812
    %v7814 = vshrl.u32 %v7579, 16
    %v7816 = vrot.slane %v7814, 4
    %v7817 = vor.u32 %v7816, %v7812
    %v7818 = vrot.slane %v7817, 4
    %v7820 = vshll.u32 %v7580, 16
    %v7822 = vrot.slane %v7820, 5
    %v7823 = vsel %vm790, %v7818, %v7822
    %v7825 = vshrl.u32 %v7581, 16
    %v7827 = vrot.slane %v7825, 4
    %v7828 = vshll.u32 %v7581, 16
    %v7830 = vrot.slane %v7828, 5
    %v7831 = vor.u32 %v7827, %v7830
    %v7832 = vrot.slane %v7831, 4
    %v7834 = vshll.u32 %v7582, 16
    %v7836 = vrot.slane %v7834, 5
    %v7837 = vsel %vm790, %v7832, %v7836
    %v7838 = vshrl.u32 %v7582, 16
    %v7840 = vrot.slane %v7838, 4
    %v7841 = vor.u32 %v7840, %v7836
    %v7842 = vrot.slane %v7841, 4
    %v7844 = vshll.u32 %v7583, 16
    %v7846 = vrot.slane %v7844, 5
    %v7847 = vsel %vm790, %v7842, %v7846
    %v7849 = vshrl.u32 %v7584, 16
    %v7851 = vrot.slane %v7849, 4
    %v7852 = vshll.u32 %v7584, 16
    %v7854 = vrot.slane %v7852, 5
    %v7855 = vor.u32 %v7851, %v7854
    %v7856 = vrot.slane %v7855, 4
    %v7858 = vshll.u32 %v7585, 16
    %v7860 = vrot.slane %v7858, 5
    %v7861 = vsel %vm790, %v7856, %v7860
    %v7862 = vshrl.u32 %v7585, 16
    %v7864 = vrot.slane %v7862, 4
    %v7865 = vor.u32 %v7864, %v7860
    %v7866 = vrot.slane %v7865, 4
    %v7868 = vshll.u32 %v7586, 16
    %v7870 = vrot.slane %v7868, 5
    %v7871 = vsel %vm790, %v7866, %v7870
    %v7873 = vshrl.u32 %v7587, 16
    %v7875 = vrot.slane %v7873, 4
    %v7876 = vshll.u32 %v7587, 16
    %v7878 = vrot.slane %v7876, 5
    %v7879 = vor.u32 %v7875, %v7878
    %v7880 = vrot.slane %v7879, 4
    %v7882 = vshll.u32 %v7588, 16
    %v7884 = vrot.slane %v7882, 5
    %v7885 = vsel %vm790, %v7880, %v7884
    %v7886 = vshrl.u32 %v7588, 16
    %v7888 = vrot.slane %v7886, 4
    %v7889 = vor.u32 %v7888, %v7884
    %v7890 = vrot.slane %v7889, 4
    %v7892 = vshll.u32 %v7589, 16
    %v7894 = vrot.slane %v7892, 5
    %v7895 = vsel %vm790, %v7890, %v7894
    %v7897 = vshrl.u32 %v7590, 16
    %v7899 = vrot.slane %v7897, 4
    %v7900 = vshll.u32 %v7590, 16
    %v7902 = vrot.slane %v7900, 5
    %v7903 = vor.u32 %v7899, %v7902
    %v7904 = vrot.slane %v7903, 4
    %v7906 = vshll.u32 %v7591, 16
    %v7908 = vrot.slane %v7906, 5
    %v7909 = vsel %vm790, %v7904, %v7908
    %v7910 = vshrl.u32 %v7591, 16
    %v7912 = vrot.slane %v7910, 4
    %v7913 = vor.u32 %v7912, %v7908
    %v7914 = vrot.slane %v7913, 4
    %v7916 = vshll.u32 %v7592, 16
    %v7918 = vrot.slane %v7916, 5
    %v7919 = vsel %vm790, %v7914, %v7918
    %v7921 = vshrl.u32 %v7593, 16
    %v7923 = vrot.slane %v7921, 4
    %v7924 = vshll.u32 %v7593, 16
    %v7926 = vrot.slane %v7924, 5
    %v7927 = vor.u32 %v7923, %v7926
    %v7928 = vrot.slane %v7927, 4
    %v7930 = vshll.u32 %v7594, 16
    %v7932 = vrot.slane %v7930, 5
    %v7933 = vsel %vm790, %v7928, %v7932
    %v7934 = vshrl.u32 %v7594, 16
    %v7936 = vrot.slane %v7934, 4
    %v7937 = vor.u32 %v7936, %v7932
    %v7938 = vrot.slane %v7937, 4
    %v7940 = vshll.u32 %v7595, 16
    %v7942 = vrot.slane %v7940, 5
    %v7943 = vsel %vm790, %v7938, %v7942
    %v7945 = vshrl.u32 %v7596, 16
    %v7947 = vrot.slane %v7945, 4
    %v7948 = vshll.u32 %v7596, 16
    %v7950 = vrot.slane %v7948, 5
    %v7951 = vor.u32 %v7947, %v7950
    %v7952 = vrot.slane %v7951, 4
    %v7954 = vshll.u32 %v7597, 16
    %v7956 = vrot.slane %v7954, 5
    %v7957 = vsel %vm790, %v7952, %v7956
    %v7958 = vshrl.u32 %v7597, 16
    %v7960 = vrot.slane %v7958, 4
    %v7961 = vor.u32 %v7960, %v7956
    %v7962 = vrot.slane %v7961, 4
    %v7964 = vshll.u32 %v7598, 16
    %v7966 = vrot.slane %v7964, 5
    %v7967 = vsel %vm790, %v7962, %v7966
    %v7969 = vshrl.u32 %v7599, 16
    %v7971 = vrot.slane %v7969, 4
    %v7972 = vshll.u32 %v7599, 16
    %v7974 = vrot.slane %v7972, 5
    %v7975 = vor.u32 %v7971, %v7974
    %v7976 = vrot.slane %v7975, 4
    %v7978 = vshll.u32 %v7600, 16
    %v7980 = vrot.slane %v7978, 5
    %v7981 = vsel %vm790, %v7976, %v7980
    %v7982 = vshrl.u32 %v7600, 16
    %v7984 = vrot.slane %v7982, 4
    %v7985 = vor.u32 %v7984, %v7980
    %v7986 = vrot.slane %v7985, 4
    %v7988 = vshll.u32 %v7601, 16
    %v7990 = vrot.slane %v7988, 5
    %v7991 = vsel %vm790, %v7986, %v7990
    %v7993 = vshrl.u32 %v7602, 16
    %v7995 = vrot.slane %v7993, 4
    %v7996 = vshll.u32 %v7602, 16
    %v7998 = vrot.slane %v7996, 5
    %v7999 = vor.u32 %v7995, %v7998
    %v8000 = vrot.slane %v7999, 4
    %v8002 = vshll.u32 %v7603, 16
    %v8004 = vrot.slane %v8002, 5
    %v8005 = vsel %vm790, %v8000, %v8004
    %v8006 = vshrl.u32 %v7603, 16
    %v8008 = vrot.slane %v8006, 4
    %v8009 = vor.u32 %v8008, %v8004
    %v8010 = vrot.slane %v8009, 4
    %v8012 = vshll.u32 %v7604, 16
    %v8014 = vrot.slane %v8012, 5
    %v8015 = vsel %vm790, %v8010, %v8014
    %v8017 = vshrl.u32 %v7605, 16
    %v8019 = vrot.slane %v8017, 4
    %v8020 = vshll.u32 %v7605, 16
    %v8022 = vrot.slane %v8020, 5
    %v8023 = vor.u32 %v8019, %v8022
    %v8024 = vrot.slane %v8023, 4
    %v8026 = vshll.u32 %v7606, 16
    %v8028 = vrot.slane %v8026, 5
    %v8029 = vsel %vm790, %v8024, %v8028
    %v8030 = vshrl.u32 %v7606, 16
    %v8032 = vrot.slane %v8030, 4
    %v8033 = vor.u32 %v8032, %v8028
    %v8034 = vrot.slane %v8033, 4
    %v8036 = vshll.u32 %v7607, 16
    %v8038 = vrot.slane %v8036, 5
    %v8039 = vsel %vm790, %v8034, %v8038
    %v8041 = vshrl.u32 %v7608, 16
    %v8043 = vrot.slane %v8041, 4
    %v8044 = vshll.u32 %v7608, 16
    %v8046 = vrot.slane %v8044, 5
    %v8047 = vor.u32 %v8043, %v8046
    %v8048 = vrot.slane %v8047, 4
    %v8050 = vshll.u32 %v7609, 16
    %v8052 = vrot.slane %v8050, 5
    %v8053 = vsel %vm790, %v8048, %v8052
    %v8054 = vshrl.u32 %v7609, 16
    %v8056 = vrot.slane %v8054, 4
    %v8057 = vor.u32 %v8056, %v8052
    %v8058 = vrot.slane %v8057, 4
    %v8060 = vshll.u32 %v7610, 16
    %v8062 = vrot.slane %v8060, 5
    %v8063 = vsel %vm790, %v8058, %v8062
    %v8065 = vshrl.u32 %v7611, 16
    %v8067 = vrot.slane %v8065, 4
    %v8068 = vshll.u32 %v7611, 16
    %v8070 = vrot.slane %v8068, 5
    %v8071 = vor.u32 %v8067, %v8070
    %v8072 = vrot.slane %v8071, 4
    %v8074 = vshll.u32 %v7612, 16
    %v8076 = vrot.slane %v8074, 5
    %v8077 = vsel %vm790, %v8072, %v8076
    %v8078 = vshrl.u32 %v7612, 16
    %v8080 = vrot.slane %v8078, 4
    %v8081 = vor.u32 %v8080, %v8076
    %v8082 = vrot.slane %v8081, 4
    %v8084 = vshll.u32 %v7613, 16
    %v8086 = vrot.slane %v8084, 5
    %v8087 = vsel %vm790, %v8082, %v8086
    %v8089 = vshrl.u32 %v7614, 16
    %v8091 = vrot.slane %v8089, 4
    %v8092 = vshll.u32 %v7614, 16
    %v8094 = vrot.slane %v8092, 5
    %v8095 = vor.u32 %v8091, %v8094
    %v8096 = vrot.slane %v8095, 4
    %v8098 = vshll.u32 %v7615, 16
    %v8100 = vrot.slane %v8098, 5
    %v8101 = vsel %vm790, %v8096, %v8100
    %v8102 = vshrl.u32 %v7615, 16
    %v8104 = vrot.slane %v8102, 4
    %v8105 = vor.u32 %v8104, %v8100
    %v8106 = vrot.slane %v8105, 4
    %v8108 = vshll.u32 %v7616, 16
    %v8110 = vrot.slane %v8108, 5
    %v8111 = vsel %vm790, %v8106, %v8110
    %v8113 = vshrl.u32 %v7617, 16
    %v8115 = vrot.slane %v8113, 4
    %v8116 = vshll.u32 %v7617, 16
    %v8118 = vrot.slane %v8116, 5
    %v8119 = vor.u32 %v8115, %v8118
    %v8120 = vrot.slane %v8119, 4
    %v8122 = vshll.u32 %v7618, 16
    %v8124 = vrot.slane %v8122, 5
    %v8125 = vsel %vm790, %v8120, %v8124
    %v8126 = vshrl.u32 %v7618, 16
    %v8128 = vrot.slane %v8126, 4
    %v8129 = vor.u32 %v8128, %v8124
    %v8130 = vrot.slane %v8129, 4
    %v8132 = vshll.u32 %v7619, 16
    %v8134 = vrot.slane %v8132, 5
    %v8135 = vsel %vm790, %v8130, %v8134
    %v8137 = vshrl.u32 %v7620, 16
    %v8139 = vrot.slane %v8137, 4
    %v8140 = vshll.u32 %v7620, 16
    %v8142 = vrot.slane %v8140, 5
    %v8143 = vor.u32 %v8139, %v8142
    %v8144 = vrot.slane %v8143, 4
    %v8146 = vshll.u32 %v7621, 16
    %v8148 = vrot.slane %v8146, 5
    %v8149 = vsel %vm790, %v8144, %v8148
    %v8150 = vshrl.u32 %v7621, 16
    %v8152 = vrot.slane %v8150, 4
    %v8153 = vor.u32 %v8152, %v8148
    %v8154 = vrot.slane %v8153, 4
    %v8156 = vshll.u32 %v7622, 16
    %v8158 = vrot.slane %v8156, 5
    %v8159 = vsel %vm790, %v8154, %v8158
    %v8161 = vshrl.u32 %v7623, 16
    %v8163 = vrot.slane %v8161, 4
    %v8164 = vshll.u32 %v7623, 16
    %v8166 = vrot.slane %v8164, 5
    %v8167 = vor.u32 %v8163, %v8166
    %v8168 = vrot.slane %v8167, 4
    %v8170 = vshll.u32 %v7624, 16
    %v8172 = vrot.slane %v8170, 5
    %v8173 = vsel %vm790, %v8168, %v8172
    %v8174 = vshrl.u32 %v7624, 16
    %v8176 = vrot.slane %v8174, 4
    %v8177 = vor.u32 %v8176, %v8172
    %v8178 = vrot.slane %v8177, 4
    %v8180 = vshll.u32 %v7625, 16
    %v8182 = vrot.slane %v8180, 5
    %v8183 = vsel %vm790, %v8178, %v8182
    %v8185 = vshrl.u32 %v7626, 16
    %v8187 = vrot.slane %v8185, 4
    %v8188 = vshll.u32 %v7626, 16
    %v8190 = vrot.slane %v8188, 5
    %v8191 = vor.u32 %v8187, %v8190
    %v8192 = vrot.slane %v8191, 4
    %v8194 = vshll.u32 %v7627, 16
    %v8196 = vrot.slane %v8194, 5
    %v8197 = vsel %vm790, %v8192, %v8196
    %v8198 = vshrl.u32 %v7627, 16
    %v8200 = vrot.slane %v8198, 4
    %v8201 = vor.u32 %v8200, %v8196
    %v8202 = vrot.slane %v8201, 4
    %v8204 = vshll.u32 %v7628, 16
    %v8206 = vrot.slane %v8204, 5
    %v8207 = vsel %vm790, %v8202, %v8206
    %v8209 = vshrl.u32 %v7629, 16
    %v8211 = vrot.slane %v8209, 4
    %v8212 = vshll.u32 %v7629, 16
    %v8214 = vrot.slane %v8212, 5
    %v8215 = vor.u32 %v8211, %v8214
    %v8216 = vrot.slane %v8215, 4
    %v8218 = vshll.u32 %v7630, 16
    %v8220 = vrot.slane %v8218, 5
    %v8221 = vsel %vm790, %v8216, %v8220
    %v8222 = vshrl.u32 %v7630, 16
    %v8224 = vrot.slane %v8222, 4
    %v8225 = vor.u32 %v8224, %v8220
    %v8226 = vrot.slane %v8225, 4
    %v8228 = vshll.u32 %v7631, 16
    %v8230 = vrot.slane %v8228, 5
    %v8231 = vsel %vm790, %v8226, %v8230
    %v8233 = vshrl.u32 %v7632, 16
    %v8235 = vrot.slane %v8233, 4
    %v8236 = vshll.u32 %v7632, 16
    %v8238 = vrot.slane %v8236, 5
    %v8239 = vor.u32 %v8235, %v8238
    %v8240 = vrot.slane %v8239, 4
    %v8242 = vshll.u32 %v7633, 16
    %v8244 = vrot.slane %v8242, 5
    %v8245 = vsel %vm790, %v8240, %v8244
    %v8246 = vshrl.u32 %v7633, 16
    %v8248 = vrot.slane %v8246, 4
    %v8249 = vor.u32 %v8248, %v8244
    %v8250 = vrot.slane %v8249, 4
    %v8252 = vshll.u32 %v7634, 16
    %v8254 = vrot.slane %v8252, 5
    %v8255 = vsel %vm790, %v8250, %v8254
    %v8257 = vshrl.u32 %v7635, 16
    %v8259 = vrot.slane %v8257, 4
    %v8260 = vshll.u32 %v7635, 16
    %v8262 = vrot.slane %v8260, 5
    %v8263 = vor.u32 %v8259, %v8262
    %v8264 = vrot.slane %v8263, 4
    %v8266 = vshll.u32 %v7636, 16
    %v8268 = vrot.slane %v8266, 5
    %v8269 = vsel %vm790, %v8264, %v8268
    %v8270 = vshrl.u32 %v7636, 16
    %v8272 = vrot.slane %v8270, 4
    %v8273 = vor.u32 %v8272, %v8268
    %v8274 = vrot.slane %v8273, 4
    %v8276 = vshll.u32 %v7637, 16
    %v8278 = vrot.slane %v8276, 5
    %v8279 = vsel %vm790, %v8274, %v8278
    %v8281 = vshrl.u32 %v7638, 16
    %v8283 = vrot.slane %v8281, 4
    %v8284 = vshll.u32 %v7638, 16
    %v8286 = vrot.slane %v8284, 5
    %v8287 = vor.u32 %v8283, %v8286
    %v8288 = vrot.slane %v8287, 4
    %v8290 = vshll.u32 %v7639, 16
    %v8292 = vrot.slane %v8290, 5
    %v8293 = vsel %vm790, %v8288, %v8292
    %v8294 = vshrl.u32 %v7639, 16
    %v8296 = vrot.slane %v8294, 4
    %v8297 = vor.u32 %v8296, %v8292
    %v8298 = vrot.slane %v8297, 4
    %v8300 = vshll.u32 %v7640, 16
    %v8302 = vrot.slane %v8300, 5
    %v8303 = vsel %vm790, %v8298, %v8302
    %v8305 = vshrl.u32 %v7641, 16
    %v8307 = vrot.slane %v8305, 4
    %v8308 = vshll.u32 %v7641, 16
    %v8310 = vrot.slane %v8308, 5
    %v8311 = vor.u32 %v8307, %v8310
    %v8312 = vrot.slane %v8311, 4
    %v8314 = vshll.u32 %v7642, 16
    %v8316 = vrot.slane %v8314, 5
    %v8317 = vsel %vm790, %v8312, %v8316
    %v8318 = vshrl.u32 %v7642, 16
    %v8320 = vrot.slane %v8318, 4
    %v8321 = vor.u32 %v8320, %v8316
    %v8322 = vrot.slane %v8321, 4
    %v8324 = vshll.u32 %v7643, 16
    %v8326 = vrot.slane %v8324, 5
    %v8327 = vsel %vm790, %v8322, %v8326
    %v8329 = vshrl.u32 %v7644, 16
    %v8331 = vrot.slane %v8329, 4
    %v8332 = vshll.u32 %v7644, 16
    %v8334 = vrot.slane %v8332, 5
    %v8335 = vor.u32 %v8331, %v8334
    %v8336 = vrot.slane %v8335, 4
    %v8338 = vshll.u32 %v7645, 16
    %v8340 = vrot.slane %v8338, 5
    %v8341 = vsel %vm790, %v8336, %v8340
    %v8342 = vshrl.u32 %v7645, 16
    %v8344 = vrot.slane %v8342, 4
    %v8345 = vor.u32 %v8344, %v8340
    %v8346 = vrot.slane %v8345, 4
    %v8348 = vshll.u32 %v7646, 16
    %v8350 = vrot.slane %v8348, 5
    %v8351 = vsel %vm790, %v8346, %v8350
    %v8353 = vshrl.u32 %v7647, 16
    %v8355 = vrot.slane %v8353, 4
    %v8356 = vshll.u32 %v7647, 16
    %v8358 = vrot.slane %v8356, 5
    %v8359 = vor.u32 %v8355, %v8358
    %v8360 = vrot.slane %v8359, 4
    %v8362 = vshll.u32 %v7648, 16
    %v8364 = vrot.slane %v8362, 5
    %v8365 = vsel %vm790, %v8360, %v8364
    %v8366 = vshrl.u32 %v7648, 16
    %v8368 = vrot.slane %v8366, 4
    %v8369 = vor.u32 %v8368, %v8364
    %v8370 = vrot.slane %v8369, 4
    %v8372 = vshll.u32 %v7649, 16
    %v8374 = vrot.slane %v8372, 5
    %v8375 = vsel %vm790, %v8370, %v8374
    %v8377 = vshrl.u32 %v7650, 16
    %v8379 = vrot.slane %v8377, 4
    %v8380 = vshll.u32 %v7650, 16
    %v8382 = vrot.slane %v8380, 5
    %v8383 = vor.u32 %v8379, %v8382
    %v8384 = vrot.slane %v8383, 4
    %v8386 = vshll.u32 %v7651, 16
    %v8388 = vrot.slane %v8386, 5
    %v8389 = vsel %vm790, %v8384, %v8388
    %v8390 = vshrl.u32 %v7651, 16
    %v8392 = vrot.slane %v8390, 4
    %v8393 = vor.u32 %v8392, %v8388
    %v8394 = vrot.slane %v8393, 4
    %v8396 = vshll.u32 %v7652, 16
    %v8398 = vrot.slane %v8396, 5
    %v8399 = vsel %vm790, %v8394, %v8398
    %v8401 = vshrl.u32 %v7653, 16
    %v8403 = vrot.slane %v8401, 4
    %v8404 = vshll.u32 %v7653, 16
    %v8406 = vrot.slane %v8404, 5
    %v8407 = vor.u32 %v8403, %v8406
    %v8408 = vrot.slane %v8407, 4
    %v8410 = vshll.u32 %v7654, 16
    %v8412 = vrot.slane %v8410, 5
    %v8413 = vsel %vm790, %v8408, %v8412
    %v8414 = vshrl.u32 %v7654, 16
    %v8416 = vrot.slane %v8414, 4
    %v8417 = vor.u32 %v8416, %v8412
    %v8418 = vrot.slane %v8417, 4
    %v8420 = vshll.u32 %v7655, 16
    %v8422 = vrot.slane %v8420, 5
    %v8423 = vsel %vm790, %v8418, %v8422
    %s8424 = scalar_lea.vmem %s2, 448
    %v8425 = vld [vmem:[%s8424] sm:$0xf]
    %v8426 = vld [vmem:[%s8424 + $0x4] sm:$0xf]
    %v8427 = vld [vmem:[%s8424 + $0x8] sm:$0xf]
    %v8428 = vld [vmem:[%s8424 + $0xc] sm:$0xf]
    %v8429 = vld [vmem:[%s8424 + $0x10] sm:$0xf]
    %v8430 = vld [vmem:[%s8424 + $0x14] sm:$0xf]
    %v8431 = vld [vmem:[%s8424 + $0x18] sm:$0xf]
    %v8432 = vld [vmem:[%s8424 + $0x1c] sm:$0xf]
    %v8433 = vld [vmem:[%s8424 + $0x20] sm:$0xf]
    %v8434 = vld [vmem:[%s8424 + $0x24] sm:$0xf]
    %v8435 = vld [vmem:[%s8424 + $0x28] sm:$0xf]
    %v8436 = vld [vmem:[%s8424 + $0x2c] sm:$0xf]
    %v8437 = vld [vmem:[%s8424 + $0x30] sm:$0xf]
    %v8438 = vld [vmem:[%s8424 + $0x34] sm:$0xf]
    %v8439 = vld [vmem:[%s8424 + $0x38] sm:$0xf]
    %v8440 = vld [vmem:[%s8424 + $0x3c] sm:$0xf]
    %v8441 = vunpack.c.l.b16 %v7669
    %v8442 = vunpack.c.l.b16 %v7679
    %v8443 = vunpack.c.l.b16 %v7693
    %v8444 = vunpack.c.l.b16 %v7703
    %v8445 = vunpack.c.l.b16 %v7717
    %v8446 = vunpack.c.l.b16 %v7727
    %v8447 = vunpack.c.l.b16 %v7741
    %v8448 = vunpack.c.l.b16 %v7751
    %v8449 = vunpack.c.l.b16 %v7765
    %v8450 = vunpack.c.l.b16 %v7775
    %v8451 = vunpack.c.l.b16 %v7789
    %v8452 = vunpack.c.l.b16 %v7799
    %v8453 = vunpack.c.l.b16 %v7813
    %v8454 = vunpack.c.l.b16 %v7823
    %v8455 = vunpack.c.l.b16 %v7837
    %v8456 = vunpack.c.l.b16 %v7847
    %v8457 = vunpack.c.l.b16 %v7861
    %v8458 = vunpack.c.l.b16 %v7871
    %v8459 = vunpack.c.l.b16 %v7885
    %v8460 = vunpack.c.l.b16 %v7895
    %v8461 = vunpack.c.l.b16 %v7909
    %v8462 = vunpack.c.l.b16 %v7919
    %v8463 = vunpack.c.l.b16 %v7933
    %v8464 = vunpack.c.l.b16 %v7943
    %v8465 = vunpack.c.l.b16 %v7957
    %v8466 = vunpack.c.l.b16 %v7967
    %v8467 = vunpack.c.l.b16 %v7981
    %v8468 = vunpack.c.l.b16 %v7991
    %v8469 = vunpack.c.l.b16 %v8005
    %v8470 = vunpack.c.l.b16 %v8015
    %v8471 = vunpack.c.l.b16 %v8029
    %v8472 = vunpack.c.l.b16 %v8039
    %v8473 = vunpack.c.l.b16 %v8053
    %v8474 = vunpack.c.l.b16 %v8063
    %v8475 = vunpack.c.l.b16 %v8077
    %v8476 = vunpack.c.l.b16 %v8087
    %v8477 = vunpack.c.l.b16 %v8101
    %v8478 = vunpack.c.l.b16 %v8111
    %v8479 = vunpack.c.l.b16 %v8125
    %v8480 = vunpack.c.l.b16 %v8135
    %v8481 = vunpack.c.l.b16 %v8149
    %v8482 = vunpack.c.l.b16 %v8159
    %v8483 = vunpack.c.l.b16 %v8173
    %v8484 = vunpack.c.l.b16 %v8183
    %v8485 = vunpack.c.l.b16 %v8197
    %v8486 = vunpack.c.l.b16 %v8207
    %v8487 = vunpack.c.l.b16 %v8221
    %v8488 = vunpack.c.l.b16 %v8231
    %v8489 = vunpack.c.l.b16 %v8245
    %v8490 = vunpack.c.l.b16 %v8255
    %v8491 = vunpack.c.l.b16 %v8269
    %v8492 = vunpack.c.l.b16 %v8279
    %v8493 = vunpack.c.l.b16 %v8293
    %v8494 = vunpack.c.l.b16 %v8303
    %v8495 = vunpack.c.l.b16 %v8317
    %v8496 = vunpack.c.l.b16 %v8327
    %v8497 = vunpack.c.l.b16 %v8341
    %v8498 = vunpack.c.l.b16 %v8351
    %v8499 = vunpack.c.l.b16 %v8365
    %v8500 = vunpack.c.l.b16 %v8375
    %v8501 = vunpack.c.l.b16 %v8389
    %v8502 = vunpack.c.l.b16 %v8399
    %v8503 = vunpack.c.l.b16 %v8413
    %v8504 = vunpack.c.l.b16 %v8423
    %v8505 = vpack.c.b16 %v8442, %v8441
    %v8506 = vpack.c.b16 %v8444, %v8443
    %v8507 = vpack.c.b16 %v8446, %v8445
    %v8508 = vpack.c.b16 %v8448, %v8447
    %v8509 = vpack.c.b16 %v8450, %v8449
    %v8510 = vpack.c.b16 %v8452, %v8451
    %v8511 = vpack.c.b16 %v8454, %v8453
    %v8512 = vpack.c.b16 %v8456, %v8455
    %v8513 = vpack.c.b16 %v8458, %v8457
    %v8514 = vpack.c.b16 %v8460, %v8459
    %v8515 = vpack.c.b16 %v8462, %v8461
    %v8516 = vpack.c.b16 %v8464, %v8463
    %v8517 = vpack.c.b16 %v8466, %v8465
    %v8518 = vpack.c.b16 %v8468, %v8467
    %v8519 = vpack.c.b16 %v8470, %v8469
    %v8520 = vpack.c.b16 %v8472, %v8471
    %v8521 = vpack.c.b16 %v8474, %v8473
    %v8522 = vpack.c.b16 %v8476, %v8475
    %v8523 = vpack.c.b16 %v8478, %v8477
    %v8524 = vpack.c.b16 %v8480, %v8479
    %v8525 = vpack.c.b16 %v8482, %v8481
    %v8526 = vpack.c.b16 %v8484, %v8483
    %v8527 = vpack.c.b16 %v8486, %v8485
    %v8528 = vpack.c.b16 %v8488, %v8487
    %v8529 = vpack.c.b16 %v8490, %v8489
    %v8530 = vpack.c.b16 %v8492, %v8491
    %v8531 = vpack.c.b16 %v8494, %v8493
    %v8532 = vpack.c.b16 %v8496, %v8495
    %v8533 = vpack.c.b16 %v8498, %v8497
    %v8534 = vpack.c.b16 %v8500, %v8499
    %v8535 = vpack.c.b16 %v8502, %v8501
    %v8536 = vpack.c.b16 %v8504, %v8503
    %v8585 = vunpack.c.l.b16 %v8425
    %v8586 = vunpack.c.l.b16 %v8426
    %v8587 = vunpack.c.l.b16 %v8427
    %v8588 = vunpack.c.l.b16 %v8428
    %v8589 = vunpack.c.l.b16 %v8429
    %v8590 = vunpack.c.l.b16 %v8430
    %v8591 = vunpack.c.l.b16 %v8431
    %v8592 = vunpack.c.l.b16 %v8432
    %v8593 = vunpack.c.l.b16 %v8433
    %v8594 = vunpack.c.l.b16 %v8434
    %v8595 = vunpack.c.l.b16 %v8435
    %v8596 = vunpack.c.l.b16 %v8436
    %v8597 = vunpack.c.l.b16 %v8437
    %v8598 = vunpack.c.l.b16 %v8438
    %v8599 = vunpack.c.l.b16 %v8439
    %v8600 = vunpack.c.l.b16 %v8440
    %v8601 = vpack.c.b16 %v8586, %v8585
    %v8602 = vpack.c.b16 %v8588, %v8587
    %v8603 = vpack.c.b16 %v8590, %v8589
    %v8604 = vpack.c.b16 %v8592, %v8591
    %v8605 = vpack.c.b16 %v8594, %v8593
    %v8606 = vpack.c.b16 %v8596, %v8595
    %v8607 = vpack.c.b16 %v8598, %v8597
    %v8608 = vpack.c.b16 %v8600, %v8599
    %8617 = vmatprep.subr.bf16.mxu0 0
    %8618 = vmatpush1.bf16.msra.mxu0 %v8608
    %8619 = vmatprep.subr.bf16.mxu0 0
    %8620 = vmatpush1.bf16.msra.mxu0 %v8607
    %8621 = vmatprep.subr.bf16.mxu0 0
    %8622 = vmatpush1.bf16.msra.mxu0 %v8606
    %8623 = vmatprep.subr.bf16.mxu0 0
    %8624 = vmatpush1.bf16.msra.mxu0 %v8605
    %8625 = vmatprep.subr.bf16.mxu0 0
    %8626 = vmatpush1.bf16.msra.mxu0 %v8604
    %8627 = vmatprep.subr.bf16.mxu0 0
    %8628 = vmatpush1.bf16.msra.mxu0 %v8603
    %8629 = vmatprep.subr.bf16.mxu0 0
    %8630 = vmatpush1.bf16.msra.mxu0 %v8602
    %8631 = vmatprep.subr.bf16.mxu0 0
    %8632 = vmatpush1.bf16.msra.mxu0 %v8601
    %8633 = vmatprep.subr.bf16.mxu0 0
    %8634 = vmatpush2.bf16.msra.mxu0 0
    %8635 = vmatprep.subr.bf16.mxu0 0
    %8636 = vmatpush2.bf16.msra.mxu0 0
    %8637 = vmatprep.subr.bf16.mxu0 0
    %8638 = vmatpush2.bf16.msra.mxu0 0
    %8639 = vmatprep.subr.bf16.mxu0 0
    %8640 = vmatpush2.bf16.msra.mxu0 0
    %8641 = vmatprep.subr.bf16.mxu0 0
    %8642 = vmatpush2.bf16.msra.mxu0 0
    %8643 = vmatprep.subr.bf16.mxu0 0
    %8644 = vmatpush2.bf16.msra.mxu0 0
    %8645 = vmatprep.subr.bf16.mxu0 0
    %8646 = vmatpush2.bf16.msra.mxu0 0
    %8647 = vmatprep.subr.bf16.mxu0 0
    %8648 = vmatpush2.bf16.msra.mxu0 0
    %8649 = vmatprep.mubr.bf16.mxu0 0
    %8650 = vmatmul.mubr.bf16.gmra.mxu0 %v8505
    %v8651 = vpop.f32.mrf.mxu0
    %v8652 = vadd.f32 0.0, %v8651
    %v8653 = vpop.f32.mrf.mxu0
    %v8654 = vpop.f32.mrf.mxu0
    %v8655 = vadd.f32 0.0, %v8654
    %v8656 = vpop.f32.mrf.mxu0
    %8657 = vmatprep.mubr.bf16.mxu0 0
    %8658 = vmatmul.mubr.bf16.gmra.mxu0 %v8506
    %v8659 = vpop.f32.mrf.mxu0
    %v8660 = vadd.f32 0.0, %v8659
    %v8661 = vpop.f32.mrf.mxu0
    %v8662 = vpop.f32.mrf.mxu0
    %v8663 = vadd.f32 0.0, %v8662
    %v8664 = vpop.f32.mrf.mxu0
    %8665 = vmatprep.mubr.bf16.mxu0 0
    %8666 = vmatmul.mubr.bf16.gmra.mxu0 %v8507
    %v8667 = vpop.f32.mrf.mxu0
    %v8668 = vadd.f32 0.0, %v8667
    %v8669 = vpop.f32.mrf.mxu0
    %v8670 = vpop.f32.mrf.mxu0
    %v8671 = vadd.f32 0.0, %v8670
    %v8672 = vpop.f32.mrf.mxu0
    %8673 = vmatprep.mubr.bf16.mxu0 0
    %8674 = vmatmul.mubr.bf16.gmra.mxu0 %v8508
    %v8675 = vpop.f32.mrf.mxu0
    %v8676 = vadd.f32 0.0, %v8675
    %v8677 = vpop.f32.mrf.mxu0
    %v8678 = vpop.f32.mrf.mxu0
    %v8679 = vadd.f32 0.0, %v8678
    %v8680 = vpop.f32.mrf.mxu0
    %8681 = vmatprep.mubr.bf16.mxu0 0
    %8682 = vmatmul.mubr.bf16.gmra.mxu0 %v8509
    %v8683 = vpop.f32.mrf.mxu0
    %v8684 = vadd.f32 0.0, %v8683
    %v8685 = vpop.f32.mrf.mxu0
    %v8686 = vpop.f32.mrf.mxu0
    %v8687 = vadd.f32 0.0, %v8686
    %v8688 = vpop.f32.mrf.mxu0
    %8689 = vmatprep.mubr.bf16.mxu0 0
    %8690 = vmatmul.mubr.bf16.gmra.mxu0 %v8510
    %v8691 = vpop.f32.mrf.mxu0
    %v8692 = vadd.f32 0.0, %v8691
    %v8693 = vpop.f32.mrf.mxu0
    %v8694 = vpop.f32.mrf.mxu0
    %v8695 = vadd.f32 0.0, %v8694
    %v8696 = vpop.f32.mrf.mxu0
    %8697 = vmatprep.mubr.bf16.mxu0 0
    %8698 = vmatmul.mubr.bf16.gmra.mxu0 %v8511
    %v8699 = vpop.f32.mrf.mxu0
    %v8700 = vadd.f32 0.0, %v8699
    %v8701 = vpop.f32.mrf.mxu0
    %v8702 = vpop.f32.mrf.mxu0
    %v8703 = vadd.f32 0.0, %v8702
    %v8704 = vpop.f32.mrf.mxu0
    %8705 = vmatprep.mubr.bf16.mxu0 0
    %8706 = vmatmul.mubr.bf16.gmra.mxu0 %v8512
    %v8707 = vpop.f32.mrf.mxu0
    %v8708 = vadd.f32 0.0, %v8707
    %v8709 = vpop.f32.mrf.mxu0
    %v8710 = vpop.f32.mrf.mxu0
    %v8711 = vadd.f32 0.0, %v8710
    %v8712 = vpop.f32.mrf.mxu0
    %8713 = vmatprep.mubr.bf16.mxu0 0
    %8714 = vmatmul.mubr.bf16.gmra.mxu0 %v8513
    %v8715 = vpop.f32.mrf.mxu0
    %v8716 = vadd.f32 0.0, %v8715
    %v8717 = vpop.f32.mrf.mxu0
    %v8718 = vpop.f32.mrf.mxu0
    %v8719 = vadd.f32 0.0, %v8718
    %v8720 = vpop.f32.mrf.mxu0
    %8721 = vmatprep.mubr.bf16.mxu0 0
    %8722 = vmatmul.mubr.bf16.gmra.mxu0 %v8514
    %v8723 = vpop.f32.mrf.mxu0
    %v8724 = vadd.f32 0.0, %v8723
    %v8725 = vpop.f32.mrf.mxu0
    %v8726 = vpop.f32.mrf.mxu0
    %v8727 = vadd.f32 0.0, %v8726
    %v8728 = vpop.f32.mrf.mxu0
    %8729 = vmatprep.mubr.bf16.mxu0 0
    %8730 = vmatmul.mubr.bf16.gmra.mxu0 %v8515
    %v8731 = vpop.f32.mrf.mxu0
    %v8732 = vadd.f32 0.0, %v8731
    %v8733 = vpop.f32.mrf.mxu0
    %v8734 = vpop.f32.mrf.mxu0
    %v8735 = vadd.f32 0.0, %v8734
    %v8736 = vpop.f32.mrf.mxu0
    %8737 = vmatprep.mubr.bf16.mxu0 0
    %8738 = vmatmul.mubr.bf16.gmra.mxu0 %v8516
    %v8739 = vpop.f32.mrf.mxu0
    %v8740 = vadd.f32 0.0, %v8739
    %v8741 = vpop.f32.mrf.mxu0
    %v8742 = vpop.f32.mrf.mxu0
    %v8743 = vadd.f32 0.0, %v8742
    %v8744 = vpop.f32.mrf.mxu0
    %8745 = vmatprep.mubr.bf16.mxu0 0
    %8746 = vmatmul.mubr.bf16.gmra.mxu0 %v8517
    %v8747 = vpop.f32.mrf.mxu0
    %v8748 = vadd.f32 0.0, %v8747
    %v8749 = vpop.f32.mrf.mxu0
    %v8750 = vpop.f32.mrf.mxu0
    %v8751 = vadd.f32 0.0, %v8750
    %v8752 = vpop.f32.mrf.mxu0
    %8753 = vmatprep.mubr.bf16.mxu0 0
    %8754 = vmatmul.mubr.bf16.gmra.mxu0 %v8518
    %v8755 = vpop.f32.mrf.mxu0
    %v8756 = vadd.f32 0.0, %v8755
    %v8757 = vpop.f32.mrf.mxu0
    %v8758 = vpop.f32.mrf.mxu0
    %v8759 = vadd.f32 0.0, %v8758
    %v8760 = vpop.f32.mrf.mxu0
    %8761 = vmatprep.mubr.bf16.mxu0 0
    %8762 = vmatmul.mubr.bf16.gmra.mxu0 %v8519
    %v8763 = vpop.f32.mrf.mxu0
    %v8764 = vadd.f32 0.0, %v8763
    %v8765 = vpop.f32.mrf.mxu0
    %v8766 = vpop.f32.mrf.mxu0
    %v8767 = vadd.f32 0.0, %v8766
    %v8768 = vpop.f32.mrf.mxu0
    %8769 = vmatprep.mubr.bf16.mxu0 0
    %8770 = vmatmul.mubr.bf16.gmra.mxu0 %v8520
    %v8771 = vpop.f32.mrf.mxu0
    %v8772 = vadd.f32 0.0, %v8771
    %v8773 = vpop.f32.mrf.mxu0
    %v8774 = vpop.f32.mrf.mxu0
    %v8775 = vadd.f32 0.0, %v8774
    %v8776 = vpop.f32.mrf.mxu0
    %8777 = vmatprep.mubr.bf16.mxu0 0
    %8778 = vmatmul.mubr.bf16.gmra.mxu0 %v8521
    %v8779 = vpop.f32.mrf.mxu0
    %v8780 = vadd.f32 0.0, %v8779
    %v8781 = vpop.f32.mrf.mxu0
    %v8782 = vpop.f32.mrf.mxu0
    %v8783 = vadd.f32 0.0, %v8782
    %v8784 = vpop.f32.mrf.mxu0
    %8785 = vmatprep.mubr.bf16.mxu0 0
    %8786 = vmatmul.mubr.bf16.gmra.mxu0 %v8522
    %v8787 = vpop.f32.mrf.mxu0
    %v8788 = vadd.f32 0.0, %v8787
    %v8789 = vpop.f32.mrf.mxu0
    %v8790 = vpop.f32.mrf.mxu0
    %v8791 = vadd.f32 0.0, %v8790
    %v8792 = vpop.f32.mrf.mxu0
    %8793 = vmatprep.mubr.bf16.mxu0 0
    %8794 = vmatmul.mubr.bf16.gmra.mxu0 %v8523
    %v8795 = vpop.f32.mrf.mxu0
    %v8796 = vadd.f32 0.0, %v8795
    %v8797 = vpop.f32.mrf.mxu0
    %v8798 = vpop.f32.mrf.mxu0
    %v8799 = vadd.f32 0.0, %v8798
    %v8800 = vpop.f32.mrf.mxu0
    %8801 = vmatprep.mubr.bf16.mxu0 0
    %8802 = vmatmul.mubr.bf16.gmra.mxu0 %v8524
    %v8803 = vpop.f32.mrf.mxu0
    %v8804 = vadd.f32 0.0, %v8803
    %v8805 = vpop.f32.mrf.mxu0
    %v8806 = vpop.f32.mrf.mxu0
    %v8807 = vadd.f32 0.0, %v8806
    %v8808 = vpop.f32.mrf.mxu0
    %8809 = vmatprep.mubr.bf16.mxu0 0
    %8810 = vmatmul.mubr.bf16.gmra.mxu0 %v8525
    %v8811 = vpop.f32.mrf.mxu0
    %v8812 = vadd.f32 0.0, %v8811
    %v8813 = vpop.f32.mrf.mxu0
    %v8814 = vpop.f32.mrf.mxu0
    %v8815 = vadd.f32 0.0, %v8814
    %v8816 = vpop.f32.mrf.mxu0
    %8817 = vmatprep.mubr.bf16.mxu0 0
    %8818 = vmatmul.mubr.bf16.gmra.mxu0 %v8526
    %v8819 = vpop.f32.mrf.mxu0
    %v8820 = vadd.f32 0.0, %v8819
    %v8821 = vpop.f32.mrf.mxu0
    %v8822 = vpop.f32.mrf.mxu0
    %v8823 = vadd.f32 0.0, %v8822
    %v8824 = vpop.f32.mrf.mxu0
    %8825 = vmatprep.mubr.bf16.mxu0 0
    %8826 = vmatmul.mubr.bf16.gmra.mxu0 %v8527
    %v8827 = vpop.f32.mrf.mxu0
    %v8828 = vadd.f32 0.0, %v8827
    %v8829 = vpop.f32.mrf.mxu0
    %v8830 = vpop.f32.mrf.mxu0
    %v8831 = vadd.f32 0.0, %v8830
    %v8832 = vpop.f32.mrf.mxu0
    %8833 = vmatprep.mubr.bf16.mxu0 0
    %8834 = vmatmul.mubr.bf16.gmra.mxu0 %v8528
    %v8835 = vpop.f32.mrf.mxu0
    %v8836 = vadd.f32 0.0, %v8835
    %v8837 = vpop.f32.mrf.mxu0
    %v8838 = vpop.f32.mrf.mxu0
    %v8839 = vadd.f32 0.0, %v8838
    %v8840 = vpop.f32.mrf.mxu0
    %8841 = vmatprep.mubr.bf16.mxu0 0
    %8842 = vmatmul.mubr.bf16.gmra.mxu0 %v8529
    %v8843 = vpop.f32.mrf.mxu0
    %v8844 = vadd.f32 0.0, %v8843
    %v8845 = vpop.f32.mrf.mxu0
    %v8846 = vpop.f32.mrf.mxu0
    %v8847 = vadd.f32 0.0, %v8846
    %v8848 = vpop.f32.mrf.mxu0
    %8849 = vmatprep.mubr.bf16.mxu0 0
    %8850 = vmatmul.mubr.bf16.gmra.mxu0 %v8530
    %v8851 = vpop.f32.mrf.mxu0
    %v8852 = vadd.f32 0.0, %v8851
    %v8853 = vpop.f32.mrf.mxu0
    %v8854 = vpop.f32.mrf.mxu0
    %v8855 = vadd.f32 0.0, %v8854
    %v8856 = vpop.f32.mrf.mxu0
    %8857 = vmatprep.mubr.bf16.mxu0 0
    %8858 = vmatmul.mubr.bf16.gmra.mxu0 %v8531
    %v8859 = vpop.f32.mrf.mxu0
    %v8860 = vadd.f32 0.0, %v8859
    %v8861 = vpop.f32.mrf.mxu0
    %v8862 = vpop.f32.mrf.mxu0
    %v8863 = vadd.f32 0.0, %v8862
    %v8864 = vpop.f32.mrf.mxu0
    %8865 = vmatprep.mubr.bf16.mxu0 0
    %8866 = vmatmul.mubr.bf16.gmra.mxu0 %v8532
    %v8867 = vpop.f32.mrf.mxu0
    %v8868 = vadd.f32 0.0, %v8867
    %v8869 = vpop.f32.mrf.mxu0
    %v8870 = vpop.f32.mrf.mxu0
    %v8871 = vadd.f32 0.0, %v8870
    %v8872 = vpop.f32.mrf.mxu0
    %8873 = vmatprep.mubr.bf16.mxu0 0
    %8874 = vmatmul.mubr.bf16.gmra.mxu0 %v8533
    %v8875 = vpop.f32.mrf.mxu0
    %v8876 = vadd.f32 0.0, %v8875
    %v8877 = vpop.f32.mrf.mxu0
    %v8878 = vpop.f32.mrf.mxu0
    %v8879 = vadd.f32 0.0, %v8878
    %v8880 = vpop.f32.mrf.mxu0
    %8881 = vmatprep.mubr.bf16.mxu0 0
    %8882 = vmatmul.mubr.bf16.gmra.mxu0 %v8534
    %v8883 = vpop.f32.mrf.mxu0
    %v8884 = vadd.f32 0.0, %v8883
    %v8885 = vpop.f32.mrf.mxu0
    %v8886 = vpop.f32.mrf.mxu0
    %v8887 = vadd.f32 0.0, %v8886
    %v8888 = vpop.f32.mrf.mxu0
    %8889 = vmatprep.mubr.bf16.mxu0 0
    %8890 = vmatmul.mubr.bf16.gmra.mxu0 %v8535
    %v8891 = vpop.f32.mrf.mxu0
    %v8892 = vadd.f32 0.0, %v8891
    %v8893 = vpop.f32.mrf.mxu0
    %v8894 = vpop.f32.mrf.mxu0
    %v8895 = vadd.f32 0.0, %v8894
    %v8896 = vpop.f32.mrf.mxu0
    %8897 = vmatprep.mubr.bf16.mxu0 0
    %8898 = vmatmul.mubr.bf16.gmra.mxu0 %v8536
    %v8899 = vpop.f32.mrf.mxu0
    %v8900 = vadd.f32 0.0, %v8899
    %v8901 = vpop.f32.mrf.mxu0
    %v8902 = vpop.f32.mrf.mxu0
    %v8903 = vadd.f32 0.0, %v8902
    %v8904 = vpop.f32.mrf.mxu0
    %8905 = vdwg.mxu0
    %v8906 = vld [vmem:[#allocation2] sm:$0xff]
    %v8907 = vld [vmem:[#allocation2 + $0x8] sm:$0xff]
    %v8908 = vld [vmem:[#allocation2 + $0x10] sm:$0xff]
    %v8909 = vld [vmem:[#allocation2 + $0x18] sm:$0xff]
    %v8910 = vld [vmem:[#allocation2 + $0x20] sm:$0xff]
    %v8911 = vld [vmem:[#allocation2 + $0x28] sm:$0xff]
    %v8912 = vld [vmem:[#allocation2 + $0x30] sm:$0xff]
    %v8913 = vld [vmem:[#allocation2 + $0x38] sm:$0xff]
    %v8914 = vld [vmem:[#allocation2 + $0x40] sm:$0xff]
    %v8915 = vld [vmem:[#allocation2 + $0x48] sm:$0xff]
    %v8916 = vld [vmem:[#allocation2 + $0x50] sm:$0xff]
    %v8917 = vld [vmem:[#allocation2 + $0x58] sm:$0xff]
    %v8918 = vld [vmem:[#allocation2 + $0x60] sm:$0xff]
    %v8919 = vld [vmem:[#allocation2 + $0x68] sm:$0xff]
    %v8920 = vld [vmem:[#allocation2 + $0x70] sm:$0xff]
    %v8921 = vld [vmem:[#allocation2 + $0x78] sm:$0xff]
    %v8922 = vld [vmem:[#allocation2 + $0x80] sm:$0xff]
    %v8923 = vld [vmem:[#allocation2 + $0x88] sm:$0xff]
    %v8924 = vld [vmem:[#allocation2 + $0x90] sm:$0xff]
    %v8925 = vld [vmem:[#allocation2 + $0x98] sm:$0xff]
    %v8926 = vld [vmem:[#allocation2 + $0xa0] sm:$0xff]
    %v8927 = vld [vmem:[#allocation2 + $0xa8] sm:$0xff]
    %v8928 = vld [vmem:[#allocation2 + $0xb0] sm:$0xff]
    %v8929 = vld [vmem:[#allocation2 + $0xb8] sm:$0xff]
    %v8930 = vld [vmem:[#allocation2 + $0xc0] sm:$0xff]
    %v8931 = vld [vmem:[#allocation2 + $0xc8] sm:$0xff]
    %v8932 = vld [vmem:[#allocation2 + $0xd0] sm:$0xff]
    %v8933 = vld [vmem:[#allocation2 + $0xd8] sm:$0xff]
    %v8934 = vld [vmem:[#allocation2 + $0xe0] sm:$0xff]
    %v8935 = vld [vmem:[#allocation2 + $0xe8] sm:$0xff]
    %v8936 = vld [vmem:[#allocation2 + $0xf0] sm:$0xff]
    %v8937 = vld [vmem:[#allocation2 + $0xf8] sm:$0xff]
    %v8938 = vld [vmem:[#allocation2 + $0x100] sm:$0xff]
    %v8939 = vld [vmem:[#allocation2 + $0x108] sm:$0xff]
    %v8940 = vld [vmem:[#allocation2 + $0x110] sm:$0xff]
    %v8941 = vld [vmem:[#allocation2 + $0x118] sm:$0xff]
    %v8942 = vld [vmem:[#allocation2 + $0x120] sm:$0xff]
    %v8943 = vld [vmem:[#allocation2 + $0x128] sm:$0xff]
    %v8944 = vld [vmem:[#allocation2 + $0x130] sm:$0xff]
    %v8945 = vld [vmem:[#allocation2 + $0x138] sm:$0xff]
    %v8946 = vld [vmem:[#allocation2 + $0x140] sm:$0xff]
    %v8947 = vld [vmem:[#allocation2 + $0x148] sm:$0xff]
    %v8948 = vld [vmem:[#allocation2 + $0x150] sm:$0xff]
    %v8949 = vld [vmem:[#allocation2 + $0x158] sm:$0xff]
    %v8950 = vld [vmem:[#allocation2 + $0x160] sm:$0xff]
    %v8951 = vld [vmem:[#allocation2 + $0x168] sm:$0xff]
    %v8952 = vld [vmem:[#allocation2 + $0x170] sm:$0xff]
    %v8953 = vld [vmem:[#allocation2 + $0x178] sm:$0xff]
    %v8954 = vld [vmem:[#allocation2 + $0x180] sm:$0xff]
    %v8955 = vld [vmem:[#allocation2 + $0x188] sm:$0xff]
    %v8956 = vld [vmem:[#allocation2 + $0x190] sm:$0xff]
    %v8957 = vld [vmem:[#allocation2 + $0x198] sm:$0xff]
    %v8958 = vld [vmem:[#allocation2 + $0x1a0] sm:$0xff]
    %v8959 = vld [vmem:[#allocation2 + $0x1a8] sm:$0xff]
    %v8960 = vld [vmem:[#allocation2 + $0x1b0] sm:$0xff]
    %v8961 = vld [vmem:[#allocation2 + $0x1b8] sm:$0xff]
    %v8962 = vld [vmem:[#allocation2 + $0x1c0] sm:$0xff]
    %v8963 = vld [vmem:[#allocation2 + $0x1c8] sm:$0xff]
    %v8964 = vld [vmem:[#allocation2 + $0x1d0] sm:$0xff]
    %v8965 = vld [vmem:[#allocation2 + $0x1d8] sm:$0xff]
    %v8966 = vld [vmem:[#allocation2 + $0x1e0] sm:$0xff]
    %v8967 = vld [vmem:[#allocation2 + $0x1e8] sm:$0xff]
    %v8968 = vld [vmem:[#allocation2 + $0x1f0] sm:$0xff]
    %v8969 = vld [vmem:[#allocation2 + $0x1f8] sm:$0xff]
    %v8970 = vadd.f32 %v8906, %v8652
    %v8971 = vadd.f32 %v8907, %v8655
    %v8972 = vadd.f32 %v8908, %v8660
    %v8973 = vadd.f32 %v8909, %v8663
    %v8974 = vadd.f32 %v8910, %v8668
    %v8975 = vadd.f32 %v8911, %v8671
    %v8976 = vadd.f32 %v8912, %v8676
    %v8977 = vadd.f32 %v8913, %v8679
    %v8978 = vadd.f32 %v8914, %v8684
    %v8979 = vadd.f32 %v8915, %v8687
    %v8980 = vadd.f32 %v8916, %v8692
    %v8981 = vadd.f32 %v8917, %v8695
    %v8982 = vadd.f32 %v8918, %v8700
    %v8983 = vadd.f32 %v8919, %v8703
    %v8984 = vadd.f32 %v8920, %v8708
    %v8985 = vadd.f32 %v8921, %v8711
    %v8986 = vadd.f32 %v8922, %v8716
    %v8987 = vadd.f32 %v8923, %v8719
    %v8988 = vadd.f32 %v8924, %v8724
    %v8989 = vadd.f32 %v8925, %v8727
    %v8990 = vadd.f32 %v8926, %v8732
    %v8991 = vadd.f32 %v8927, %v8735
    %v8992 = vadd.f32 %v8928, %v8740
    %v8993 = vadd.f32 %v8929, %v8743
    %v8994 = vadd.f32 %v8930, %v8748
    %v8995 = vadd.f32 %v8931, %v8751
    %v8996 = vadd.f32 %v8932, %v8756
    %v8997 = vadd.f32 %v8933, %v8759
    %v8998 = vadd.f32 %v8934, %v8764
    %v8999 = vadd.f32 %v8935, %v8767
    %v9000 = vadd.f32 %v8936, %v8772
    %v9001 = vadd.f32 %v8937, %v8775
    %v9002 = vadd.f32 %v8938, %v8780
    %v9003 = vadd.f32 %v8939, %v8783
    %v9004 = vadd.f32 %v8940, %v8788
    %v9005 = vadd.f32 %v8941, %v8791
    %v9006 = vadd.f32 %v8942, %v8796
    %v9007 = vadd.f32 %v8943, %v8799
    %v9008 = vadd.f32 %v8944, %v8804
    %v9009 = vadd.f32 %v8945, %v8807
    %v9010 = vadd.f32 %v8946, %v8812
    %v9011 = vadd.f32 %v8947, %v8815
    %v9012 = vadd.f32 %v8948, %v8820
    %v9013 = vadd.f32 %v8949, %v8823
    %v9014 = vadd.f32 %v8950, %v8828
    %v9015 = vadd.f32 %v8951, %v8831
    %v9016 = vadd.f32 %v8952, %v8836
    %v9017 = vadd.f32 %v8953, %v8839
    %v9018 = vadd.f32 %v8954, %v8844
    %v9019 = vadd.f32 %v8955, %v8847
    %v9020 = vadd.f32 %v8956, %v8852
    %v9021 = vadd.f32 %v8957, %v8855
    %v9022 = vadd.f32 %v8958, %v8860
    %v9023 = vadd.f32 %v8959, %v8863
    %v9024 = vadd.f32 %v8960, %v8868
    %v9025 = vadd.f32 %v8961, %v8871
    %v9026 = vadd.f32 %v8962, %v8876
    %v9027 = vadd.f32 %v8963, %v8879
    %v9028 = vadd.f32 %v8964, %v8884
    %v9029 = vadd.f32 %v8965, %v8887
    %v9030 = vadd.f32 %v8966, %v8892
    %v9031 = vadd.f32 %v8967, %v8895
    %v9032 = vadd.f32 %v8968, %v8900
    %v9033 = vadd.f32 %v8969, %v8903
    %9034 = vst [vmem:[#allocation2] sm:$0xff] %v8970
    %9035 = vst [vmem:[#allocation2 + $0x8] sm:$0xff] %v8971
    %9036 = vst [vmem:[#allocation2 + $0x10] sm:$0xff] %v8972
    %9037 = vst [vmem:[#allocation2 + $0x18] sm:$0xff] %v8973
    %9038 = vst [vmem:[#allocation2 + $0x20] sm:$0xff] %v8974
    %9039 = vst [vmem:[#allocation2 + $0x28] sm:$0xff] %v8975
    %9040 = vst [vmem:[#allocation2 + $0x30] sm:$0xff] %v8976
    %9041 = vst [vmem:[#allocation2 + $0x38] sm:$0xff] %v8977
    %9042 = vst [vmem:[#allocation2 + $0x40] sm:$0xff] %v8978
    %9043 = vst [vmem:[#allocation2 + $0x48] sm:$0xff] %v8979
    %9044 = vst [vmem:[#allocation2 + $0x50] sm:$0xff] %v8980
    %9045 = vst [vmem:[#allocation2 + $0x58] sm:$0xff] %v8981
    %9046 = vst [vmem:[#allocation2 + $0x60] sm:$0xff] %v8982
    %9047 = vst [vmem:[#allocation2 + $0x68] sm:$0xff] %v8983
    %9048 = vst [vmem:[#allocation2 + $0x70] sm:$0xff] %v8984
    %9049 = vst [vmem:[#allocation2 + $0x78] sm:$0xff] %v8985
    %9050 = vst [vmem:[#allocation2 + $0x80] sm:$0xff] %v8986
    %9051 = vst [vmem:[#allocation2 + $0x88] sm:$0xff] %v8987
    %9052 = vst [vmem:[#allocation2 + $0x90] sm:$0xff] %v8988
    %9053 = vst [vmem:[#allocation2 + $0x98] sm:$0xff] %v8989
    %9054 = vst [vmem:[#allocation2 + $0xa0] sm:$0xff] %v8990
    %9055 = vst [vmem:[#allocation2 + $0xa8] sm:$0xff] %v8991
    %9056 = vst [vmem:[#allocation2 + $0xb0] sm:$0xff] %v8992
    %9057 = vst [vmem:[#allocation2 + $0xb8] sm:$0xff] %v8993
    %9058 = vst [vmem:[#allocation2 + $0xc0] sm:$0xff] %v8994
    %9059 = vst [vmem:[#allocation2 + $0xc8] sm:$0xff] %v8995
    %9060 = vst [vmem:[#allocation2 + $0xd0] sm:$0xff] %v8996
    %9061 = vst [vmem:[#allocation2 + $0xd8] sm:$0xff] %v8997
    %9062 = vst [vmem:[#allocation2 + $0xe0] sm:$0xff] %v8998
    %9063 = vst [vmem:[#allocation2 + $0xe8] sm:$0xff] %v8999
    %9064 = vst [vmem:[#allocation2 + $0xf0] sm:$0xff] %v9000
    %9065 = vst [vmem:[#allocation2 + $0xf8] sm:$0xff] %v9001
    %9066 = vst [vmem:[#allocation2 + $0x100] sm:$0xff] %v9002
    %9067 = vst [vmem:[#allocation2 + $0x108] sm:$0xff] %v9003
    %9068 = vst [vmem:[#allocation2 + $0x110] sm:$0xff] %v9004
    %9069 = vst [vmem:[#allocation2 + $0x118] sm:$0xff] %v9005
    %9070 = vst [vmem:[#allocation2 + $0x120] sm:$0xff] %v9006
    %9071 = vst [vmem:[#allocation2 + $0x128] sm:$0xff] %v9007
    %9072 = vst [vmem:[#allocation2 + $0x130] sm:$0xff] %v9008
    %9073 = vst [vmem:[#allocation2 + $0x138] sm:$0xff] %v9009
    %9074 = vst [vmem:[#allocation2 + $0x140] sm:$0xff] %v9010
    %9075 = vst [vmem:[#allocation2 + $0x148] sm:$0xff] %v9011
    %9076 = vst [vmem:[#allocation2 + $0x150] sm:$0xff] %v9012
    %9077 = vst [vmem:[#allocation2 + $0x158] sm:$0xff] %v9013
    %9078 = vst [vmem:[#allocation2 + $0x160] sm:$0xff] %v9014
    %9079 = vst [vmem:[#allocation2 + $0x168] sm:$0xff] %v9015
    %9080 = vst [vmem:[#allocation2 + $0x170] sm:$0xff] %v9016
    %9081 = vst [vmem:[#allocation2 + $0x178] sm:$0xff] %v9017
    %9082 = vst [vmem:[#allocation2 + $0x180] sm:$0xff] %v9018
    %9083 = vst [vmem:[#allocation2 + $0x188] sm:$0xff] %v9019
    %9084 = vst [vmem:[#allocation2 + $0x190] sm:$0xff] %v9020
    %9085 = vst [vmem:[#allocation2 + $0x198] sm:$0xff] %v9021
    %9086 = vst [vmem:[#allocation2 + $0x1a0] sm:$0xff] %v9022
    %9087 = vst [vmem:[#allocation2 + $0x1a8] sm:$0xff] %v9023
    %9088 = vst [vmem:[#allocation2 + $0x1b0] sm:$0xff] %v9024
    %9089 = vst [vmem:[#allocation2 + $0x1b8] sm:$0xff] %v9025
    %9090 = vst [vmem:[#allocation2 + $0x1c0] sm:$0xff] %v9026
    %9091 = vst [vmem:[#allocation2 + $0x1c8] sm:$0xff] %v9027
    %9092 = vst [vmem:[#allocation2 + $0x1d0] sm:$0xff] %v9028
    %9093 = vst [vmem:[#allocation2 + $0x1d8] sm:$0xff] %v9029
    %9094 = vst [vmem:[#allocation2 + $0x1e0] sm:$0xff] %v9030
    %9095 = vst [vmem:[#allocation2 + $0x1e8] sm:$0xff] %v9031
    %9096 = vst [vmem:[#allocation2 + $0x1f0] sm:$0xff] %v9032
    %9097 = vst [vmem:[#allocation2 + $0x1f8] sm:$0xff] %v9033
    %v9098 = vld [vmem:[%s6757] sm:$0xe]
    %v9099 = vld [vmem:[%s6757 + $0x4] sm:$0xf]
    %v9100 = vld [vmem:[%s6757 + $0x8] sm:$0x1]
    %v9101 = vld [vmem:[%s6757 + $0xc] sm:$0xe]
    %v9102 = vld [vmem:[%s6757 + $0x10] sm:$0xf]
    %v9103 = vld [vmem:[%s6757 + $0x14] sm:$0x1]
    %v9104 = vld [vmem:[%s6757 + $0x18] sm:$0xe]
    %v9105 = vld [vmem:[%s6757 + $0x1c] sm:$0xf]
    %v9106 = vld [vmem:[%s6757 + $0x20] sm:$0x1]
    %v9107 = vld [vmem:[%s6757 + $0x24] sm:$0xe]
    %v9108 = vld [vmem:[%s6757 + $0x28] sm:$0xf]
    %v9109 = vld [vmem:[%s6757 + $0x2c] sm:$0x1]
    %v9110 = vld [vmem:[%s6757 + $0x30] sm:$0xe]
    %v9111 = vld [vmem:[%s6757 + $0x34] sm:$0xf]
    %v9112 = vld [vmem:[%s6757 + $0x38] sm:$0x1]
    %v9113 = vld [vmem:[%s6757 + $0x3c] sm:$0xe]
    %v9114 = vld [vmem:[%s6757 + $0x40] sm:$0xf]
    %v9115 = vld [vmem:[%s6757 + $0x44] sm:$0x1]
    %v9116 = vld [vmem:[%s6757 + $0x48] sm:$0xe]
    %v9117 = vld [vmem:[%s6757 + $0x4c] sm:$0xf]
    %v9118 = vld [vmem:[%s6757 + $0x50] sm:$0x1]
    %v9119 = vld [vmem:[%s6757 + $0x54] sm:$0xe]
    %v9120 = vld [vmem:[%s6757 + $0x58] sm:$0xf]
    %v9121 = vld [vmem:[%s6757 + $0x5c] sm:$0x1]
    %v9122 = vld [vmem:[%s6757 + $0x60] sm:$0xe]
    %v9123 = vld [vmem:[%s6757 + $0x64] sm:$0xf]
    %v9124 = vld [vmem:[%s6757 + $0x68] sm:$0x1]
    %v9125 = vld [vmem:[%s6757 + $0x6c] sm:$0xe]
    %v9126 = vld [vmem:[%s6757 + $0x70] sm:$0xf]
    %v9127 = vld [vmem:[%s6757 + $0x74] sm:$0x1]
    %v9128 = vld [vmem:[%s6757 + $0x78] sm:$0xe]
    %v9129 = vld [vmem:[%s6757 + $0x7c] sm:$0xf]
    %v9130 = vld [vmem:[%s6757 + $0x80] sm:$0x1]
    %v9131 = vld [vmem:[%s6757 + $0x84] sm:$0xe]
    %v9132 = vld [vmem:[%s6757 + $0x88] sm:$0xf]
    %v9133 = vld [vmem:[%s6757 + $0x8c] sm:$0x1]
    %v9134 = vld [vmem:[%s6757 + $0x90] sm:$0xe]
    %v9135 = vld [vmem:[%s6757 + $0x94] sm:$0xf]
    %v9136 = vld [vmem:[%s6757 + $0x98] sm:$0x1]
    %v9137 = vld [vmem:[%s6757 + $0x9c] sm:$0xe]
    %v9138 = vld [vmem:[%s6757 + $0xa0] sm:$0xf]
    %v9139 = vld [vmem:[%s6757 + $0xa4] sm:$0x1]
    %v9140 = vld [vmem:[%s6757 + $0xa8] sm:$0xe]
    %v9141 = vld [vmem:[%s6757 + $0xac] sm:$0xf]
    %v9142 = vld [vmem:[%s6757 + $0xb0] sm:$0x1]
    %v9143 = vld [vmem:[%s6757 + $0xb4] sm:$0xe]
    %v9144 = vld [vmem:[%s6757 + $0xb8] sm:$0xf]
    %v9145 = vld [vmem:[%s6757 + $0xbc] sm:$0x1]
    %v9146 = vld [vmem:[%s6757 + $0xd8] sm:$0xe]
    %v9147 = vld [vmem:[%s6757 + $0xdc] sm:$0xf]
    %v9148 = vld [vmem:[%s6757 + $0xe0] sm:$0x1]
    %v9149 = vld [vmem:[%s6757 + $0xe4] sm:$0xe]
    %v9150 = vld [vmem:[%s6757 + $0xe8] sm:$0xf]
    %v9151 = vld [vmem:[%s6757 + $0xec] sm:$0x1]
    %v9152 = vld [vmem:[%s6757 + $0xf0] sm:$0xe]
    %v9153 = vld [vmem:[%s6757 + $0xf4] sm:$0xf]
    %v9154 = vld [vmem:[%s6757 + $0xf8] sm:$0x1]
    %v9155 = vld [vmem:[%s6757 + $0xfc] sm:$0xe]
    %v9156 = vld [vmem:[%s6757 + $0x100] sm:$0xf]
    %v9157 = vld [vmem:[%s6757 + $0x104] sm:$0x1]
    %v9158 = vld [vmem:[%s6757 + $0x108] sm:$0xe]
    %v9159 = vld [vmem:[%s6757 + $0x10c] sm:$0xf]
    %v9160 = vld [vmem:[%s6757 + $0x110] sm:$0x1]
    %v9161 = vld [vmem:[%s6757 + $0x114] sm:$0xe]
    %v9162 = vld [vmem:[%s6757 + $0x118] sm:$0xf]
    %v9163 = vld [vmem:[%s6757 + $0x11c] sm:$0x1]
    %v9164 = vld [vmem:[%s6757 + $0x120] sm:$0xe]
    %v9165 = vld [vmem:[%s6757 + $0x124] sm:$0xf]
    %v9166 = vld [vmem:[%s6757 + $0x128] sm:$0x1]
    %v9167 = vld [vmem:[%s6757 + $0x12c] sm:$0xe]
    %v9168 = vld [vmem:[%s6757 + $0x130] sm:$0xf]
    %v9169 = vld [vmem:[%s6757 + $0x134] sm:$0x1]
    %v9170 = vld [vmem:[%s6757 + $0x138] sm:$0xe]
    %v9171 = vld [vmem:[%s6757 + $0x13c] sm:$0xf]
    %v9172 = vld [vmem:[%s6757 + $0x140] sm:$0x1]
    %v9173 = vld [vmem:[%s6757 + $0x144] sm:$0xe]
    %v9174 = vld [vmem:[%s6757 + $0x148] sm:$0xf]
    %v9175 = vld [vmem:[%s6757 + $0x14c] sm:$0x1]
    %v9176 = vld [vmem:[%s6757 + $0x150] sm:$0xe]
    %v9177 = vld [vmem:[%s6757 + $0x154] sm:$0xf]
    %v9178 = vld [vmem:[%s6757 + $0x158] sm:$0x1]
    %v9179 = vld [vmem:[%s6757 + $0x15c] sm:$0xe]
    %v9180 = vld [vmem:[%s6757 + $0x160] sm:$0xf]
    %v9181 = vld [vmem:[%s6757 + $0x164] sm:$0x1]
    %v9182 = vld [vmem:[%s6757 + $0x168] sm:$0xe]
    %v9183 = vld [vmem:[%s6757 + $0x16c] sm:$0xf]
    %v9184 = vld [vmem:[%s6757 + $0x170] sm:$0x1]
    %v9185 = vld [vmem:[%s6757 + $0x174] sm:$0xe]
    %v9186 = vld [vmem:[%s6757 + $0x178] sm:$0xf]
    %v9187 = vld [vmem:[%s6757 + $0x17c] sm:$0x1]
    %v9188 = vld [vmem:[%s6757 + $0x180] sm:$0xe]
    %v9189 = vld [vmem:[%s6757 + $0x184] sm:$0xf]
    %v9190 = vld [vmem:[%s6757 + $0x188] sm:$0x1]
    %v9191 = vld [vmem:[%s6757 + $0x18c] sm:$0xe]
    %v9192 = vld [vmem:[%s6757 + $0x190] sm:$0xf]
    %v9193 = vld [vmem:[%s6757 + $0x194] sm:$0x1]
    %v9290 = vrot.slane %v9098, 5
    %v9291 = vrot.slane %v9290, 4
    %v9292 = vrot.slane %v9099, 5
    %v9293 = vsel %vm2427, %v9291, %v9292
    %v9294 = vrot.slane %v9292, 4
    %v9295 = vrot.slane %v9100, 5
    %v9296 = vsel %vm2427, %v9294, %v9295
    %v9297 = vrot.slane %v9101, 5
    %v9298 = vrot.slane %v9297, 4
    %v9299 = vrot.slane %v9102, 5
    %v9300 = vsel %vm2427, %v9298, %v9299
    %v9301 = vrot.slane %v9299, 4
    %v9302 = vrot.slane %v9103, 5
    %v9303 = vsel %vm2427, %v9301, %v9302
    %v9304 = vrot.slane %v9104, 5
    %v9305 = vrot.slane %v9304, 4
    %v9306 = vrot.slane %v9105, 5
    %v9307 = vsel %vm2427, %v9305, %v9306
    %v9308 = vrot.slane %v9306, 4
    %v9309 = vrot.slane %v9106, 5
    %v9310 = vsel %vm2427, %v9308, %v9309
    %v9311 = vrot.slane %v9107, 5
    %v9312 = vrot.slane %v9311, 4
    %v9313 = vrot.slane %v9108, 5
    %v9314 = vsel %vm2427, %v9312, %v9313
    %v9315 = vrot.slane %v9313, 4
    %v9316 = vrot.slane %v9109, 5
    %v9317 = vsel %vm2427, %v9315, %v9316
    %v9318 = vrot.slane %v9110, 5
    %v9319 = vrot.slane %v9318, 4
    %v9320 = vrot.slane %v9111, 5
    %v9321 = vsel %vm2427, %v9319, %v9320
    %v9322 = vrot.slane %v9320, 4
    %v9323 = vrot.slane %v9112, 5
    %v9324 = vsel %vm2427, %v9322, %v9323
    %v9325 = vrot.slane %v9113, 5
    %v9326 = vrot.slane %v9325, 4
    %v9327 = vrot.slane %v9114, 5
    %v9328 = vsel %vm2427, %v9326, %v9327
    %v9329 = vrot.slane %v9327, 4
    %v9330 = vrot.slane %v9115, 5
    %v9331 = vsel %vm2427, %v9329, %v9330
    %v9332 = vrot.slane %v9116, 5
    %v9333 = vrot.slane %v9332, 4
    %v9334 = vrot.slane %v9117, 5
    %v9335 = vsel %vm2427, %v9333, %v9334
    %v9336 = vrot.slane %v9334, 4
    %v9337 = vrot.slane %v9118, 5
    %v9338 = vsel %vm2427, %v9336, %v9337
    %v9339 = vrot.slane %v9119, 5
    %v9340 = vrot.slane %v9339, 4
    %v9341 = vrot.slane %v9120, 5
    %v9342 = vsel %vm2427, %v9340, %v9341
    %v9343 = vrot.slane %v9341, 4
    %v9344 = vrot.slane %v9121, 5
    %v9345 = vsel %vm2427, %v9343, %v9344
    %v9346 = vrot.slane %v9122, 5
    %v9347 = vrot.slane %v9346, 4
    %v9348 = vrot.slane %v9123, 5
    %v9349 = vsel %vm2427, %v9347, %v9348
    %v9350 = vrot.slane %v9348, 4
    %v9351 = vrot.slane %v9124, 5
    %v9352 = vsel %vm2427, %v9350, %v9351
    %v9353 = vrot.slane %v9125, 5
    %v9354 = vrot.slane %v9353, 4
    %v9355 = vrot.slane %v9126, 5
    %v9356 = vsel %vm2427, %v9354, %v9355
    %v9357 = vrot.slane %v9355, 4
    %v9358 = vrot.slane %v9127, 5
    %v9359 = vsel %vm2427, %v9357, %v9358
    %v9360 = vrot.slane %v9128, 5
    %v9361 = vrot.slane %v9360, 4
    %v9362 = vrot.slane %v9129, 5
    %v9363 = vsel %vm2427, %v9361, %v9362
    %v9364 = vrot.slane %v9362, 4
    %v9365 = vrot.slane %v9130, 5
    %v9366 = vsel %vm2427, %v9364, %v9365
    %v9367 = vrot.slane %v9131, 5
    %v9368 = vrot.slane %v9367, 4
    %v9369 = vrot.slane %v9132, 5
    %v9370 = vsel %vm2427, %v9368, %v9369
    %v9371 = vrot.slane %v9369, 4
    %v9372 = vrot.slane %v9133, 5
    %v9373 = vsel %vm2427, %v9371, %v9372
    %v9374 = vrot.slane %v9134, 5
    %v9375 = vrot.slane %v9374, 4
    %v9376 = vrot.slane %v9135, 5
    %v9377 = vsel %vm2427, %v9375, %v9376
    %v9378 = vrot.slane %v9376, 4
    %v9379 = vrot.slane %v9136, 5
    %v9380 = vsel %vm2427, %v9378, %v9379
    %v9381 = vrot.slane %v9137, 5
    %v9382 = vrot.slane %v9381, 4
    %v9383 = vrot.slane %v9138, 5
    %v9384 = vsel %vm2427, %v9382, %v9383
    %v9385 = vrot.slane %v9383, 4
    %v9386 = vrot.slane %v9139, 5
    %v9387 = vsel %vm2427, %v9385, %v9386
    %v9388 = vrot.slane %v9140, 5
    %v9389 = vrot.slane %v9388, 4
    %v9390 = vrot.slane %v9141, 5
    %v9391 = vsel %vm2427, %v9389, %v9390
    %v9392 = vrot.slane %v9390, 4
    %v9393 = vrot.slane %v9142, 5
    %v9394 = vsel %vm2427, %v9392, %v9393
    %v9395 = vrot.slane %v9143, 5
    %v9396 = vrot.slane %v9395, 4
    %v9397 = vrot.slane %v9144, 5
    %v9398 = vsel %vm2427, %v9396, %v9397
    %v9399 = vrot.slane %v9397, 4
    %v9400 = vrot.slane %v9145, 5
    %v9401 = vsel %vm2427, %v9399, %v9400
    %v9402 = vrot.slane %v9146, 5
    %v9403 = vrot.slane %v9402, 4
    %v9404 = vrot.slane %v9147, 5
    %v9405 = vsel %vm2427, %v9403, %v9404
    %v9406 = vrot.slane %v9404, 4
    %v9407 = vrot.slane %v9148, 5
    %v9408 = vsel %vm2427, %v9406, %v9407
    %v9409 = vrot.slane %v9149, 5
    %v9410 = vrot.slane %v9409, 4
    %v9411 = vrot.slane %v9150, 5
    %v9412 = vsel %vm2427, %v9410, %v9411
    %v9413 = vrot.slane %v9411, 4
    %v9414 = vrot.slane %v9151, 5
    %v9415 = vsel %vm2427, %v9413, %v9414
    %v9416 = vrot.slane %v9152, 5
    %v9417 = vrot.slane %v9416, 4
    %v9418 = vrot.slane %v9153, 5
    %v9419 = vsel %vm2427, %v9417, %v9418
    %v9420 = vrot.slane %v9418, 4
    %v9421 = vrot.slane %v9154, 5
    %v9422 = vsel %vm2427, %v9420, %v9421
    %v9423 = vrot.slane %v9155, 5
    %v9424 = vrot.slane %v9423, 4
    %v9425 = vrot.slane %v9156, 5
    %v9426 = vsel %vm2427, %v9424, %v9425
    %v9427 = vrot.slane %v9425, 4
    %v9428 = vrot.slane %v9157, 5
    %v9429 = vsel %vm2427, %v9427, %v9428
    %v9430 = vrot.slane %v9158, 5
    %v9431 = vrot.slane %v9430, 4
    %v9432 = vrot.slane %v9159, 5
    %v9433 = vsel %vm2427, %v9431, %v9432
    %v9434 = vrot.slane %v9432, 4
    %v9435 = vrot.slane %v9160, 5
    %v9436 = vsel %vm2427, %v9434, %v9435
    %v9437 = vrot.slane %v9161, 5
    %v9438 = vrot.slane %v9437, 4
    %v9439 = vrot.slane %v9162, 5
    %v9440 = vsel %vm2427, %v9438, %v9439
    %v9441 = vrot.slane %v9439, 4
    %v9442 = vrot.slane %v9163, 5
    %v9443 = vsel %vm2427, %v9441, %v9442
    %v9444 = vrot.slane %v9164, 5
    %v9445 = vrot.slane %v9444, 4
    %v9446 = vrot.slane %v9165, 5
    %v9447 = vsel %vm2427, %v9445, %v9446
    %v9448 = vrot.slane %v9446, 4
    %v9449 = vrot.slane %v9166, 5
    %v9450 = vsel %vm2427, %v9448, %v9449
    %v9451 = vrot.slane %v9167, 5
    %v9452 = vrot.slane %v9451, 4
    %v9453 = vrot.slane %v9168, 5
    %v9454 = vsel %vm2427, %v9452, %v9453
    %v9455 = vrot.slane %v9453, 4
    %v9456 = vrot.slane %v9169, 5
    %v9457 = vsel %vm2427, %v9455, %v9456
    %v9458 = vrot.slane %v9170, 5
    %v9459 = vrot.slane %v9458, 4
    %v9460 = vrot.slane %v9171, 5
    %v9461 = vsel %vm2427, %v9459, %v9460
    %v9462 = vrot.slane %v9460, 4
    %v9463 = vrot.slane %v9172, 5
    %v9464 = vsel %vm2427, %v9462, %v9463
    %v9465 = vrot.slane %v9173, 5
    %v9466 = vrot.slane %v9465, 4
    %v9467 = vrot.slane %v9174, 5
    %v9468 = vsel %vm2427, %v9466, %v9467
    %v9469 = vrot.slane %v9467, 4
    %v9470 = vrot.slane %v9175, 5
    %v9471 = vsel %vm2427, %v9469, %v9470
    %v9472 = vrot.slane %v9176, 5
    %v9473 = vrot.slane %v9472, 4
    %v9474 = vrot.slane %v9177, 5
    %v9475 = vsel %vm2427, %v9473, %v9474
    %v9476 = vrot.slane %v9474, 4
    %v9477 = vrot.slane %v9178, 5
    %v9478 = vsel %vm2427, %v9476, %v9477
    %v9479 = vrot.slane %v9179, 5
    %v9480 = vrot.slane %v9479, 4
    %v9481 = vrot.slane %v9180, 5
    %v9482 = vsel %vm2427, %v9480, %v9481
    %v9483 = vrot.slane %v9481, 4
    %v9484 = vrot.slane %v9181, 5
    %v9485 = vsel %vm2427, %v9483, %v9484
    %v9486 = vrot.slane %v9182, 5
    %v9487 = vrot.slane %v9486, 4
    %v9488 = vrot.slane %v9183, 5
    %v9489 = vsel %vm2427, %v9487, %v9488
    %v9490 = vrot.slane %v9488, 4
    %v9491 = vrot.slane %v9184, 5
    %v9492 = vsel %vm2427, %v9490, %v9491
    %v9493 = vrot.slane %v9185, 5
    %v9494 = vrot.slane %v9493, 4
    %v9495 = vrot.slane %v9186, 5
    %v9496 = vsel %vm2427, %v9494, %v9495
    %v9497 = vrot.slane %v9495, 4
    %v9498 = vrot.slane %v9187, 5
    %v9499 = vsel %vm2427, %v9497, %v9498
    %v9500 = vrot.slane %v9188, 5
    %v9501 = vrot.slane %v9500, 4
    %v9502 = vrot.slane %v9189, 5
    %v9503 = vsel %vm2427, %v9501, %v9502
    %v9504 = vrot.slane %v9502, 4
    %v9505 = vrot.slane %v9190, 5
    %v9506 = vsel %vm2427, %v9504, %v9505
    %v9507 = vrot.slane %v9191, 5
    %v9508 = vrot.slane %v9507, 4
    %v9509 = vrot.slane %v9192, 5
    %v9510 = vsel %vm2427, %v9508, %v9509
    %v9511 = vrot.slane %v9509, 4
    %v9512 = vrot.slane %v9193, 5
    %v9513 = vsel %vm2427, %v9511, %v9512
    %s9514 = scalar_lea.vmem %s2, 512
    %v9515 = vld [vmem:[%s9514] sm:$0xf]
    %v9516 = vld [vmem:[%s9514 + $0x4] sm:$0xf]
    %v9517 = vld [vmem:[%s9514 + $0x8] sm:$0xf]
    %v9518 = vld [vmem:[%s9514 + $0xc] sm:$0xf]
    %v9519 = vld [vmem:[%s9514 + $0x10] sm:$0xf]
    %v9520 = vld [vmem:[%s9514 + $0x14] sm:$0xf]
    %v9521 = vld [vmem:[%s9514 + $0x18] sm:$0xf]
    %v9522 = vld [vmem:[%s9514 + $0x1c] sm:$0xf]
    %v9523 = vld [vmem:[%s9514 + $0x20] sm:$0xf]
    %v9524 = vld [vmem:[%s9514 + $0x24] sm:$0xf]
    %v9525 = vld [vmem:[%s9514 + $0x28] sm:$0xf]
    %v9526 = vld [vmem:[%s9514 + $0x2c] sm:$0xf]
    %v9527 = vld [vmem:[%s9514 + $0x30] sm:$0xf]
    %v9528 = vld [vmem:[%s9514 + $0x34] sm:$0xf]
    %v9529 = vld [vmem:[%s9514 + $0x38] sm:$0xf]
    %v9530 = vld [vmem:[%s9514 + $0x3c] sm:$0xf]
    %v9531 = vunpack.c.l.b16 %v9293
    %v9532 = vunpack.c.l.b16 %v9296
    %v9533 = vunpack.c.l.b16 %v9300
    %v9534 = vunpack.c.l.b16 %v9303
    %v9535 = vunpack.c.l.b16 %v9307
    %v9536 = vunpack.c.l.b16 %v9310
    %v9537 = vunpack.c.l.b16 %v9314
    %v9538 = vunpack.c.l.b16 %v9317
    %v9539 = vunpack.c.l.b16 %v9321
    %v9540 = vunpack.c.l.b16 %v9324
    %v9541 = vunpack.c.l.b16 %v9328
    %v9542 = vunpack.c.l.b16 %v9331
    %v9543 = vunpack.c.l.b16 %v9335
    %v9544 = vunpack.c.l.b16 %v9338
    %v9545 = vunpack.c.l.b16 %v9342
    %v9546 = vunpack.c.l.b16 %v9345
    %v9547 = vunpack.c.l.b16 %v9349
    %v9548 = vunpack.c.l.b16 %v9352
    %v9549 = vunpack.c.l.b16 %v9356
    %v9550 = vunpack.c.l.b16 %v9359
    %v9551 = vunpack.c.l.b16 %v9363
    %v9552 = vunpack.c.l.b16 %v9366
    %v9553 = vunpack.c.l.b16 %v9370
    %v9554 = vunpack.c.l.b16 %v9373
    %v9555 = vunpack.c.l.b16 %v9377
    %v9556 = vunpack.c.l.b16 %v9380
    %v9557 = vunpack.c.l.b16 %v9384
    %v9558 = vunpack.c.l.b16 %v9387
    %v9559 = vunpack.c.l.b16 %v9391
    %v9560 = vunpack.c.l.b16 %v9394
    %v9561 = vunpack.c.l.b16 %v9398
    %v9562 = vunpack.c.l.b16 %v9401
    %v9563 = vunpack.c.l.b16 %v9405
    %v9564 = vunpack.c.l.b16 %v9408
    %v9565 = vunpack.c.l.b16 %v9412
    %v9566 = vunpack.c.l.b16 %v9415
    %v9567 = vunpack.c.l.b16 %v9419
    %v9568 = vunpack.c.l.b16 %v9422
    %v9569 = vunpack.c.l.b16 %v9426
    %v9570 = vunpack.c.l.b16 %v9429
    %v9571 = vunpack.c.l.b16 %v9433
    %v9572 = vunpack.c.l.b16 %v9436
    %v9573 = vunpack.c.l.b16 %v9440
    %v9574 = vunpack.c.l.b16 %v9443
    %v9575 = vunpack.c.l.b16 %v9447
    %v9576 = vunpack.c.l.b16 %v9450
    %v9577 = vunpack.c.l.b16 %v9454
    %v9578 = vunpack.c.l.b16 %v9457
    %v9579 = vunpack.c.l.b16 %v9461
    %v9580 = vunpack.c.l.b16 %v9464
    %v9581 = vunpack.c.l.b16 %v9468
    %v9582 = vunpack.c.l.b16 %v9471
    %v9583 = vunpack.c.l.b16 %v9475
    %v9584 = vunpack.c.l.b16 %v9478
    %v9585 = vunpack.c.l.b16 %v9482
    %v9586 = vunpack.c.l.b16 %v9485
    %v9587 = vunpack.c.l.b16 %v9489
    %v9588 = vunpack.c.l.b16 %v9492
    %v9589 = vunpack.c.l.b16 %v9496
    %v9590 = vunpack.c.l.b16 %v9499
    %v9591 = vunpack.c.l.b16 %v9503
    %v9592 = vunpack.c.l.b16 %v9506
    %v9593 = vunpack.c.l.b16 %v9510
    %v9594 = vunpack.c.l.b16 %v9513
    %v9595 = vpack.c.b16 %v9532, %v9531
    %v9596 = vpack.c.b16 %v9534, %v9533
    %v9597 = vpack.c.b16 %v9536, %v9535
    %v9598 = vpack.c.b16 %v9538, %v9537
    %v9599 = vpack.c.b16 %v9540, %v9539
    %v9600 = vpack.c.b16 %v9542, %v9541
    %v9601 = vpack.c.b16 %v9544, %v9543
    %v9602 = vpack.c.b16 %v9546, %v9545
    %v9603 = vpack.c.b16 %v9548, %v9547
    %v9604 = vpack.c.b16 %v9550, %v9549
    %v9605 = vpack.c.b16 %v9552, %v9551
    %v9606 = vpack.c.b16 %v9554, %v9553
    %v9607 = vpack.c.b16 %v9556, %v9555
    %v9608 = vpack.c.b16 %v9558, %v9557
    %v9609 = vpack.c.b16 %v9560, %v9559
    %v9610 = vpack.c.b16 %v9562, %v9561
    %v9611 = vpack.c.b16 %v9564, %v9563
    %v9612 = vpack.c.b16 %v9566, %v9565
    %v9613 = vpack.c.b16 %v9568, %v9567
    %v9614 = vpack.c.b16 %v9570, %v9569
    %v9615 = vpack.c.b16 %v9572, %v9571
    %v9616 = vpack.c.b16 %v9574, %v9573
    %v9617 = vpack.c.b16 %v9576, %v9575
    %v9618 = vpack.c.b16 %v9578, %v9577
    %v9619 = vpack.c.b16 %v9580, %v9579
    %v9620 = vpack.c.b16 %v9582, %v9581
    %v9621 = vpack.c.b16 %v9584, %v9583
    %v9622 = vpack.c.b16 %v9586, %v9585
    %v9623 = vpack.c.b16 %v9588, %v9587
    %v9624 = vpack.c.b16 %v9590, %v9589
    %v9625 = vpack.c.b16 %v9592, %v9591
    %v9626 = vpack.c.b16 %v9594, %v9593
    %v9675 = vunpack.c.l.b16 %v9515
    %v9676 = vunpack.c.l.b16 %v9516
    %v9677 = vunpack.c.l.b16 %v9517
    %v9678 = vunpack.c.l.b16 %v9518
    %v9679 = vunpack.c.l.b16 %v9519
    %v9680 = vunpack.c.l.b16 %v9520
    %v9681 = vunpack.c.l.b16 %v9521
    %v9682 = vunpack.c.l.b16 %v9522
    %v9683 = vunpack.c.l.b16 %v9523
    %v9684 = vunpack.c.l.b16 %v9524
    %v9685 = vunpack.c.l.b16 %v9525
    %v9686 = vunpack.c.l.b16 %v9526
    %v9687 = vunpack.c.l.b16 %v9527
    %v9688 = vunpack.c.l.b16 %v9528
    %v9689 = vunpack.c.l.b16 %v9529
    %v9690 = vunpack.c.l.b16 %v9530
    %v9691 = vpack.c.b16 %v9676, %v9675
    %v9692 = vpack.c.b16 %v9678, %v9677
    %v9693 = vpack.c.b16 %v9680, %v9679
    %v9694 = vpack.c.b16 %v9682, %v9681
    %v9695 = vpack.c.b16 %v9684, %v9683
    %v9696 = vpack.c.b16 %v9686, %v9685
    %v9697 = vpack.c.b16 %v9688, %v9687
    %v9698 = vpack.c.b16 %v9690, %v9689
    %9707 = vmatprep.subr.bf16.mxu0 0
    %9708 = vmatpush1.bf16.msra.mxu0 %v9698
    %9709 = vmatprep.subr.bf16.mxu0 0
    %9710 = vmatpush1.bf16.msra.mxu0 %v9697
    %9711 = vmatprep.subr.bf16.mxu0 0
    %9712 = vmatpush1.bf16.msra.mxu0 %v9696
    %9713 = vmatprep.subr.bf16.mxu0 0
    %9714 = vmatpush1.bf16.msra.mxu0 %v9695
    %9715 = vmatprep.subr.bf16.mxu0 0
    %9716 = vmatpush1.bf16.msra.mxu0 %v9694
    %9717 = vmatprep.subr.bf16.mxu0 0
    %9718 = vmatpush1.bf16.msra.mxu0 %v9693
    %9719 = vmatprep.subr.bf16.mxu0 0
    %9720 = vmatpush1.bf16.msra.mxu0 %v9692
    %9721 = vmatprep.subr.bf16.mxu0 0
    %9722 = vmatpush1.bf16.msra.mxu0 %v9691
    %9723 = vmatprep.subr.bf16.mxu0 0
    %9724 = vmatpush2.bf16.msra.mxu0 0
    %9725 = vmatprep.subr.bf16.mxu0 0
    %9726 = vmatpush2.bf16.msra.mxu0 0
    %9727 = vmatprep.subr.bf16.mxu0 0
    %9728 = vmatpush2.bf16.msra.mxu0 0
    %9729 = vmatprep.subr.bf16.mxu0 0
    %9730 = vmatpush2.bf16.msra.mxu0 0
    %9731 = vmatprep.subr.bf16.mxu0 0
    %9732 = vmatpush2.bf16.msra.mxu0 0
    %9733 = vmatprep.subr.bf16.mxu0 0
    %9734 = vmatpush2.bf16.msra.mxu0 0
    %9735 = vmatprep.subr.bf16.mxu0 0
    %9736 = vmatpush2.bf16.msra.mxu0 0
    %9737 = vmatprep.subr.bf16.mxu0 0
    %9738 = vmatpush2.bf16.msra.mxu0 0
    %9739 = vmatprep.mubr.bf16.mxu0 0
    %9740 = vmatmul.mubr.bf16.gmra.mxu0 %v9595
    %v9741 = vpop.f32.mrf.mxu0
    %v9742 = vadd.f32 0.0, %v9741
    %v9743 = vpop.f32.mrf.mxu0
    %v9744 = vpop.f32.mrf.mxu0
    %v9745 = vadd.f32 0.0, %v9744
    %v9746 = vpop.f32.mrf.mxu0
    %9747 = vmatprep.mubr.bf16.mxu0 0
    %9748 = vmatmul.mubr.bf16.gmra.mxu0 %v9596
    %v9749 = vpop.f32.mrf.mxu0
    %v9750 = vadd.f32 0.0, %v9749
    %v9751 = vpop.f32.mrf.mxu0
    %v9752 = vpop.f32.mrf.mxu0
    %v9753 = vadd.f32 0.0, %v9752
    %v9754 = vpop.f32.mrf.mxu0
    %9755 = vmatprep.mubr.bf16.mxu0 0
    %9756 = vmatmul.mubr.bf16.gmra.mxu0 %v9597
    %v9757 = vpop.f32.mrf.mxu0
    %v9758 = vadd.f32 0.0, %v9757
    %v9759 = vpop.f32.mrf.mxu0
    %v9760 = vpop.f32.mrf.mxu0
    %v9761 = vadd.f32 0.0, %v9760
    %v9762 = vpop.f32.mrf.mxu0
    %9763 = vmatprep.mubr.bf16.mxu0 0
    %9764 = vmatmul.mubr.bf16.gmra.mxu0 %v9598
    %v9765 = vpop.f32.mrf.mxu0
    %v9766 = vadd.f32 0.0, %v9765
    %v9767 = vpop.f32.mrf.mxu0
    %v9768 = vpop.f32.mrf.mxu0
    %v9769 = vadd.f32 0.0, %v9768
    %v9770 = vpop.f32.mrf.mxu0
    %9771 = vmatprep.mubr.bf16.mxu0 0
    %9772 = vmatmul.mubr.bf16.gmra.mxu0 %v9599
    %v9773 = vpop.f32.mrf.mxu0
    %v9774 = vadd.f32 0.0, %v9773
    %v9775 = vpop.f32.mrf.mxu0
    %v9776 = vpop.f32.mrf.mxu0
    %v9777 = vadd.f32 0.0, %v9776
    %v9778 = vpop.f32.mrf.mxu0
    %9779 = vmatprep.mubr.bf16.mxu0 0
    %9780 = vmatmul.mubr.bf16.gmra.mxu0 %v9600
    %v9781 = vpop.f32.mrf.mxu0
    %v9782 = vadd.f32 0.0, %v9781
    %v9783 = vpop.f32.mrf.mxu0
    %v9784 = vpop.f32.mrf.mxu0
    %v9785 = vadd.f32 0.0, %v9784
    %v9786 = vpop.f32.mrf.mxu0
    %9787 = vmatprep.mubr.bf16.mxu0 0
    %9788 = vmatmul.mubr.bf16.gmra.mxu0 %v9601
    %v9789 = vpop.f32.mrf.mxu0
    %v9790 = vadd.f32 0.0, %v9789
    %v9791 = vpop.f32.mrf.mxu0
    %v9792 = vpop.f32.mrf.mxu0
    %v9793 = vadd.f32 0.0, %v9792
    %v9794 = vpop.f32.mrf.mxu0
    %9795 = vmatprep.mubr.bf16.mxu0 0
    %9796 = vmatmul.mubr.bf16.gmra.mxu0 %v9602
    %v9797 = vpop.f32.mrf.mxu0
    %v9798 = vadd.f32 0.0, %v9797
    %v9799 = vpop.f32.mrf.mxu0
    %v9800 = vpop.f32.mrf.mxu0
    %v9801 = vadd.f32 0.0, %v9800
    %v9802 = vpop.f32.mrf.mxu0
    %9803 = vmatprep.mubr.bf16.mxu0 0
    %9804 = vmatmul.mubr.bf16.gmra.mxu0 %v9603
    %v9805 = vpop.f32.mrf.mxu0
    %v9806 = vadd.f32 0.0, %v9805
    %v9807 = vpop.f32.mrf.mxu0
    %v9808 = vpop.f32.mrf.mxu0
    %v9809 = vadd.f32 0.0, %v9808
    %v9810 = vpop.f32.mrf.mxu0
    %9811 = vmatprep.mubr.bf16.mxu0 0
    %9812 = vmatmul.mubr.bf16.gmra.mxu0 %v9604
    %v9813 = vpop.f32.mrf.mxu0
    %v9814 = vadd.f32 0.0, %v9813
    %v9815 = vpop.f32.mrf.mxu0
    %v9816 = vpop.f32.mrf.mxu0
    %v9817 = vadd.f32 0.0, %v9816
    %v9818 = vpop.f32.mrf.mxu0
    %9819 = vmatprep.mubr.bf16.mxu0 0
    %9820 = vmatmul.mubr.bf16.gmra.mxu0 %v9605
    %v9821 = vpop.f32.mrf.mxu0
    %v9822 = vadd.f32 0.0, %v9821
    %v9823 = vpop.f32.mrf.mxu0
    %v9824 = vpop.f32.mrf.mxu0
    %v9825 = vadd.f32 0.0, %v9824
    %v9826 = vpop.f32.mrf.mxu0
    %9827 = vmatprep.mubr.bf16.mxu0 0
    %9828 = vmatmul.mubr.bf16.gmra.mxu0 %v9606
    %v9829 = vpop.f32.mrf.mxu0
    %v9830 = vadd.f32 0.0, %v9829
    %v9831 = vpop.f32.mrf.mxu0
    %v9832 = vpop.f32.mrf.mxu0
    %v9833 = vadd.f32 0.0, %v9832
    %v9834 = vpop.f32.mrf.mxu0
    %9835 = vmatprep.mubr.bf16.mxu0 0
    %9836 = vmatmul.mubr.bf16.gmra.mxu0 %v9607
    %v9837 = vpop.f32.mrf.mxu0
    %v9838 = vadd.f32 0.0, %v9837
    %v9839 = vpop.f32.mrf.mxu0
    %v9840 = vpop.f32.mrf.mxu0
    %v9841 = vadd.f32 0.0, %v9840
    %v9842 = vpop.f32.mrf.mxu0
    %9843 = vmatprep.mubr.bf16.mxu0 0
    %9844 = vmatmul.mubr.bf16.gmra.mxu0 %v9608
    %v9845 = vpop.f32.mrf.mxu0
    %v9846 = vadd.f32 0.0, %v9845
    %v9847 = vpop.f32.mrf.mxu0
    %v9848 = vpop.f32.mrf.mxu0
    %v9849 = vadd.f32 0.0, %v9848
    %v9850 = vpop.f32.mrf.mxu0
    %9851 = vmatprep.mubr.bf16.mxu0 0
    %9852 = vmatmul.mubr.bf16.gmra.mxu0 %v9609
    %v9853 = vpop.f32.mrf.mxu0
    %v9854 = vadd.f32 0.0, %v9853
    %v9855 = vpop.f32.mrf.mxu0
    %v9856 = vpop.f32.mrf.mxu0
    %v9857 = vadd.f32 0.0, %v9856
    %v9858 = vpop.f32.mrf.mxu0
    %9859 = vmatprep.mubr.bf16.mxu0 0
    %9860 = vmatmul.mubr.bf16.gmra.mxu0 %v9610
    %v9861 = vpop.f32.mrf.mxu0
    %v9862 = vadd.f32 0.0, %v9861
    %v9863 = vpop.f32.mrf.mxu0
    %v9864 = vpop.f32.mrf.mxu0
    %v9865 = vadd.f32 0.0, %v9864
    %v9866 = vpop.f32.mrf.mxu0
    %9867 = vmatprep.mubr.bf16.mxu0 0
    %9868 = vmatmul.mubr.bf16.gmra.mxu0 %v9611
    %v9869 = vpop.f32.mrf.mxu0
    %v9870 = vadd.f32 0.0, %v9869
    %v9871 = vpop.f32.mrf.mxu0
    %v9872 = vpop.f32.mrf.mxu0
    %v9873 = vadd.f32 0.0, %v9872
    %v9874 = vpop.f32.mrf.mxu0
    %9875 = vmatprep.mubr.bf16.mxu0 0
    %9876 = vmatmul.mubr.bf16.gmra.mxu0 %v9612
    %v9877 = vpop.f32.mrf.mxu0
    %v9878 = vadd.f32 0.0, %v9877
    %v9879 = vpop.f32.mrf.mxu0
    %v9880 = vpop.f32.mrf.mxu0
    %v9881 = vadd.f32 0.0, %v9880
    %v9882 = vpop.f32.mrf.mxu0
    %9883 = vmatprep.mubr.bf16.mxu0 0
    %9884 = vmatmul.mubr.bf16.gmra.mxu0 %v9613
    %v9885 = vpop.f32.mrf.mxu0
    %v9886 = vadd.f32 0.0, %v9885
    %v9887 = vpop.f32.mrf.mxu0
    %v9888 = vpop.f32.mrf.mxu0
    %v9889 = vadd.f32 0.0, %v9888
    %v9890 = vpop.f32.mrf.mxu0
    %9891 = vmatprep.mubr.bf16.mxu0 0
    %9892 = vmatmul.mubr.bf16.gmra.mxu0 %v9614
    %v9893 = vpop.f32.mrf.mxu0
    %v9894 = vadd.f32 0.0, %v9893
    %v9895 = vpop.f32.mrf.mxu0
    %v9896 = vpop.f32.mrf.mxu0
    %v9897 = vadd.f32 0.0, %v9896
    %v9898 = vpop.f32.mrf.mxu0
    %9899 = vmatprep.mubr.bf16.mxu0 0
    %9900 = vmatmul.mubr.bf16.gmra.mxu0 %v9615
    %v9901 = vpop.f32.mrf.mxu0
    %v9902 = vadd.f32 0.0, %v9901
    %v9903 = vpop.f32.mrf.mxu0
    %v9904 = vpop.f32.mrf.mxu0
    %v9905 = vadd.f32 0.0, %v9904
    %v9906 = vpop.f32.mrf.mxu0
    %9907 = vmatprep.mubr.bf16.mxu0 0
    %9908 = vmatmul.mubr.bf16.gmra.mxu0 %v9616
    %v9909 = vpop.f32.mrf.mxu0
    %v9910 = vadd.f32 0.0, %v9909
    %v9911 = vpop.f32.mrf.mxu0
    %v9912 = vpop.f32.mrf.mxu0
    %v9913 = vadd.f32 0.0, %v9912
    %v9914 = vpop.f32.mrf.mxu0
    %9915 = vmatprep.mubr.bf16.mxu0 0
    %9916 = vmatmul.mubr.bf16.gmra.mxu0 %v9617
    %v9917 = vpop.f32.mrf.mxu0
    %v9918 = vadd.f32 0.0, %v9917
    %v9919 = vpop.f32.mrf.mxu0
    %v9920 = vpop.f32.mrf.mxu0
    %v9921 = vadd.f32 0.0, %v9920
    %v9922 = vpop.f32.mrf.mxu0
    %9923 = vmatprep.mubr.bf16.mxu0 0
    %9924 = vmatmul.mubr.bf16.gmra.mxu0 %v9618
    %v9925 = vpop.f32.mrf.mxu0
    %v9926 = vadd.f32 0.0, %v9925
    %v9927 = vpop.f32.mrf.mxu0
    %v9928 = vpop.f32.mrf.mxu0
    %v9929 = vadd.f32 0.0, %v9928
    %v9930 = vpop.f32.mrf.mxu0
    %9931 = vmatprep.mubr.bf16.mxu0 0
    %9932 = vmatmul.mubr.bf16.gmra.mxu0 %v9619
    %v9933 = vpop.f32.mrf.mxu0
    %v9934 = vadd.f32 0.0, %v9933
    %v9935 = vpop.f32.mrf.mxu0
    %v9936 = vpop.f32.mrf.mxu0
    %v9937 = vadd.f32 0.0, %v9936
    %v9938 = vpop.f32.mrf.mxu0
    %9939 = vmatprep.mubr.bf16.mxu0 0
    %9940 = vmatmul.mubr.bf16.gmra.mxu0 %v9620
    %v9941 = vpop.f32.mrf.mxu0
    %v9942 = vadd.f32 0.0, %v9941
    %v9943 = vpop.f32.mrf.mxu0
    %v9944 = vpop.f32.mrf.mxu0
    %v9945 = vadd.f32 0.0, %v9944
    %v9946 = vpop.f32.mrf.mxu0
    %9947 = vmatprep.mubr.bf16.mxu0 0
    %9948 = vmatmul.mubr.bf16.gmra.mxu0 %v9621
    %v9949 = vpop.f32.mrf.mxu0
    %v9950 = vadd.f32 0.0, %v9949
    %v9951 = vpop.f32.mrf.mxu0
    %v9952 = vpop.f32.mrf.mxu0
    %v9953 = vadd.f32 0.0, %v9952
    %v9954 = vpop.f32.mrf.mxu0
    %9955 = vmatprep.mubr.bf16.mxu0 0
    %9956 = vmatmul.mubr.bf16.gmra.mxu0 %v9622
    %v9957 = vpop.f32.mrf.mxu0
    %v9958 = vadd.f32 0.0, %v9957
    %v9959 = vpop.f32.mrf.mxu0
    %v9960 = vpop.f32.mrf.mxu0
    %v9961 = vadd.f32 0.0, %v9960
    %v9962 = vpop.f32.mrf.mxu0
    %9963 = vmatprep.mubr.bf16.mxu0 0
    %9964 = vmatmul.mubr.bf16.gmra.mxu0 %v9623
    %v9965 = vpop.f32.mrf.mxu0
    %v9966 = vadd.f32 0.0, %v9965
    %v9967 = vpop.f32.mrf.mxu0
    %v9968 = vpop.f32.mrf.mxu0
    %v9969 = vadd.f32 0.0, %v9968
    %v9970 = vpop.f32.mrf.mxu0
    %9971 = vmatprep.mubr.bf16.mxu0 0
    %9972 = vmatmul.mubr.bf16.gmra.mxu0 %v9624
    %v9973 = vpop.f32.mrf.mxu0
    %v9974 = vadd.f32 0.0, %v9973
    %v9975 = vpop.f32.mrf.mxu0
    %v9976 = vpop.f32.mrf.mxu0
    %v9977 = vadd.f32 0.0, %v9976
    %v9978 = vpop.f32.mrf.mxu0
    %9979 = vmatprep.mubr.bf16.mxu0 0
    %9980 = vmatmul.mubr.bf16.gmra.mxu0 %v9625
    %v9981 = vpop.f32.mrf.mxu0
    %v9982 = vadd.f32 0.0, %v9981
    %v9983 = vpop.f32.mrf.mxu0
    %v9984 = vpop.f32.mrf.mxu0
    %v9985 = vadd.f32 0.0, %v9984
    %v9986 = vpop.f32.mrf.mxu0
    %9987 = vmatprep.mubr.bf16.mxu0 0
    %9988 = vmatmul.mubr.bf16.gmra.mxu0 %v9626
    %v9989 = vpop.f32.mrf.mxu0
    %v9990 = vadd.f32 0.0, %v9989
    %v9991 = vpop.f32.mrf.mxu0
    %v9992 = vpop.f32.mrf.mxu0
    %v9993 = vadd.f32 0.0, %v9992
    %v9994 = vpop.f32.mrf.mxu0
    %9995 = vdwg.mxu0
    %v9996 = vld [vmem:[#allocation2] sm:$0xff]
    %v9997 = vld [vmem:[#allocation2 + $0x8] sm:$0xff]
    %v9998 = vld [vmem:[#allocation2 + $0x10] sm:$0xff]
    %v9999 = vld [vmem:[#allocation2 + $0x18] sm:$0xff]
    %v10000 = vld [vmem:[#allocation2 + $0x20] sm:$0xff]
    %v10001 = vld [vmem:[#allocation2 + $0x28] sm:$0xff]
    %v10002 = vld [vmem:[#allocation2 + $0x30] sm:$0xff]
    %v10003 = vld [vmem:[#allocation2 + $0x38] sm:$0xff]
    %v10004 = vld [vmem:[#allocation2 + $0x40] sm:$0xff]
    %v10005 = vld [vmem:[#allocation2 + $0x48] sm:$0xff]
    %v10006 = vld [vmem:[#allocation2 + $0x50] sm:$0xff]
    %v10007 = vld [vmem:[#allocation2 + $0x58] sm:$0xff]
    %v10008 = vld [vmem:[#allocation2 + $0x60] sm:$0xff]
    %v10009 = vld [vmem:[#allocation2 + $0x68] sm:$0xff]
    %v10010 = vld [vmem:[#allocation2 + $0x70] sm:$0xff]
    %v10011 = vld [vmem:[#allocation2 + $0x78] sm:$0xff]
    %v10012 = vld [vmem:[#allocation2 + $0x80] sm:$0xff]
    %v10013 = vld [vmem:[#allocation2 + $0x88] sm:$0xff]
    %v10014 = vld [vmem:[#allocation2 + $0x90] sm:$0xff]
    %v10015 = vld [vmem:[#allocation2 + $0x98] sm:$0xff]
    %v10016 = vld [vmem:[#allocation2 + $0xa0] sm:$0xff]
    %v10017 = vld [vmem:[#allocation2 + $0xa8] sm:$0xff]
    %v10018 = vld [vmem:[#allocation2 + $0xb0] sm:$0xff]
    %v10019 = vld [vmem:[#allocation2 + $0xb8] sm:$0xff]
    %v10020 = vld [vmem:[#allocation2 + $0xc0] sm:$0xff]
    %v10021 = vld [vmem:[#allocation2 + $0xc8] sm:$0xff]
    %v10022 = vld [vmem:[#allocation2 + $0xd0] sm:$0xff]
    %v10023 = vld [vmem:[#allocation2 + $0xd8] sm:$0xff]
    %v10024 = vld [vmem:[#allocation2 + $0xe0] sm:$0xff]
    %v10025 = vld [vmem:[#allocation2 + $0xe8] sm:$0xff]
    %v10026 = vld [vmem:[#allocation2 + $0xf0] sm:$0xff]
    %v10027 = vld [vmem:[#allocation2 + $0xf8] sm:$0xff]
    %v10028 = vld [vmem:[#allocation2 + $0x100] sm:$0xff]
    %v10029 = vld [vmem:[#allocation2 + $0x108] sm:$0xff]
    %v10030 = vld [vmem:[#allocation2 + $0x110] sm:$0xff]
    %v10031 = vld [vmem:[#allocation2 + $0x118] sm:$0xff]
    %v10032 = vld [vmem:[#allocation2 + $0x120] sm:$0xff]
    %v10033 = vld [vmem:[#allocation2 + $0x128] sm:$0xff]
    %v10034 = vld [vmem:[#allocation2 + $0x130] sm:$0xff]
    %v10035 = vld [vmem:[#allocation2 + $0x138] sm:$0xff]
    %v10036 = vld [vmem:[#allocation2 + $0x140] sm:$0xff]
    %v10037 = vld [vmem:[#allocation2 + $0x148] sm:$0xff]
    %v10038 = vld [vmem:[#allocation2 + $0x150] sm:$0xff]
    %v10039 = vld [vmem:[#allocation2 + $0x158] sm:$0xff]
    %v10040 = vld [vmem:[#allocation2 + $0x160] sm:$0xff]
    %v10041 = vld [vmem:[#allocation2 + $0x168] sm:$0xff]
    %v10042 = vld [vmem:[#allocation2 + $0x170] sm:$0xff]
    %v10043 = vld [vmem:[#allocation2 + $0x178] sm:$0xff]
    %v10044 = vld [vmem:[#allocation2 + $0x180] sm:$0xff]
    %v10045 = vld [vmem:[#allocation2 + $0x188] sm:$0xff]
    %v10046 = vld [vmem:[#allocation2 + $0x190] sm:$0xff]
    %v10047 = vld [vmem:[#allocation2 + $0x198] sm:$0xff]
    %v10048 = vld [vmem:[#allocation2 + $0x1a0] sm:$0xff]
    %v10049 = vld [vmem:[#allocation2 + $0x1a8] sm:$0xff]
    %v10050 = vld [vmem:[#allocation2 + $0x1b0] sm:$0xff]
    %v10051 = vld [vmem:[#allocation2 + $0x1b8] sm:$0xff]
    %v10052 = vld [vmem:[#allocation2 + $0x1c0] sm:$0xff]
    %v10053 = vld [vmem:[#allocation2 + $0x1c8] sm:$0xff]
    %v10054 = vld [vmem:[#allocation2 + $0x1d0] sm:$0xff]
    %v10055 = vld [vmem:[#allocation2 + $0x1d8] sm:$0xff]
    %v10056 = vld [vmem:[#allocation2 + $0x1e0] sm:$0xff]
    %v10057 = vld [vmem:[#allocation2 + $0x1e8] sm:$0xff]
    %v10058 = vld [vmem:[#allocation2 + $0x1f0] sm:$0xff]
    %v10059 = vld [vmem:[#allocation2 + $0x1f8] sm:$0xff]
    %v10060 = vadd.f32 %v9996, %v9742
    %v10061 = vadd.f32 %v9997, %v9745
    %v10062 = vadd.f32 %v9998, %v9750
    %v10063 = vadd.f32 %v9999, %v9753
    %v10064 = vadd.f32 %v10000, %v9758
    %v10065 = vadd.f32 %v10001, %v9761
    %v10066 = vadd.f32 %v10002, %v9766
    %v10067 = vadd.f32 %v10003, %v9769
    %v10068 = vadd.f32 %v10004, %v9774
    %v10069 = vadd.f32 %v10005, %v9777
    %v10070 = vadd.f32 %v10006, %v9782
    %v10071 = vadd.f32 %v10007, %v9785
    %v10072 = vadd.f32 %v10008, %v9790
    %v10073 = vadd.f32 %v10009, %v9793
    %v10074 = vadd.f32 %v10010, %v9798
    %v10075 = vadd.f32 %v10011, %v9801
    %v10076 = vadd.f32 %v10012, %v9806
    %v10077 = vadd.f32 %v10013, %v9809
    %v10078 = vadd.f32 %v10014, %v9814
    %v10079 = vadd.f32 %v10015, %v9817
    %v10080 = vadd.f32 %v10016, %v9822
    %v10081 = vadd.f32 %v10017, %v9825
    %v10082 = vadd.f32 %v10018, %v9830
    %v10083 = vadd.f32 %v10019, %v9833
    %v10084 = vadd.f32 %v10020, %v9838
    %v10085 = vadd.f32 %v10021, %v9841
    %v10086 = vadd.f32 %v10022, %v9846
    %v10087 = vadd.f32 %v10023, %v9849
    %v10088 = vadd.f32 %v10024, %v9854
    %v10089 = vadd.f32 %v10025, %v9857
    %v10090 = vadd.f32 %v10026, %v9862
    %v10091 = vadd.f32 %v10027, %v9865
    %v10092 = vadd.f32 %v10028, %v9870
    %v10093 = vadd.f32 %v10029, %v9873
    %v10094 = vadd.f32 %v10030, %v9878
    %v10095 = vadd.f32 %v10031, %v9881
    %v10096 = vadd.f32 %v10032, %v9886
    %v10097 = vadd.f32 %v10033, %v9889
    %v10098 = vadd.f32 %v10034, %v9894
    %v10099 = vadd.f32 %v10035, %v9897
    %v10100 = vadd.f32 %v10036, %v9902
    %v10101 = vadd.f32 %v10037, %v9905
    %v10102 = vadd.f32 %v10038, %v9910
    %v10103 = vadd.f32 %v10039, %v9913
    %v10104 = vadd.f32 %v10040, %v9918
    %v10105 = vadd.f32 %v10041, %v9921
    %v10106 = vadd.f32 %v10042, %v9926
    %v10107 = vadd.f32 %v10043, %v9929
    %v10108 = vadd.f32 %v10044, %v9934
    %v10109 = vadd.f32 %v10045, %v9937
    %v10110 = vadd.f32 %v10046, %v9942
    %v10111 = vadd.f32 %v10047, %v9945
    %v10112 = vadd.f32 %v10048, %v9950
    %v10113 = vadd.f32 %v10049, %v9953
    %v10114 = vadd.f32 %v10050, %v9958
    %v10115 = vadd.f32 %v10051, %v9961
    %v10116 = vadd.f32 %v10052, %v9966
    %v10117 = vadd.f32 %v10053, %v9969
    %v10118 = vadd.f32 %v10054, %v9974
    %v10119 = vadd.f32 %v10055, %v9977
    %v10120 = vadd.f32 %v10056, %v9982
    %v10121 = vadd.f32 %v10057, %v9985
    %v10122 = vadd.f32 %v10058, %v9990
    %v10123 = vadd.f32 %v10059, %v9993
    %10124 = vst [vmem:[#allocation2] sm:$0xff] %v10060
    %10125 = vst [vmem:[#allocation2 + $0x8] sm:$0xff] %v10061
    %10126 = vst [vmem:[#allocation2 + $0x10] sm:$0xff] %v10062
    %10127 = vst [vmem:[#allocation2 + $0x18] sm:$0xff] %v10063
    %10128 = vst [vmem:[#allocation2 + $0x20] sm:$0xff] %v10064
    %10129 = vst [vmem:[#allocation2 + $0x28] sm:$0xff] %v10065
    %10130 = vst [vmem:[#allocation2 + $0x30] sm:$0xff] %v10066
    %10131 = vst [vmem:[#allocation2 + $0x38] sm:$0xff] %v10067
    %10132 = vst [vmem:[#allocation2 + $0x40] sm:$0xff] %v10068
    %10133 = vst [vmem:[#allocation2 + $0x48] sm:$0xff] %v10069
    %10134 = vst [vmem:[#allocation2 + $0x50] sm:$0xff] %v10070
    %10135 = vst [vmem:[#allocation2 + $0x58] sm:$0xff] %v10071
    %10136 = vst [vmem:[#allocation2 + $0x60] sm:$0xff] %v10072
    %10137 = vst [vmem:[#allocation2 + $0x68] sm:$0xff] %v10073
    %10138 = vst [vmem:[#allocation2 + $0x70] sm:$0xff] %v10074
    %10139 = vst [vmem:[#allocation2 + $0x78] sm:$0xff] %v10075
    %10140 = vst [vmem:[#allocation2 + $0x80] sm:$0xff] %v10076
    %10141 = vst [vmem:[#allocation2 + $0x88] sm:$0xff] %v10077
    %10142 = vst [vmem:[#allocation2 + $0x90] sm:$0xff] %v10078
    %10143 = vst [vmem:[#allocation2 + $0x98] sm:$0xff] %v10079
    %10144 = vst [vmem:[#allocation2 + $0xa0] sm:$0xff] %v10080
    %10145 = vst [vmem:[#allocation2 + $0xa8] sm:$0xff] %v10081
    %10146 = vst [vmem:[#allocation2 + $0xb0] sm:$0xff] %v10082
    %10147 = vst [vmem:[#allocation2 + $0xb8] sm:$0xff] %v10083
    %10148 = vst [vmem:[#allocation2 + $0xc0] sm:$0xff] %v10084
    %10149 = vst [vmem:[#allocation2 + $0xc8] sm:$0xff] %v10085
    %10150 = vst [vmem:[#allocation2 + $0xd0] sm:$0xff] %v10086
    %10151 = vst [vmem:[#allocation2 + $0xd8] sm:$0xff] %v10087
    %10152 = vst [vmem:[#allocation2 + $0xe0] sm:$0xff] %v10088
    %10153 = vst [vmem:[#allocation2 + $0xe8] sm:$0xff] %v10089
    %10154 = vst [vmem:[#allocation2 + $0xf0] sm:$0xff] %v10090
    %10155 = vst [vmem:[#allocation2 + $0xf8] sm:$0xff] %v10091
    %10156 = vst [vmem:[#allocation2 + $0x100] sm:$0xff] %v10092
    %10157 = vst [vmem:[#allocation2 + $0x108] sm:$0xff] %v10093
    %10158 = vst [vmem:[#allocation2 + $0x110] sm:$0xff] %v10094
    %10159 = vst [vmem:[#allocation2 + $0x118] sm:$0xff] %v10095
    %10160 = vst [vmem:[#allocation2 + $0x120] sm:$0xff] %v10096
    %10161 = vst [vmem:[#allocation2 + $0x128] sm:$0xff] %v10097
    %10162 = vst [vmem:[#allocation2 + $0x130] sm:$0xff] %v10098
    %10163 = vst [vmem:[#allocation2 + $0x138] sm:$0xff] %v10099
    %10164 = vst [vmem:[#allocation2 + $0x140] sm:$0xff] %v10100
    %10165 = vst [vmem:[#allocation2 + $0x148] sm:$0xff] %v10101
    %10166 = vst [vmem:[#allocation2 + $0x150] sm:$0xff] %v10102
    %10167 = vst [vmem:[#allocation2 + $0x158] sm:$0xff] %v10103
    %10168 = vst [vmem:[#allocation2 + $0x160] sm:$0xff] %v10104
    %10169 = vst [vmem:[#allocation2 + $0x168] sm:$0xff] %v10105
    %10170 = vst [vmem:[#allocation2 + $0x170] sm:$0xff] %v10106
    %10171 = vst [vmem:[#allocation2 + $0x178] sm:$0xff] %v10107
    %10172 = vst [vmem:[#allocation2 + $0x180] sm:$0xff] %v10108
    %10173 = vst [vmem:[#allocation2 + $0x188] sm:$0xff] %v10109
    %10174 = vst [vmem:[#allocation2 + $0x190] sm:$0xff] %v10110
    %10175 = vst [vmem:[#allocation2 + $0x198] sm:$0xff] %v10111
    %10176 = vst [vmem:[#allocation2 + $0x1a0] sm:$0xff] %v10112
    %10177 = vst [vmem:[#allocation2 + $0x1a8] sm:$0xff] %v10113
    %10178 = vst [vmem:[#allocation2 + $0x1b0] sm:$0xff] %v10114
    %10179 = vst [vmem:[#allocation2 + $0x1b8] sm:$0xff] %v10115
    %10180 = vst [vmem:[#allocation2 + $0x1c0] sm:$0xff] %v10116
    %10181 = vst [vmem:[#allocation2 + $0x1c8] sm:$0xff] %v10117
    %10182 = vst [vmem:[#allocation2 + $0x1d0] sm:$0xff] %v10118
    %10183 = vst [vmem:[#allocation2 + $0x1d8] sm:$0xff] %v10119
    %10184 = vst [vmem:[#allocation2 + $0x1e0] sm:$0xff] %v10120
    %10185 = vst [vmem:[#allocation2 + $0x1e8] sm:$0xff] %v10121
    %10186 = vst [vmem:[#allocation2 + $0x1f0] sm:$0xff] %v10122
    %10187 = vst [vmem:[#allocation2 + $0x1f8] sm:$0xff] %v10123
    %v10188 = vld [vmem:[%s3] sm:$0x1]
    %v10189 = vld [vmem:[%s3 + $0x1] sm:$0x1]
    %v10190 = vld [vmem:[%s3 + $0x2] sm:$0x1]
    %v10191 = vld [vmem:[%s3 + $0x3] sm:$0x1]
    %v10192 = vld [vmem:[#allocation2] sm:$0xff]
    %v10193 = vld [vmem:[#allocation2 + $0x8] sm:$0xff]
    %v10194 = vld [vmem:[#allocation2 + $0x10] sm:$0xff]
    %v10195 = vld [vmem:[#allocation2 + $0x18] sm:$0xff]
    %v10196 = vld [vmem:[#allocation2 + $0x20] sm:$0xff]
    %v10197 = vld [vmem:[#allocation2 + $0x28] sm:$0xff]
    %v10198 = vld [vmem:[#allocation2 + $0x30] sm:$0xff]
    %v10199 = vld [vmem:[#allocation2 + $0x38] sm:$0xff]
    %v10200 = vld [vmem:[#allocation2 + $0x40] sm:$0xff]
    %v10201 = vld [vmem:[#allocation2 + $0x48] sm:$0xff]
    %v10202 = vld [vmem:[#allocation2 + $0x50] sm:$0xff]
    %v10203 = vld [vmem:[#allocation2 + $0x58] sm:$0xff]
    %v10204 = vld [vmem:[#allocation2 + $0x60] sm:$0xff]
    %v10205 = vld [vmem:[#allocation2 + $0x68] sm:$0xff]
    %v10206 = vld [vmem:[#allocation2 + $0x70] sm:$0xff]
    %v10207 = vld [vmem:[#allocation2 + $0x78] sm:$0xff]
    %v10208 = vld [vmem:[#allocation2 + $0x80] sm:$0xff]
    %v10209 = vld [vmem:[#allocation2 + $0x88] sm:$0xff]
    %v10210 = vld [vmem:[#allocation2 + $0x90] sm:$0xff]
    %v10211 = vld [vmem:[#allocation2 + $0x98] sm:$0xff]
    %v10212 = vld [vmem:[#allocation2 + $0xa0] sm:$0xff]
    %v10213 = vld [vmem:[#allocation2 + $0xa8] sm:$0xff]
    %v10214 = vld [vmem:[#allocation2 + $0xb0] sm:$0xff]
    %v10215 = vld [vmem:[#allocation2 + $0xb8] sm:$0xff]
    %v10216 = vld [vmem:[#allocation2 + $0xc0] sm:$0xff]
    %v10217 = vld [vmem:[#allocation2 + $0xc8] sm:$0xff]
    %v10218 = vld [vmem:[#allocation2 + $0xd0] sm:$0xff]
    %v10219 = vld [vmem:[#allocation2 + $0xd8] sm:$0xff]
    %v10220 = vld [vmem:[#allocation2 + $0xe0] sm:$0xff]
    %v10221 = vld [vmem:[#allocation2 + $0xe8] sm:$0xff]
    %v10222 = vld [vmem:[#allocation2 + $0xf0] sm:$0xff]
    %v10223 = vld [vmem:[#allocation2 + $0xf8] sm:$0xff]
    %v10224 = vld [vmem:[#allocation2 + $0x100] sm:$0xff]
    %v10225 = vld [vmem:[#allocation2 + $0x108] sm:$0xff]
    %v10226 = vld [vmem:[#allocation2 + $0x110] sm:$0xff]
    %v10227 = vld [vmem:[#allocation2 + $0x118] sm:$0xff]
    %v10228 = vld [vmem:[#allocation2 + $0x120] sm:$0xff]
    %v10229 = vld [vmem:[#allocation2 + $0x128] sm:$0xff]
    %v10230 = vld [vmem:[#allocation2 + $0x130] sm:$0xff]
    %v10231 = vld [vmem:[#allocation2 + $0x138] sm:$0xff]
    %v10232 = vld [vmem:[#allocation2 + $0x140] sm:$0xff]
    %v10233 = vld [vmem:[#allocation2 + $0x148] sm:$0xff]
    %v10234 = vld [vmem:[#allocation2 + $0x150] sm:$0xff]
    %v10235 = vld [vmem:[#allocation2 + $0x158] sm:$0xff]
    %v10236 = vld [vmem:[#allocation2 + $0x160] sm:$0xff]
    %v10237 = vld [vmem:[#allocation2 + $0x168] sm:$0xff]
    %v10238 = vld [vmem:[#allocation2 + $0x170] sm:$0xff]
    %v10239 = vld [vmem:[#allocation2 + $0x178] sm:$0xff]
    %v10240 = vld [vmem:[#allocation2 + $0x180] sm:$0xff]
    %v10241 = vld [vmem:[#allocation2 + $0x188] sm:$0xff]
    %v10242 = vld [vmem:[#allocation2 + $0x190] sm:$0xff]
    %v10243 = vld [vmem:[#allocation2 + $0x198] sm:$0xff]
    %v10244 = vld [vmem:[#allocation2 + $0x1a0] sm:$0xff]
    %v10245 = vld [vmem:[#allocation2 + $0x1a8] sm:$0xff]
    %v10246 = vld [vmem:[#allocation2 + $0x1b0] sm:$0xff]
    %v10247 = vld [vmem:[#allocation2 + $0x1b8] sm:$0xff]
    %v10248 = vld [vmem:[#allocation2 + $0x1c0] sm:$0xff]
    %v10249 = vld [vmem:[#allocation2 + $0x1c8] sm:$0xff]
    %v10250 = vld [vmem:[#allocation2 + $0x1d0] sm:$0xff]
    %v10251 = vld [vmem:[#allocation2 + $0x1d8] sm:$0xff]
    %v10252 = vld [vmem:[#allocation2 + $0x1e0] sm:$0xff]
    %v10253 = vld [vmem:[#allocation2 + $0x1e8] sm:$0xff]
    %v10254 = vld [vmem:[#allocation2 + $0x1f0] sm:$0xff]
    %v10255 = vld [vmem:[#allocation2 + $0x1f8] sm:$0xff]
    %v10256 = vadd.f32 %v10192, %v10193
    %v10257 = vadd.f32 %v10256, %v10194
    %v10258 = vadd.f32 %v10257, %v10195
    %v10259 = vadd.f32 %v10258, %v10196
    %v10260 = vadd.f32 %v10259, %v10197
    %v10261 = vadd.f32 %v10260, %v10198
    %v10262 = vadd.f32 %v10261, %v10199
    %v10263 = vadd.f32 %v10262, %v10200
    %v10264 = vadd.f32 %v10263, %v10201
    %v10265 = vadd.f32 %v10264, %v10202
    %v10266 = vadd.f32 %v10265, %v10203
    %v10267 = vadd.f32 %v10266, %v10204
    %v10268 = vadd.f32 %v10267, %v10205
    %v10269 = vadd.f32 %v10268, %v10206
    %v10270 = vadd.f32 %v10269, %v10207
    %v10271 = vadd.f32 %v10270, %v10208
    %v10272 = vadd.f32 %v10271, %v10209
    %v10273 = vadd.f32 %v10272, %v10210
    %v10274 = vadd.f32 %v10273, %v10211
    %v10275 = vadd.f32 %v10274, %v10212
    %v10276 = vadd.f32 %v10275, %v10213
    %v10277 = vadd.f32 %v10276, %v10214
    %v10278 = vadd.f32 %v10277, %v10215
    %v10279 = vadd.f32 %v10278, %v10216
    %v10280 = vadd.f32 %v10279, %v10217
    %v10281 = vadd.f32 %v10280, %v10218
    %v10282 = vadd.f32 %v10281, %v10219
    %v10283 = vadd.f32 %v10282, %v10220
    %v10284 = vadd.f32 %v10283, %v10221
    %v10285 = vadd.f32 %v10284, %v10222
    %v10286 = vadd.f32 %v10285, %v10223
    %v10287 = vadd.f32 %v10286, %v10224
    %v10288 = vadd.f32 %v10287, %v10225
    %v10289 = vadd.f32 %v10288, %v10226
    %v10290 = vadd.f32 %v10289, %v10227
    %v10291 = vadd.f32 %v10290, %v10228
    %v10292 = vadd.f32 %v10291, %v10229
    %v10293 = vadd.f32 %v10292, %v10230
    %v10294 = vadd.f32 %v10293, %v10231
    %v10295 = vadd.f32 %v10294, %v10232
    %v10296 = vadd.f32 %v10295, %v10233
    %v10297 = vadd.f32 %v10296, %v10234
    %v10298 = vadd.f32 %v10297, %v10235
    %v10299 = vadd.f32 %v10298, %v10236
    %v10300 = vadd.f32 %v10299, %v10237
    %v10301 = vadd.f32 %v10300, %v10238
    %v10302 = vadd.f32 %v10301, %v10239
    %v10303 = vadd.f32 %v10302, %v10240
    %v10304 = vadd.f32 %v10303, %v10241
    %v10305 = vadd.f32 %v10304, %v10242
    %v10306 = vadd.f32 %v10305, %v10243
    %v10307 = vadd.f32 %v10306, %v10244
    %v10308 = vadd.f32 %v10307, %v10245
    %v10309 = vadd.f32 %v10308, %v10246
    %v10310 = vadd.f32 %v10309, %v10247
    %v10311 = vadd.f32 %v10310, %v10248
    %v10312 = vadd.f32 %v10311, %v10249
    %v10313 = vadd.f32 %v10312, %v10250
    %v10314 = vadd.f32 %v10313, %v10251
    %v10315 = vadd.f32 %v10314, %v10252
    %v10316 = vadd.f32 %v10315, %v10253
    %v10317 = vadd.f32 %v10316, %v10254
    %v10318 = vadd.f32 %v10317, %v10255
    %v10319 = vrot.slane %v10318, 4
    %v10320 = vadd.f32 %v10318, %v10319
    %v10321 = vrot.slane %v10320, 2
    %v10322 = vadd.f32 %v10320, %v10321
    %v10323 = vrot.slane %v10322, 1
    %v10324 = vadd.f32 %v10322, %v10323
    %v10325 = vrcp.pop 512.0
    %v10326 = vmul.f32 %v10324, %v10325
    %v10327 = vsub.f32 %v10192, %v10326
    %v10328 = vsub.f32 %v10193, %v10326
    %v10329 = vsub.f32 %v10194, %v10326
    %v10330 = vsub.f32 %v10195, %v10326
    %v10331 = vsub.f32 %v10196, %v10326
    %v10332 = vsub.f32 %v10197, %v10326
    %v10333 = vsub.f32 %v10198, %v10326
    %v10334 = vsub.f32 %v10199, %v10326
    %v10335 = vsub.f32 %v10200, %v10326
    %v10336 = vsub.f32 %v10201, %v10326
    %v10337 = vsub.f32 %v10202, %v10326
    %v10338 = vsub.f32 %v10203, %v10326
    %v10339 = vsub.f32 %v10204, %v10326
    %v10340 = vsub.f32 %v10205, %v10326
    %v10341 = vsub.f32 %v10206, %v10326
    %v10342 = vsub.f32 %v10207, %v10326
    %v10343 = vsub.f32 %v10208, %v10326
    %v10344 = vsub.f32 %v10209, %v10326
    %v10345 = vsub.f32 %v10210, %v10326
    %v10346 = vsub.f32 %v10211, %v10326
    %v10347 = vsub.f32 %v10212, %v10326
    %v10348 = vsub.f32 %v10213, %v10326
    %v10349 = vsub.f32 %v10214, %v10326
    %v10350 = vsub.f32 %v10215, %v10326
    %v10351 = vsub.f32 %v10216, %v10326
    %v10352 = vsub.f32 %v10217, %v10326
    %v10353 = vsub.f32 %v10218, %v10326
    %v10354 = vsub.f32 %v10219, %v10326
    %v10355 = vsub.f32 %v10220, %v10326
    %v10356 = vsub.f32 %v10221, %v10326
    %v10357 = vsub.f32 %v10222, %v10326
    %v10358 = vsub.f32 %v10223, %v10326
    %v10359 = vsub.f32 %v10224, %v10326
    %v10360 = vsub.f32 %v10225, %v10326
    %v10361 = vsub.f32 %v10226, %v10326
    %v10362 = vsub.f32 %v10227, %v10326
    %v10363 = vsub.f32 %v10228, %v10326
    %v10364 = vsub.f32 %v10229, %v10326
    %v10365 = vsub.f32 %v10230, %v10326
    %v10366 = vsub.f32 %v10231, %v10326
    %v10367 = vsub.f32 %v10232, %v10326
    %v10368 = vsub.f32 %v10233, %v10326
    %v10369 = vsub.f32 %v10234, %v10326
    %v10370 = vsub.f32 %v10235, %v10326
    %v10371 = vsub.f32 %v10236, %v10326
    %v10372 = vsub.f32 %v10237, %v10326
    %v10373 = vsub.f32 %v10238, %v10326
    %v10374 = vsub.f32 %v10239, %v10326
    %v10375 = vsub.f32 %v10240, %v10326
    %v10376 = vsub.f32 %v10241, %v10326
    %v10377 = vsub.f32 %v10242, %v10326
    %v10378 = vsub.f32 %v10243, %v10326
    %v10379 = vsub.f32 %v10244, %v10326
    %v10380 = vsub.f32 %v10245, %v10326
    %v10381 = vsub.f32 %v10246, %v10326
    %v10382 = vsub.f32 %v10247, %v10326
    %v10383 = vsub.f32 %v10248, %v10326
    %v10384 = vsub.f32 %v10249, %v10326
    %v10385 = vsub.f32 %v10250, %v10326
    %v10386 = vsub.f32 %v10251, %v10326
    %v10387 = vsub.f32 %v10252, %v10326
    %v10388 = vsub.f32 %v10253, %v10326
    %v10389 = vsub.f32 %v10254, %v10326
    %v10390 = vsub.f32 %v10255, %v10326
    %v10391 = vmul.f32 %v10327, %v10327
    %v10392 = vmul.f32 %v10328, %v10328
    %v10393 = vmul.f32 %v10329, %v10329
    %v10394 = vmul.f32 %v10330, %v10330
    %v10395 = vmul.f32 %v10331, %v10331
    %v10396 = vmul.f32 %v10332, %v10332
    %v10397 = vmul.f32 %v10333, %v10333
    %v10398 = vmul.f32 %v10334, %v10334
    %v10399 = vmul.f32 %v10335, %v10335
    %v10400 = vmul.f32 %v10336, %v10336
    %v10401 = vmul.f32 %v10337, %v10337
    %v10402 = vmul.f32 %v10338, %v10338
    %v10403 = vmul.f32 %v10339, %v10339
    %v10404 = vmul.f32 %v10340, %v10340
    %v10405 = vmul.f32 %v10341, %v10341
    %v10406 = vmul.f32 %v10342, %v10342
    %v10407 = vmul.f32 %v10343, %v10343
    %v10408 = vmul.f32 %v10344, %v10344
    %v10409 = vmul.f32 %v10345, %v10345
    %v10410 = vmul.f32 %v10346, %v10346
    %v10411 = vmul.f32 %v10347, %v10347
    %v10412 = vmul.f32 %v10348, %v10348
    %v10413 = vmul.f32 %v10349, %v10349
    %v10414 = vmul.f32 %v10350, %v10350
    %v10415 = vmul.f32 %v10351, %v10351
    %v10416 = vmul.f32 %v10352, %v10352
    %v10417 = vmul.f32 %v10353, %v10353
    %v10418 = vmul.f32 %v10354, %v10354
    %v10419 = vmul.f32 %v10355, %v10355
    %v10420 = vmul.f32 %v10356, %v10356
    %v10421 = vmul.f32 %v10357, %v10357
    %v10422 = vmul.f32 %v10358, %v10358
    %v10423 = vmul.f32 %v10359, %v10359
    %v10424 = vmul.f32 %v10360, %v10360
    %v10425 = vmul.f32 %v10361, %v10361
    %v10426 = vmul.f32 %v10362, %v10362
    %v10427 = vmul.f32 %v10363, %v10363
    %v10428 = vmul.f32 %v10364, %v10364
    %v10429 = vmul.f32 %v10365, %v10365
    %v10430 = vmul.f32 %v10366, %v10366
    %v10431 = vmul.f32 %v10367, %v10367
    %v10432 = vmul.f32 %v10368, %v10368
    %v10433 = vmul.f32 %v10369, %v10369
    %v10434 = vmul.f32 %v10370, %v10370
    %v10435 = vmul.f32 %v10371, %v10371
    %v10436 = vmul.f32 %v10372, %v10372
    %v10437 = vmul.f32 %v10373, %v10373
    %v10438 = vmul.f32 %v10374, %v10374
    %v10439 = vmul.f32 %v10375, %v10375
    %v10440 = vmul.f32 %v10376, %v10376
    %v10441 = vmul.f32 %v10377, %v10377
    %v10442 = vmul.f32 %v10378, %v10378
    %v10443 = vmul.f32 %v10379, %v10379
    %v10444 = vmul.f32 %v10380, %v10380
    %v10445 = vmul.f32 %v10381, %v10381
    %v10446 = vmul.f32 %v10382, %v10382
    %v10447 = vmul.f32 %v10383, %v10383
    %v10448 = vmul.f32 %v10384, %v10384
    %v10449 = vmul.f32 %v10385, %v10385
    %v10450 = vmul.f32 %v10386, %v10386
    %v10451 = vmul.f32 %v10387, %v10387
    %v10452 = vmul.f32 %v10388, %v10388
    %v10453 = vmul.f32 %v10389, %v10389
    %v10454 = vmul.f32 %v10390, %v10390
    %v10455 = vadd.f32 %v10391, %v10392
    %v10456 = vadd.f32 %v10455, %v10393
    %v10457 = vadd.f32 %v10456, %v10394
    %v10458 = vadd.f32 %v10457, %v10395
    %v10459 = vadd.f32 %v10458, %v10396
    %v10460 = vadd.f32 %v10459, %v10397
    %v10461 = vadd.f32 %v10460, %v10398
    %v10462 = vadd.f32 %v10461, %v10399
    %v10463 = vadd.f32 %v10462, %v10400
    %v10464 = vadd.f32 %v10463, %v10401
    %v10465 = vadd.f32 %v10464, %v10402
    %v10466 = vadd.f32 %v10465, %v10403
    %v10467 = vadd.f32 %v10466, %v10404
    %v10468 = vadd.f32 %v10467, %v10405
    %v10469 = vadd.f32 %v10468, %v10406
    %v10470 = vadd.f32 %v10469, %v10407
    %v10471 = vadd.f32 %v10470, %v10408
    %v10472 = vadd.f32 %v10471, %v10409
    %v10473 = vadd.f32 %v10472, %v10410
    %v10474 = vadd.f32 %v10473, %v10411
    %v10475 = vadd.f32 %v10474, %v10412
    %v10476 = vadd.f32 %v10475, %v10413
    %v10477 = vadd.f32 %v10476, %v10414
    %v10478 = vadd.f32 %v10477, %v10415
    %v10479 = vadd.f32 %v10478, %v10416
    %v10480 = vadd.f32 %v10479, %v10417
    %v10481 = vadd.f32 %v10480, %v10418
    %v10482 = vadd.f32 %v10481, %v10419
    %v10483 = vadd.f32 %v10482, %v10420
    %v10484 = vadd.f32 %v10483, %v10421
    %v10485 = vadd.f32 %v10484, %v10422
    %v10486 = vadd.f32 %v10485, %v10423
    %v10487 = vadd.f32 %v10486, %v10424
    %v10488 = vadd.f32 %v10487, %v10425
    %v10489 = vadd.f32 %v10488, %v10426
    %v10490 = vadd.f32 %v10489, %v10427
    %v10491 = vadd.f32 %v10490, %v10428
    %v10492 = vadd.f32 %v10491, %v10429
    %v10493 = vadd.f32 %v10492, %v10430
    %v10494 = vadd.f32 %v10493, %v10431
    %v10495 = vadd.f32 %v10494, %v10432
    %v10496 = vadd.f32 %v10495, %v10433
    %v10497 = vadd.f32 %v10496, %v10434
    %v10498 = vadd.f32 %v10497, %v10435
    %v10499 = vadd.f32 %v10498, %v10436
    %v10500 = vadd.f32 %v10499, %v10437
    %v10501 = vadd.f32 %v10500, %v10438
    %v10502 = vadd.f32 %v10501, %v10439
    %v10503 = vadd.f32 %v10502, %v10440
    %v10504 = vadd.f32 %v10503, %v10441
    %v10505 = vadd.f32 %v10504, %v10442
    %v10506 = vadd.f32 %v10505, %v10443
    %v10507 = vadd.f32 %v10506, %v10444
    %v10508 = vadd.f32 %v10507, %v10445
    %v10509 = vadd.f32 %v10508, %v10446
    %v10510 = vadd.f32 %v10509, %v10447
    %v10511 = vadd.f32 %v10510, %v10448
    %v10512 = vadd.f32 %v10511, %v10449
    %v10513 = vadd.f32 %v10512, %v10450
    %v10514 = vadd.f32 %v10513, %v10451
    %v10515 = vadd.f32 %v10514, %v10452
    %v10516 = vadd.f32 %v10515, %v10453
    %v10517 = vadd.f32 %v10516, %v10454
    %v10518 = vrot.slane %v10517, 4
    %v10519 = vadd.f32 %v10517, %v10518
    %v10520 = vrot.slane %v10519, 2
    %v10521 = vadd.f32 %v10519, %v10520
    %v10522 = vrot.slane %v10521, 1
    %v10523 = vadd.f32 %v10521, %v10522
    %v10524 = vmul.f32 %v10523, %v10325
    %v10525 = vadd.f32 %v10524, 1e-05
    %v10526 = vrsqrt.pop %v10525
    %v10527 = vmul.f32 %v10327, %v10526
    %v10528 = vmul.f32 %v10328, %v10526
    %v10529 = vmul.f32 %v10329, %v10526
    %v10530 = vmul.f32 %v10330, %v10526
    %v10531 = vmul.f32 %v10331, %v10526
    %v10532 = vmul.f32 %v10332, %v10526
    %v10533 = vmul.f32 %v10333, %v10526
    %v10534 = vmul.f32 %v10334, %v10526
    %v10535 = vmul.f32 %v10335, %v10526
    %v10536 = vmul.f32 %v10336, %v10526
    %v10537 = vmul.f32 %v10337, %v10526
    %v10538 = vmul.f32 %v10338, %v10526
    %v10539 = vmul.f32 %v10339, %v10526
    %v10540 = vmul.f32 %v10340, %v10526
    %v10541 = vmul.f32 %v10341, %v10526
    %v10542 = vmul.f32 %v10342, %v10526
    %v10543 = vmul.f32 %v10343, %v10526
    %v10544 = vmul.f32 %v10344, %v10526
    %v10545 = vmul.f32 %v10345, %v10526
    %v10546 = vmul.f32 %v10346, %v10526
    %v10547 = vmul.f32 %v10347, %v10526
    %v10548 = vmul.f32 %v10348, %v10526
    %v10549 = vmul.f32 %v10349, %v10526
    %v10550 = vmul.f32 %v10350, %v10526
    %v10551 = vmul.f32 %v10351, %v10526
    %v10552 = vmul.f32 %v10352, %v10526
    %v10553 = vmul.f32 %v10353, %v10526
    %v10554 = vmul.f32 %v10354, %v10526
    %v10555 = vmul.f32 %v10355, %v10526
    %v10556 = vmul.f32 %v10356, %v10526
    %v10557 = vmul.f32 %v10357, %v10526
    %v10558 = vmul.f32 %v10358, %v10526
    %v10559 = vmul.f32 %v10359, %v10526
    %v10560 = vmul.f32 %v10360, %v10526
    %v10561 = vmul.f32 %v10361, %v10526
    %v10562 = vmul.f32 %v10362, %v10526
    %v10563 = vmul.f32 %v10363, %v10526
    %v10564 = vmul.f32 %v10364, %v10526
    %v10565 = vmul.f32 %v10365, %v10526
    %v10566 = vmul.f32 %v10366, %v10526
    %v10567 = vmul.f32 %v10367, %v10526
    %v10568 = vmul.f32 %v10368, %v10526
    %v10569 = vmul.f32 %v10369, %v10526
    %v10570 = vmul.f32 %v10370, %v10526
    %v10571 = vmul.f32 %v10371, %v10526
    %v10572 = vmul.f32 %v10372, %v10526
    %v10573 = vmul.f32 %v10373, %v10526
    %v10574 = vmul.f32 %v10374, %v10526
    %v10575 = vmul.f32 %v10375, %v10526
    %v10576 = vmul.f32 %v10376, %v10526
    %v10577 = vmul.f32 %v10377, %v10526
    %v10578 = vmul.f32 %v10378, %v10526
    %v10579 = vmul.f32 %v10379, %v10526
    %v10580 = vmul.f32 %v10380, %v10526
    %v10581 = vmul.f32 %v10381, %v10526
    %v10582 = vmul.f32 %v10382, %v10526
    %v10583 = vmul.f32 %v10383, %v10526
    %v10584 = vmul.f32 %v10384, %v10526
    %v10585 = vmul.f32 %v10385, %v10526
    %v10586 = vmul.f32 %v10386, %v10526
    %v10587 = vmul.f32 %v10387, %v10526
    %v10588 = vmul.f32 %v10388, %v10526
    %v10589 = vmul.f32 %v10389, %v10526
    %v10590 = vmul.f32 %v10390, %v10526
    %v10591 = vlaneseq
    %v10592 = vshrl.u32 %v10591, 7
    %v10593 = vsub.s32 0, %v10592
    %v10594 = vrot.slane %v10188, %v10593
    %v10595 = vmul.f32 %v10527, %v10594
    %v10596 = vmul.f32 %v10528, %v10594
    %v10597 = vmul.f32 %v10529, %v10594
    %v10598 = vmul.f32 %v10530, %v10594
    %v10599 = vmul.f32 %v10531, %v10594
    %v10600 = vmul.f32 %v10532, %v10594
    %v10601 = vmul.f32 %v10533, %v10594
    %v10602 = vmul.f32 %v10534, %v10594
    %v10603 = vmul.f32 %v10535, %v10594
    %v10604 = vmul.f32 %v10536, %v10594
    %v10605 = vmul.f32 %v10537, %v10594
    %v10606 = vmul.f32 %v10538, %v10594
    %v10607 = vmul.f32 %v10539, %v10594
    %v10608 = vmul.f32 %v10540, %v10594
    %v10609 = vmul.f32 %v10541, %v10594
    %v10610 = vmul.f32 %v10542, %v10594
    %v10611 = vmul.f32 %v10543, %v10594
    %v10612 = vmul.f32 %v10544, %v10594
    %v10613 = vmul.f32 %v10545, %v10594
    %v10614 = vmul.f32 %v10546, %v10594
    %v10615 = vmul.f32 %v10547, %v10594
    %v10616 = vmul.f32 %v10548, %v10594
    %v10617 = vmul.f32 %v10549, %v10594
    %v10618 = vmul.f32 %v10550, %v10594
    %v10619 = vmul.f32 %v10551, %v10594
    %v10620 = vmul.f32 %v10552, %v10594
    %v10621 = vmul.f32 %v10553, %v10594
    %v10622 = vmul.f32 %v10554, %v10594
    %v10623 = vmul.f32 %v10555, %v10594
    %v10624 = vmul.f32 %v10556, %v10594
    %v10625 = vmul.f32 %v10557, %v10594
    %v10626 = vmul.f32 %v10558, %v10594
    %v10627 = vmul.f32 %v10559, %v10594
    %v10628 = vmul.f32 %v10560, %v10594
    %v10629 = vmul.f32 %v10561, %v10594
    %v10630 = vmul.f32 %v10562, %v10594
    %v10631 = vmul.f32 %v10563, %v10594
    %v10632 = vmul.f32 %v10564, %v10594
    %v10633 = vmul.f32 %v10565, %v10594
    %v10634 = vmul.f32 %v10566, %v10594
    %v10635 = vmul.f32 %v10567, %v10594
    %v10636 = vmul.f32 %v10568, %v10594
    %v10637 = vmul.f32 %v10569, %v10594
    %v10638 = vmul.f32 %v10570, %v10594
    %v10639 = vmul.f32 %v10571, %v10594
    %v10640 = vmul.f32 %v10572, %v10594
    %v10641 = vmul.f32 %v10573, %v10594
    %v10642 = vmul.f32 %v10574, %v10594
    %v10643 = vmul.f32 %v10575, %v10594
    %v10644 = vmul.f32 %v10576, %v10594
    %v10645 = vmul.f32 %v10577, %v10594
    %v10646 = vmul.f32 %v10578, %v10594
    %v10647 = vmul.f32 %v10579, %v10594
    %v10648 = vmul.f32 %v10580, %v10594
    %v10649 = vmul.f32 %v10581, %v10594
    %v10650 = vmul.f32 %v10582, %v10594
    %v10651 = vmul.f32 %v10583, %v10594
    %v10652 = vmul.f32 %v10584, %v10594
    %v10653 = vmul.f32 %v10585, %v10594
    %v10654 = vmul.f32 %v10586, %v10594
    %v10655 = vmul.f32 %v10587, %v10594
    %v10656 = vmul.f32 %v10588, %v10594
    %v10657 = vmul.f32 %v10589, %v10594
    %v10658 = vmul.f32 %v10590, %v10594
    %v10659 = vlaneseq
    %v10660 = vshrl.u32 %v10659, 7
    %v10661 = vsub.s32 0, %v10660
    %v10662 = vrot.slane %v10189, %v10661
    %v10663 = vadd.f32 %v10595, %v10662
    %v10664 = vadd.f32 %v10596, %v10662
    %v10665 = vadd.f32 %v10597, %v10662
    %v10666 = vadd.f32 %v10598, %v10662
    %v10667 = vadd.f32 %v10599, %v10662
    %v10668 = vadd.f32 %v10600, %v10662
    %v10669 = vadd.f32 %v10601, %v10662
    %v10670 = vadd.f32 %v10602, %v10662
    %v10671 = vadd.f32 %v10603, %v10662
    %v10672 = vadd.f32 %v10604, %v10662
    %v10673 = vadd.f32 %v10605, %v10662
    %v10674 = vadd.f32 %v10606, %v10662
    %v10675 = vadd.f32 %v10607, %v10662
    %v10676 = vadd.f32 %v10608, %v10662
    %v10677 = vadd.f32 %v10609, %v10662
    %v10678 = vadd.f32 %v10610, %v10662
    %v10679 = vadd.f32 %v10611, %v10662
    %v10680 = vadd.f32 %v10612, %v10662
    %v10681 = vadd.f32 %v10613, %v10662
    %v10682 = vadd.f32 %v10614, %v10662
    %v10683 = vadd.f32 %v10615, %v10662
    %v10684 = vadd.f32 %v10616, %v10662
    %v10685 = vadd.f32 %v10617, %v10662
    %v10686 = vadd.f32 %v10618, %v10662
    %v10687 = vadd.f32 %v10619, %v10662
    %v10688 = vadd.f32 %v10620, %v10662
    %v10689 = vadd.f32 %v10621, %v10662
    %v10690 = vadd.f32 %v10622, %v10662
    %v10691 = vadd.f32 %v10623, %v10662
    %v10692 = vadd.f32 %v10624, %v10662
    %v10693 = vadd.f32 %v10625, %v10662
    %v10694 = vadd.f32 %v10626, %v10662
    %v10695 = vadd.f32 %v10627, %v10662
    %v10696 = vadd.f32 %v10628, %v10662
    %v10697 = vadd.f32 %v10629, %v10662
    %v10698 = vadd.f32 %v10630, %v10662
    %v10699 = vadd.f32 %v10631, %v10662
    %v10700 = vadd.f32 %v10632, %v10662
    %v10701 = vadd.f32 %v10633, %v10662
    %v10702 = vadd.f32 %v10634, %v10662
    %v10703 = vadd.f32 %v10635, %v10662
    %v10704 = vadd.f32 %v10636, %v10662
    %v10705 = vadd.f32 %v10637, %v10662
    %v10706 = vadd.f32 %v10638, %v10662
    %v10707 = vadd.f32 %v10639, %v10662
    %v10708 = vadd.f32 %v10640, %v10662
    %v10709 = vadd.f32 %v10641, %v10662
    %v10710 = vadd.f32 %v10642, %v10662
    %v10711 = vadd.f32 %v10643, %v10662
    %v10712 = vadd.f32 %v10644, %v10662
    %v10713 = vadd.f32 %v10645, %v10662
    %v10714 = vadd.f32 %v10646, %v10662
    %v10715 = vadd.f32 %v10647, %v10662
    %v10716 = vadd.f32 %v10648, %v10662
    %v10717 = vadd.f32 %v10649, %v10662
    %v10718 = vadd.f32 %v10650, %v10662
    %v10719 = vadd.f32 %v10651, %v10662
    %v10720 = vadd.f32 %v10652, %v10662
    %v10721 = vadd.f32 %v10653, %v10662
    %v10722 = vadd.f32 %v10654, %v10662
    %v10723 = vadd.f32 %v10655, %v10662
    %v10724 = vadd.f32 %v10656, %v10662
    %v10725 = vadd.f32 %v10657, %v10662
    %v10726 = vadd.f32 %v10658, %v10662
    %v10727 = vmax.f32 %v10663, 0.0
    %v10728 = vmax.f32 %v10664, 0.0
    %v10729 = vmax.f32 %v10665, 0.0
    %v10730 = vmax.f32 %v10666, 0.0
    %v10731 = vmax.f32 %v10667, 0.0
    %v10732 = vmax.f32 %v10668, 0.0
    %v10733 = vmax.f32 %v10669, 0.0
    %v10734 = vmax.f32 %v10670, 0.0
    %v10735 = vmax.f32 %v10671, 0.0
    %v10736 = vmax.f32 %v10672, 0.0
    %v10737 = vmax.f32 %v10673, 0.0
    %v10738 = vmax.f32 %v10674, 0.0
    %v10739 = vmax.f32 %v10675, 0.0
    %v10740 = vmax.f32 %v10676, 0.0
    %v10741 = vmax.f32 %v10677, 0.0
    %v10742 = vmax.f32 %v10678, 0.0
    %v10743 = vmax.f32 %v10679, 0.0
    %v10744 = vmax.f32 %v10680, 0.0
    %v10745 = vmax.f32 %v10681, 0.0
    %v10746 = vmax.f32 %v10682, 0.0
    %v10747 = vmax.f32 %v10683, 0.0
    %v10748 = vmax.f32 %v10684, 0.0
    %v10749 = vmax.f32 %v10685, 0.0
    %v10750 = vmax.f32 %v10686, 0.0
    %v10751 = vmax.f32 %v10687, 0.0
    %v10752 = vmax.f32 %v10688, 0.0
    %v10753 = vmax.f32 %v10689, 0.0
    %v10754 = vmax.f32 %v10690, 0.0
    %v10755 = vmax.f32 %v10691, 0.0
    %v10756 = vmax.f32 %v10692, 0.0
    %v10757 = vmax.f32 %v10693, 0.0
    %v10758 = vmax.f32 %v10694, 0.0
    %v10759 = vmax.f32 %v10695, 0.0
    %v10760 = vmax.f32 %v10696, 0.0
    %v10761 = vmax.f32 %v10697, 0.0
    %v10762 = vmax.f32 %v10698, 0.0
    %v10763 = vmax.f32 %v10699, 0.0
    %v10764 = vmax.f32 %v10700, 0.0
    %v10765 = vmax.f32 %v10701, 0.0
    %v10766 = vmax.f32 %v10702, 0.0
    %v10767 = vmax.f32 %v10703, 0.0
    %v10768 = vmax.f32 %v10704, 0.0
    %v10769 = vmax.f32 %v10705, 0.0
    %v10770 = vmax.f32 %v10706, 0.0
    %v10771 = vmax.f32 %v10707, 0.0
    %v10772 = vmax.f32 %v10708, 0.0
    %v10773 = vmax.f32 %v10709, 0.0
    %v10774 = vmax.f32 %v10710, 0.0
    %v10775 = vmax.f32 %v10711, 0.0
    %v10776 = vmax.f32 %v10712, 0.0
    %v10777 = vmax.f32 %v10713, 0.0
    %v10778 = vmax.f32 %v10714, 0.0
    %v10779 = vmax.f32 %v10715, 0.0
    %v10780 = vmax.f32 %v10716, 0.0
    %v10781 = vmax.f32 %v10717, 0.0
    %v10782 = vmax.f32 %v10718, 0.0
    %v10783 = vmax.f32 %v10719, 0.0
    %v10784 = vmax.f32 %v10720, 0.0
    %v10785 = vmax.f32 %v10721, 0.0
    %v10786 = vmax.f32 %v10722, 0.0
    %v10787 = vmax.f32 %v10723, 0.0
    %v10788 = vmax.f32 %v10724, 0.0
    %v10789 = vmax.f32 %v10725, 0.0
    %v10790 = vmax.f32 %v10726, 0.0
    %v10791 = vadd.f32 %v10727, %v10728
    %v10792 = vadd.f32 %v10791, %v10729
    %v10793 = vadd.f32 %v10792, %v10730
    %v10794 = vadd.f32 %v10793, %v10731
    %v10795 = vadd.f32 %v10794, %v10732
    %v10796 = vadd.f32 %v10795, %v10733
    %v10797 = vadd.f32 %v10796, %v10734
    %v10798 = vadd.f32 %v10797, %v10735
    %v10799 = vadd.f32 %v10798, %v10736
    %v10800 = vadd.f32 %v10799, %v10737
    %v10801 = vadd.f32 %v10800, %v10738
    %v10802 = vadd.f32 %v10801, %v10739
    %v10803 = vadd.f32 %v10802, %v10740
    %v10804 = vadd.f32 %v10803, %v10741
    %v10805 = vadd.f32 %v10804, %v10742
    %v10806 = vadd.f32 %v10805, %v10743
    %v10807 = vadd.f32 %v10806, %v10744
    %v10808 = vadd.f32 %v10807, %v10745
    %v10809 = vadd.f32 %v10808, %v10746
    %v10810 = vadd.f32 %v10809, %v10747
    %v10811 = vadd.f32 %v10810, %v10748
    %v10812 = vadd.f32 %v10811, %v10749
    %v10813 = vadd.f32 %v10812, %v10750
    %v10814 = vadd.f32 %v10813, %v10751
    %v10815 = vadd.f32 %v10814, %v10752
    %v10816 = vadd.f32 %v10815, %v10753
    %v10817 = vadd.f32 %v10816, %v10754
    %v10818 = vadd.f32 %v10817, %v10755
    %v10819 = vadd.f32 %v10818, %v10756
    %v10820 = vadd.f32 %v10819, %v10757
    %v10821 = vadd.f32 %v10820, %v10758
    %v10822 = vadd.f32 %v10821, %v10759
    %v10823 = vadd.f32 %v10822, %v10760
    %v10824 = vadd.f32 %v10823, %v10761
    %v10825 = vadd.f32 %v10824, %v10762
    %v10826 = vadd.f32 %v10825, %v10763
    %v10827 = vadd.f32 %v10826, %v10764
    %v10828 = vadd.f32 %v10827, %v10765
    %v10829 = vadd.f32 %v10828, %v10766
    %v10830 = vadd.f32 %v10829, %v10767
    %v10831 = vadd.f32 %v10830, %v10768
    %v10832 = vadd.f32 %v10831, %v10769
    %v10833 = vadd.f32 %v10832, %v10770
    %v10834 = vadd.f32 %v10833, %v10771
    %v10835 = vadd.f32 %v10834, %v10772
    %v10836 = vadd.f32 %v10835, %v10773
    %v10837 = vadd.f32 %v10836, %v10774
    %v10838 = vadd.f32 %v10837, %v10775
    %v10839 = vadd.f32 %v10838, %v10776
    %v10840 = vadd.f32 %v10839, %v10777
    %v10841 = vadd.f32 %v10840, %v10778
    %v10842 = vadd.f32 %v10841, %v10779
    %v10843 = vadd.f32 %v10842, %v10780
    %v10844 = vadd.f32 %v10843, %v10781
    %v10845 = vadd.f32 %v10844, %v10782
    %v10846 = vadd.f32 %v10845, %v10783
    %v10847 = vadd.f32 %v10846, %v10784
    %v10848 = vadd.f32 %v10847, %v10785
    %v10849 = vadd.f32 %v10848, %v10786
    %v10850 = vadd.f32 %v10849, %v10787
    %v10851 = vadd.f32 %v10850, %v10788
    %v10852 = vadd.f32 %v10851, %v10789
    %v10853 = vadd.f32 %v10852, %v10790
    %v10854 = vrot.slane %v10853, 4
    %v10855 = vadd.f32 %v10853, %v10854
    %v10856 = vrot.slane %v10855, 2
    %v10857 = vadd.f32 %v10855, %v10856
    %v10858 = vrot.slane %v10857, 1
    %v10859 = vadd.f32 %v10857, %v10858
    %v10860 = vmul.f32 %v10859, %v10325
    %v10861 = vsub.f32 %v10727, %v10860
    %v10862 = vsub.f32 %v10728, %v10860
    %v10863 = vsub.f32 %v10729, %v10860
    %v10864 = vsub.f32 %v10730, %v10860
    %v10865 = vsub.f32 %v10731, %v10860
    %v10866 = vsub.f32 %v10732, %v10860
    %v10867 = vsub.f32 %v10733, %v10860
    %v10868 = vsub.f32 %v10734, %v10860
    %v10869 = vsub.f32 %v10735, %v10860
    %v10870 = vsub.f32 %v10736, %v10860
    %v10871 = vsub.f32 %v10737, %v10860
    %v10872 = vsub.f32 %v10738, %v10860
    %v10873 = vsub.f32 %v10739, %v10860
    %v10874 = vsub.f32 %v10740, %v10860
    %v10875 = vsub.f32 %v10741, %v10860
    %v10876 = vsub.f32 %v10742, %v10860
    %v10877 = vsub.f32 %v10743, %v10860
    %v10878 = vsub.f32 %v10744, %v10860
    %v10879 = vsub.f32 %v10745, %v10860
    %v10880 = vsub.f32 %v10746, %v10860
    %v10881 = vsub.f32 %v10747, %v10860
    %v10882 = vsub.f32 %v10748, %v10860
    %v10883 = vsub.f32 %v10749, %v10860
    %v10884 = vsub.f32 %v10750, %v10860
    %v10885 = vsub.f32 %v10751, %v10860
    %v10886 = vsub.f32 %v10752, %v10860
    %v10887 = vsub.f32 %v10753, %v10860
    %v10888 = vsub.f32 %v10754, %v10860
    %v10889 = vsub.f32 %v10755, %v10860
    %v10890 = vsub.f32 %v10756, %v10860
    %v10891 = vsub.f32 %v10757, %v10860
    %v10892 = vsub.f32 %v10758, %v10860
    %v10893 = vsub.f32 %v10759, %v10860
    %v10894 = vsub.f32 %v10760, %v10860
    %v10895 = vsub.f32 %v10761, %v10860
    %v10896 = vsub.f32 %v10762, %v10860
    %v10897 = vsub.f32 %v10763, %v10860
    %v10898 = vsub.f32 %v10764, %v10860
    %v10899 = vsub.f32 %v10765, %v10860
    %v10900 = vsub.f32 %v10766, %v10860
    %v10901 = vsub.f32 %v10767, %v10860
    %v10902 = vsub.f32 %v10768, %v10860
    %v10903 = vsub.f32 %v10769, %v10860
    %v10904 = vsub.f32 %v10770, %v10860
    %v10905 = vsub.f32 %v10771, %v10860
    %v10906 = vsub.f32 %v10772, %v10860
    %v10907 = vsub.f32 %v10773, %v10860
    %v10908 = vsub.f32 %v10774, %v10860
    %v10909 = vsub.f32 %v10775, %v10860
    %v10910 = vsub.f32 %v10776, %v10860
    %v10911 = vsub.f32 %v10777, %v10860
    %v10912 = vsub.f32 %v10778, %v10860
    %v10913 = vsub.f32 %v10779, %v10860
    %v10914 = vsub.f32 %v10780, %v10860
    %v10915 = vsub.f32 %v10781, %v10860
    %v10916 = vsub.f32 %v10782, %v10860
    %v10917 = vsub.f32 %v10783, %v10860
    %v10918 = vsub.f32 %v10784, %v10860
    %v10919 = vsub.f32 %v10785, %v10860
    %v10920 = vsub.f32 %v10786, %v10860
    %v10921 = vsub.f32 %v10787, %v10860
    %v10922 = vsub.f32 %v10788, %v10860
    %v10923 = vsub.f32 %v10789, %v10860
    %v10924 = vsub.f32 %v10790, %v10860
    %v10925 = vmul.f32 %v10861, %v10861
    %v10926 = vmul.f32 %v10862, %v10862
    %v10927 = vmul.f32 %v10863, %v10863
    %v10928 = vmul.f32 %v10864, %v10864
    %v10929 = vmul.f32 %v10865, %v10865
    %v10930 = vmul.f32 %v10866, %v10866
    %v10931 = vmul.f32 %v10867, %v10867
    %v10932 = vmul.f32 %v10868, %v10868
    %v10933 = vmul.f32 %v10869, %v10869
    %v10934 = vmul.f32 %v10870, %v10870
    %v10935 = vmul.f32 %v10871, %v10871
    %v10936 = vmul.f32 %v10872, %v10872
    %v10937 = vmul.f32 %v10873, %v10873
    %v10938 = vmul.f32 %v10874, %v10874
    %v10939 = vmul.f32 %v10875, %v10875
    %v10940 = vmul.f32 %v10876, %v10876
    %v10941 = vmul.f32 %v10877, %v10877
    %v10942 = vmul.f32 %v10878, %v10878
    %v10943 = vmul.f32 %v10879, %v10879
    %v10944 = vmul.f32 %v10880, %v10880
    %v10945 = vmul.f32 %v10881, %v10881
    %v10946 = vmul.f32 %v10882, %v10882
    %v10947 = vmul.f32 %v10883, %v10883
    %v10948 = vmul.f32 %v10884, %v10884
    %v10949 = vmul.f32 %v10885, %v10885
    %v10950 = vmul.f32 %v10886, %v10886
    %v10951 = vmul.f32 %v10887, %v10887
    %v10952 = vmul.f32 %v10888, %v10888
    %v10953 = vmul.f32 %v10889, %v10889
    %v10954 = vmul.f32 %v10890, %v10890
    %v10955 = vmul.f32 %v10891, %v10891
    %v10956 = vmul.f32 %v10892, %v10892
    %v10957 = vmul.f32 %v10893, %v10893
    %v10958 = vmul.f32 %v10894, %v10894
    %v10959 = vmul.f32 %v10895, %v10895
    %v10960 = vmul.f32 %v10896, %v10896
    %v10961 = vmul.f32 %v10897, %v10897
    %v10962 = vmul.f32 %v10898, %v10898
    %v10963 = vmul.f32 %v10899, %v10899
    %v10964 = vmul.f32 %v10900, %v10900
    %v10965 = vmul.f32 %v10901, %v10901
    %v10966 = vmul.f32 %v10902, %v10902
    %v10967 = vmul.f32 %v10903, %v10903
    %v10968 = vmul.f32 %v10904, %v10904
    %v10969 = vmul.f32 %v10905, %v10905
    %v10970 = vmul.f32 %v10906, %v10906
    %v10971 = vmul.f32 %v10907, %v10907
    %v10972 = vmul.f32 %v10908, %v10908
    %v10973 = vmul.f32 %v10909, %v10909
    %v10974 = vmul.f32 %v10910, %v10910
    %v10975 = vmul.f32 %v10911, %v10911
    %v10976 = vmul.f32 %v10912, %v10912
    %v10977 = vmul.f32 %v10913, %v10913
    %v10978 = vmul.f32 %v10914, %v10914
    %v10979 = vmul.f32 %v10915, %v10915
    %v10980 = vmul.f32 %v10916, %v10916
    %v10981 = vmul.f32 %v10917, %v10917
    %v10982 = vmul.f32 %v10918, %v10918
    %v10983 = vmul.f32 %v10919, %v10919
    %v10984 = vmul.f32 %v10920, %v10920
    %v10985 = vmul.f32 %v10921, %v10921
    %v10986 = vmul.f32 %v10922, %v10922
    %v10987 = vmul.f32 %v10923, %v10923
    %v10988 = vmul.f32 %v10924, %v10924
    %v10989 = vadd.f32 %v10925, %v10926
    %v10990 = vadd.f32 %v10989, %v10927
    %v10991 = vadd.f32 %v10990, %v10928
    %v10992 = vadd.f32 %v10991, %v10929
    %v10993 = vadd.f32 %v10992, %v10930
    %v10994 = vadd.f32 %v10993, %v10931
    %v10995 = vadd.f32 %v10994, %v10932
    %v10996 = vadd.f32 %v10995, %v10933
    %v10997 = vadd.f32 %v10996, %v10934
    %v10998 = vadd.f32 %v10997, %v10935
    %v10999 = vadd.f32 %v10998, %v10936
    %v11000 = vadd.f32 %v10999, %v10937
    %v11001 = vadd.f32 %v11000, %v10938
    %v11002 = vadd.f32 %v11001, %v10939
    %v11003 = vadd.f32 %v11002, %v10940
    %v11004 = vadd.f32 %v11003, %v10941
    %v11005 = vadd.f32 %v11004, %v10942
    %v11006 = vadd.f32 %v11005, %v10943
    %v11007 = vadd.f32 %v11006, %v10944
    %v11008 = vadd.f32 %v11007, %v10945
    %v11009 = vadd.f32 %v11008, %v10946
    %v11010 = vadd.f32 %v11009, %v10947
    %v11011 = vadd.f32 %v11010, %v10948
    %v11012 = vadd.f32 %v11011, %v10949
    %v11013 = vadd.f32 %v11012, %v10950
    %v11014 = vadd.f32 %v11013, %v10951
    %v11015 = vadd.f32 %v11014, %v10952
    %v11016 = vadd.f32 %v11015, %v10953
    %v11017 = vadd.f32 %v11016, %v10954
    %v11018 = vadd.f32 %v11017, %v10955
    %v11019 = vadd.f32 %v11018, %v10956
    %v11020 = vadd.f32 %v11019, %v10957
    %v11021 = vadd.f32 %v11020, %v10958
    %v11022 = vadd.f32 %v11021, %v10959
    %v11023 = vadd.f32 %v11022, %v10960
    %v11024 = vadd.f32 %v11023, %v10961
    %v11025 = vadd.f32 %v11024, %v10962
    %v11026 = vadd.f32 %v11025, %v10963
    %v11027 = vadd.f32 %v11026, %v10964
    %v11028 = vadd.f32 %v11027, %v10965
    %v11029 = vadd.f32 %v11028, %v10966
    %v11030 = vadd.f32 %v11029, %v10967
    %v11031 = vadd.f32 %v11030, %v10968
    %v11032 = vadd.f32 %v11031, %v10969
    %v11033 = vadd.f32 %v11032, %v10970
    %v11034 = vadd.f32 %v11033, %v10971
    %v11035 = vadd.f32 %v11034, %v10972
    %v11036 = vadd.f32 %v11035, %v10973
    %v11037 = vadd.f32 %v11036, %v10974
    %v11038 = vadd.f32 %v11037, %v10975
    %v11039 = vadd.f32 %v11038, %v10976
    %v11040 = vadd.f32 %v11039, %v10977
    %v11041 = vadd.f32 %v11040, %v10978
    %v11042 = vadd.f32 %v11041, %v10979
    %v11043 = vadd.f32 %v11042, %v10980
    %v11044 = vadd.f32 %v11043, %v10981
    %v11045 = vadd.f32 %v11044, %v10982
    %v11046 = vadd.f32 %v11045, %v10983
    %v11047 = vadd.f32 %v11046, %v10984
    %v11048 = vadd.f32 %v11047, %v10985
    %v11049 = vadd.f32 %v11048, %v10986
    %v11050 = vadd.f32 %v11049, %v10987
    %v11051 = vadd.f32 %v11050, %v10988
    %v11052 = vrot.slane %v11051, 4
    %v11053 = vadd.f32 %v11051, %v11052
    %v11054 = vrot.slane %v11053, 2
    %v11055 = vadd.f32 %v11053, %v11054
    %v11056 = vrot.slane %v11055, 1
    %v11057 = vadd.f32 %v11055, %v11056
    %v11058 = vmul.f32 %v11057, %v10325
    %v11059 = vadd.f32 %v11058, 1e-05
    %v11060 = vrsqrt.pop %v11059
    %v11061 = vmul.f32 %v10861, %v11060
    %v11062 = vmul.f32 %v10862, %v11060
    %v11063 = vmul.f32 %v10863, %v11060
    %v11064 = vmul.f32 %v10864, %v11060
    %v11065 = vmul.f32 %v10865, %v11060
    %v11066 = vmul.f32 %v10866, %v11060
    %v11067 = vmul.f32 %v10867, %v11060
    %v11068 = vmul.f32 %v10868, %v11060
    %v11069 = vmul.f32 %v10869, %v11060
    %v11070 = vmul.f32 %v10870, %v11060
    %v11071 = vmul.f32 %v10871, %v11060
    %v11072 = vmul.f32 %v10872, %v11060
    %v11073 = vmul.f32 %v10873, %v11060
    %v11074 = vmul.f32 %v10874, %v11060
    %v11075 = vmul.f32 %v10875, %v11060
    %v11076 = vmul.f32 %v10876, %v11060
    %v11077 = vmul.f32 %v10877, %v11060
    %v11078 = vmul.f32 %v10878, %v11060
    %v11079 = vmul.f32 %v10879, %v11060
    %v11080 = vmul.f32 %v10880, %v11060
    %v11081 = vmul.f32 %v10881, %v11060
    %v11082 = vmul.f32 %v10882, %v11060
    %v11083 = vmul.f32 %v10883, %v11060
    %v11084 = vmul.f32 %v10884, %v11060
    %v11085 = vmul.f32 %v10885, %v11060
    %v11086 = vmul.f32 %v10886, %v11060
    %v11087 = vmul.f32 %v10887, %v11060
    %v11088 = vmul.f32 %v10888, %v11060
    %v11089 = vmul.f32 %v10889, %v11060
    %v11090 = vmul.f32 %v10890, %v11060
    %v11091 = vmul.f32 %v10891, %v11060
    %v11092 = vmul.f32 %v10892, %v11060
    %v11093 = vmul.f32 %v10893, %v11060
    %v11094 = vmul.f32 %v10894, %v11060
    %v11095 = vmul.f32 %v10895, %v11060
    %v11096 = vmul.f32 %v10896, %v11060
    %v11097 = vmul.f32 %v10897, %v11060
    %v11098 = vmul.f32 %v10898, %v11060
    %v11099 = vmul.f32 %v10899, %v11060
    %v11100 = vmul.f32 %v10900, %v11060
    %v11101 = vmul.f32 %v10901, %v11060
    %v11102 = vmul.f32 %v10902, %v11060
    %v11103 = vmul.f32 %v10903, %v11060
    %v11104 = vmul.f32 %v10904, %v11060
    %v11105 = vmul.f32 %v10905, %v11060
    %v11106 = vmul.f32 %v10906, %v11060
    %v11107 = vmul.f32 %v10907, %v11060
    %v11108 = vmul.f32 %v10908, %v11060
    %v11109 = vmul.f32 %v10909, %v11060
    %v11110 = vmul.f32 %v10910, %v11060
    %v11111 = vmul.f32 %v10911, %v11060
    %v11112 = vmul.f32 %v10912, %v11060
    %v11113 = vmul.f32 %v10913, %v11060
    %v11114 = vmul.f32 %v10914, %v11060
    %v11115 = vmul.f32 %v10915, %v11060
    %v11116 = vmul.f32 %v10916, %v11060
    %v11117 = vmul.f32 %v10917, %v11060
    %v11118 = vmul.f32 %v10918, %v11060
    %v11119 = vmul.f32 %v10919, %v11060
    %v11120 = vmul.f32 %v10920, %v11060
    %v11121 = vmul.f32 %v10921, %v11060
    %v11122 = vmul.f32 %v10922, %v11060
    %v11123 = vmul.f32 %v10923, %v11060
    %v11124 = vmul.f32 %v10924, %v11060
    %v11125 = vlaneseq
    %v11126 = vshrl.u32 %v11125, 7
    %v11127 = vsub.s32 0, %v11126
    %v11128 = vrot.slane %v10190, %v11127
    %v11129 = vmul.f32 %v11061, %v11128
    %v11130 = vmul.f32 %v11062, %v11128
    %v11131 = vmul.f32 %v11063, %v11128
    %v11132 = vmul.f32 %v11064, %v11128
    %v11133 = vmul.f32 %v11065, %v11128
    %v11134 = vmul.f32 %v11066, %v11128
    %v11135 = vmul.f32 %v11067, %v11128
    %v11136 = vmul.f32 %v11068, %v11128
    %v11137 = vmul.f32 %v11069, %v11128
    %v11138 = vmul.f32 %v11070, %v11128
    %v11139 = vmul.f32 %v11071, %v11128
    %v11140 = vmul.f32 %v11072, %v11128
    %v11141 = vmul.f32 %v11073, %v11128
    %v11142 = vmul.f32 %v11074, %v11128
    %v11143 = vmul.f32 %v11075, %v11128
    %v11144 = vmul.f32 %v11076, %v11128
    %v11145 = vmul.f32 %v11077, %v11128
    %v11146 = vmul.f32 %v11078, %v11128
    %v11147 = vmul.f32 %v11079, %v11128
    %v11148 = vmul.f32 %v11080, %v11128
    %v11149 = vmul.f32 %v11081, %v11128
    %v11150 = vmul.f32 %v11082, %v11128
    %v11151 = vmul.f32 %v11083, %v11128
    %v11152 = vmul.f32 %v11084, %v11128
    %v11153 = vmul.f32 %v11085, %v11128
    %v11154 = vmul.f32 %v11086, %v11128
    %v11155 = vmul.f32 %v11087, %v11128
    %v11156 = vmul.f32 %v11088, %v11128
    %v11157 = vmul.f32 %v11089, %v11128
    %v11158 = vmul.f32 %v11090, %v11128
    %v11159 = vmul.f32 %v11091, %v11128
    %v11160 = vmul.f32 %v11092, %v11128
    %v11161 = vmul.f32 %v11093, %v11128
    %v11162 = vmul.f32 %v11094, %v11128
    %v11163 = vmul.f32 %v11095, %v11128
    %v11164 = vmul.f32 %v11096, %v11128
    %v11165 = vmul.f32 %v11097, %v11128
    %v11166 = vmul.f32 %v11098, %v11128
    %v11167 = vmul.f32 %v11099, %v11128
    %v11168 = vmul.f32 %v11100, %v11128
    %v11169 = vmul.f32 %v11101, %v11128
    %v11170 = vmul.f32 %v11102, %v11128
    %v11171 = vmul.f32 %v11103, %v11128
    %v11172 = vmul.f32 %v11104, %v11128
    %v11173 = vmul.f32 %v11105, %v11128
    %v11174 = vmul.f32 %v11106, %v11128
    %v11175 = vmul.f32 %v11107, %v11128
    %v11176 = vmul.f32 %v11108, %v11128
    %v11177 = vmul.f32 %v11109, %v11128
    %v11178 = vmul.f32 %v11110, %v11128
    %v11179 = vmul.f32 %v11111, %v11128
    %v11180 = vmul.f32 %v11112, %v11128
    %v11181 = vmul.f32 %v11113, %v11128
    %v11182 = vmul.f32 %v11114, %v11128
    %v11183 = vmul.f32 %v11115, %v11128
    %v11184 = vmul.f32 %v11116, %v11128
    %v11185 = vmul.f32 %v11117, %v11128
    %v11186 = vmul.f32 %v11118, %v11128
    %v11187 = vmul.f32 %v11119, %v11128
    %v11188 = vmul.f32 %v11120, %v11128
    %v11189 = vmul.f32 %v11121, %v11128
    %v11190 = vmul.f32 %v11122, %v11128
    %v11191 = vmul.f32 %v11123, %v11128
    %v11192 = vmul.f32 %v11124, %v11128
    %v11193 = vlaneseq
    %v11194 = vshrl.u32 %v11193, 7
    %v11195 = vsub.s32 0, %v11194
    %v11196 = vrot.slane %v10191, %v11195
    %v11197 = vadd.f32 %v11129, %v11196
    %v11198 = vadd.f32 %v11130, %v11196
    %v11199 = vadd.f32 %v11131, %v11196
    %v11200 = vadd.f32 %v11132, %v11196
    %v11201 = vadd.f32 %v11133, %v11196
    %v11202 = vadd.f32 %v11134, %v11196
    %v11203 = vadd.f32 %v11135, %v11196
    %v11204 = vadd.f32 %v11136, %v11196
    %v11205 = vadd.f32 %v11137, %v11196
    %v11206 = vadd.f32 %v11138, %v11196
    %v11207 = vadd.f32 %v11139, %v11196
    %v11208 = vadd.f32 %v11140, %v11196
    %v11209 = vadd.f32 %v11141, %v11196
    %v11210 = vadd.f32 %v11142, %v11196
    %v11211 = vadd.f32 %v11143, %v11196
    %v11212 = vadd.f32 %v11144, %v11196
    %v11213 = vadd.f32 %v11145, %v11196
    %v11214 = vadd.f32 %v11146, %v11196
    %v11215 = vadd.f32 %v11147, %v11196
    %v11216 = vadd.f32 %v11148, %v11196
    %v11217 = vadd.f32 %v11149, %v11196
    %v11218 = vadd.f32 %v11150, %v11196
    %v11219 = vadd.f32 %v11151, %v11196
    %v11220 = vadd.f32 %v11152, %v11196
    %v11221 = vadd.f32 %v11153, %v11196
    %v11222 = vadd.f32 %v11154, %v11196
    %v11223 = vadd.f32 %v11155, %v11196
    %v11224 = vadd.f32 %v11156, %v11196
    %v11225 = vadd.f32 %v11157, %v11196
    %v11226 = vadd.f32 %v11158, %v11196
    %v11227 = vadd.f32 %v11159, %v11196
    %v11228 = vadd.f32 %v11160, %v11196
    %v11229 = vadd.f32 %v11161, %v11196
    %v11230 = vadd.f32 %v11162, %v11196
    %v11231 = vadd.f32 %v11163, %v11196
    %v11232 = vadd.f32 %v11164, %v11196
    %v11233 = vadd.f32 %v11165, %v11196
    %v11234 = vadd.f32 %v11166, %v11196
    %v11235 = vadd.f32 %v11167, %v11196
    %v11236 = vadd.f32 %v11168, %v11196
    %v11237 = vadd.f32 %v11169, %v11196
    %v11238 = vadd.f32 %v11170, %v11196
    %v11239 = vadd.f32 %v11171, %v11196
    %v11240 = vadd.f32 %v11172, %v11196
    %v11241 = vadd.f32 %v11173, %v11196
    %v11242 = vadd.f32 %v11174, %v11196
    %v11243 = vadd.f32 %v11175, %v11196
    %v11244 = vadd.f32 %v11176, %v11196
    %v11245 = vadd.f32 %v11177, %v11196
    %v11246 = vadd.f32 %v11178, %v11196
    %v11247 = vadd.f32 %v11179, %v11196
    %v11248 = vadd.f32 %v11180, %v11196
    %v11249 = vadd.f32 %v11181, %v11196
    %v11250 = vadd.f32 %v11182, %v11196
    %v11251 = vadd.f32 %v11183, %v11196
    %v11252 = vadd.f32 %v11184, %v11196
    %v11253 = vadd.f32 %v11185, %v11196
    %v11254 = vadd.f32 %v11186, %v11196
    %v11255 = vadd.f32 %v11187, %v11196
    %v11256 = vadd.f32 %v11188, %v11196
    %v11257 = vadd.f32 %v11189, %v11196
    %v11258 = vadd.f32 %v11190, %v11196
    %v11259 = vadd.f32 %v11191, %v11196
    %v11260 = vadd.f32 %v11192, %v11196
    %v11261 = vld [vmem:[%s1] sm:$0xf]
    %v11262 = vld [vmem:[%s1 + $0x4] sm:$0xf]
    %v11263 = vld [vmem:[%s1 + $0x8] sm:$0xf]
    %v11264 = vld [vmem:[%s1 + $0xc] sm:$0xf]
    %v11265 = vld [vmem:[%s1 + $0x10] sm:$0xf]
    %v11266 = vld [vmem:[%s1 + $0x14] sm:$0xf]
    %v11267 = vld [vmem:[%s1 + $0x18] sm:$0xf]
    %v11268 = vld [vmem:[%s1 + $0x1c] sm:$0xf]
    %v11269 = vld [vmem:[%s1 + $0x20] sm:$0xf]
    %v11270 = vld [vmem:[%s1 + $0x24] sm:$0xf]
    %v11271 = vld [vmem:[%s1 + $0x28] sm:$0xf]
    %v11272 = vld [vmem:[%s1 + $0x2c] sm:$0xf]
    %v11273 = vld [vmem:[%s1 + $0x30] sm:$0xf]
    %v11274 = vld [vmem:[%s1 + $0x34] sm:$0xf]
    %v11275 = vld [vmem:[%s1 + $0x38] sm:$0xf]
    %v11276 = vld [vmem:[%s1 + $0x3c] sm:$0xf]
    %v11277 = vld [vmem:[%s1 + $0x40] sm:$0xf]
    %v11278 = vld [vmem:[%s1 + $0x44] sm:$0xf]
    %v11279 = vld [vmem:[%s1 + $0x48] sm:$0xf]
    %v11280 = vld [vmem:[%s1 + $0x4c] sm:$0xf]
    %v11281 = vld [vmem:[%s1 + $0x50] sm:$0xf]
    %v11282 = vld [vmem:[%s1 + $0x54] sm:$0xf]
    %v11283 = vld [vmem:[%s1 + $0x58] sm:$0xf]
    %v11284 = vld [vmem:[%s1 + $0x5c] sm:$0xf]
    %v11285 = vld [vmem:[%s1 + $0x60] sm:$0xf]
    %v11286 = vld [vmem:[%s1 + $0x64] sm:$0xf]
    %v11287 = vld [vmem:[%s1 + $0x68] sm:$0xf]
    %v11288 = vld [vmem:[%s1 + $0x6c] sm:$0xf]
    %v11289 = vld [vmem:[%s1 + $0x70] sm:$0xf]
    %v11290 = vld [vmem:[%s1 + $0x74] sm:$0xf]
    %v11291 = vld [vmem:[%s1 + $0x78] sm:$0xf]
    %v11292 = vld [vmem:[%s1 + $0x7c] sm:$0xf]
    %v11293 = vld [vmem:[%s1 + $0x80] sm:$0xf]
    %v11294 = vld [vmem:[%s1 + $0x84] sm:$0xf]
    %v11295 = vld [vmem:[%s1 + $0x88] sm:$0xf]
    %v11296 = vld [vmem:[%s1 + $0x8c] sm:$0xf]
    %v11297 = vld [vmem:[%s1 + $0x90] sm:$0xf]
    %v11298 = vld [vmem:[%s1 + $0x94] sm:$0xf]
    %v11299 = vld [vmem:[%s1 + $0x98] sm:$0xf]
    %v11300 = vld [vmem:[%s1 + $0x9c] sm:$0xf]
    %v11301 = vld [vmem:[%s1 + $0xa0] sm:$0xf]
    %v11302 = vld [vmem:[%s1 + $0xa4] sm:$0xf]
    %v11303 = vld [vmem:[%s1 + $0xa8] sm:$0xf]
    %v11304 = vld [vmem:[%s1 + $0xac] sm:$0xf]
    %v11305 = vld [vmem:[%s1 + $0xb0] sm:$0xf]
    %v11306 = vld [vmem:[%s1 + $0xb4] sm:$0xf]
    %v11307 = vld [vmem:[%s1 + $0xb8] sm:$0xf]
    %v11308 = vld [vmem:[%s1 + $0xbc] sm:$0xf]
    %v11309 = vld [vmem:[%s1 + $0xc0] sm:$0xf]
    %v11310 = vld [vmem:[%s1 + $0xc4] sm:$0xf]
    %v11311 = vld [vmem:[%s1 + $0xc8] sm:$0xf]
    %v11312 = vld [vmem:[%s1 + $0xcc] sm:$0xf]
    %v11313 = vld [vmem:[%s1 + $0xd0] sm:$0xf]
    %v11314 = vld [vmem:[%s1 + $0xd4] sm:$0xf]
    %v11315 = vld [vmem:[%s1 + $0xd8] sm:$0xf]
    %v11316 = vld [vmem:[%s1 + $0xdc] sm:$0xf]
    %v11317 = vld [vmem:[%s1 + $0xe0] sm:$0xf]
    %v11318 = vld [vmem:[%s1 + $0xe4] sm:$0xf]
    %v11319 = vld [vmem:[%s1 + $0xe8] sm:$0xf]
    %v11320 = vld [vmem:[%s1 + $0xec] sm:$0xf]
    %v11321 = vld [vmem:[%s1 + $0xf0] sm:$0xf]
    %v11322 = vld [vmem:[%s1 + $0xf4] sm:$0xf]
    %v11323 = vld [vmem:[%s1 + $0xf8] sm:$0xf]
    %v11324 = vld [vmem:[%s1 + $0xfc] sm:$0xf]
    %v11325 = vunpack.c.l.bf16 %v11261
    %v11326 = vunpack.c.l.bf16 %v11262
    %v11327 = vunpack.c.l.bf16 %v11263
    %v11328 = vunpack.c.l.bf16 %v11264
    %v11329 = vunpack.c.l.bf16 %v11265
    %v11330 = vunpack.c.l.bf16 %v11266
    %v11331 = vunpack.c.l.bf16 %v11267
    %v11332 = vunpack.c.l.bf16 %v11268
    %v11333 = vunpack.c.l.bf16 %v11269
    %v11334 = vunpack.c.l.bf16 %v11270
    %v11335 = vunpack.c.l.bf16 %v11271
    %v11336 = vunpack.c.l.bf16 %v11272
    %v11337 = vunpack.c.l.bf16 %v11273
    %v11338 = vunpack.c.l.bf16 %v11274
    %v11339 = vunpack.c.l.bf16 %v11275
    %v11340 = vunpack.c.l.bf16 %v11276
    %v11341 = vunpack.c.l.bf16 %v11277
    %v11342 = vunpack.c.l.bf16 %v11278
    %v11343 = vunpack.c.l.bf16 %v11279
    %v11344 = vunpack.c.l.bf16 %v11280
    %v11345 = vunpack.c.l.bf16 %v11281
    %v11346 = vunpack.c.l.bf16 %v11282
    %v11347 = vunpack.c.l.bf16 %v11283
    %v11348 = vunpack.c.l.bf16 %v11284
    %v11349 = vunpack.c.l.bf16 %v11285
    %v11350 = vunpack.c.l.bf16 %v11286
    %v11351 = vunpack.c.l.bf16 %v11287
    %v11352 = vunpack.c.l.bf16 %v11288
    %v11353 = vunpack.c.l.bf16 %v11289
    %v11354 = vunpack.c.l.bf16 %v11290
    %v11355 = vunpack.c.l.bf16 %v11291
    %v11356 = vunpack.c.l.bf16 %v11292
    %v11357 = vunpack.c.l.bf16 %v11293
    %v11358 = vunpack.c.l.bf16 %v11294
    %v11359 = vunpack.c.l.bf16 %v11295
    %v11360 = vunpack.c.l.bf16 %v11296
    %v11361 = vunpack.c.l.bf16 %v11297
    %v11362 = vunpack.c.l.bf16 %v11298
    %v11363 = vunpack.c.l.bf16 %v11299
    %v11364 = vunpack.c.l.bf16 %v11300
    %v11365 = vunpack.c.l.bf16 %v11301
    %v11366 = vunpack.c.l.bf16 %v11302
    %v11367 = vunpack.c.l.bf16 %v11303
    %v11368 = vunpack.c.l.bf16 %v11304
    %v11369 = vunpack.c.l.bf16 %v11305
    %v11370 = vunpack.c.l.bf16 %v11306
    %v11371 = vunpack.c.l.bf16 %v11307
    %v11372 = vunpack.c.l.bf16 %v11308
    %v11373 = vunpack.c.l.bf16 %v11309
    %v11374 = vunpack.c.l.bf16 %v11310
    %v11375 = vunpack.c.l.bf16 %v11311
    %v11376 = vunpack.c.l.bf16 %v11312
    %v11377 = vunpack.c.l.bf16 %v11313
    %v11378 = vunpack.c.l.bf16 %v11314
    %v11379 = vunpack.c.l.bf16 %v11315
    %v11380 = vunpack.c.l.bf16 %v11316
    %v11381 = vunpack.c.l.bf16 %v11317
    %v11382 = vunpack.c.l.bf16 %v11318
    %v11383 = vunpack.c.l.bf16 %v11319
    %v11384 = vunpack.c.l.bf16 %v11320
    %v11385 = vunpack.c.l.bf16 %v11321
    %v11386 = vunpack.c.l.bf16 %v11322
    %v11387 = vunpack.c.l.bf16 %v11323
    %v11388 = vunpack.c.l.bf16 %v11324
    %v11389 = vadd.f32 %v11197, %v11325
    %v11390 = vadd.f32 %v11198, %v11326
    %v11391 = vadd.f32 %v11199, %v11327
    %v11392 = vadd.f32 %v11200, %v11328
    %v11393 = vadd.f32 %v11201, %v11329
    %v11394 = vadd.f32 %v11202, %v11330
    %v11395 = vadd.f32 %v11203, %v11331
    %v11396 = vadd.f32 %v11204, %v11332
    %v11397 = vadd.f32 %v11205, %v11333
    %v11398 = vadd.f32 %v11206, %v11334
    %v11399 = vadd.f32 %v11207, %v11335
    %v11400 = vadd.f32 %v11208, %v11336
    %v11401 = vadd.f32 %v11209, %v11337
    %v11402 = vadd.f32 %v11210, %v11338
    %v11403 = vadd.f32 %v11211, %v11339
    %v11404 = vadd.f32 %v11212, %v11340
    %v11405 = vadd.f32 %v11213, %v11341
    %v11406 = vadd.f32 %v11214, %v11342
    %v11407 = vadd.f32 %v11215, %v11343
    %v11408 = vadd.f32 %v11216, %v11344
    %v11409 = vadd.f32 %v11217, %v11345
    %v11410 = vadd.f32 %v11218, %v11346
    %v11411 = vadd.f32 %v11219, %v11347
    %v11412 = vadd.f32 %v11220, %v11348
    %v11413 = vadd.f32 %v11221, %v11349
    %v11414 = vadd.f32 %v11222, %v11350
    %v11415 = vadd.f32 %v11223, %v11351
    %v11416 = vadd.f32 %v11224, %v11352
    %v11417 = vadd.f32 %v11225, %v11353
    %v11418 = vadd.f32 %v11226, %v11354
    %v11419 = vadd.f32 %v11227, %v11355
    %v11420 = vadd.f32 %v11228, %v11356
    %v11421 = vadd.f32 %v11229, %v11357
    %v11422 = vadd.f32 %v11230, %v11358
    %v11423 = vadd.f32 %v11231, %v11359
    %v11424 = vadd.f32 %v11232, %v11360
    %v11425 = vadd.f32 %v11233, %v11361
    %v11426 = vadd.f32 %v11234, %v11362
    %v11427 = vadd.f32 %v11235, %v11363
    %v11428 = vadd.f32 %v11236, %v11364
    %v11429 = vadd.f32 %v11237, %v11365
    %v11430 = vadd.f32 %v11238, %v11366
    %v11431 = vadd.f32 %v11239, %v11367
    %v11432 = vadd.f32 %v11240, %v11368
    %v11433 = vadd.f32 %v11241, %v11369
    %v11434 = vadd.f32 %v11242, %v11370
    %v11435 = vadd.f32 %v11243, %v11371
    %v11436 = vadd.f32 %v11244, %v11372
    %v11437 = vadd.f32 %v11245, %v11373
    %v11438 = vadd.f32 %v11246, %v11374
    %v11439 = vadd.f32 %v11247, %v11375
    %v11440 = vadd.f32 %v11248, %v11376
    %v11441 = vadd.f32 %v11249, %v11377
    %v11442 = vadd.f32 %v11250, %v11378
    %v11443 = vadd.f32 %v11251, %v11379
    %v11444 = vadd.f32 %v11252, %v11380
    %v11445 = vadd.f32 %v11253, %v11381
    %v11446 = vadd.f32 %v11254, %v11382
    %v11447 = vadd.f32 %v11255, %v11383
    %v11448 = vadd.f32 %v11256, %v11384
    %v11449 = vadd.f32 %v11257, %v11385
    %v11450 = vadd.f32 %v11258, %v11386
    %v11451 = vadd.f32 %v11259, %v11387
    %v11452 = vadd.f32 %v11260, %v11388
    %v11453 = vadd.f32 %v11389, %v11390
    %v11454 = vadd.f32 %v11453, %v11391
    %v11455 = vadd.f32 %v11454, %v11392
    %v11456 = vadd.f32 %v11455, %v11393
    %v11457 = vadd.f32 %v11456, %v11394
    %v11458 = vadd.f32 %v11457, %v11395
    %v11459 = vadd.f32 %v11458, %v11396
    %v11460 = vadd.f32 %v11459, %v11397
    %v11461 = vadd.f32 %v11460, %v11398
    %v11462 = vadd.f32 %v11461, %v11399
    %v11463 = vadd.f32 %v11462, %v11400
    %v11464 = vadd.f32 %v11463, %v11401
    %v11465 = vadd.f32 %v11464, %v11402
    %v11466 = vadd.f32 %v11465, %v11403
    %v11467 = vadd.f32 %v11466, %v11404
    %v11468 = vadd.f32 %v11467, %v11405
    %v11469 = vadd.f32 %v11468, %v11406
    %v11470 = vadd.f32 %v11469, %v11407
    %v11471 = vadd.f32 %v11470, %v11408
    %v11472 = vadd.f32 %v11471, %v11409
    %v11473 = vadd.f32 %v11472, %v11410
    %v11474 = vadd.f32 %v11473, %v11411
    %v11475 = vadd.f32 %v11474, %v11412
    %v11476 = vadd.f32 %v11475, %v11413
    %v11477 = vadd.f32 %v11476, %v11414
    %v11478 = vadd.f32 %v11477, %v11415
    %v11479 = vadd.f32 %v11478, %v11416
    %v11480 = vadd.f32 %v11479, %v11417
    %v11481 = vadd.f32 %v11480, %v11418
    %v11482 = vadd.f32 %v11481, %v11419
    %v11483 = vadd.f32 %v11482, %v11420
    %v11484 = vadd.f32 %v11483, %v11421
    %v11485 = vadd.f32 %v11484, %v11422
    %v11486 = vadd.f32 %v11485, %v11423
    %v11487 = vadd.f32 %v11486, %v11424
    %v11488 = vadd.f32 %v11487, %v11425
    %v11489 = vadd.f32 %v11488, %v11426
    %v11490 = vadd.f32 %v11489, %v11427
    %v11491 = vadd.f32 %v11490, %v11428
    %v11492 = vadd.f32 %v11491, %v11429
    %v11493 = vadd.f32 %v11492, %v11430
    %v11494 = vadd.f32 %v11493, %v11431
    %v11495 = vadd.f32 %v11494, %v11432
    %v11496 = vadd.f32 %v11495, %v11433
    %v11497 = vadd.f32 %v11496, %v11434
    %v11498 = vadd.f32 %v11497, %v11435
    %v11499 = vadd.f32 %v11498, %v11436
    %v11500 = vadd.f32 %v11499, %v11437
    %v11501 = vadd.f32 %v11500, %v11438
    %v11502 = vadd.f32 %v11501, %v11439
    %v11503 = vadd.f32 %v11502, %v11440
    %v11504 = vadd.f32 %v11503, %v11441
    %v11505 = vadd.f32 %v11504, %v11442
    %v11506 = vadd.f32 %v11505, %v11443
    %v11507 = vadd.f32 %v11506, %v11444
    %v11508 = vadd.f32 %v11507, %v11445
    %v11509 = vadd.f32 %v11508, %v11446
    %v11510 = vadd.f32 %v11509, %v11447
    %v11511 = vadd.f32 %v11510, %v11448
    %v11512 = vadd.f32 %v11511, %v11449
    %v11513 = vadd.f32 %v11512, %v11450
    %v11514 = vadd.f32 %v11513, %v11451
    %v11515 = vadd.f32 %v11514, %v11452
    %v11516 = vrot.slane %v11515, 4
    %v11517 = vadd.f32 %v11515, %v11516
    %v11518 = vrot.slane %v11517, 2
    %v11519 = vadd.f32 %v11517, %v11518
    %v11520 = vrot.slane %v11519, 1
    %v11521 = vadd.f32 %v11519, %v11520
    %v11522 = vmul.f32 %v11521, %v10325
    %v11523 = vsub.f32 %v11389, %v11522
    %v11524 = vsub.f32 %v11390, %v11522
    %v11525 = vsub.f32 %v11391, %v11522
    %v11526 = vsub.f32 %v11392, %v11522
    %v11527 = vsub.f32 %v11393, %v11522
    %v11528 = vsub.f32 %v11394, %v11522
    %v11529 = vsub.f32 %v11395, %v11522
    %v11530 = vsub.f32 %v11396, %v11522
    %v11531 = vsub.f32 %v11397, %v11522
    %v11532 = vsub.f32 %v11398, %v11522
    %v11533 = vsub.f32 %v11399, %v11522
    %v11534 = vsub.f32 %v11400, %v11522
    %v11535 = vsub.f32 %v11401, %v11522
    %v11536 = vsub.f32 %v11402, %v11522
    %v11537 = vsub.f32 %v11403, %v11522
    %v11538 = vsub.f32 %v11404, %v11522
    %v11539 = vsub.f32 %v11405, %v11522
    %v11540 = vsub.f32 %v11406, %v11522
    %v11541 = vsub.f32 %v11407, %v11522
    %v11542 = vsub.f32 %v11408, %v11522
    %v11543 = vsub.f32 %v11409, %v11522
    %v11544 = vsub.f32 %v11410, %v11522
    %v11545 = vsub.f32 %v11411, %v11522
    %v11546 = vsub.f32 %v11412, %v11522
    %v11547 = vsub.f32 %v11413, %v11522
    %v11548 = vsub.f32 %v11414, %v11522
    %v11549 = vsub.f32 %v11415, %v11522
    %v11550 = vsub.f32 %v11416, %v11522
    %v11551 = vsub.f32 %v11417, %v11522
    %v11552 = vsub.f32 %v11418, %v11522
    %v11553 = vsub.f32 %v11419, %v11522
    %v11554 = vsub.f32 %v11420, %v11522
    %v11555 = vsub.f32 %v11421, %v11522
    %v11556 = vsub.f32 %v11422, %v11522
    %v11557 = vsub.f32 %v11423, %v11522
    %v11558 = vsub.f32 %v11424, %v11522
    %v11559 = vsub.f32 %v11425, %v11522
    %v11560 = vsub.f32 %v11426, %v11522
    %v11561 = vsub.f32 %v11427, %v11522
    %v11562 = vsub.f32 %v11428, %v11522
    %v11563 = vsub.f32 %v11429, %v11522
    %v11564 = vsub.f32 %v11430, %v11522
    %v11565 = vsub.f32 %v11431, %v11522
    %v11566 = vsub.f32 %v11432, %v11522
    %v11567 = vsub.f32 %v11433, %v11522
    %v11568 = vsub.f32 %v11434, %v11522
    %v11569 = vsub.f32 %v11435, %v11522
    %v11570 = vsub.f32 %v11436, %v11522
    %v11571 = vsub.f32 %v11437, %v11522
    %v11572 = vsub.f32 %v11438, %v11522
    %v11573 = vsub.f32 %v11439, %v11522
    %v11574 = vsub.f32 %v11440, %v11522
    %v11575 = vsub.f32 %v11441, %v11522
    %v11576 = vsub.f32 %v11442, %v11522
    %v11577 = vsub.f32 %v11443, %v11522
    %v11578 = vsub.f32 %v11444, %v11522
    %v11579 = vsub.f32 %v11445, %v11522
    %v11580 = vsub.f32 %v11446, %v11522
    %v11581 = vsub.f32 %v11447, %v11522
    %v11582 = vsub.f32 %v11448, %v11522
    %v11583 = vsub.f32 %v11449, %v11522
    %v11584 = vsub.f32 %v11450, %v11522
    %v11585 = vsub.f32 %v11451, %v11522
    %v11586 = vsub.f32 %v11452, %v11522
    %v11587 = vmul.f32 %v11523, %v11523
    %v11588 = vmul.f32 %v11524, %v11524
    %v11589 = vmul.f32 %v11525, %v11525
    %v11590 = vmul.f32 %v11526, %v11526
    %v11591 = vmul.f32 %v11527, %v11527
    %v11592 = vmul.f32 %v11528, %v11528
    %v11593 = vmul.f32 %v11529, %v11529
    %v11594 = vmul.f32 %v11530, %v11530
    %v11595 = vmul.f32 %v11531, %v11531
    %v11596 = vmul.f32 %v11532, %v11532
    %v11597 = vmul.f32 %v11533, %v11533
    %v11598 = vmul.f32 %v11534, %v11534
    %v11599 = vmul.f32 %v11535, %v11535
    %v11600 = vmul.f32 %v11536, %v11536
    %v11601 = vmul.f32 %v11537, %v11537
    %v11602 = vmul.f32 %v11538, %v11538
    %v11603 = vmul.f32 %v11539, %v11539
    %v11604 = vmul.f32 %v11540, %v11540
    %v11605 = vmul.f32 %v11541, %v11541
    %v11606 = vmul.f32 %v11542, %v11542
    %v11607 = vmul.f32 %v11543, %v11543
    %v11608 = vmul.f32 %v11544, %v11544
    %v11609 = vmul.f32 %v11545, %v11545
    %v11610 = vmul.f32 %v11546, %v11546
    %v11611 = vmul.f32 %v11547, %v11547
    %v11612 = vmul.f32 %v11548, %v11548
    %v11613 = vmul.f32 %v11549, %v11549
    %v11614 = vmul.f32 %v11550, %v11550
    %v11615 = vmul.f32 %v11551, %v11551
    %v11616 = vmul.f32 %v11552, %v11552
    %v11617 = vmul.f32 %v11553, %v11553
    %v11618 = vmul.f32 %v11554, %v11554
    %v11619 = vmul.f32 %v11555, %v11555
    %v11620 = vmul.f32 %v11556, %v11556
    %v11621 = vmul.f32 %v11557, %v11557
    %v11622 = vmul.f32 %v11558, %v11558
    %v11623 = vmul.f32 %v11559, %v11559
    %v11624 = vmul.f32 %v11560, %v11560
    %v11625 = vmul.f32 %v11561, %v11561
    %v11626 = vmul.f32 %v11562, %v11562
    %v11627 = vmul.f32 %v11563, %v11563
    %v11628 = vmul.f32 %v11564, %v11564
    %v11629 = vmul.f32 %v11565, %v11565
    %v11630 = vmul.f32 %v11566, %v11566
    %v11631 = vmul.f32 %v11567, %v11567
    %v11632 = vmul.f32 %v11568, %v11568
    %v11633 = vmul.f32 %v11569, %v11569
    %v11634 = vmul.f32 %v11570, %v11570
    %v11635 = vmul.f32 %v11571, %v11571
    %v11636 = vmul.f32 %v11572, %v11572
    %v11637 = vmul.f32 %v11573, %v11573
    %v11638 = vmul.f32 %v11574, %v11574
    %v11639 = vmul.f32 %v11575, %v11575
    %v11640 = vmul.f32 %v11576, %v11576
    %v11641 = vmul.f32 %v11577, %v11577
    %v11642 = vmul.f32 %v11578, %v11578
    %v11643 = vmul.f32 %v11579, %v11579
    %v11644 = vmul.f32 %v11580, %v11580
    %v11645 = vmul.f32 %v11581, %v11581
    %v11646 = vmul.f32 %v11582, %v11582
    %v11647 = vmul.f32 %v11583, %v11583
    %v11648 = vmul.f32 %v11584, %v11584
    %v11649 = vmul.f32 %v11585, %v11585
    %v11650 = vmul.f32 %v11586, %v11586
    %v11651 = vadd.f32 %v11587, %v11588
    %v11652 = vadd.f32 %v11651, %v11589
    %v11653 = vadd.f32 %v11652, %v11590
    %v11654 = vadd.f32 %v11653, %v11591
    %v11655 = vadd.f32 %v11654, %v11592
    %v11656 = vadd.f32 %v11655, %v11593
    %v11657 = vadd.f32 %v11656, %v11594
    %v11658 = vadd.f32 %v11657, %v11595
    %v11659 = vadd.f32 %v11658, %v11596
    %v11660 = vadd.f32 %v11659, %v11597
    %v11661 = vadd.f32 %v11660, %v11598
    %v11662 = vadd.f32 %v11661, %v11599
    %v11663 = vadd.f32 %v11662, %v11600
    %v11664 = vadd.f32 %v11663, %v11601
    %v11665 = vadd.f32 %v11664, %v11602
    %v11666 = vadd.f32 %v11665, %v11603
    %v11667 = vadd.f32 %v11666, %v11604
    %v11668 = vadd.f32 %v11667, %v11605
    %v11669 = vadd.f32 %v11668, %v11606
    %v11670 = vadd.f32 %v11669, %v11607
    %v11671 = vadd.f32 %v11670, %v11608
    %v11672 = vadd.f32 %v11671, %v11609
    %v11673 = vadd.f32 %v11672, %v11610
    %v11674 = vadd.f32 %v11673, %v11611
    %v11675 = vadd.f32 %v11674, %v11612
    %v11676 = vadd.f32 %v11675, %v11613
    %v11677 = vadd.f32 %v11676, %v11614
    %v11678 = vadd.f32 %v11677, %v11615
    %v11679 = vadd.f32 %v11678, %v11616
    %v11680 = vadd.f32 %v11679, %v11617
    %v11681 = vadd.f32 %v11680, %v11618
    %v11682 = vadd.f32 %v11681, %v11619
    %v11683 = vadd.f32 %v11682, %v11620
    %v11684 = vadd.f32 %v11683, %v11621
    %v11685 = vadd.f32 %v11684, %v11622
    %v11686 = vadd.f32 %v11685, %v11623
    %v11687 = vadd.f32 %v11686, %v11624
    %v11688 = vadd.f32 %v11687, %v11625
    %v11689 = vadd.f32 %v11688, %v11626
    %v11690 = vadd.f32 %v11689, %v11627
    %v11691 = vadd.f32 %v11690, %v11628
    %v11692 = vadd.f32 %v11691, %v11629
    %v11693 = vadd.f32 %v11692, %v11630
    %v11694 = vadd.f32 %v11693, %v11631
    %v11695 = vadd.f32 %v11694, %v11632
    %v11696 = vadd.f32 %v11695, %v11633
    %v11697 = vadd.f32 %v11696, %v11634
    %v11698 = vadd.f32 %v11697, %v11635
    %v11699 = vadd.f32 %v11698, %v11636
    %v11700 = vadd.f32 %v11699, %v11637
    %v11701 = vadd.f32 %v11700, %v11638
    %v11702 = vadd.f32 %v11701, %v11639
    %v11703 = vadd.f32 %v11702, %v11640
    %v11704 = vadd.f32 %v11703, %v11641
    %v11705 = vadd.f32 %v11704, %v11642
    %v11706 = vadd.f32 %v11705, %v11643
    %v11707 = vadd.f32 %v11706, %v11644
    %v11708 = vadd.f32 %v11707, %v11645
    %v11709 = vadd.f32 %v11708, %v11646
    %v11710 = vadd.f32 %v11709, %v11647
    %v11711 = vadd.f32 %v11710, %v11648
    %v11712 = vadd.f32 %v11711, %v11649
    %v11713 = vadd.f32 %v11712, %v11650
    %v11714 = vrot.slane %v11713, 4
    %v11715 = vadd.f32 %v11713, %v11714
    %v11716 = vrot.slane %v11715, 2
    %v11717 = vadd.f32 %v11715, %v11716
    %v11718 = vrot.slane %v11717, 1
    %v11719 = vadd.f32 %v11717, %v11718
    %v11720 = vmul.f32 %v11719, %v10325
    %v11721 = vadd.f32 %v11720, 1e-05
    %v11722 = vrsqrt.pop %v11721
    %v11723 = vmul.f32 %v11523, %v11722
    %v11724 = vmul.f32 %v11524, %v11722
    %v11725 = vmul.f32 %v11525, %v11722
    %v11726 = vmul.f32 %v11526, %v11722
    %v11727 = vmul.f32 %v11527, %v11722
    %v11728 = vmul.f32 %v11528, %v11722
    %v11729 = vmul.f32 %v11529, %v11722
    %v11730 = vmul.f32 %v11530, %v11722
    %v11731 = vmul.f32 %v11531, %v11722
    %v11732 = vmul.f32 %v11532, %v11722
    %v11733 = vmul.f32 %v11533, %v11722
    %v11734 = vmul.f32 %v11534, %v11722
    %v11735 = vmul.f32 %v11535, %v11722
    %v11736 = vmul.f32 %v11536, %v11722
    %v11737 = vmul.f32 %v11537, %v11722
    %v11738 = vmul.f32 %v11538, %v11722
    %v11739 = vmul.f32 %v11539, %v11722
    %v11740 = vmul.f32 %v11540, %v11722
    %v11741 = vmul.f32 %v11541, %v11722
    %v11742 = vmul.f32 %v11542, %v11722
    %v11743 = vmul.f32 %v11543, %v11722
    %v11744 = vmul.f32 %v11544, %v11722
    %v11745 = vmul.f32 %v11545, %v11722
    %v11746 = vmul.f32 %v11546, %v11722
    %v11747 = vmul.f32 %v11547, %v11722
    %v11748 = vmul.f32 %v11548, %v11722
    %v11749 = vmul.f32 %v11549, %v11722
    %v11750 = vmul.f32 %v11550, %v11722
    %v11751 = vmul.f32 %v11551, %v11722
    %v11752 = vmul.f32 %v11552, %v11722
    %v11753 = vmul.f32 %v11553, %v11722
    %v11754 = vmul.f32 %v11554, %v11722
    %v11755 = vmul.f32 %v11555, %v11722
    %v11756 = vmul.f32 %v11556, %v11722
    %v11757 = vmul.f32 %v11557, %v11722
    %v11758 = vmul.f32 %v11558, %v11722
    %v11759 = vmul.f32 %v11559, %v11722
    %v11760 = vmul.f32 %v11560, %v11722
    %v11761 = vmul.f32 %v11561, %v11722
    %v11762 = vmul.f32 %v11562, %v11722
    %v11763 = vmul.f32 %v11563, %v11722
    %v11764 = vmul.f32 %v11564, %v11722
    %v11765 = vmul.f32 %v11565, %v11722
    %v11766 = vmul.f32 %v11566, %v11722
    %v11767 = vmul.f32 %v11567, %v11722
    %v11768 = vmul.f32 %v11568, %v11722
    %v11769 = vmul.f32 %v11569, %v11722
    %v11770 = vmul.f32 %v11570, %v11722
    %v11771 = vmul.f32 %v11571, %v11722
    %v11772 = vmul.f32 %v11572, %v11722
    %v11773 = vmul.f32 %v11573, %v11722
    %v11774 = vmul.f32 %v11574, %v11722
    %v11775 = vmul.f32 %v11575, %v11722
    %v11776 = vmul.f32 %v11576, %v11722
    %v11777 = vmul.f32 %v11577, %v11722
    %v11778 = vmul.f32 %v11578, %v11722
    %v11779 = vmul.f32 %v11579, %v11722
    %v11780 = vmul.f32 %v11580, %v11722
    %v11781 = vmul.f32 %v11581, %v11722
    %v11782 = vmul.f32 %v11582, %v11722
    %v11783 = vmul.f32 %v11583, %v11722
    %v11784 = vmul.f32 %v11584, %v11722
    %v11785 = vmul.f32 %v11585, %v11722
    %v11786 = vmul.f32 %v11586, %v11722
    %v11787 = vmul.f32 %v11723, %v11128
    %v11788 = vmul.f32 %v11724, %v11128
    %v11789 = vmul.f32 %v11725, %v11128
    %v11790 = vmul.f32 %v11726, %v11128
    %v11791 = vmul.f32 %v11727, %v11128
    %v11792 = vmul.f32 %v11728, %v11128
    %v11793 = vmul.f32 %v11729, %v11128
    %v11794 = vmul.f32 %v11730, %v11128
    %v11795 = vmul.f32 %v11731, %v11128
    %v11796 = vmul.f32 %v11732, %v11128
    %v11797 = vmul.f32 %v11733, %v11128
    %v11798 = vmul.f32 %v11734, %v11128
    %v11799 = vmul.f32 %v11735, %v11128
    %v11800 = vmul.f32 %v11736, %v11128
    %v11801 = vmul.f32 %v11737, %v11128
    %v11802 = vmul.f32 %v11738, %v11128
    %v11803 = vmul.f32 %v11739, %v11128
    %v11804 = vmul.f32 %v11740, %v11128
    %v11805 = vmul.f32 %v11741, %v11128
    %v11806 = vmul.f32 %v11742, %v11128
    %v11807 = vmul.f32 %v11743, %v11128
    %v11808 = vmul.f32 %v11744, %v11128
    %v11809 = vmul.f32 %v11745, %v11128
    %v11810 = vmul.f32 %v11746, %v11128
    %v11811 = vmul.f32 %v11747, %v11128
    %v11812 = vmul.f32 %v11748, %v11128
    %v11813 = vmul.f32 %v11749, %v11128
    %v11814 = vmul.f32 %v11750, %v11128
    %v11815 = vmul.f32 %v11751, %v11128
    %v11816 = vmul.f32 %v11752, %v11128
    %v11817 = vmul.f32 %v11753, %v11128
    %v11818 = vmul.f32 %v11754, %v11128
    %v11819 = vmul.f32 %v11755, %v11128
    %v11820 = vmul.f32 %v11756, %v11128
    %v11821 = vmul.f32 %v11757, %v11128
    %v11822 = vmul.f32 %v11758, %v11128
    %v11823 = vmul.f32 %v11759, %v11128
    %v11824 = vmul.f32 %v11760, %v11128
    %v11825 = vmul.f32 %v11761, %v11128
    %v11826 = vmul.f32 %v11762, %v11128
    %v11827 = vmul.f32 %v11763, %v11128
    %v11828 = vmul.f32 %v11764, %v11128
    %v11829 = vmul.f32 %v11765, %v11128
    %v11830 = vmul.f32 %v11766, %v11128
    %v11831 = vmul.f32 %v11767, %v11128
    %v11832 = vmul.f32 %v11768, %v11128
    %v11833 = vmul.f32 %v11769, %v11128
    %v11834 = vmul.f32 %v11770, %v11128
    %v11835 = vmul.f32 %v11771, %v11128
    %v11836 = vmul.f32 %v11772, %v11128
    %v11837 = vmul.f32 %v11773, %v11128
    %v11838 = vmul.f32 %v11774, %v11128
    %v11839 = vmul.f32 %v11775, %v11128
    %v11840 = vmul.f32 %v11776, %v11128
    %v11841 = vmul.f32 %v11777, %v11128
    %v11842 = vmul.f32 %v11778, %v11128
    %v11843 = vmul.f32 %v11779, %v11128
    %v11844 = vmul.f32 %v11780, %v11128
    %v11845 = vmul.f32 %v11781, %v11128
    %v11846 = vmul.f32 %v11782, %v11128
    %v11847 = vmul.f32 %v11783, %v11128
    %v11848 = vmul.f32 %v11784, %v11128
    %v11849 = vmul.f32 %v11785, %v11128
    %v11850 = vmul.f32 %v11786, %v11128
    %v11851 = vadd.f32 %v11787, %v11196
    %v11852 = vadd.f32 %v11788, %v11196
    %v11853 = vadd.f32 %v11789, %v11196
    %v11854 = vadd.f32 %v11790, %v11196
    %v11855 = vadd.f32 %v11791, %v11196
    %v11856 = vadd.f32 %v11792, %v11196
    %v11857 = vadd.f32 %v11793, %v11196
    %v11858 = vadd.f32 %v11794, %v11196
    %v11859 = vadd.f32 %v11795, %v11196
    %v11860 = vadd.f32 %v11796, %v11196
    %v11861 = vadd.f32 %v11797, %v11196
    %v11862 = vadd.f32 %v11798, %v11196
    %v11863 = vadd.f32 %v11799, %v11196
    %v11864 = vadd.f32 %v11800, %v11196
    %v11865 = vadd.f32 %v11801, %v11196
    %v11866 = vadd.f32 %v11802, %v11196
    %v11867 = vadd.f32 %v11803, %v11196
    %v11868 = vadd.f32 %v11804, %v11196
    %v11869 = vadd.f32 %v11805, %v11196
    %v11870 = vadd.f32 %v11806, %v11196
    %v11871 = vadd.f32 %v11807, %v11196
    %v11872 = vadd.f32 %v11808, %v11196
    %v11873 = vadd.f32 %v11809, %v11196
    %v11874 = vadd.f32 %v11810, %v11196
    %v11875 = vadd.f32 %v11811, %v11196
    %v11876 = vadd.f32 %v11812, %v11196
    %v11877 = vadd.f32 %v11813, %v11196
    %v11878 = vadd.f32 %v11814, %v11196
    %v11879 = vadd.f32 %v11815, %v11196
    %v11880 = vadd.f32 %v11816, %v11196
    %v11881 = vadd.f32 %v11817, %v11196
    %v11882 = vadd.f32 %v11818, %v11196
    %v11883 = vadd.f32 %v11819, %v11196
    %v11884 = vadd.f32 %v11820, %v11196
    %v11885 = vadd.f32 %v11821, %v11196
    %v11886 = vadd.f32 %v11822, %v11196
    %v11887 = vadd.f32 %v11823, %v11196
    %v11888 = vadd.f32 %v11824, %v11196
    %v11889 = vadd.f32 %v11825, %v11196
    %v11890 = vadd.f32 %v11826, %v11196
    %v11891 = vadd.f32 %v11827, %v11196
    %v11892 = vadd.f32 %v11828, %v11196
    %v11893 = vadd.f32 %v11829, %v11196
    %v11894 = vadd.f32 %v11830, %v11196
    %v11895 = vadd.f32 %v11831, %v11196
    %v11896 = vadd.f32 %v11832, %v11196
    %v11897 = vadd.f32 %v11833, %v11196
    %v11898 = vadd.f32 %v11834, %v11196
    %v11899 = vadd.f32 %v11835, %v11196
    %v11900 = vadd.f32 %v11836, %v11196
    %v11901 = vadd.f32 %v11837, %v11196
    %v11902 = vadd.f32 %v11838, %v11196
    %v11903 = vadd.f32 %v11839, %v11196
    %v11904 = vadd.f32 %v11840, %v11196
    %v11905 = vadd.f32 %v11841, %v11196
    %v11906 = vadd.f32 %v11842, %v11196
    %v11907 = vadd.f32 %v11843, %v11196
    %v11908 = vadd.f32 %v11844, %v11196
    %v11909 = vadd.f32 %v11845, %v11196
    %v11910 = vadd.f32 %v11846, %v11196
    %v11911 = vadd.f32 %v11847, %v11196
    %v11912 = vadd.f32 %v11848, %v11196
    %v11913 = vadd.f32 %v11849, %v11196
    %v11914 = vadd.f32 %v11850, %v11196
    %v11915 = vmax.f32 %v11851, 0.0
    %v11916 = vmax.f32 %v11852, 0.0
    %v11917 = vmax.f32 %v11853, 0.0
    %v11918 = vmax.f32 %v11854, 0.0
    %v11919 = vmax.f32 %v11855, 0.0
    %v11920 = vmax.f32 %v11856, 0.0
    %v11921 = vmax.f32 %v11857, 0.0
    %v11922 = vmax.f32 %v11858, 0.0
    %v11923 = vmax.f32 %v11859, 0.0
    %v11924 = vmax.f32 %v11860, 0.0
    %v11925 = vmax.f32 %v11861, 0.0
    %v11926 = vmax.f32 %v11862, 0.0
    %v11927 = vmax.f32 %v11863, 0.0
    %v11928 = vmax.f32 %v11864, 0.0
    %v11929 = vmax.f32 %v11865, 0.0
    %v11930 = vmax.f32 %v11866, 0.0
    %v11931 = vmax.f32 %v11867, 0.0
    %v11932 = vmax.f32 %v11868, 0.0
    %v11933 = vmax.f32 %v11869, 0.0
    %v11934 = vmax.f32 %v11870, 0.0
    %v11935 = vmax.f32 %v11871, 0.0
    %v11936 = vmax.f32 %v11872, 0.0
    %v11937 = vmax.f32 %v11873, 0.0
    %v11938 = vmax.f32 %v11874, 0.0
    %v11939 = vmax.f32 %v11875, 0.0
    %v11940 = vmax.f32 %v11876, 0.0
    %v11941 = vmax.f32 %v11877, 0.0
    %v11942 = vmax.f32 %v11878, 0.0
    %v11943 = vmax.f32 %v11879, 0.0
    %v11944 = vmax.f32 %v11880, 0.0
    %v11945 = vmax.f32 %v11881, 0.0
    %v11946 = vmax.f32 %v11882, 0.0
    %v11947 = vmax.f32 %v11883, 0.0
    %v11948 = vmax.f32 %v11884, 0.0
    %v11949 = vmax.f32 %v11885, 0.0
    %v11950 = vmax.f32 %v11886, 0.0
    %v11951 = vmax.f32 %v11887, 0.0
    %v11952 = vmax.f32 %v11888, 0.0
    %v11953 = vmax.f32 %v11889, 0.0
    %v11954 = vmax.f32 %v11890, 0.0
    %v11955 = vmax.f32 %v11891, 0.0
    %v11956 = vmax.f32 %v11892, 0.0
    %v11957 = vmax.f32 %v11893, 0.0
    %v11958 = vmax.f32 %v11894, 0.0
    %v11959 = vmax.f32 %v11895, 0.0
    %v11960 = vmax.f32 %v11896, 0.0
    %v11961 = vmax.f32 %v11897, 0.0
    %v11962 = vmax.f32 %v11898, 0.0
    %v11963 = vmax.f32 %v11899, 0.0
    %v11964 = vmax.f32 %v11900, 0.0
    %v11965 = vmax.f32 %v11901, 0.0
    %v11966 = vmax.f32 %v11902, 0.0
    %v11967 = vmax.f32 %v11903, 0.0
    %v11968 = vmax.f32 %v11904, 0.0
    %v11969 = vmax.f32 %v11905, 0.0
    %v11970 = vmax.f32 %v11906, 0.0
    %v11971 = vmax.f32 %v11907, 0.0
    %v11972 = vmax.f32 %v11908, 0.0
    %v11973 = vmax.f32 %v11909, 0.0
    %v11974 = vmax.f32 %v11910, 0.0
    %v11975 = vmax.f32 %v11911, 0.0
    %v11976 = vmax.f32 %v11912, 0.0
    %v11977 = vmax.f32 %v11913, 0.0
    %v11978 = vmax.f32 %v11914, 0.0
    %11979 = vst [vmem:[#allocation2] sm:$0xff] %v11915
    %11980 = vst [vmem:[#allocation2 + $0x8] sm:$0xff] %v11916
    %11981 = vst [vmem:[#allocation2 + $0x10] sm:$0xff] %v11917
    %11982 = vst [vmem:[#allocation2 + $0x18] sm:$0xff] %v11918
    %11983 = vst [vmem:[#allocation2 + $0x20] sm:$0xff] %v11919
    %11984 = vst [vmem:[#allocation2 + $0x28] sm:$0xff] %v11920
    %11985 = vst [vmem:[#allocation2 + $0x30] sm:$0xff] %v11921
    %11986 = vst [vmem:[#allocation2 + $0x38] sm:$0xff] %v11922
    %11987 = vst [vmem:[#allocation2 + $0x40] sm:$0xff] %v11923
    %11988 = vst [vmem:[#allocation2 + $0x48] sm:$0xff] %v11924
    %11989 = vst [vmem:[#allocation2 + $0x50] sm:$0xff] %v11925
    %11990 = vst [vmem:[#allocation2 + $0x58] sm:$0xff] %v11926
    %11991 = vst [vmem:[#allocation2 + $0x60] sm:$0xff] %v11927
    %11992 = vst [vmem:[#allocation2 + $0x68] sm:$0xff] %v11928
    %11993 = vst [vmem:[#allocation2 + $0x70] sm:$0xff] %v11929
    %11994 = vst [vmem:[#allocation2 + $0x78] sm:$0xff] %v11930
    %11995 = vst [vmem:[#allocation2 + $0x80] sm:$0xff] %v11931
    %11996 = vst [vmem:[#allocation2 + $0x88] sm:$0xff] %v11932
    %11997 = vst [vmem:[#allocation2 + $0x90] sm:$0xff] %v11933
    %11998 = vst [vmem:[#allocation2 + $0x98] sm:$0xff] %v11934
    %11999 = vst [vmem:[#allocation2 + $0xa0] sm:$0xff] %v11935
    %12000 = vst [vmem:[#allocation2 + $0xa8] sm:$0xff] %v11936
    %12001 = vst [vmem:[#allocation2 + $0xb0] sm:$0xff] %v11937
    %12002 = vst [vmem:[#allocation2 + $0xb8] sm:$0xff] %v11938
    %12003 = vst [vmem:[#allocation2 + $0xc0] sm:$0xff] %v11939
    %12004 = vst [vmem:[#allocation2 + $0xc8] sm:$0xff] %v11940
    %12005 = vst [vmem:[#allocation2 + $0xd0] sm:$0xff] %v11941
    %12006 = vst [vmem:[#allocation2 + $0xd8] sm:$0xff] %v11942
    %12007 = vst [vmem:[#allocation2 + $0xe0] sm:$0xff] %v11943
    %12008 = vst [vmem:[#allocation2 + $0xe8] sm:$0xff] %v11944
    %12009 = vst [vmem:[#allocation2 + $0xf0] sm:$0xff] %v11945
    %12010 = vst [vmem:[#allocation2 + $0xf8] sm:$0xff] %v11946
    %12011 = vst [vmem:[#allocation2 + $0x100] sm:$0xff] %v11947
    %12012 = vst [vmem:[#allocation2 + $0x108] sm:$0xff] %v11948
    %12013 = vst [vmem:[#allocation2 + $0x110] sm:$0xff] %v11949
    %12014 = vst [vmem:[#allocation2 + $0x118] sm:$0xff] %v11950
    %12015 = vst [vmem:[#allocation2 + $0x120] sm:$0xff] %v11951
    %12016 = vst [vmem:[#allocation2 + $0x128] sm:$0xff] %v11952
    %12017 = vst [vmem:[#allocation2 + $0x130] sm:$0xff] %v11953
    %12018 = vst [vmem:[#allocation2 + $0x138] sm:$0xff] %v11954
    %12019 = vst [vmem:[#allocation2 + $0x140] sm:$0xff] %v11955
    %12020 = vst [vmem:[#allocation2 + $0x148] sm:$0xff] %v11956
    %12021 = vst [vmem:[#allocation2 + $0x150] sm:$0xff] %v11957
    %12022 = vst [vmem:[#allocation2 + $0x158] sm:$0xff] %v11958
    %12023 = vst [vmem:[#allocation2 + $0x160] sm:$0xff] %v11959
    %12024 = vst [vmem:[#allocation2 + $0x168] sm:$0xff] %v11960
    %12025 = vst [vmem:[#allocation2 + $0x170] sm:$0xff] %v11961
    %12026 = vst [vmem:[#allocation2 + $0x178] sm:$0xff] %v11962
    %12027 = vst [vmem:[#allocation2 + $0x180] sm:$0xff] %v11963
    %12028 = vst [vmem:[#allocation2 + $0x188] sm:$0xff] %v11964
    %12029 = vst [vmem:[#allocation2 + $0x190] sm:$0xff] %v11965
    %12030 = vst [vmem:[#allocation2 + $0x198] sm:$0xff] %v11966
    %12031 = vst [vmem:[#allocation2 + $0x1a0] sm:$0xff] %v11967
    %12032 = vst [vmem:[#allocation2 + $0x1a8] sm:$0xff] %v11968
    %12033 = vst [vmem:[#allocation2 + $0x1b0] sm:$0xff] %v11969
    %12034 = vst [vmem:[#allocation2 + $0x1b8] sm:$0xff] %v11970
    %12035 = vst [vmem:[#allocation2 + $0x1c0] sm:$0xff] %v11971
    %12036 = vst [vmem:[#allocation2 + $0x1c8] sm:$0xff] %v11972
    %12037 = vst [vmem:[#allocation2 + $0x1d0] sm:$0xff] %v11973
    %12038 = vst [vmem:[#allocation2 + $0x1d8] sm:$0xff] %v11974
    %12039 = vst [vmem:[#allocation2 + $0x1e0] sm:$0xff] %v11975
    %12040 = vst [vmem:[#allocation2 + $0x1e8] sm:$0xff] %v11976
    %12041 = vst [vmem:[#allocation2 + $0x1f0] sm:$0xff] %v11977
    %12042 = vst [vmem:[#allocation2 + $0x1f8] sm:$0xff] %v11978
    // Predicated region
    $region18: #{resnet_block_forward.1} parent=1 // pred_check
      _
    $region19: #{resnet_block_forward.1} parent=1 // pred_check_branch
      %12044 = sbr.rel (0) target = $region21
    $region20: #{resnet_block_forward.1} parent=1 // pred_region
      %s12046 = ssub.s32 8192, 8192
      %12047 = vsyncadd [#allocation3], %s12046
      %s12048 = sshll.u32 [#allocation2], 4
      %s12049 = int_to_ptr.vmem [resolvable:$true] %s12048
      %12054 = dma.vmem_to_hbm [thread:$0]  %s12049, 8192, %s4, [#allocation3], 128, 128, 8
    $region21: #{resnet_block_forward.1} parent=1 // pred_fallthru
      _
    // Predicated region
    $region22: #{resnet_block_forward.1} parent=1 // pred_check
      _
    $region23: #{resnet_block_forward.1} parent=1 // pred_check_branch
      %12056 = sbr.rel (0) target = $region25
    $region24: #{resnet_block_forward.1} parent=1 // pred_region
      %12057 = dma.done [#allocation3], 8192
    $region25: #{resnet_block_forward.1} parent=1 // pred_fallthru
      _
    %12058 = vsyncpa [#allocation3], 1

</llo_original>
